<compile_context>
chip_gen: v6e
topology: v6e:2x2x1
jax: 0.10.0
libtpu: 0.0.40
codegen_flags: <defaults>
</compile_context>

<pallas_src>
import functools

import jax
import jax.numpy as jnp
import numpy as np
from jax.experimental import pallas as pl
from jax.experimental.pallas import tpu as pltpu

EPS = 1e-5


# ---------------------------------------------------------------------------
# Fused Pallas kernel (built per static shape via closure)
# ---------------------------------------------------------------------------
def _make_kernel(N, H, W, Cin, Cout, groups, eps):
    HW = H * W
    PADF = W + 1                       # covers the max flat tap offset of +-(W+1)
    Cmax = max(Cin, Cout)
    gc_in, gc_out = Cin // groups, Cout // groups
    need_avg_in, need_avg_out = gc_in > 1, gc_out > 1
    inv_in, inv_out = 1.0 / (gc_in * HW), 1.0 / (gc_out * HW)

    def kernel(*refs):
        it = iter(refs)
        x_ref = next(it)                              # (N, Cin, HW)
        mask_ref = next(it)                           # (2, HW): [w>=1, w<=W-2]
        avg_i_ref = next(it) if need_avg_in else None
        g1_ref, be1_ref = next(it), next(it)
        w1_ref, b1_ref = next(it), next(it)
        avg_o_ref = next(it) if need_avg_out else None
        g2_ref, be2_ref = next(it), next(it)
        w2_ref, b2_ref = next(it), next(it)
        ws_ref, bs_ref = next(it), next(it)
        gs_ref, bes_ref = next(it), next(it)
        out_ref = next(it)                            # (N, Cout, HW)
        pad_ref = next(it)                            # (Cmax, HW + 2*PADF)
        col_ref = next(it)                            # (9*Cmax, HW)

        mask_l = mask_ref[0:1, :]                     # (1, HW)
        mask_r = mask_ref[1:2, :]

        # Zero only the pad borders, once; interiors are rewritten per conv.
        pad_ref[:, :PADF] = jnp.zeros((Cmax, PADF), jnp.float32)
        pad_ref[:, PADF + HW:] = jnp.zeros((Cmax, PADF), jnp.float32)

        def group_norm(x, gamma_ref, beta_ref, avg_ref, inv_cnt):
            """x: (C, HW) one batch. gamma/beta: (C, 1). avg: (C, C) or None."""
            s = jnp.sum(x, axis=-1, keepdims=True)             # (C, 1)
            sq = jnp.sum(x * x, axis=-1, keepdims=True)        # (C, 1)
            if avg_ref is None:                                # 1 channel / group
                mu, ex2 = s * inv_cnt, sq * inv_cnt
            else:                                              # group averaging dot
                mu = jnp.dot(avg_ref[...], s, preferred_element_type=jnp.float32)
                ex2 = jnp.dot(avg_ref[...], sq, preferred_element_type=jnp.float32)
            inv = jax.lax.rsqrt(ex2 - mu * mu + eps)
            return (x - mu) * inv * gamma_ref[...] + beta_ref[...]

        def conv3x3(xin, w_ref, b_ref):
            """xin: (C, HW) one batch; w_ref: (Cout, 9*C); b_ref: (Cout, 1)."""
            C = xin.shape[0]
            pad_ref[:C, PADF:PADF + HW] = xin
            for kh in range(3):
                for kw in range(3):
                    off = (kh - 1) * W + (kw - 1)
                    tap = pad_ref[:C, PADF + off:PADF + off + HW]
                    if kw == 0:
                        tap = tap * mask_l            # kill w-1 wrap at w == 0
                    elif kw == 2:
                        tap = tap * mask_r            # kill w+1 wrap at w == W-1
                    t = kh * 3 + kw
                    col_ref[t * C:(t + 1) * C, :] = tap
            # One big MXU dot: (Cout, 9C) @ (9C, HW)
            return jnp.dot(w_ref[...], col_ref[:9 * C, :],
                           preferred_element_type=jnp.float32) + b_ref[...]

        for n in range(N):                            # N == 2, unrolled at trace
            x = x_ref[n]                              # (Cin, HW)

            # main branch: GN -> ReLU -> conv1 -> GN -> ReLU -> conv2
            y = jnp.maximum(group_norm(x, g1_ref, be1_ref, avg_i_ref, inv_in), 0.0)
            c1 = conv3x3(y, w1_ref, b1_ref)           # (Cout, HW)
            z = jnp.maximum(group_norm(c1, g2_ref, be2_ref, avg_o_ref, inv_out), 0.0)
            c2 = conv3x3(z, w2_ref, b2_ref)

            # skip branch: conv -> GN
            sk = group_norm(conv3x3(x, ws_ref, bs_ref),
                            gs_ref, bes_ref, avg_o_ref, inv_out)

            out_ref[n] = c2 + sk                      # lane-dense (Cout, 256) store

    return kernel, PADF, Cmax, need_avg_in, need_avg_out


# ---------------------------------------------------------------------------
# Wrapper: PyTorch NCHW in/out (only free reshapes), parameter re-layout,
# single pallas_call.
# ---------------------------------------------------------------------------
def residual_conv_forward(x_nchw, params, *, input_dim, output_dim,
                          stride=1, padding=1, eps=EPS):
    # TODO(synk): stride > 1 (downsampling) needs strided tap gathers; this
    # kernel implements the stride=1, padding=1 configuration only.
    assert stride == 1 and padding == 1, "kernel implements stride=1, padding=1"
    groups = 1 if output_dim == 2 else 16

    N, Cin, H, W = x_nchw.shape
    Cout = output_dim
    assert Cin == input_dim and Cin % groups == 0 and Cout % groups == 0
    HW = H * W

    (g1, be1) = params["gn1"]
    (w1, b1) = params["conv1"]
    (g2, be2) = params["gn2"]
    (w2, b2) = params["conv2"]
    (ws, bs) = params["conv_skip"]
    (gs, bes) = params["gn_skip"]

    kernel, PADF, Cmax, need_avg_in, need_avg_out = _make_kernel(
        N, H, W, Cin, Cout, groups, eps)

    def wconv(w):      # (Cout, Cin, 3, 3) -> (Cout, 9*Cin), tap-major columns
        return jnp.transpose(w, (0, 2, 3, 1)).reshape(w.shape[0], -1)

    def col(v):        # (C,) -> (C, 1): per-channel params broadcast over lanes
        return v.reshape(-1, 1)

    def gavg(C):       # (C, C) group-averaging matrix incl. the 1/(gc*HW) factor
        gc = C // groups
        gid = np.arange(C) // gc
        return jnp.asarray(
            (gid[:, None] == gid[None, :]).astype(np.float32) / (gc * HW))

    # 0/1 lane masks that remove the horizontal wrap of the flattened taps.
    wpos = np.arange(HW) % W
    masks = jnp.asarray(np.stack([wpos >= 1, wpos <= W - 2]).astype(np.float32))

    x3 = x_nchw.reshape(N, Cin, HW).astype(jnp.float32)   # free reshape, no transpose

    args = [x3, masks]
    if need_avg_in:
        args.append(gavg(Cin))
    args += [col(g1), col(be1), wconv(w1), col(b1)]
    if need_avg_out:
        args.append(gavg(Cout))
    args += [col(g2), col(be2), wconv(w2), col(b2),
             wconv(ws), col(bs), col(gs), col(bes)]

    out3 = pl.pallas_call(
        kernel,
        out_shape=jax.ShapeDtypeStruct((N, Cout, HW), jnp.float32),
        scratch_shapes=[
            pltpu.VMEM((Cmax, HW + 2 * PADF), jnp.float32),   # shared padded slab
            pltpu.VMEM((9 * Cmax, HW), jnp.float32),          # im2col buffer
        ],
    )(*args)

    return out3.reshape(N, Cout, H, W)                        # free reshape -> NCHW


# ---------------------------------------------------------------------------
# Deterministic parameter init (PyTorch-like scales; GN affine randomized so
# the correctness check is non-trivial)
# ---------------------------------------------------------------------------
def init_params(key, input_dim, output_dim):
    ks = jax.random.split(key, 12)

    def conv_init(kw, kb, cout, cin):
        bound = 1.0 / np.sqrt(cin * 9)
        w = jax.random.uniform(kw, (cout, cin, 3, 3), jnp.float32, -bound, bound)
        b = jax.random.uniform(kb, (cout,), jnp.float32, -bound, bound)
        return w, b

    def gn_init(kg, kb, c):
        g = 1.0 + 0.1 * jax.random.normal(kg, (c,), jnp.float32)
        b = 0.1 * jax.random.normal(kb, (c,), jnp.float32)
        return g, b

    return {
        "gn1": gn_init(ks[0], ks[1], input_dim),
        "conv1": conv_init(ks[2], ks[3], output_dim, input_dim),
        "gn2": gn_init(ks[4], ks[5], output_dim),
        "conv2": conv_init(ks[6], ks[7], output_dim, output_dim),
        "conv_skip": conv_init(ks[8], ks[9], output_dim, input_dim),
        "gn_skip": gn_init(ks[10], ks[11], output_dim),
    }


# ---------------------------------------------------------------------------
# Pure-JAX reference (mirrors the PyTorch module exactly)
# ---------------------------------------------------------------------------
def residual_conv_ref(x, params, *, input_dim, output_dim,
                      stride=1, padding=1, eps=EPS):
    groups = 1 if output_dim == 2 else 16

    def group_norm(x, gamma, beta):
        n, c, h, w = x.shape
        xg = x.reshape(n, groups, c // groups, h, w)
        mu = xg.mean(axis=(2, 3, 4), keepdims=True)
        var = xg.var(axis=(2, 3, 4), keepdims=True)   # biased, like PyTorch
        xn = ((xg - mu) / jnp.sqrt(var + eps)).reshape(n, c, h, w)
        return xn * gamma[None, :, None, None] + beta[None, :, None, None]

    def conv(x, w, b, s, p):
        y = jax.lax.conv_general_dilated(
            x, w, window_strides=(s, s), padding=[(p, p), (p, p)],
            dimension_numbers=("NCHW", "OIHW", "NCHW"))
        return y + b[None, :, None, None]

    (g1, be1) = params["gn1"]
    (w1, b1) = params["conv1"]
    (g2, be2) = params["gn2"]
    (w2, b2) = params["conv2"]
    (ws, bs) = params["conv_skip"]
    (gs, bes) = params["gn_skip"]

    y = jax.nn.relu(group_norm(x, g1, be1))
    y = conv(y, w1, b1, stride, padding)
    y = jax.nn.relu(group_norm(y, g2, be2))
    y = conv(y, w2, b2, 1, 1)
    s = group_norm(conv(x, ws, bs, stride, 1), gs, bes)
    return y + s


# ---------------------------------------------------------------------------
if __name__ == "__main__":
    INPUT_DIM, OUTPUT_DIM = 16, 32
    STRIDE, PADDING = 1, 1
    N, H, W = 2, 16, 16

    key = jax.random.PRNGKey(0)
    kp, kx = jax.random.split(key)
    params = init_params(kp, INPUT_DIM, OUTPUT_DIM)
    x = jax.random.normal(kx, (N, INPUT_DIM, H, W), jnp.float32)

    fwd = jax.jit(functools.partial(
        residual_conv_forward, input_dim=INPUT_DIM, output_dim=OUTPUT_DIM,
        stride=STRIDE, padding=PADDING))
    out = jax.block_until_ready(fwd(x, params))
    assert out.shape == (N, OUTPUT_DIM, H, W), out.shape

    ref = residual_conv_ref(x, params, input_dim=INPUT_DIM,
                            output_dim=OUTPUT_DIM, stride=STRIDE,
                            padding=PADDING)
    max_err = jnp.max(jnp.abs(out - ref))
    assert jnp.allclose(out, ref, atol=1e-3, rtol=1e-3), f"max abs err {max_err}"
    print("KERNEL_OK")
</pallas_src>

<mosaic_0001>
module attributes {stable_mosaic.version = 11 : i64} {
  func.func @kernel(%arg0: memref<2x16x256xf32, #tpu.memory_space<vmem>>, %arg1: memref<2x256xf32, #tpu.memory_space<vmem>>, %arg2: memref<16x1xf32, #tpu.memory_space<vmem>>, %arg3: memref<16x1xf32, #tpu.memory_space<vmem>>, %arg4: memref<32x144xf32, #tpu.memory_space<vmem>>, %arg5: memref<32x1xf32, #tpu.memory_space<vmem>>, %arg6: memref<32x32xf32, #tpu.memory_space<vmem>>, %arg7: memref<32x1xf32, #tpu.memory_space<vmem>>, %arg8: memref<32x1xf32, #tpu.memory_space<vmem>>, %arg9: memref<32x288xf32, #tpu.memory_space<vmem>>, %arg10: memref<32x1xf32, #tpu.memory_space<vmem>>, %arg11: memref<32x144xf32, #tpu.memory_space<vmem>>, %arg12: memref<32x1xf32, #tpu.memory_space<vmem>>, %arg13: memref<32x1xf32, #tpu.memory_space<vmem>>, %arg14: memref<32x1xf32, #tpu.memory_space<vmem>>, %arg15: memref<2x32x256xf32, #tpu.memory_space<vmem>>, %arg16: memref<32x290xf32, #tpu.memory_space<vmem>>, %arg17: memref<288x256xf32, #tpu.memory_space<vmem>>) attributes {dimension_semantics = [], scalar_prefetch = 0 : i64, scratch_operands = 2 : i64, tpu.core_type = #tpu.core_type<tc>} {
    %c0 = arith.constant 0 : index
    %c0_0 = arith.constant 0 : index
    %0 = vector.load %arg1[%c0, %c0_0] : memref<2x256xf32, #tpu.memory_space<vmem>>, vector<1x256xf32>
    %c1 = arith.constant 1 : index
    %c0_1 = arith.constant 0 : index
    %1 = vector.load %arg1[%c1, %c0_1] : memref<2x256xf32, #tpu.memory_space<vmem>>, vector<1x256xf32>
    %cst = arith.constant 0.000000e+00 : f32
    %2 = vector.broadcast %cst : f32 to vector<32x17xf32>
    %c0_2 = arith.constant 0 : index
    %c0_3 = arith.constant 0 : index
    %3 = vector.load %arg16[%c0_2, %c0_3] : memref<32x290xf32, #tpu.memory_space<vmem>>, vector<32x17xf32>
    tpu.vector_store %arg16[%c0_2, %c0_3], %2 {strides = array<i32>} : memref<32x290xf32, #tpu.memory_space<vmem>>, vector<32x17xf32>,
    %cst_4 = arith.constant 0.000000e+00 : f32
    %4 = vector.broadcast %cst_4 : f32 to vector<32x17xf32>
    %c0_5 = arith.constant 0 : index
    %c273 = arith.constant 273 : index
    %5 = vector.load %arg16[%c0_5, %c273] : memref<32x290xf32, #tpu.memory_space<vmem>>, vector<32x17xf32>
    tpu.vector_store %arg16[%c0_5, %c273], %4 {strides = array<i32>} : memref<32x290xf32, #tpu.memory_space<vmem>>, vector<32x17xf32>,
    %c0_6 = arith.constant 0 : index
    %c0_7 = arith.constant 0 : index
    %c0_8 = arith.constant 0 : index
    %6 = vector.load %arg0[%c0_6, %c0_7, %c0_8] : memref<2x16x256xf32, #tpu.memory_space<vmem>>, vector<1x16x256xf32>
    %7 = vector.shape_cast %6 : vector<1x16x256xf32> to vector<16x256xf32>
    %cst_9 = arith.constant dense<0.000000e+00> : vector<16xf32>
    %8 = vector.multi_reduction <add>, %7, %cst_9 [1] : vector<16x256xf32> to vector<16xf32>
    %9 = vector.shape_cast %8 : vector<16xf32> to vector<16x1xf32>
    %10 = arith.mulf %7, %7 : vector<16x256xf32>
    %cst_10 = arith.constant dense<0.000000e+00> : vector<16xf32>
    %11 = vector.multi_reduction <add>, %10, %cst_10 [1] : vector<16x256xf32> to vector<16xf32>
    %12 = vector.shape_cast %11 : vector<16xf32> to vector<16x1xf32>
    %cst_11 = arith.constant 3.906250e-03 : f32
    %13 = vector.broadcast %cst_11 : f32 to vector<16x1xf32>
    %14 = arith.mulf %9, %13 : vector<16x1xf32>
    %cst_12 = arith.constant 3.906250e-03 : f32
    %15 = vector.broadcast %cst_12 : f32 to vector<16x1xf32>
    %16 = arith.mulf %12, %15 : vector<16x1xf32>
    %17 = arith.mulf %14, %14 : vector<16x1xf32>
    %18 = arith.subf %16, %17 : vector<16x1xf32>
    %cst_13 = arith.constant 9.99999974E-6 : f32
    %19 = vector.broadcast %cst_13 : f32 to vector<16x1xf32>
    %20 = arith.addf %18, %19 : vector<16x1xf32>
    %21 = math.rsqrt %20 : vector<16x1xf32>
    %22 = vector.broadcast %14 : vector<16x1xf32> to vector<16x256xf32>
    %23 = arith.subf %7, %22 : vector<16x256xf32>
    %24 = vector.broadcast %21 : vector<16x1xf32> to vector<16x256xf32>
    %25 = arith.mulf %23, %24 : vector<16x256xf32>
    %c0_14 = arith.constant 0 : index
    %c0_15 = arith.constant 0 : index
    %26 = vector.load %arg2[%c0_14, %c0_15] : memref<16x1xf32, #tpu.memory_space<vmem>>, vector<16x1xf32>
    %27 = vector.broadcast %26 : vector<16x1xf32> to vector<16x256xf32>
    %28 = arith.mulf %25, %27 : vector<16x256xf32>
    %c0_16 = arith.constant 0 : index
    %c0_17 = arith.constant 0 : index
    %29 = vector.load %arg3[%c0_16, %c0_17] : memref<16x1xf32, #tpu.memory_space<vmem>>, vector<16x1xf32>
    %30 = vector.broadcast %29 : vector<16x1xf32> to vector<16x256xf32>
    %31 = arith.addf %28, %30 : vector<16x256xf32>
    %cst_18 = arith.constant 0.000000e+00 : f32
    %32 = vector.broadcast %cst_18 : f32 to vector<16x256xf32>
    %33 = arith.maximumf %31, %32 : vector<16x256xf32>
    %c0_19 = arith.constant 0 : index
    %c17 = arith.constant 17 : index
    %34 = vector.load %arg16[%c0_19, %c17] : memref<32x290xf32, #tpu.memory_space<vmem>>, vector<16x256xf32>
    tpu.vector_store %arg16[%c0_19, %c17], %33 {strides = array<i32>} : memref<32x290xf32, #tpu.memory_space<vmem>>, vector<16x256xf32>,
    %c0_20 = arith.constant 0 : index
    %c0_21 = arith.constant 0 : index
    %35 = vector.load %arg16[%c0_20, %c0_21] : memref<32x290xf32, #tpu.memory_space<vmem>>, vector<16x256xf32>
    %36 = vector.broadcast %0 : vector<1x256xf32> to vector<16x256xf32>
    %37 = arith.mulf %35, %36 : vector<16x256xf32>
    %c0_22 = arith.constant 0 : index
    %c0_23 = arith.constant 0 : index
    %38 = vector.load %arg17[%c0_22, %c0_23] : memref<288x256xf32, #tpu.memory_space<vmem>>, vector<16x256xf32>
    tpu.vector_store %arg17[%c0_22, %c0_23], %37 {strides = array<i32>} : memref<288x256xf32, #tpu.memory_space<vmem>>, vector<16x256xf32>,
    %c0_24 = arith.constant 0 : index
    %c1_25 = arith.constant 1 : index
    %39 = vector.load %arg16[%c0_24, %c1_25] : memref<32x290xf32, #tpu.memory_space<vmem>>, vector<16x256xf32>
    %c16 = arith.constant 16 : index
    %c0_26 = arith.constant 0 : index
    %40 = vector.load %arg17[%c16, %c0_26] : memref<288x256xf32, #tpu.memory_space<vmem>>, vector<16x256xf32>
    tpu.vector_store %arg17[%c16, %c0_26], %39 {strides = array<i32>} : memref<288x256xf32, #tpu.memory_space<vmem>>, vector<16x256xf32>,
    %c0_27 = arith.constant 0 : index
    %c2 = arith.constant 2 : index
    %41 = vector.load %arg16[%c0_27, %c2] : memref<32x290xf32, #tpu.memory_space<vmem>>, vector<16x256xf32>
    %42 = vector.broadcast %1 : vector<1x256xf32> to vector<16x256xf32>
    %43 = arith.mulf %41, %42 : vector<16x256xf32>
    %c32 = arith.constant 32 : index
    %c0_28 = arith.constant 0 : index
    %44 = vector.load %arg17[%c32, %c0_28] : memref<288x256xf32, #tpu.memory_space<vmem>>, vector<16x256xf32>
    tpu.vector_store %arg17[%c32, %c0_28], %43 {strides = array<i32>} : memref<288x256xf32, #tpu.memory_space<vmem>>, vector<16x256xf32>,
    %c0_29 = arith.constant 0 : index
    %c16_30 = arith.constant 16 : index
    %45 = vector.load %arg16[%c0_29, %c16_30] : memref<32x290xf32, #tpu.memory_space<vmem>>, vector<16x256xf32>
    %46 = vector.broadcast %0 : vector<1x256xf32> to vector<16x256xf32>
    %47 = arith.mulf %45, %46 : vector<16x256xf32>
    %c48 = arith.constant 48 : index
    %c0_31 = arith.constant 0 : index
    %48 = vector.load %arg17[%c48, %c0_31] : memref<288x256xf32, #tpu.memory_space<vmem>>, vector<16x256xf32>
    tpu.vector_store %arg17[%c48, %c0_31], %47 {strides = array<i32>} : memref<288x256xf32, #tpu.memory_space<vmem>>, vector<16x256xf32>,
    %c0_32 = arith.constant 0 : index
    %c17_33 = arith.constant 17 : index
    %49 = vector.load %arg16[%c0_32, %c17_33] : memref<32x290xf32, #tpu.memory_space<vmem>>, vector<16x256xf32>
    %c64 = arith.constant 64 : index
    %c0_34 = arith.constant 0 : index
    %50 = vector.load %arg17[%c64, %c0_34] : memref<288x256xf32, #tpu.memory_space<vmem>>, vector<16x256xf32>
    tpu.vector_store %arg17[%c64, %c0_34], %49 {strides = array<i32>} : memref<288x256xf32, #tpu.memory_space<vmem>>, vector<16x256xf32>,
    %c0_35 = arith.constant 0 : index
    %c18 = arith.constant 18 : index
    %51 = vector.load %arg16[%c0_35, %c18] : memref<32x290xf32, #tpu.memory_space<vmem>>, vector<16x256xf32>
    %52 = vector.broadcast %1 : vector<1x256xf32> to vector<16x256xf32>
    %53 = arith.mulf %51, %52 : vector<16x256xf32>
    %c80 = arith.constant 80 : index
    %c0_36 = arith.constant 0 : index
    %54 = vector.load %arg17[%c80, %c0_36] : memref<288x256xf32, #tpu.memory_space<vmem>>, vector<16x256xf32>
    tpu.vector_store %arg17[%c80, %c0_36], %53 {strides = array<i32>} : memref<288x256xf32, #tpu.memory_space<vmem>>, vector<16x256xf32>,
    %c0_37 = arith.constant 0 : index
    %c32_38 = arith.constant 32 : index
    %55 = vector.load %arg16[%c0_37, %c32_38] : memref<32x290xf32, #tpu.memory_space<vmem>>, vector<16x256xf32>
    %56 = vector.broadcast %0 : vector<1x256xf32> to vector<16x256xf32>
    %57 = arith.mulf %55, %56 : vector<16x256xf32>
    %c96 = arith.constant 96 : index
    %c0_39 = arith.constant 0 : index
    %58 = vector.load %arg17[%c96, %c0_39] : memref<288x256xf32, #tpu.memory_space<vmem>>, vector<16x256xf32>
    tpu.vector_store %arg17[%c96, %c0_39], %57 {strides = array<i32>} : memref<288x256xf32, #tpu.memory_space<vmem>>, vector<16x256xf32>,
    %c0_40 = arith.constant 0 : index
    %c33 = arith.constant 33 : index
    %59 = vector.load %arg16[%c0_40, %c33] : memref<32x290xf32, #tpu.memory_space<vmem>>, vector<16x256xf32>
    %c112 = arith.constant 112 : index
    %c0_41 = arith.constant 0 : index
    %60 = vector.load %arg17[%c112, %c0_41] : memref<288x256xf32, #tpu.memory_space<vmem>>, vector<16x256xf32>
    tpu.vector_store %arg17[%c112, %c0_41], %59 {strides = array<i32>} : memref<288x256xf32, #tpu.memory_space<vmem>>, vector<16x256xf32>,
    %c0_42 = arith.constant 0 : index
    %c34 = arith.constant 34 : index
    %61 = vector.load %arg16[%c0_42, %c34] : memref<32x290xf32, #tpu.memory_space<vmem>>, vector<16x256xf32>
    %62 = vector.broadcast %1 : vector<1x256xf32> to vector<16x256xf32>
    %63 = arith.mulf %61, %62 : vector<16x256xf32>
    %c128 = arith.constant 128 : index
    %c0_43 = arith.constant 0 : index
    %64 = vector.load %arg17[%c128, %c0_43] : memref<288x256xf32, #tpu.memory_space<vmem>>, vector<16x256xf32>
    tpu.vector_store %arg17[%c128, %c0_43], %63 {strides = array<i32>} : memref<288x256xf32, #tpu.memory_space<vmem>>, vector<16x256xf32>,
    %c0_44 = arith.constant 0 : index
    %c0_45 = arith.constant 0 : index
    %65 = vector.load %arg4[%c0_44, %c0_45] : memref<32x144xf32, #tpu.memory_space<vmem>>, vector<32x144xf32>
    %c0_46 = arith.constant 0 : index
    %c0_47 = arith.constant 0 : index
    %66 = vector.load %arg17[%c0_46, %c0_47] : memref<288x256xf32, #tpu.memory_space<vmem>>, vector<144x256xf32>
    %cst_48 = arith.constant dense<0.000000e+00> : vector<32x256xf32>
    %67 = tpu.matmul %65, %66, %cst_48 {dimension_numbers = #tpu.dot_dimension_numbers<[1], [0], [0], [1], [0, 0, 1, 1], [], []>} : vector<32x144xf32>, vector<144x256xf32>, vector<32x256xf32> -> vector<32x256xf32>
    %c0_49 = arith.constant 0 : index
    %c0_50 = arith.constant 0 : index
    %68 = vector.load %arg5[%c0_49, %c0_50] : memref<32x1xf32, #tpu.memory_space<vmem>>, vector<32x1xf32>
    %69 = vector.broadcast %68 : vector<32x1xf32> to vector<32x256xf32>
    %70 = arith.addf %67, %69 : vector<32x256xf32>
    %cst_51 = arith.constant dense<0.000000e+00> : vector<32xf32>
    %71 = vector.multi_reduction <add>, %70, %cst_51 [1] : vector<32x256xf32> to vector<32xf32>
    %72 = vector.shape_cast %71 : vector<32xf32> to vector<32x1xf32>
    %73 = arith.mulf %70, %70 : vector<32x256xf32>
    %cst_52 = arith.constant dense<0.000000e+00> : vector<32xf32>
    %74 = vector.multi_reduction <add>, %73, %cst_52 [1] : vector<32x256xf32> to vector<32xf32>
    %75 = vector.shape_cast %74 : vector<32xf32> to vector<32x1xf32>
    %c0_53 = arith.constant 0 : index
    %c0_54 = arith.constant 0 : index
    %76 = vector.load %arg6[%c0_53, %c0_54] : memref<32x32xf32, #tpu.memory_space<vmem>>, vector<32x32xf32>
    %cst_55 = arith.constant dense<0.000000e+00> : vector<32x1xf32>
    %77 = tpu.matmul %76, %72, %cst_55 {dimension_numbers = #tpu.dot_dimension_numbers<[1], [0], [0], [1], [0, 0, 1, 1], [], []>} : vector<32x32xf32>, vector<32x1xf32>, vector<32x1xf32> -> vector<32x1xf32>
    %c0_56 = arith.constant 0 : index
    %c0_57 = arith.constant 0 : index
    %78 = vector.load %arg6[%c0_56, %c0_57] : memref<32x32xf32, #tpu.memory_space<vmem>>, vector<32x32xf32>
    %cst_58 = arith.constant dense<0.000000e+00> : vector<32x1xf32>
    %79 = tpu.matmul %78, %75, %cst_58 {dimension_numbers = #tpu.dot_dimension_numbers<[1], [0], [0], [1], [0, 0, 1, 1], [], []>} : vector<32x32xf32>, vector<32x1xf32>, vector<32x1xf32> -> vector<32x1xf32>
    %80 = arith.mulf %77, %77 : vector<32x1xf32>
    %81 = arith.subf %79, %80 : vector<32x1xf32>
    %cst_59 = arith.constant 9.99999974E-6 : f32
    %82 = vector.broadcast %cst_59 : f32 to vector<32x1xf32>
    %83 = arith.addf %81, %82 : vector<32x1xf32>
    %84 = math.rsqrt %83 : vector<32x1xf32>
    %85 = vector.broadcast %77 : vector<32x1xf32> to vector<32x256xf32>
    %86 = arith.subf %70, %85 : vector<32x256xf32>
    %87 = vector.broadcast %84 : vector<32x1xf32> to vector<32x256xf32>
    %88 = arith.mulf %86, %87 : vector<32x256xf32>
    %c0_60 = arith.constant 0 : index
    %c0_61 = arith.constant 0 : index
    %89 = vector.load %arg7[%c0_60, %c0_61] : memref<32x1xf32, #tpu.memory_space<vmem>>, vector<32x1xf32>
    %90 = vector.broadcast %89 : vector<32x1xf32> to vector<32x256xf32>
    %91 = arith.mulf %88, %90 : vector<32x256xf32>
    %c0_62 = arith.constant 0 : index
    %c0_63 = arith.constant 0 : index
    %92 = vector.load %arg8[%c0_62, %c0_63] : memref<32x1xf32, #tpu.memory_space<vmem>>, vector<32x1xf32>
    %93 = vector.broadcast %92 : vector<32x1xf32> to vector<32x256xf32>
    %94 = arith.addf %91, %93 : vector<32x256xf32>
    %cst_64 = arith.constant 0.000000e+00 : f32
    %95 = vector.broadcast %cst_64 : f32 to vector<32x256xf32>
    %96 = arith.maximumf %94, %95 : vector<32x256xf32>
    %c0_65 = arith.constant 0 : index
    %c17_66 = arith.constant 17 : index
    %97 = vector.load %arg16[%c0_65, %c17_66] : memref<32x290xf32, #tpu.memory_space<vmem>>, vector<32x256xf32>
    tpu.vector_store %arg16[%c0_65, %c17_66], %96 {strides = array<i32>} : memref<32x290xf32, #tpu.memory_space<vmem>>, vector<32x256xf32>,
    %c0_67 = arith.constant 0 : index
    %c0_68 = arith.constant 0 : index
    %98 = vector.load %arg16[%c0_67, %c0_68] : memref<32x290xf32, #tpu.memory_space<vmem>>, vector<32x256xf32>
    %99 = vector.broadcast %0 : vector<1x256xf32> to vector<32x256xf32>
    %100 = arith.mulf %98, %99 : vector<32x256xf32>
    %c0_69 = arith.constant 0 : index
    %c0_70 = arith.constant 0 : index
    %101 = vector.load %arg17[%c0_69, %c0_70] : memref<288x256xf32, #tpu.memory_space<vmem>>, vector<32x256xf32>
    tpu.vector_store %arg17[%c0_69, %c0_70], %100 {strides = array<i32>} : memref<288x256xf32, #tpu.memory_space<vmem>>, vector<32x256xf32>,
    %c0_71 = arith.constant 0 : index
    %c1_72 = arith.constant 1 : index
    %102 = vector.load %arg16[%c0_71, %c1_72] : memref<32x290xf32, #tpu.memory_space<vmem>>, vector<32x256xf32>
    %c32_73 = arith.constant 32 : index
    %c0_74 = arith.constant 0 : index
    %103 = vector.load %arg17[%c32_73, %c0_74] : memref<288x256xf32, #tpu.memory_space<vmem>>, vector<32x256xf32>
    tpu.vector_store %arg17[%c32_73, %c0_74], %102 {strides = array<i32>} : memref<288x256xf32, #tpu.memory_space<vmem>>, vector<32x256xf32>,
    %c0_75 = arith.constant 0 : index
    %c2_76 = arith.constant 2 : index
    %104 = vector.load %arg16[%c0_75, %c2_76] : memref<32x290xf32, #tpu.memory_space<vmem>>, vector<32x256xf32>
    %105 = vector.broadcast %1 : vector<1x256xf32> to vector<32x256xf32>
    %106 = arith.mulf %104, %105 : vector<32x256xf32>
    %c64_77 = arith.constant 64 : index
    %c0_78 = arith.constant 0 : index
    %107 = vector.load %arg17[%c64_77, %c0_78] : memref<288x256xf32, #tpu.memory_space<vmem>>, vector<32x256xf32>
    tpu.vector_store %arg17[%c64_77, %c0_78], %106 {strides = array<i32>} : memref<288x256xf32, #tpu.memory_space<vmem>>, vector<32x256xf32>,
    %c0_79 = arith.constant 0 : index
    %c16_80 = arith.constant 16 : index
    %108 = vector.load %arg16[%c0_79, %c16_80] : memref<32x290xf32, #tpu.memory_space<vmem>>, vector<32x256xf32>
    %109 = vector.broadcast %0 : vector<1x256xf32> to vector<32x256xf32>
    %110 = arith.mulf %108, %109 : vector<32x256xf32>
    %c96_81 = arith.constant 96 : index
    %c0_82 = arith.constant 0 : index
    %111 = vector.load %arg17[%c96_81, %c0_82] : memref<288x256xf32, #tpu.memory_space<vmem>>, vector<32x256xf32>
    tpu.vector_store %arg17[%c96_81, %c0_82], %110 {strides = array<i32>} : memref<288x256xf32, #tpu.memory_space<vmem>>, vector<32x256xf32>,
    %c0_83 = arith.constant 0 : index
    %c17_84 = arith.constant 17 : index
    %112 = vector.load %arg16[%c0_83, %c17_84] : memref<32x290xf32, #tpu.memory_space<vmem>>, vector<32x256xf32>
    %c128_85 = arith.constant 128 : index
    %c0_86 = arith.constant 0 : index
    %113 = vector.load %arg17[%c128_85, %c0_86] : memref<288x256xf32, #tpu.memory_space<vmem>>, vector<32x256xf32>
    tpu.vector_store %arg17[%c128_85, %c0_86], %112 {strides = array<i32>} : memref<288x256xf32, #tpu.memory_space<vmem>>, vector<32x256xf32>,
    %c0_87 = arith.constant 0 : index
    %c18_88 = arith.constant 18 : index
    %114 = vector.load %arg16[%c0_87, %c18_88] : memref<32x290xf32, #tpu.memory_space<vmem>>, vector<32x256xf32>
    %115 = vector.broadcast %1 : vector<1x256xf32> to vector<32x256xf32>
    %116 = arith.mulf %114, %115 : vector<32x256xf32>
    %c160 = arith.constant 160 : index
    %c0_89 = arith.constant 0 : index
    %117 = vector.load %arg17[%c160, %c0_89] : memref<288x256xf32, #tpu.memory_space<vmem>>, vector<32x256xf32>
    tpu.vector_store %arg17[%c160, %c0_89], %116 {strides = array<i32>} : memref<288x256xf32, #tpu.memory_space<vmem>>, vector<32x256xf32>,
    %c0_90 = arith.constant 0 : index
    %c32_91 = arith.constant 32 : index
    %118 = vector.load %arg16[%c0_90, %c32_91] : memref<32x290xf32, #tpu.memory_space<vmem>>, vector<32x256xf32>
    %119 = vector.broadcast %0 : vector<1x256xf32> to vector<32x256xf32>
    %120 = arith.mulf %118, %119 : vector<32x256xf32>
    %c192 = arith.constant 192 : index
    %c0_92 = arith.constant 0 : index
    %121 = vector.load %arg17[%c192, %c0_92] : memref<288x256xf32, #tpu.memory_space<vmem>>, vector<32x256xf32>
    tpu.vector_store %arg17[%c192, %c0_92], %120 {strides = array<i32>} : memref<288x256xf32, #tpu.memory_space<vmem>>, vector<32x256xf32>,
    %c0_93 = arith.constant 0 : index
    %c33_94 = arith.constant 33 : index
    %122 = vector.load %arg16[%c0_93, %c33_94] : memref<32x290xf32, #tpu.memory_space<vmem>>, vector<32x256xf32>
    %c224 = arith.constant 224 : index
    %c0_95 = arith.constant 0 : index
    %123 = vector.load %arg17[%c224, %c0_95] : memref<288x256xf32, #tpu.memory_space<vmem>>, vector<32x256xf32>
    tpu.vector_store %arg17[%c224, %c0_95], %122 {strides = array<i32>} : memref<288x256xf32, #tpu.memory_space<vmem>>, vector<32x256xf32>,
    %c0_96 = arith.constant 0 : index
    %c34_97 = arith.constant 34 : index
    %124 = vector.load %arg16[%c0_96, %c34_97] : memref<32x290xf32, #tpu.memory_space<vmem>>, vector<32x256xf32>
    %125 = vector.broadcast %1 : vector<1x256xf32> to vector<32x256xf32>
    %126 = arith.mulf %124, %125 : vector<32x256xf32>
    %c256 = arith.constant 256 : index
    %c0_98 = arith.constant 0 : index
    %127 = vector.load %arg17[%c256, %c0_98] : memref<288x256xf32, #tpu.memory_space<vmem>>, vector<32x256xf32>
    tpu.vector_store %arg17[%c256, %c0_98], %126 {strides = array<i32>} : memref<288x256xf32, #tpu.memory_space<vmem>>, vector<32x256xf32>,
    %c0_99 = arith.constant 0 : index
    %c0_100 = arith.constant 0 : index
    %128 = vector.load %arg9[%c0_99, %c0_100] : memref<32x288xf32, #tpu.memory_space<vmem>>, vector<32x288xf32>
    %c0_101 = arith.constant 0 : index
    %c0_102 = arith.constant 0 : index
    %129 = vector.load %arg17[%c0_101, %c0_102] : memref<288x256xf32, #tpu.memory_space<vmem>>, vector<288x256xf32>
    %cst_103 = arith.constant dense<0.000000e+00> : vector<32x256xf32>
    %130 = tpu.matmul %128, %129, %cst_103 {dimension_numbers = #tpu.dot_dimension_numbers<[1], [0], [0], [1], [0, 0, 1, 1], [], []>} : vector<32x288xf32>, vector<288x256xf32>, vector<32x256xf32> -> vector<32x256xf32>
    %c0_104 = arith.constant 0 : index
    %c0_105 = arith.constant 0 : index
    %131 = vector.load %arg10[%c0_104, %c0_105] : memref<32x1xf32, #tpu.memory_space<vmem>>, vector<32x1xf32>
    %132 = vector.broadcast %131 : vector<32x1xf32> to vector<32x256xf32>
    %133 = arith.addf %130, %132 : vector<32x256xf32>
    %c0_106 = arith.constant 0 : index
    %c17_107 = arith.constant 17 : index
    %134 = vector.load %arg16[%c0_106, %c17_107] : memref<32x290xf32, #tpu.memory_space<vmem>>, vector<16x256xf32>
    tpu.vector_store %arg16[%c0_106, %c17_107], %7 {strides = array<i32>} : memref<32x290xf32, #tpu.memory_space<vmem>>, vector<16x256xf32>,
    %c0_108 = arith.constant 0 : index
    %c0_109 = arith.constant 0 : index
    %135 = vector.load %arg16[%c0_108, %c0_109] : memref<32x290xf32, #tpu.memory_space<vmem>>, vector<16x256xf32>
    %136 = vector.broadcast %0 : vector<1x256xf32> to vector<16x256xf32>
    %137 = arith.mulf %135, %136 : vector<16x256xf32>
    %c0_110 = arith.constant 0 : index
    %c0_111 = arith.constant 0 : index
    %138 = vector.load %arg17[%c0_110, %c0_111] : memref<288x256xf32, #tpu.memory_space<vmem>>, vector<16x256xf32>
    tpu.vector_store %arg17[%c0_110, %c0_111], %137 {strides = array<i32>} : memref<288x256xf32, #tpu.memory_space<vmem>>, vector<16x256xf32>,
    %c0_112 = arith.constant 0 : index
    %c1_113 = arith.constant 1 : index
    %139 = vector.load %arg16[%c0_112, %c1_113] : memref<32x290xf32, #tpu.memory_space<vmem>>, vector<16x256xf32>
    %c16_114 = arith.constant 16 : index
    %c0_115 = arith.constant 0 : index
    %140 = vector.load %arg17[%c16_114, %c0_115] : memref<288x256xf32, #tpu.memory_space<vmem>>, vector<16x256xf32>
    tpu.vector_store %arg17[%c16_114, %c0_115], %139 {strides = array<i32>} : memref<288x256xf32, #tpu.memory_space<vmem>>, vector<16x256xf32>,
    %c0_116 = arith.constant 0 : index
    %c2_117 = arith.constant 2 : index
    %141 = vector.load %arg16[%c0_116, %c2_117] : memref<32x290xf32, #tpu.memory_space<vmem>>, vector<16x256xf32>
    %142 = vector.broadcast %1 : vector<1x256xf32> to vector<16x256xf32>
    %143 = arith.mulf %141, %142 : vector<16x256xf32>
    %c32_118 = arith.constant 32 : index
    %c0_119 = arith.constant 0 : index
    %144 = vector.load %arg17[%c32_118, %c0_119] : memref<288x256xf32, #tpu.memory_space<vmem>>, vector<16x256xf32>
    tpu.vector_store %arg17[%c32_118, %c0_119], %143 {strides = array<i32>} : memref<288x256xf32, #tpu.memory_space<vmem>>, vector<16x256xf32>,
    %c0_120 = arith.constant 0 : index
    %c16_121 = arith.constant 16 : index
    %145 = vector.load %arg16[%c0_120, %c16_121] : memref<32x290xf32, #tpu.memory_space<vmem>>, vector<16x256xf32>
    %146 = vector.broadcast %0 : vector<1x256xf32> to vector<16x256xf32>
    %147 = arith.mulf %145, %146 : vector<16x256xf32>
    %c48_122 = arith.constant 48 : index
    %c0_123 = arith.constant 0 : index
    %148 = vector.load %arg17[%c48_122, %c0_123] : memref<288x256xf32, #tpu.memory_space<vmem>>, vector<16x256xf32>
    tpu.vector_store %arg17[%c48_122, %c0_123], %147 {strides = array<i32>} : memref<288x256xf32, #tpu.memory_space<vmem>>, vector<16x256xf32>,
    %c0_124 = arith.constant 0 : index
    %c17_125 = arith.constant 17 : index
    %149 = vector.load %arg16[%c0_124, %c17_125] : memref<32x290xf32, #tpu.memory_space<vmem>>, vector<16x256xf32>
    %c64_126 = arith.constant 64 : index
    %c0_127 = arith.constant 0 : index
    %150 = vector.load %arg17[%c64_126, %c0_127] : memref<288x256xf32, #tpu.memory_space<vmem>>, vector<16x256xf32>
    tpu.vector_store %arg17[%c64_126, %c0_127], %149 {strides = array<i32>} : memref<288x256xf32, #tpu.memory_space<vmem>>, vector<16x256xf32>,
    %c0_128 = arith.constant 0 : index
    %c18_129 = arith.constant 18 : index
    %151 = vector.load %arg16[%c0_128, %c18_129] : memref<32x290xf32, #tpu.memory_space<vmem>>, vector<16x256xf32>
    %152 = vector.broadcast %1 : vector<1x256xf32> to vector<16x256xf32>
    %153 = arith.mulf %151, %152 : vector<16x256xf32>
    %c80_130 = arith.constant 80 : index
    %c0_131 = arith.constant 0 : index
    %154 = vector.load %arg17[%c80_130, %c0_131] : memref<288x256xf32, #tpu.memory_space<vmem>>, vector<16x256xf32>
    tpu.vector_store %arg17[%c80_130, %c0_131], %153 {strides = array<i32>} : memref<288x256xf32, #tpu.memory_space<vmem>>, vector<16x256xf32>,
    %c0_132 = arith.constant 0 : index
    %c32_133 = arith.constant 32 : index
    %155 = vector.load %arg16[%c0_132, %c32_133] : memref<32x290xf32, #tpu.memory_space<vmem>>, vector<16x256xf32>
    %156 = vector.broadcast %0 : vector<1x256xf32> to vector<16x256xf32>
    %157 = arith.mulf %155, %156 : vector<16x256xf32>
    %c96_134 = arith.constant 96 : index
    %c0_135 = arith.constant 0 : index
    %158 = vector.load %arg17[%c96_134, %c0_135] : memref<288x256xf32, #tpu.memory_space<vmem>>, vector<16x256xf32>
    tpu.vector_store %arg17[%c96_134, %c0_135], %157 {strides = array<i32>} : memref<288x256xf32, #tpu.memory_space<vmem>>, vector<16x256xf32>,
    %c0_136 = arith.constant 0 : index
    %c33_137 = arith.constant 33 : index
    %159 = vector.load %arg16[%c0_136, %c33_137] : memref<32x290xf32, #tpu.memory_space<vmem>>, vector<16x256xf32>
    %c112_138 = arith.constant 112 : index
    %c0_139 = arith.constant 0 : index
    %160 = vector.load %arg17[%c112_138, %c0_139] : memref<288x256xf32, #tpu.memory_space<vmem>>, vector<16x256xf32>
    tpu.vector_store %arg17[%c112_138, %c0_139], %159 {strides = array<i32>} : memref<288x256xf32, #tpu.memory_space<vmem>>, vector<16x256xf32>,
    %c0_140 = arith.constant 0 : index
    %c34_141 = arith.constant 34 : index
    %161 = vector.load %arg16[%c0_140, %c34_141] : memref<32x290xf32, #tpu.memory_space<vmem>>, vector<16x256xf32>
    %162 = vector.broadcast %1 : vector<1x256xf32> to vector<16x256xf32>
    %163 = arith.mulf %161, %162 : vector<16x256xf32>
    %c128_142 = arith.constant 128 : index
    %c0_143 = arith.constant 0 : index
    %164 = vector.load %arg17[%c128_142, %c0_143] : memref<288x256xf32, #tpu.memory_space<vmem>>, vector<16x256xf32>
    tpu.vector_store %arg17[%c128_142, %c0_143], %163 {strides = array<i32>} : memref<288x256xf32, #tpu.memory_space<vmem>>, vector<16x256xf32>,
    %c0_144 = arith.constant 0 : index
    %c0_145 = arith.constant 0 : index
    %165 = vector.load %arg11[%c0_144, %c0_145] : memref<32x144xf32, #tpu.memory_space<vmem>>, vector<32x144xf32>
    %c0_146 = arith.constant 0 : index
    %c0_147 = arith.constant 0 : index
    %166 = vector.load %arg17[%c0_146, %c0_147] : memref<288x256xf32, #tpu.memory_space<vmem>>, vector<144x256xf32>
    %cst_148 = arith.constant dense<0.000000e+00> : vector<32x256xf32>
    %167 = tpu.matmul %165, %166, %cst_148 {dimension_numbers = #tpu.dot_dimension_numbers<[1], [0], [0], [1], [0, 0, 1, 1], [], []>} : vector<32x144xf32>, vector<144x256xf32>, vector<32x256xf32> -> vector<32x256xf32>
    %c0_149 = arith.constant 0 : index
    %c0_150 = arith.constant 0 : index
    %168 = vector.load %arg12[%c0_149, %c0_150] : memref<32x1xf32, #tpu.memory_space<vmem>>, vector<32x1xf32>
    %169 = vector.broadcast %168 : vector<32x1xf32> to vector<32x256xf32>
    %170 = arith.addf %167, %169 : vector<32x256xf32>
    %cst_151 = arith.constant dense<0.000000e+00> : vector<32xf32>
    %171 = vector.multi_reduction <add>, %170, %cst_151 [1] : vector<32x256xf32> to vector<32xf32>
    %172 = vector.shape_cast %171 : vector<32xf32> to vector<32x1xf32>
    %173 = arith.mulf %170, %170 : vector<32x256xf32>
    %cst_152 = arith.constant dense<0.000000e+00> : vector<32xf32>
    %174 = vector.multi_reduction <add>, %173, %cst_152 [1] : vector<32x256xf32> to vector<32xf32>
    %175 = vector.shape_cast %174 : vector<32xf32> to vector<32x1xf32>
    %c0_153 = arith.constant 0 : index
    %c0_154 = arith.constant 0 : index
    %176 = vector.load %arg6[%c0_153, %c0_154] : memref<32x32xf32, #tpu.memory_space<vmem>>, vector<32x32xf32>
    %cst_155 = arith.constant dense<0.000000e+00> : vector<32x1xf32>
    %177 = tpu.matmul %176, %172, %cst_155 {dimension_numbers = #tpu.dot_dimension_numbers<[1], [0], [0], [1], [0, 0, 1, 1], [], []>} : vector<32x32xf32>, vector<32x1xf32>, vector<32x1xf32> -> vector<32x1xf32>
    %c0_156 = arith.constant 0 : index
    %c0_157 = arith.constant 0 : index
    %178 = vector.load %arg6[%c0_156, %c0_157] : memref<32x32xf32, #tpu.memory_space<vmem>>, vector<32x32xf32>
    %cst_158 = arith.constant dense<0.000000e+00> : vector<32x1xf32>
    %179 = tpu.matmul %178, %175, %cst_158 {dimension_numbers = #tpu.dot_dimension_numbers<[1], [0], [0], [1], [0, 0, 1, 1], [], []>} : vector<32x32xf32>, vector<32x1xf32>, vector<32x1xf32> -> vector<32x1xf32>
    %180 = arith.mulf %177, %177 : vector<32x1xf32>
    %181 = arith.subf %179, %180 : vector<32x1xf32>
    %cst_159 = arith.constant 9.99999974E-6 : f32
    %182 = vector.broadcast %cst_159 : f32 to vector<32x1xf32>
    %183 = arith.addf %181, %182 : vector<32x1xf32>
    %184 = math.rsqrt %183 : vector<32x1xf32>
    %185 = vector.broadcast %177 : vector<32x1xf32> to vector<32x256xf32>
    %186 = arith.subf %170, %185 : vector<32x256xf32>
    %187 = vector.broadcast %184 : vector<32x1xf32> to vector<32x256xf32>
    %188 = arith.mulf %186, %187 : vector<32x256xf32>
    %c0_160 = arith.constant 0 : index
    %c0_161 = arith.constant 0 : index
    %189 = vector.load %arg13[%c0_160, %c0_161] : memref<32x1xf32, #tpu.memory_space<vmem>>, vector<32x1xf32>
    %190 = vector.broadcast %189 : vector<32x1xf32> to vector<32x256xf32>
    %191 = arith.mulf %188, %190 : vector<32x256xf32>
    %c0_162 = arith.constant 0 : index
    %c0_163 = arith.constant 0 : index
    %192 = vector.load %arg14[%c0_162, %c0_163] : memref<32x1xf32, #tpu.memory_space<vmem>>, vector<32x1xf32>
    %193 = vector.broadcast %192 : vector<32x1xf32> to vector<32x256xf32>
    %194 = arith.addf %191, %193 : vector<32x256xf32>
    %195 = arith.addf %133, %194 : vector<32x256xf32>
    %c0_164 = arith.constant 0 : index
    %c0_165 = arith.constant 0 : index
    %c0_166 = arith.constant 0 : index
    %196 = vector.load %arg15[%c0_164, %c0_165, %c0_166] : memref<2x32x256xf32, #tpu.memory_space<vmem>>, vector<1x32x256xf32>
    %197 = vector.shape_cast %196 : vector<1x32x256xf32> to vector<32x256xf32>
    %198 = vector.shape_cast %195 : vector<32x256xf32> to vector<1x32x256xf32>
    tpu.vector_store %arg15[%c0_164, %c0_165, %c0_166], %198 {strides = array<i32>} : memref<2x32x256xf32, #tpu.memory_space<vmem>>, vector<1x32x256xf32>,
    %c1_167 = arith.constant 1 : index
    %c0_168 = arith.constant 0 : index
    %c0_169 = arith.constant 0 : index
    %199 = vector.load %arg0[%c1_167, %c0_168, %c0_169] : memref<2x16x256xf32, #tpu.memory_space<vmem>>, vector<1x16x256xf32>
    %200 = vector.shape_cast %199 : vector<1x16x256xf32> to vector<16x256xf32>
    %cst_170 = arith.constant dense<0.000000e+00> : vector<16xf32>
    %201 = vector.multi_reduction <add>, %200, %cst_170 [1] : vector<16x256xf32> to vector<16xf32>
    %202 = vector.shape_cast %201 : vector<16xf32> to vector<16x1xf32>
    %203 = arith.mulf %200, %200 : vector<16x256xf32>
    %cst_171 = arith.constant dense<0.000000e+00> : vector<16xf32>
    %204 = vector.multi_reduction <add>, %203, %cst_171 [1] : vector<16x256xf32> to vector<16xf32>
    %205 = vector.shape_cast %204 : vector<16xf32> to vector<16x1xf32>
    %cst_172 = arith.constant 3.906250e-03 : f32
    %206 = vector.broadcast %cst_172 : f32 to vector<16x1xf32>
    %207 = arith.mulf %202, %206 : vector<16x1xf32>
    %cst_173 = arith.constant 3.906250e-03 : f32
    %208 = vector.broadcast %cst_173 : f32 to vector<16x1xf32>
    %209 = arith.mulf %205, %208 : vector<16x1xf32>
    %210 = arith.mulf %207, %207 : vector<16x1xf32>
    %211 = arith.subf %209, %210 : vector<16x1xf32>
    %cst_174 = arith.constant 9.99999974E-6 : f32
    %212 = vector.broadcast %cst_174 : f32 to vector<16x1xf32>
    %213 = arith.addf %211, %212 : vector<16x1xf32>
    %214 = math.rsqrt %213 : vector<16x1xf32>
    %215 = vector.broadcast %207 : vector<16x1xf32> to vector<16x256xf32>
    %216 = arith.subf %200, %215 : vector<16x256xf32>
    %217 = vector.broadcast %214 : vector<16x1xf32> to vector<16x256xf32>
    %218 = arith.mulf %216, %217 : vector<16x256xf32>
    %c0_175 = arith.constant 0 : index
    %c0_176 = arith.constant 0 : index
    %219 = vector.load %arg2[%c0_175, %c0_176] : memref<16x1xf32, #tpu.memory_space<vmem>>, vector<16x1xf32>
    %220 = vector.broadcast %219 : vector<16x1xf32> to vector<16x256xf32>
    %221 = arith.mulf %218, %220 : vector<16x256xf32>
    %c0_177 = arith.constant 0 : index
    %c0_178 = arith.constant 0 : index
    %222 = vector.load %arg3[%c0_177, %c0_178] : memref<16x1xf32, #tpu.memory_space<vmem>>, vector<16x1xf32>
    %223 = vector.broadcast %222 : vector<16x1xf32> to vector<16x256xf32>
    %224 = arith.addf %221, %223 : vector<16x256xf32>
    %cst_179 = arith.constant 0.000000e+00 : f32
    %225 = vector.broadcast %cst_179 : f32 to vector<16x256xf32>
    %226 = arith.maximumf %224, %225 : vector<16x256xf32>
    %c0_180 = arith.constant 0 : index
    %c17_181 = arith.constant 17 : index
    %227 = vector.load %arg16[%c0_180, %c17_181] : memref<32x290xf32, #tpu.memory_space<vmem>>, vector<16x256xf32>
    tpu.vector_store %arg16[%c0_180, %c17_181], %226 {strides = array<i32>} : memref<32x290xf32, #tpu.memory_space<vmem>>, vector<16x256xf32>,
    %c0_182 = arith.constant 0 : index
    %c0_183 = arith.constant 0 : index
    %228 = vector.load %arg16[%c0_182, %c0_183] : memref<32x290xf32, #tpu.memory_space<vmem>>, vector<16x256xf32>
    %229 = vector.broadcast %0 : vector<1x256xf32> to vector<16x256xf32>
    %230 = arith.mulf %228, %229 : vector<16x256xf32>
    %c0_184 = arith.constant 0 : index
    %c0_185 = arith.constant 0 : index
    %231 = vector.load %arg17[%c0_184, %c0_185] : memref<288x256xf32, #tpu.memory_space<vmem>>, vector<16x256xf32>
    tpu.vector_store %arg17[%c0_184, %c0_185], %230 {strides = array<i32>} : memref<288x256xf32, #tpu.memory_space<vmem>>, vector<16x256xf32>,
    %c0_186 = arith.constant 0 : index
    %c1_187 = arith.constant 1 : index
    %232 = vector.load %arg16[%c0_186, %c1_187] : memref<32x290xf32, #tpu.memory_space<vmem>>, vector<16x256xf32>
    %c16_188 = arith.constant 16 : index
    %c0_189 = arith.constant 0 : index
    %233 = vector.load %arg17[%c16_188, %c0_189] : memref<288x256xf32, #tpu.memory_space<vmem>>, vector<16x256xf32>
    tpu.vector_store %arg17[%c16_188, %c0_189], %232 {strides = array<i32>} : memref<288x256xf32, #tpu.memory_space<vmem>>, vector<16x256xf32>,
    %c0_190 = arith.constant 0 : index
    %c2_191 = arith.constant 2 : index
    %234 = vector.load %arg16[%c0_190, %c2_191] : memref<32x290xf32, #tpu.memory_space<vmem>>, vector<16x256xf32>
    %235 = vector.broadcast %1 : vector<1x256xf32> to vector<16x256xf32>
    %236 = arith.mulf %234, %235 : vector<16x256xf32>
    %c32_192 = arith.constant 32 : index
    %c0_193 = arith.constant 0 : index
    %237 = vector.load %arg17[%c32_192, %c0_193] : memref<288x256xf32, #tpu.memory_space<vmem>>, vector<16x256xf32>
    tpu.vector_store %arg17[%c32_192, %c0_193], %236 {strides = array<i32>} : memref<288x256xf32, #tpu.memory_space<vmem>>, vector<16x256xf32>,
    %c0_194 = arith.constant 0 : index
    %c16_195 = arith.constant 16 : index
    %238 = vector.load %arg16[%c0_194, %c16_195] : memref<32x290xf32, #tpu.memory_space<vmem>>, vector<16x256xf32>
    %239 = vector.broadcast %0 : vector<1x256xf32> to vector<16x256xf32>
    %240 = arith.mulf %238, %239 : vector<16x256xf32>
    %c48_196 = arith.constant 48 : index
    %c0_197 = arith.constant 0 : index
    %241 = vector.load %arg17[%c48_196, %c0_197] : memref<288x256xf32, #tpu.memory_space<vmem>>, vector<16x256xf32>
    tpu.vector_store %arg17[%c48_196, %c0_197], %240 {strides = array<i32>} : memref<288x256xf32, #tpu.memory_space<vmem>>, vector<16x256xf32>,
    %c0_198 = arith.constant 0 : index
    %c17_199 = arith.constant 17 : index
    %242 = vector.load %arg16[%c0_198, %c17_199] : memref<32x290xf32, #tpu.memory_space<vmem>>, vector<16x256xf32>
    %c64_200 = arith.constant 64 : index
    %c0_201 = arith.constant 0 : index
    %243 = vector.load %arg17[%c64_200, %c0_201] : memref<288x256xf32, #tpu.memory_space<vmem>>, vector<16x256xf32>
    tpu.vector_store %arg17[%c64_200, %c0_201], %242 {strides = array<i32>} : memref<288x256xf32, #tpu.memory_space<vmem>>, vector<16x256xf32>,
    %c0_202 = arith.constant 0 : index
    %c18_203 = arith.constant 18 : index
    %244 = vector.load %arg16[%c0_202, %c18_203] : memref<32x290xf32, #tpu.memory_space<vmem>>, vector<16x256xf32>
    %245 = vector.broadcast %1 : vector<1x256xf32> to vector<16x256xf32>
    %246 = arith.mulf %244, %245 : vector<16x256xf32>
    %c80_204 = arith.constant 80 : index
    %c0_205 = arith.constant 0 : index
    %247 = vector.load %arg17[%c80_204, %c0_205] : memref<288x256xf32, #tpu.memory_space<vmem>>, vector<16x256xf32>
    tpu.vector_store %arg17[%c80_204, %c0_205], %246 {strides = array<i32>} : memref<288x256xf32, #tpu.memory_space<vmem>>, vector<16x256xf32>,
    %c0_206 = arith.constant 0 : index
    %c32_207 = arith.constant 32 : index
    %248 = vector.load %arg16[%c0_206, %c32_207] : memref<32x290xf32, #tpu.memory_space<vmem>>, vector<16x256xf32>
    %249 = vector.broadcast %0 : vector<1x256xf32> to vector<16x256xf32>
    %250 = arith.mulf %248, %249 : vector<16x256xf32>
    %c96_208 = arith.constant 96 : index
    %c0_209 = arith.constant 0 : index
    %251 = vector.load %arg17[%c96_208, %c0_209] : memref<288x256xf32, #tpu.memory_space<vmem>>, vector<16x256xf32>
    tpu.vector_store %arg17[%c96_208, %c0_209], %250 {strides = array<i32>} : memref<288x256xf32, #tpu.memory_space<vmem>>, vector<16x256xf32>,
    %c0_210 = arith.constant 0 : index
    %c33_211 = arith.constant 33 : index
    %252 = vector.load %arg16[%c0_210, %c33_211] : memref<32x290xf32, #tpu.memory_space<vmem>>, vector<16x256xf32>
    %c112_212 = arith.constant 112 : index
    %c0_213 = arith.constant 0 : index
    %253 = vector.load %arg17[%c112_212, %c0_213] : memref<288x256xf32, #tpu.memory_space<vmem>>, vector<16x256xf32>
    tpu.vector_store %arg17[%c112_212, %c0_213], %252 {strides = array<i32>} : memref<288x256xf32, #tpu.memory_space<vmem>>, vector<16x256xf32>,
    %c0_214 = arith.constant 0 : index
    %c34_215 = arith.constant 34 : index
    %254 = vector.load %arg16[%c0_214, %c34_215] : memref<32x290xf32, #tpu.memory_space<vmem>>, vector<16x256xf32>
    %255 = vector.broadcast %1 : vector<1x256xf32> to vector<16x256xf32>
    %256 = arith.mulf %254, %255 : vector<16x256xf32>
    %c128_216 = arith.constant 128 : index
    %c0_217 = arith.constant 0 : index
    %257 = vector.load %arg17[%c128_216, %c0_217] : memref<288x256xf32, #tpu.memory_space<vmem>>, vector<16x256xf32>
    tpu.vector_store %arg17[%c128_216, %c0_217], %256 {strides = array<i32>} : memref<288x256xf32, #tpu.memory_space<vmem>>, vector<16x256xf32>,
    %c0_218 = arith.constant 0 : index
    %c0_219 = arith.constant 0 : index
    %258 = vector.load %arg4[%c0_218, %c0_219] : memref<32x144xf32, #tpu.memory_space<vmem>>, vector<32x144xf32>
    %c0_220 = arith.constant 0 : index
    %c0_221 = arith.constant 0 : index
    %259 = vector.load %arg17[%c0_220, %c0_221] : memref<288x256xf32, #tpu.memory_space<vmem>>, vector<144x256xf32>
    %cst_222 = arith.constant dense<0.000000e+00> : vector<32x256xf32>
    %260 = tpu.matmul %258, %259, %cst_222 {dimension_numbers = #tpu.dot_dimension_numbers<[1], [0], [0], [1], [0, 0, 1, 1], [], []>} : vector<32x144xf32>, vector<144x256xf32>, vector<32x256xf32> -> vector<32x256xf32>
    %c0_223 = arith.constant 0 : index
    %c0_224 = arith.constant 0 : index
    %261 = vector.load %arg5[%c0_223, %c0_224] : memref<32x1xf32, #tpu.memory_space<vmem>>, vector<32x1xf32>
    %262 = vector.broadcast %261 : vector<32x1xf32> to vector<32x256xf32>
    %263 = arith.addf %260, %262 : vector<32x256xf32>
    %cst_225 = arith.constant dense<0.000000e+00> : vector<32xf32>
    %264 = vector.multi_reduction <add>, %263, %cst_225 [1] : vector<32x256xf32> to vector<32xf32>
    %265 = vector.shape_cast %264 : vector<32xf32> to vector<32x1xf32>
    %266 = arith.mulf %263, %263 : vector<32x256xf32>
    %cst_226 = arith.constant dense<0.000000e+00> : vector<32xf32>
    %267 = vector.multi_reduction <add>, %266, %cst_226 [1] : vector<32x256xf32> to vector<32xf32>
    %268 = vector.shape_cast %267 : vector<32xf32> to vector<32x1xf32>
    %c0_227 = arith.constant 0 : index
    %c0_228 = arith.constant 0 : index
    %269 = vector.load %arg6[%c0_227, %c0_228] : memref<32x32xf32, #tpu.memory_space<vmem>>, vector<32x32xf32>
    %cst_229 = arith.constant dense<0.000000e+00> : vector<32x1xf32>
    %270 = tpu.matmul %269, %265, %cst_229 {dimension_numbers = #tpu.dot_dimension_numbers<[1], [0], [0], [1], [0, 0, 1, 1], [], []>} : vector<32x32xf32>, vector<32x1xf32>, vector<32x1xf32> -> vector<32x1xf32>
    %c0_230 = arith.constant 0 : index
    %c0_231 = arith.constant 0 : index
    %271 = vector.load %arg6[%c0_230, %c0_231] : memref<32x32xf32, #tpu.memory_space<vmem>>, vector<32x32xf32>
    %cst_232 = arith.constant dense<0.000000e+00> : vector<32x1xf32>
    %272 = tpu.matmul %271, %268, %cst_232 {dimension_numbers = #tpu.dot_dimension_numbers<[1], [0], [0], [1], [0, 0, 1, 1], [], []>} : vector<32x32xf32>, vector<32x1xf32>, vector<32x1xf32> -> vector<32x1xf32>
    %273 = arith.mulf %270, %270 : vector<32x1xf32>
    %274 = arith.subf %272, %273 : vector<32x1xf32>
    %cst_233 = arith.constant 9.99999974E-6 : f32
    %275 = vector.broadcast %cst_233 : f32 to vector<32x1xf32>
    %276 = arith.addf %274, %275 : vector<32x1xf32>
    %277 = math.rsqrt %276 : vector<32x1xf32>
    %278 = vector.broadcast %270 : vector<32x1xf32> to vector<32x256xf32>
    %279 = arith.subf %263, %278 : vector<32x256xf32>
    %280 = vector.broadcast %277 : vector<32x1xf32> to vector<32x256xf32>
    %281 = arith.mulf %279, %280 : vector<32x256xf32>
    %c0_234 = arith.constant 0 : index
    %c0_235 = arith.constant 0 : index
    %282 = vector.load %arg7[%c0_234, %c0_235] : memref<32x1xf32, #tpu.memory_space<vmem>>, vector<32x1xf32>
    %283 = vector.broadcast %282 : vector<32x1xf32> to vector<32x256xf32>
    %284 = arith.mulf %281, %283 : vector<32x256xf32>
    %c0_236 = arith.constant 0 : index
    %c0_237 = arith.constant 0 : index
    %285 = vector.load %arg8[%c0_236, %c0_237] : memref<32x1xf32, #tpu.memory_space<vmem>>, vector<32x1xf32>
    %286 = vector.broadcast %285 : vector<32x1xf32> to vector<32x256xf32>
    %287 = arith.addf %284, %286 : vector<32x256xf32>
    %cst_238 = arith.constant 0.000000e+00 : f32
    %288 = vector.broadcast %cst_238 : f32 to vector<32x256xf32>
    %289 = arith.maximumf %287, %288 : vector<32x256xf32>
    %c0_239 = arith.constant 0 : index
    %c17_240 = arith.constant 17 : index
    %290 = vector.load %arg16[%c0_239, %c17_240] : memref<32x290xf32, #tpu.memory_space<vmem>>, vector<32x256xf32>
    tpu.vector_store %arg16[%c0_239, %c17_240], %289 {strides = array<i32>} : memref<32x290xf32, #tpu.memory_space<vmem>>, vector<32x256xf32>,
    %c0_241 = arith.constant 0 : index
    %c0_242 = arith.constant 0 : index
    %291 = vector.load %arg16[%c0_241, %c0_242] : memref<32x290xf32, #tpu.memory_space<vmem>>, vector<32x256xf32>
    %292 = vector.broadcast %0 : vector<1x256xf32> to vector<32x256xf32>
    %293 = arith.mulf %291, %292 : vector<32x256xf32>
    %c0_243 = arith.constant 0 : index
    %c0_244 = arith.constant 0 : index
    %294 = vector.load %arg17[%c0_243, %c0_244] : memref<288x256xf32, #tpu.memory_space<vmem>>, vector<32x256xf32>
    tpu.vector_store %arg17[%c0_243, %c0_244], %293 {strides = array<i32>} : memref<288x256xf32, #tpu.memory_space<vmem>>, vector<32x256xf32>,
    %c0_245 = arith.constant 0 : index
    %c1_246 = arith.constant 1 : index
    %295 = vector.load %arg16[%c0_245, %c1_246] : memref<32x290xf32, #tpu.memory_space<vmem>>, vector<32x256xf32>
    %c32_247 = arith.constant 32 : index
    %c0_248 = arith.constant 0 : index
    %296 = vector.load %arg17[%c32_247, %c0_248] : memref<288x256xf32, #tpu.memory_space<vmem>>, vector<32x256xf32>
    tpu.vector_store %arg17[%c32_247, %c0_248], %295 {strides = array<i32>} : memref<288x256xf32, #tpu.memory_space<vmem>>, vector<32x256xf32>,
    %c0_249 = arith.constant 0 : index
    %c2_250 = arith.constant 2 : index
    %297 = vector.load %arg16[%c0_249, %c2_250] : memref<32x290xf32, #tpu.memory_space<vmem>>, vector<32x256xf32>
    %298 = vector.broadcast %1 : vector<1x256xf32> to vector<32x256xf32>
    %299 = arith.mulf %297, %298 : vector<32x256xf32>
    %c64_251 = arith.constant 64 : index
    %c0_252 = arith.constant 0 : index
    %300 = vector.load %arg17[%c64_251, %c0_252] : memref<288x256xf32, #tpu.memory_space<vmem>>, vector<32x256xf32>
    tpu.vector_store %arg17[%c64_251, %c0_252], %299 {strides = array<i32>} : memref<288x256xf32, #tpu.memory_space<vmem>>, vector<32x256xf32>,
    %c0_253 = arith.constant 0 : index
    %c16_254 = arith.constant 16 : index
    %301 = vector.load %arg16[%c0_253, %c16_254] : memref<32x290xf32, #tpu.memory_space<vmem>>, vector<32x256xf32>
    %302 = vector.broadcast %0 : vector<1x256xf32> to vector<32x256xf32>
    %303 = arith.mulf %301, %302 : vector<32x256xf32>
    %c96_255 = arith.constant 96 : index
    %c0_256 = arith.constant 0 : index
    %304 = vector.load %arg17[%c96_255, %c0_256] : memref<288x256xf32, #tpu.memory_space<vmem>>, vector<32x256xf32>
    tpu.vector_store %arg17[%c96_255, %c0_256], %303 {strides = array<i32>} : memref<288x256xf32, #tpu.memory_space<vmem>>, vector<32x256xf32>,
    %c0_257 = arith.constant 0 : index
    %c17_258 = arith.constant 17 : index
    %305 = vector.load %arg16[%c0_257, %c17_258] : memref<32x290xf32, #tpu.memory_space<vmem>>, vector<32x256xf32>
    %c128_259 = arith.constant 128 : index
    %c0_260 = arith.constant 0 : index
    %306 = vector.load %arg17[%c128_259, %c0_260] : memref<288x256xf32, #tpu.memory_space<vmem>>, vector<32x256xf32>
    tpu.vector_store %arg17[%c128_259, %c0_260], %305 {strides = array<i32>} : memref<288x256xf32, #tpu.memory_space<vmem>>, vector<32x256xf32>,
    %c0_261 = arith.constant 0 : index
    %c18_262 = arith.constant 18 : index
    %307 = vector.load %arg16[%c0_261, %c18_262] : memref<32x290xf32, #tpu.memory_space<vmem>>, vector<32x256xf32>
    %308 = vector.broadcast %1 : vector<1x256xf32> to vector<32x256xf32>
    %309 = arith.mulf %307, %308 : vector<32x256xf32>
    %c160_263 = arith.constant 160 : index
    %c0_264 = arith.constant 0 : index
    %310 = vector.load %arg17[%c160_263, %c0_264] : memref<288x256xf32, #tpu.memory_space<vmem>>, vector<32x256xf32>
    tpu.vector_store %arg17[%c160_263, %c0_264], %309 {strides = array<i32>} : memref<288x256xf32, #tpu.memory_space<vmem>>, vector<32x256xf32>,
    %c0_265 = arith.constant 0 : index
    %c32_266 = arith.constant 32 : index
    %311 = vector.load %arg16[%c0_265, %c32_266] : memref<32x290xf32, #tpu.memory_space<vmem>>, vector<32x256xf32>
    %312 = vector.broadcast %0 : vector<1x256xf32> to vector<32x256xf32>
    %313 = arith.mulf %311, %312 : vector<32x256xf32>
    %c192_267 = arith.constant 192 : index
    %c0_268 = arith.constant 0 : index
    %314 = vector.load %arg17[%c192_267, %c0_268] : memref<288x256xf32, #tpu.memory_space<vmem>>, vector<32x256xf32>
    tpu.vector_store %arg17[%c192_267, %c0_268], %313 {strides = array<i32>} : memref<288x256xf32, #tpu.memory_space<vmem>>, vector<32x256xf32>,
    %c0_269 = arith.constant 0 : index
    %c33_270 = arith.constant 33 : index
    %315 = vector.load %arg16[%c0_269, %c33_270] : memref<32x290xf32, #tpu.memory_space<vmem>>, vector<32x256xf32>
    %c224_271 = arith.constant 224 : index
    %c0_272 = arith.constant 0 : index
    %316 = vector.load %arg17[%c224_271, %c0_272] : memref<288x256xf32, #tpu.memory_space<vmem>>, vector<32x256xf32>
    tpu.vector_store %arg17[%c224_271, %c0_272], %315 {strides = array<i32>} : memref<288x256xf32, #tpu.memory_space<vmem>>, vector<32x256xf32>,
    %c0_273 = arith.constant 0 : index
    %c34_274 = arith.constant 34 : index
    %317 = vector.load %arg16[%c0_273, %c34_274] : memref<32x290xf32, #tpu.memory_space<vmem>>, vector<32x256xf32>
    %318 = vector.broadcast %1 : vector<1x256xf32> to vector<32x256xf32>
    %319 = arith.mulf %317, %318 : vector<32x256xf32>
    %c256_275 = arith.constant 256 : index
    %c0_276 = arith.constant 0 : index
    %320 = vector.load %arg17[%c256_275, %c0_276] : memref<288x256xf32, #tpu.memory_space<vmem>>, vector<32x256xf32>
    tpu.vector_store %arg17[%c256_275, %c0_276], %319 {strides = array<i32>} : memref<288x256xf32, #tpu.memory_space<vmem>>, vector<32x256xf32>,
    %c0_277 = arith.constant 0 : index
    %c0_278 = arith.constant 0 : index
    %321 = vector.load %arg9[%c0_277, %c0_278] : memref<32x288xf32, #tpu.memory_space<vmem>>, vector<32x288xf32>
    %c0_279 = arith.constant 0 : index
    %c0_280 = arith.constant 0 : index
    %322 = vector.load %arg17[%c0_279, %c0_280] : memref<288x256xf32, #tpu.memory_space<vmem>>, vector<288x256xf32>
    %cst_281 = arith.constant dense<0.000000e+00> : vector<32x256xf32>
    %323 = tpu.matmul %321, %322, %cst_281 {dimension_numbers = #tpu.dot_dimension_numbers<[1], [0], [0], [1], [0, 0, 1, 1], [], []>} : vector<32x288xf32>, vector<288x256xf32>, vector<32x256xf32> -> vector<32x256xf32>
    %c0_282 = arith.constant 0 : index
    %c0_283 = arith.constant 0 : index
    %324 = vector.load %arg10[%c0_282, %c0_283] : memref<32x1xf32, #tpu.memory_space<vmem>>, vector<32x1xf32>
    %325 = vector.broadcast %324 : vector<32x1xf32> to vector<32x256xf32>
    %326 = arith.addf %323, %325 : vector<32x256xf32>
    %c0_284 = arith.constant 0 : index
    %c17_285 = arith.constant 17 : index
    %327 = vector.load %arg16[%c0_284, %c17_285] : memref<32x290xf32, #tpu.memory_space<vmem>>, vector<16x256xf32>
    tpu.vector_store %arg16[%c0_284, %c17_285], %200 {strides = array<i32>} : memref<32x290xf32, #tpu.memory_space<vmem>>, vector<16x256xf32>,
    %c0_286 = arith.constant 0 : index
    %c0_287 = arith.constant 0 : index
    %328 = vector.load %arg16[%c0_286, %c0_287] : memref<32x290xf32, #tpu.memory_space<vmem>>, vector<16x256xf32>
    %329 = vector.broadcast %0 : vector<1x256xf32> to vector<16x256xf32>
    %330 = arith.mulf %328, %329 : vector<16x256xf32>
    %c0_288 = arith.constant 0 : index
    %c0_289 = arith.constant 0 : index
    %331 = vector.load %arg17[%c0_288, %c0_289] : memref<288x256xf32, #tpu.memory_space<vmem>>, vector<16x256xf32>
    tpu.vector_store %arg17[%c0_288, %c0_289], %330 {strides = array<i32>} : memref<288x256xf32, #tpu.memory_space<vmem>>, vector<16x256xf32>,
    %c0_290 = arith.constant 0 : index
    %c1_291 = arith.constant 1 : index
    %332 = vector.load %arg16[%c0_290, %c1_291] : memref<32x290xf32, #tpu.memory_space<vmem>>, vector<16x256xf32>
    %c16_292 = arith.constant 16 : index
    %c0_293 = arith.constant 0 : index
    %333 = vector.load %arg17[%c16_292, %c0_293] : memref<288x256xf32, #tpu.memory_space<vmem>>, vector<16x256xf32>
    tpu.vector_store %arg17[%c16_292, %c0_293], %332 {strides = array<i32>} : memref<288x256xf32, #tpu.memory_space<vmem>>, vector<16x256xf32>,
    %c0_294 = arith.constant 0 : index
    %c2_295 = arith.constant 2 : index
    %334 = vector.load %arg16[%c0_294, %c2_295] : memref<32x290xf32, #tpu.memory_space<vmem>>, vector<16x256xf32>
    %335 = vector.broadcast %1 : vector<1x256xf32> to vector<16x256xf32>
    %336 = arith.mulf %334, %335 : vector<16x256xf32>
    %c32_296 = arith.constant 32 : index
    %c0_297 = arith.constant 0 : index
    %337 = vector.load %arg17[%c32_296, %c0_297] : memref<288x256xf32, #tpu.memory_space<vmem>>, vector<16x256xf32>
    tpu.vector_store %arg17[%c32_296, %c0_297], %336 {strides = array<i32>} : memref<288x256xf32, #tpu.memory_space<vmem>>, vector<16x256xf32>,
    %c0_298 = arith.constant 0 : index
    %c16_299 = arith.constant 16 : index
    %338 = vector.load %arg16[%c0_298, %c16_299] : memref<32x290xf32, #tpu.memory_space<vmem>>, vector<16x256xf32>
    %339 = vector.broadcast %0 : vector<1x256xf32> to vector<16x256xf32>
    %340 = arith.mulf %338, %339 : vector<16x256xf32>
    %c48_300 = arith.constant 48 : index
    %c0_301 = arith.constant 0 : index
    %341 = vector.load %arg17[%c48_300, %c0_301] : memref<288x256xf32, #tpu.memory_space<vmem>>, vector<16x256xf32>
    tpu.vector_store %arg17[%c48_300, %c0_301], %340 {strides = array<i32>} : memref<288x256xf32, #tpu.memory_space<vmem>>, vector<16x256xf32>,
    %c0_302 = arith.constant 0 : index
    %c17_303 = arith.constant 17 : index
    %342 = vector.load %arg16[%c0_302, %c17_303] : memref<32x290xf32, #tpu.memory_space<vmem>>, vector<16x256xf32>
    %c64_304 = arith.constant 64 : index
    %c0_305 = arith.constant 0 : index
    %343 = vector.load %arg17[%c64_304, %c0_305] : memref<288x256xf32, #tpu.memory_space<vmem>>, vector<16x256xf32>
    tpu.vector_store %arg17[%c64_304, %c0_305], %342 {strides = array<i32>} : memref<288x256xf32, #tpu.memory_space<vmem>>, vector<16x256xf32>,
    %c0_306 = arith.constant 0 : index
    %c18_307 = arith.constant 18 : index
    %344 = vector.load %arg16[%c0_306, %c18_307] : memref<32x290xf32, #tpu.memory_space<vmem>>, vector<16x256xf32>
    %345 = vector.broadcast %1 : vector<1x256xf32> to vector<16x256xf32>
    %346 = arith.mulf %344, %345 : vector<16x256xf32>
    %c80_308 = arith.constant 80 : index
    %c0_309 = arith.constant 0 : index
    %347 = vector.load %arg17[%c80_308, %c0_309] : memref<288x256xf32, #tpu.memory_space<vmem>>, vector<16x256xf32>
    tpu.vector_store %arg17[%c80_308, %c0_309], %346 {strides = array<i32>} : memref<288x256xf32, #tpu.memory_space<vmem>>, vector<16x256xf32>,
    %c0_310 = arith.constant 0 : index
    %c32_311 = arith.constant 32 : index
    %348 = vector.load %arg16[%c0_310, %c32_311] : memref<32x290xf32, #tpu.memory_space<vmem>>, vector<16x256xf32>
    %349 = vector.broadcast %0 : vector<1x256xf32> to vector<16x256xf32>
    %350 = arith.mulf %348, %349 : vector<16x256xf32>
    %c96_312 = arith.constant 96 : index
    %c0_313 = arith.constant 0 : index
    %351 = vector.load %arg17[%c96_312, %c0_313] : memref<288x256xf32, #tpu.memory_space<vmem>>, vector<16x256xf32>
    tpu.vector_store %arg17[%c96_312, %c0_313], %350 {strides = array<i32>} : memref<288x256xf32, #tpu.memory_space<vmem>>, vector<16x256xf32>,
    %c0_314 = arith.constant 0 : index
    %c33_315 = arith.constant 33 : index
    %352 = vector.load %arg16[%c0_314, %c33_315] : memref<32x290xf32, #tpu.memory_space<vmem>>, vector<16x256xf32>
    %c112_316 = arith.constant 112 : index
    %c0_317 = arith.constant 0 : index
    %353 = vector.load %arg17[%c112_316, %c0_317] : memref<288x256xf32, #tpu.memory_space<vmem>>, vector<16x256xf32>
    tpu.vector_store %arg17[%c112_316, %c0_317], %352 {strides = array<i32>} : memref<288x256xf32, #tpu.memory_space<vmem>>, vector<16x256xf32>,
    %c0_318 = arith.constant 0 : index
    %c34_319 = arith.constant 34 : index
    %354 = vector.load %arg16[%c0_318, %c34_319] : memref<32x290xf32, #tpu.memory_space<vmem>>, vector<16x256xf32>
    %355 = vector.broadcast %1 : vector<1x256xf32> to vector<16x256xf32>
    %356 = arith.mulf %354, %355 : vector<16x256xf32>
    %c128_320 = arith.constant 128 : index
    %c0_321 = arith.constant 0 : index
    %357 = vector.load %arg17[%c128_320, %c0_321] : memref<288x256xf32, #tpu.memory_space<vmem>>, vector<16x256xf32>
    tpu.vector_store %arg17[%c128_320, %c0_321], %356 {strides = array<i32>} : memref<288x256xf32, #tpu.memory_space<vmem>>, vector<16x256xf32>,
    %c0_322 = arith.constant 0 : index
    %c0_323 = arith.constant 0 : index
    %358 = vector.load %arg11[%c0_322, %c0_323] : memref<32x144xf32, #tpu.memory_space<vmem>>, vector<32x144xf32>
    %c0_324 = arith.constant 0 : index
    %c0_325 = arith.constant 0 : index
    %359 = vector.load %arg17[%c0_324, %c0_325] : memref<288x256xf32, #tpu.memory_space<vmem>>, vector<144x256xf32>
    %cst_326 = arith.constant dense<0.000000e+00> : vector<32x256xf32>
    %360 = tpu.matmul %358, %359, %cst_326 {dimension_numbers = #tpu.dot_dimension_numbers<[1], [0], [0], [1], [0, 0, 1, 1], [], []>} : vector<32x144xf32>, vector<144x256xf32>, vector<32x256xf32> -> vector<32x256xf32>
    %c0_327 = arith.constant 0 : index
    %c0_328 = arith.constant 0 : index
    %361 = vector.load %arg12[%c0_327, %c0_328] : memref<32x1xf32, #tpu.memory_space<vmem>>, vector<32x1xf32>
    %362 = vector.broadcast %361 : vector<32x1xf32> to vector<32x256xf32>
    %363 = arith.addf %360, %362 : vector<32x256xf32>
    %cst_329 = arith.constant dense<0.000000e+00> : vector<32xf32>
    %364 = vector.multi_reduction <add>, %363, %cst_329 [1] : vector<32x256xf32> to vector<32xf32>
    %365 = vector.shape_cast %364 : vector<32xf32> to vector<32x1xf32>
    %366 = arith.mulf %363, %363 : vector<32x256xf32>
    %cst_330 = arith.constant dense<0.000000e+00> : vector<32xf32>
    %367 = vector.multi_reduction <add>, %366, %cst_330 [1] : vector<32x256xf32> to vector<32xf32>
    %368 = vector.shape_cast %367 : vector<32xf32> to vector<32x1xf32>
    %c0_331 = arith.constant 0 : index
    %c0_332 = arith.constant 0 : index
    %369 = vector.load %arg6[%c0_331, %c0_332] : memref<32x32xf32, #tpu.memory_space<vmem>>, vector<32x32xf32>
    %cst_333 = arith.constant dense<0.000000e+00> : vector<32x1xf32>
    %370 = tpu.matmul %369, %365, %cst_333 {dimension_numbers = #tpu.dot_dimension_numbers<[1], [0], [0], [1], [0, 0, 1, 1], [], []>} : vector<32x32xf32>, vector<32x1xf32>, vector<32x1xf32> -> vector<32x1xf32>
    %c0_334 = arith.constant 0 : index
    %c0_335 = arith.constant 0 : index
    %371 = vector.load %arg6[%c0_334, %c0_335] : memref<32x32xf32, #tpu.memory_space<vmem>>, vector<32x32xf32>
    %cst_336 = arith.constant dense<0.000000e+00> : vector<32x1xf32>
    %372 = tpu.matmul %371, %368, %cst_336 {dimension_numbers = #tpu.dot_dimension_numbers<[1], [0], [0], [1], [0, 0, 1, 1], [], []>} : vector<32x32xf32>, vector<32x1xf32>, vector<32x1xf32> -> vector<32x1xf32>
    %373 = arith.mulf %370, %370 : vector<32x1xf32>
    %374 = arith.subf %372, %373 : vector<32x1xf32>
    %cst_337 = arith.constant 9.99999974E-6 : f32
    %375 = vector.broadcast %cst_337 : f32 to vector<32x1xf32>
    %376 = arith.addf %374, %375 : vector<32x1xf32>
    %377 = math.rsqrt %376 : vector<32x1xf32>
    %378 = vector.broadcast %370 : vector<32x1xf32> to vector<32x256xf32>
    %379 = arith.subf %363, %378 : vector<32x256xf32>
    %380 = vector.broadcast %377 : vector<32x1xf32> to vector<32x256xf32>
    %381 = arith.mulf %379, %380 : vector<32x256xf32>
    %c0_338 = arith.constant 0 : index
    %c0_339 = arith.constant 0 : index
    %382 = vector.load %arg13[%c0_338, %c0_339] : memref<32x1xf32, #tpu.memory_space<vmem>>, vector<32x1xf32>
    %383 = vector.broadcast %382 : vector<32x1xf32> to vector<32x256xf32>
    %384 = arith.mulf %381, %383 : vector<32x256xf32>
    %c0_340 = arith.constant 0 : index
    %c0_341 = arith.constant 0 : index
    %385 = vector.load %arg14[%c0_340, %c0_341] : memref<32x1xf32, #tpu.memory_space<vmem>>, vector<32x1xf32>
    %386 = vector.broadcast %385 : vector<32x1xf32> to vector<32x256xf32>
    %387 = arith.addf %384, %386 : vector<32x256xf32>
    %388 = arith.addf %326, %387 : vector<32x256xf32>
    %c1_342 = arith.constant 1 : index
    %c0_343 = arith.constant 0 : index
    %c0_344 = arith.constant 0 : index
    %389 = vector.load %arg15[%c1_342, %c0_343, %c0_344] : memref<2x32x256xf32, #tpu.memory_space<vmem>>, vector<1x32x256xf32>
    %390 = vector.shape_cast %389 : vector<1x32x256xf32> to vector<32x256xf32>
    %391 = vector.shape_cast %388 : vector<32x256xf32> to vector<1x32x256xf32>
    tpu.vector_store %arg15[%c1_342, %c0_343, %c0_344], %391 {strides = array<i32>} : memref<2x32x256xf32, #tpu.memory_space<vmem>>, vector<1x32x256xf32>,
    return
  }
}

</mosaic_0001>

<llo_original>
// kernel: residual_conv_forward.1
$region0: #{residual_conv_forward.1}
  #allocation0 [shape = 'u32[]', space=smem, size = 0x4, offset = 0x4, fixed_abs, tag = 'smem constant byte address 0x4 - core index']
  #allocation1 [shape = 'u32[144,128]{1,0:T(1,128)}', space=vmem, size = 0x12000, scoped, tag = 'internal scratch']
  #allocation2 [shape = 'f32[32,290]{1,0:T(8,128)}', space=vmem, size = 0xc000, scoped, tag = 'scratch operand']
  #allocation3 [shape = 'f32[288,256]{1,0:T(8,128)}', space=vmem, size = 0x48000, scoped, tag = 'scratch operand']
  %s0 = inlined_call_operand.vmem [shape: f32[2,16,256], index: 0, kind: input, shape index: {}]
  %s1 = inlined_call_operand.vmem [shape: f32[2,256], index: 1, kind: input, shape index: {}]
  %s2 = inlined_call_operand.vmem [shape: f32[16,1], index: 2, kind: input, shape index: {}]
  %s3 = inlined_call_operand.vmem [shape: f32[16,1], index: 3, kind: input, shape index: {}]
  %s4 = inlined_call_operand.vmem [shape: f32[32,144], index: 4, kind: input, shape index: {}]
  %s5 = inlined_call_operand.vmem [shape: f32[32,1], index: 5, kind: input, shape index: {}]
  %s6 = inlined_call_operand.vmem [shape: f32[32,32], index: 6, kind: input, shape index: {}]
  %s7 = inlined_call_operand.vmem [shape: f32[32,1], index: 7, kind: input, shape index: {}]
  %s8 = inlined_call_operand.vmem [shape: f32[32,1], index: 8, kind: input, shape index: {}]
  %s9 = inlined_call_operand.vmem [shape: f32[32,288], index: 9, kind: input, shape index: {}]
  %s10 = inlined_call_operand.vmem [shape: f32[32,1], index: 10, kind: input, shape index: {}]
  %s11 = inlined_call_operand.vmem [shape: f32[32,144], index: 11, kind: input, shape index: {}]
  %s12 = inlined_call_operand.vmem [shape: f32[32,1], index: 12, kind: input, shape index: {}]
  %s13 = inlined_call_operand.vmem [shape: f32[32,1], index: 13, kind: input, shape index: {}]
  %s14 = inlined_call_operand.vmem [shape: f32[32,1], index: 14, kind: input, shape index: {}]
  %s15 = inlined_call_operand.vmem [shape: f32[2,32,256], index: 15, kind: output, shape index: {}]
  %s16 = sld [smem:[#allocation0]]
  $region70: #{residual_conv_forward.1} parent=0
    _
  %s18 = ssub.s32 1, %s16
  %s19 = scalar_select 0, %s18, %s16
  // Predicated region
  $region2: #{residual_conv_forward.1} parent=0 // pred_check
    _
  $region3: #{residual_conv_forward.1} parent=0 // pred_check_branch
    %21 = sbr.rel (0) target = $region5
  $region4: #{residual_conv_forward.1} parent=0 // pred_region
    _
  $region5: #{residual_conv_forward.1} parent=0 // pred_fallthru
    _
  // Predicated region
  $region6: #{residual_conv_forward.1} parent=0 // pred_check
    _
  $region7: #{residual_conv_forward.1} parent=0 // pred_check_branch
    %23 = sbr.rel (0) target = $region9
  $region8: #{residual_conv_forward.1} parent=0 // pred_region
    _
  $region9: #{residual_conv_forward.1} parent=0 // pred_fallthru
    _
  // Predicated region
  $region10: #{residual_conv_forward.1} parent=0 // pred_check
    _
  $region11: #{residual_conv_forward.1} parent=0 // pred_check_branch
    %25 = sbr.rel (0) target = $region13
  $region12: #{residual_conv_forward.1} parent=0 // pred_region
    _
  $region13: #{residual_conv_forward.1} parent=0 // pred_fallthru
    _
  // Predicated region
  $region14: #{residual_conv_forward.1} parent=0 // pred_check
    _
  $region15: #{residual_conv_forward.1} parent=0 // pred_check_branch
    %27 = sbr.rel (0) target = $region17
  $region16: #{residual_conv_forward.1} parent=0 // pred_region
    _
  $region17: #{residual_conv_forward.1} parent=0 // pred_fallthru
    _
  // Predicated region
  $region18: #{residual_conv_forward.1} parent=0 // pred_check
    _
  $region19: #{residual_conv_forward.1} parent=0 // pred_check_branch
    %29 = sbr.rel (0) target = $region21
  $region20: #{residual_conv_forward.1} parent=0 // pred_region
    _
  $region21: #{residual_conv_forward.1} parent=0 // pred_fallthru
    _
  // Predicated region
  $region22: #{residual_conv_forward.1} parent=0 // pred_check
    _
  $region23: #{residual_conv_forward.1} parent=0 // pred_check_branch
    %31 = sbr.rel (0) target = $region25
  $region24: #{residual_conv_forward.1} parent=0 // pred_region
    _
  $region25: #{residual_conv_forward.1} parent=0 // pred_fallthru
    _
  // Predicated region
  $region26: #{residual_conv_forward.1} parent=0 // pred_check
    _
  $region27: #{residual_conv_forward.1} parent=0 // pred_check_branch
    %33 = sbr.rel (0) target = $region29
  $region28: #{residual_conv_forward.1} parent=0 // pred_region
    _
  $region29: #{residual_conv_forward.1} parent=0 // pred_fallthru
    _
  // Predicated region
  $region30: #{residual_conv_forward.1} parent=0 // pred_check
    _
  $region31: #{residual_conv_forward.1} parent=0 // pred_check_branch
    %35 = sbr.rel (0) target = $region33
  $region32: #{residual_conv_forward.1} parent=0 // pred_region
    _
  $region33: #{residual_conv_forward.1} parent=0 // pred_fallthru
    _
  // Predicated region
  $region34: #{residual_conv_forward.1} parent=0 // pred_check
    _
  $region35: #{residual_conv_forward.1} parent=0 // pred_check_branch
    %37 = sbr.rel (0) target = $region37
  $region36: #{residual_conv_forward.1} parent=0 // pred_region
    _
  $region37: #{residual_conv_forward.1} parent=0 // pred_fallthru
    _
  // Predicated region
  $region38: #{residual_conv_forward.1} parent=0 // pred_check
    _
  $region39: #{residual_conv_forward.1} parent=0 // pred_check_branch
    %39 = sbr.rel (0) target = $region41
  $region40: #{residual_conv_forward.1} parent=0 // pred_region
    _
  $region41: #{residual_conv_forward.1} parent=0 // pred_fallthru
    _
  // Predicated region
  $region42: #{residual_conv_forward.1} parent=0 // pred_check
    _
  $region43: #{residual_conv_forward.1} parent=0 // pred_check_branch
    %41 = sbr.rel (0) target = $region45
  $region44: #{residual_conv_forward.1} parent=0 // pred_region
    _
  $region45: #{residual_conv_forward.1} parent=0 // pred_fallthru
    _
  // Predicated region
  $region46: #{residual_conv_forward.1} parent=0 // pred_check
    _
  $region47: #{residual_conv_forward.1} parent=0 // pred_check_branch
    %43 = sbr.rel (0) target = $region49
  $region48: #{residual_conv_forward.1} parent=0 // pred_region
    _
  $region49: #{residual_conv_forward.1} parent=0 // pred_fallthru
    _
  // Predicated region
  $region50: #{residual_conv_forward.1} parent=0 // pred_check
    _
  $region51: #{residual_conv_forward.1} parent=0 // pred_check_branch
    %45 = sbr.rel (0) target = $region53
  $region52: #{residual_conv_forward.1} parent=0 // pred_region
    _
  $region53: #{residual_conv_forward.1} parent=0 // pred_fallthru
    _
  // Predicated region
  $region54: #{residual_conv_forward.1} parent=0 // pred_check
    _
  $region55: #{residual_conv_forward.1} parent=0 // pred_check_branch
    %47 = sbr.rel (0) target = $region57
  $region56: #{residual_conv_forward.1} parent=0 // pred_region
    _
  $region57: #{residual_conv_forward.1} parent=0 // pred_fallthru
    _
  // Predicated region
  $region58: #{residual_conv_forward.1} parent=0 // pred_check
    _
  $region59: #{residual_conv_forward.1} parent=0 // pred_check_branch
    %49 = sbr.rel (0) target = $region61
  $region60: #{residual_conv_forward.1} parent=0 // pred_region
    _
  $region61: #{residual_conv_forward.1} parent=0 // pred_fallthru
    _
  %v50 = vld [vmem:[%s1] ss:$2 sm:$0x3]
  %s51 = scalar_lea.vmem %s1, 1
  %v52 = vld [vmem:[%s51] ss:$2 sm:$0x3]
  %vm53 = vcmask 138240
  %54 = vst.msk [vmem:[#allocation2] sm:$0xff] %vm53, 0.0
  %55 = vst.msk [vmem:[#allocation2 + $0x18] sm:$0xff] %vm53, 0.0
  %56 = vst.msk [vmem:[#allocation2 + $0x30] sm:$0xff] %vm53, 0.0
  %57 = vst.msk [vmem:[#allocation2 + $0x48] sm:$0xff] %vm53, 0.0
  %vm58 = vcmask 277640
  %59 = vst.msk [vmem:[#allocation2 + $0x10] sm:$0xff] %vm58, 0.0
  %60 = vst.msk [vmem:[#allocation2 + $0x28] sm:$0xff] %vm58, 0.0
  %61 = vst.msk [vmem:[#allocation2 + $0x40] sm:$0xff] %vm58, 0.0
  %62 = vst.msk [vmem:[#allocation2 + $0x58] sm:$0xff] %vm58, 0.0
  %v63 = vld [vmem:[%s0] sm:$0xff]
  %v64 = vld [vmem:[%s0 + $0x8] sm:$0xff]
  %v65 = vld [vmem:[%s0 + $0x10] sm:$0xff]
  %v66 = vld [vmem:[%s0 + $0x18] sm:$0xff]
  %v67 = vadd.f32 %v63, %v64
  %68 = vadd.xlane.f32.xlu0 %v67
  %v69 = vpop.xlane.xlu0 %68
  %v70 = vadd.f32 %v65, %v66
  %71 = vadd.xlane.f32.xlu0 %v70
  %v72 = vpop.xlane.xlu0 %71
  %v73 = vmul.f32 %v63, %v63
  %v74 = vmul.f32 %v64, %v64
  %v75 = vmul.f32 %v65, %v65
  %v76 = vmul.f32 %v66, %v66
  %v77 = vadd.f32 %v73, %v74
  %78 = vadd.xlane.f32.xlu0 %v77
  %v79 = vpop.xlane.xlu0 %78
  %v80 = vadd.f32 %v75, %v76
  %81 = vadd.xlane.f32.xlu0 %v80
  %v82 = vpop.xlane.xlu0 %81
  %v83 = vmul.f32 %v69, 0.00390625
  %v84 = vmul.f32 %v72, 0.00390625
  %v85 = vmul.f32 %v79, 0.00390625
  %v86 = vmul.f32 %v82, 0.00390625
  %v87 = vmul.f32 %v83, %v83
  %v88 = vmul.f32 %v84, %v84
  %v89 = vsub.f32 %v85, %v87
  %v90 = vsub.f32 %v86, %v88
  %v91 = vadd.f32 %v89, 1e-05
  %v92 = vadd.f32 %v90, 1e-05
  %v93 = vrsqrt.pop %v91
  %v94 = vrsqrt.pop %v92
  %v95 = vsub.f32 %v63, %v83
  %v96 = vsub.f32 %v64, %v83
  %v97 = vsub.f32 %v65, %v84
  %v98 = vsub.f32 %v66, %v84
  %v99 = vmul.f32 %v95, %v93
  %v100 = vmul.f32 %v96, %v93
  %v101 = vmul.f32 %v97, %v94
  %v102 = vmul.f32 %v98, %v94
  %v103 = vld [vmem:[%s2] sm:$0xff]
  %v104 = vld [vmem:[%s2 + $0x8] sm:$0xff]
  %106 = vset.pattern.permute.xlu0 0
  %107 = vperm.xlu0 %106, %v103
  %v108 = vpop.permute.xlu0 %107
  %111 = vset.pattern.permute.xlu0 0
  %112 = vperm.xlu0 %111, %v104
  %v113 = vpop.permute.xlu0 %112
  %v115 = vmul.f32 %v99, %v108
  %v116 = vmul.f32 %v100, %v108
  %v117 = vmul.f32 %v101, %v113
  %v118 = vmul.f32 %v102, %v113
  %v119 = vld [vmem:[%s3] sm:$0xff]
  %v120 = vld [vmem:[%s3 + $0x8] sm:$0xff]
  %122 = vset.pattern.permute.xlu0 0
  %123 = vperm.xlu0 %122, %v119
  %v124 = vpop.permute.xlu0 %123
  %127 = vset.pattern.permute.xlu0 0
  %128 = vperm.xlu0 %127, %v120
  %v129 = vpop.permute.xlu0 %128
  %v131 = vadd.f32 %v115, %v124
  %v132 = vadd.f32 %v116, %v124
  %v133 = vadd.f32 %v117, %v129
  %v134 = vadd.f32 %v118, %v129
  %v135 = vmax.f32 %v131, 0.0
  %v136 = vmax.f32 %v132, 0.0
  %v137 = vmax.f32 %v133, 0.0
  %v138 = vmax.f32 %v134, 0.0
  %143 = vrot.lane.b32.xlu0 %v135, 17
  %v144 = vpop.permute.xlu0 %143
  %145 = vrot.lane.b32.xlu0 %v136, 17
  %v146 = vpop.permute.xlu0 %145
  %147 = vrot.lane.b32.xlu0 %v137, 17
  %v148 = vpop.permute.xlu0 %147
  %149 = vrot.lane.b32.xlu0 %v138, 17
  %v150 = vpop.permute.xlu0 %149
  %v151 = vsel %vm53, %v144, %v146
  %v152 = vsel %vm53, %v148, %v150
  %vm159 = vcmask 1047688
  %160 = vst.msk [vmem:[#allocation2] sm:$0xff] %vm159, %v144
  %161 = vst [vmem:[#allocation2 + $0x8] sm:$0xff] %v151
  %162 = vst.msk [vmem:[#allocation2 + $0x10] sm:$0xff] %vm53, %v146
  %163 = vst.msk [vmem:[#allocation2 + $0x18] sm:$0xff] %vm159, %v148
  %164 = vst [vmem:[#allocation2 + $0x20] sm:$0xff] %v152
  %165 = vst.msk [vmem:[#allocation2 + $0x28] sm:$0xff] %vm53, %v150
  %v166 = vld [vmem:[#allocation2] sm:$0xff]
  %v167 = vld [vmem:[#allocation2 + $0x8] sm:$0xff]
  %v168 = vld [vmem:[#allocation2 + $0x18] sm:$0xff]
  %v169 = vld [vmem:[#allocation2 + $0x20] sm:$0xff]
  %v171 = vlaneseq
  %v172 = vshrl.u32 %v171, 7
  %v173 = vsub.s32 0, %v172
  %v174 = vrot.slane %v50, %v173
  %v175 = vlaneseq
  %v176 = vshrl.u32 %v175, 7
  %v177 = vsub.s32 1, %v176
  %v178 = vrot.slane %v50, %v177
  %v181 = vmul.f32 %v166, %v174
  %v182 = vmul.f32 %v167, %v178
  %v183 = vmul.f32 %v168, %v174
  %v184 = vmul.f32 %v169, %v178
  %185 = vst [vmem:[#allocation3] sm:$0xff] %v181
  %186 = vst [vmem:[#allocation3 + $0x8] sm:$0xff] %v182
  %187 = vst [vmem:[#allocation3 + $0x10] sm:$0xff] %v183
  %188 = vst [vmem:[#allocation3 + $0x18] sm:$0xff] %v184
  %v189 = vld [vmem:[#allocation2] sm:$0xff]
  %v190 = vld [vmem:[#allocation2 + $0x8] sm:$0xff]
  %v191 = vld [vmem:[#allocation2 + $0x10] sm:$0xff]
  %v192 = vld [vmem:[#allocation2 + $0x18] sm:$0xff]
  %v193 = vld [vmem:[#allocation2 + $0x20] sm:$0xff]
  %v194 = vld [vmem:[#allocation2 + $0x28] sm:$0xff]
  %201 = vrot.lane.b32.xlu0 %v189, 127
  %v202 = vpop.permute.xlu0 %201
  %203 = vrot.lane.b32.xlu0 %v190, 127
  %v204 = vpop.permute.xlu0 %203
  %205 = vrot.lane.b32.xlu0 %v191, 127
  %v206 = vpop.permute.xlu0 %205
  %207 = vrot.lane.b32.xlu0 %v192, 127
  %v208 = vpop.permute.xlu0 %207
  %209 = vrot.lane.b32.xlu0 %v193, 127
  %v210 = vpop.permute.xlu0 %209
  %211 = vrot.lane.b32.xlu0 %v194, 127
  %v212 = vpop.permute.xlu0 %211
  %vm213 = vcmask 1039360
  %v214 = vsel %vm213, %v202, %v204
  %v215 = vsel %vm213, %v204, %v206
  %v216 = vsel %vm213, %v208, %v210
  %v217 = vsel %vm213, %v210, %v212
  %222 = vst [vmem:[#allocation3 + $0x20] sm:$0xff] %v214
  %223 = vst [vmem:[#allocation3 + $0x28] sm:$0xff] %v215
  %224 = vst [vmem:[#allocation3 + $0x30] sm:$0xff] %v216
  %225 = vst [vmem:[#allocation3 + $0x38] sm:$0xff] %v217
  %v226 = vld [vmem:[#allocation2] sm:$0xff]
  %v227 = vld [vmem:[#allocation2 + $0x8] sm:$0xff]
  %v228 = vld [vmem:[#allocation2 + $0x10] sm:$0xff]
  %v229 = vld [vmem:[#allocation2 + $0x18] sm:$0xff]
  %v230 = vld [vmem:[#allocation2 + $0x20] sm:$0xff]
  %v231 = vld [vmem:[#allocation2 + $0x28] sm:$0xff]
  %v233 = vlaneseq
  %v234 = vshrl.u32 %v233, 7
  %v235 = vsub.s32 0, %v234
  %v236 = vrot.slane %v52, %v235
  %v237 = vlaneseq
  %v238 = vshrl.u32 %v237, 7
  %v239 = vsub.s32 1, %v238
  %v240 = vrot.slane %v52, %v239
  %241 = vrot.lane.b32.xlu0 %v236, 2
  %v242 = vpop.permute.xlu0 %241
  %243 = vrot.lane.b32.xlu0 %v240, 2
  %v244 = vpop.permute.xlu0 %243
  %vm245 = vcmask 15360
  %v246 = vsel %vm245, %v242, %v244
  %v250 = vmul.f32 %v226, %v242
  %v251 = vmul.f32 %v227, %v246
  %v252 = vmul.f32 %v228, %v244
  %v253 = vmul.f32 %v229, %v242
  %v254 = vmul.f32 %v230, %v246
  %v255 = vmul.f32 %v231, %v244
  %262 = vrot.lane.b32.xlu0 %v250, 126
  %v263 = vpop.permute.xlu0 %262
  %264 = vrot.lane.b32.xlu0 %v251, 126
  %v265 = vpop.permute.xlu0 %264
  %266 = vrot.lane.b32.xlu0 %v252, 126
  %v267 = vpop.permute.xlu0 %266
  %268 = vrot.lane.b32.xlu0 %v253, 126
  %v269 = vpop.permute.xlu0 %268
  %270 = vrot.lane.b32.xlu0 %v254, 126
  %v271 = vpop.permute.xlu0 %270
  %272 = vrot.lane.b32.xlu0 %v255, 126
  %v273 = vpop.permute.xlu0 %272
  %vm274 = vcmask 1031168
  %v275 = vsel %vm274, %v263, %v265
  %v276 = vsel %vm274, %v265, %v267
  %v277 = vsel %vm274, %v269, %v271
  %v278 = vsel %vm274, %v271, %v273
  %283 = vst [vmem:[#allocation3 + $0x40] sm:$0xff] %v275
  %284 = vst [vmem:[#allocation3 + $0x48] sm:$0xff] %v276
  %285 = vst [vmem:[#allocation3 + $0x50] sm:$0xff] %v277
  %286 = vst [vmem:[#allocation3 + $0x58] sm:$0xff] %v278
  %v287 = vld [vmem:[#allocation2] sm:$0xff]
  %v288 = vld [vmem:[#allocation2 + $0x8] sm:$0xff]
  %v289 = vld [vmem:[#allocation2 + $0x10] sm:$0xff]
  %v290 = vld [vmem:[#allocation2 + $0x18] sm:$0xff]
  %v291 = vld [vmem:[#allocation2 + $0x20] sm:$0xff]
  %v292 = vld [vmem:[#allocation2 + $0x28] sm:$0xff]
  %293 = vrot.lane.b32.xlu0 %v174, 16
  %v294 = vpop.permute.xlu0 %293
  %295 = vrot.lane.b32.xlu0 %v178, 16
  %v296 = vpop.permute.xlu0 %295
  %vm297 = vcmask 130048
  %v298 = vsel %vm297, %v294, %v296
  %v302 = vmul.f32 %v287, %v294
  %v303 = vmul.f32 %v288, %v298
  %v304 = vmul.f32 %v289, %v296
  %v305 = vmul.f32 %v290, %v294
  %v306 = vmul.f32 %v291, %v298
  %v307 = vmul.f32 %v292, %v296
  %314 = vrot.lane.b32.xlu0 %v302, 112
  %v315 = vpop.permute.xlu0 %314
  %316 = vrot.lane.b32.xlu0 %v303, 112
  %v317 = vpop.permute.xlu0 %316
  %318 = vrot.lane.b32.xlu0 %v304, 112
  %v319 = vpop.permute.xlu0 %318
  %320 = vrot.lane.b32.xlu0 %v305, 112
  %v321 = vpop.permute.xlu0 %320
  %322 = vrot.lane.b32.xlu0 %v306, 112
  %v323 = vpop.permute.xlu0 %322
  %324 = vrot.lane.b32.xlu0 %v307, 112
  %v325 = vpop.permute.xlu0 %324
  %vm326 = vcmask 916480
  %v327 = vsel %vm326, %v315, %v317
  %v328 = vsel %vm326, %v317, %v319
  %v329 = vsel %vm326, %v321, %v323
  %v330 = vsel %vm326, %v323, %v325
  %335 = vst [vmem:[#allocation3 + $0x60] sm:$0xff] %v327
  %336 = vst [vmem:[#allocation3 + $0x68] sm:$0xff] %v328
  %337 = vst [vmem:[#allocation3 + $0x70] sm:$0xff] %v329
  %338 = vst [vmem:[#allocation3 + $0x78] sm:$0xff] %v330
  %v339 = vld [vmem:[#allocation2] sm:$0xff]
  %v340 = vld [vmem:[#allocation2 + $0x8] sm:$0xff]
  %v341 = vld [vmem:[#allocation2 + $0x10] sm:$0xff]
  %v342 = vld [vmem:[#allocation2 + $0x18] sm:$0xff]
  %v343 = vld [vmem:[#allocation2 + $0x20] sm:$0xff]
  %v344 = vld [vmem:[#allocation2 + $0x28] sm:$0xff]
  %351 = vrot.lane.b32.xlu0 %v339, 111
  %v352 = vpop.permute.xlu0 %351
  %353 = vrot.lane.b32.xlu0 %v340, 111
  %v354 = vpop.permute.xlu0 %353
  %355 = vrot.lane.b32.xlu0 %v341, 111
  %v356 = vpop.permute.xlu0 %355
  %357 = vrot.lane.b32.xlu0 %v342, 111
  %v358 = vpop.permute.xlu0 %357
  %359 = vrot.lane.b32.xlu0 %v343, 111
  %v360 = vpop.permute.xlu0 %359
  %361 = vrot.lane.b32.xlu0 %v344, 111
  %v362 = vpop.permute.xlu0 %361
  %vm363 = vcmask 908288
  %v364 = vsel %vm363, %v352, %v354
  %v365 = vsel %vm363, %v354, %v356
  %v366 = vsel %vm363, %v358, %v360
  %v367 = vsel %vm363, %v360, %v362
  %372 = vst [vmem:[#allocation3 + $0x80] sm:$0xff] %v364
  %373 = vst [vmem:[#allocation3 + $0x88] sm:$0xff] %v365
  %374 = vst [vmem:[#allocation3 + $0x90] sm:$0xff] %v366
  %375 = vst [vmem:[#allocation3 + $0x98] sm:$0xff] %v367
  %v376 = vld [vmem:[#allocation2] sm:$0xff]
  %v377 = vld [vmem:[#allocation2 + $0x8] sm:$0xff]
  %v378 = vld [vmem:[#allocation2 + $0x10] sm:$0xff]
  %v379 = vld [vmem:[#allocation2 + $0x18] sm:$0xff]
  %v380 = vld [vmem:[#allocation2 + $0x20] sm:$0xff]
  %v381 = vld [vmem:[#allocation2 + $0x28] sm:$0xff]
  %382 = vrot.lane.b32.xlu0 %v236, 18
  %v383 = vpop.permute.xlu0 %382
  %384 = vrot.lane.b32.xlu0 %v240, 18
  %v385 = vpop.permute.xlu0 %384
  %vm386 = vcmask 146432
  %v387 = vsel %vm386, %v383, %v385
  %v391 = vmul.f32 %v376, %v383
  %v392 = vmul.f32 %v377, %v387
  %v393 = vmul.f32 %v378, %v385
  %v394 = vmul.f32 %v379, %v383
  %v395 = vmul.f32 %v380, %v387
  %v396 = vmul.f32 %v381, %v385
  %403 = vrot.lane.b32.xlu0 %v391, 110
  %v404 = vpop.permute.xlu0 %403
  %405 = vrot.lane.b32.xlu0 %v392, 110
  %v406 = vpop.permute.xlu0 %405
  %407 = vrot.lane.b32.xlu0 %v393, 110
  %v408 = vpop.permute.xlu0 %407
  %409 = vrot.lane.b32.xlu0 %v394, 110
  %v410 = vpop.permute.xlu0 %409
  %411 = vrot.lane.b32.xlu0 %v395, 110
  %v412 = vpop.permute.xlu0 %411
  %413 = vrot.lane.b32.xlu0 %v396, 110
  %v414 = vpop.permute.xlu0 %413
  %vm415 = vcmask 900096
  %v416 = vsel %vm415, %v404, %v406
  %v417 = vsel %vm415, %v406, %v408
  %v418 = vsel %vm415, %v410, %v412
  %v419 = vsel %vm415, %v412, %v414
  %424 = vst [vmem:[#allocation3 + $0xa0] sm:$0xff] %v416
  %425 = vst [vmem:[#allocation3 + $0xa8] sm:$0xff] %v417
  %426 = vst [vmem:[#allocation3 + $0xb0] sm:$0xff] %v418
  %427 = vst [vmem:[#allocation3 + $0xb8] sm:$0xff] %v419
  %v428 = vld [vmem:[#allocation2] sm:$0xff]
  %v429 = vld [vmem:[#allocation2 + $0x8] sm:$0xff]
  %v430 = vld [vmem:[#allocation2 + $0x10] sm:$0xff]
  %v431 = vld [vmem:[#allocation2 + $0x18] sm:$0xff]
  %v432 = vld [vmem:[#allocation2 + $0x20] sm:$0xff]
  %v433 = vld [vmem:[#allocation2 + $0x28] sm:$0xff]
  %434 = vrot.lane.b32.xlu0 %v174, 32
  %v435 = vpop.permute.xlu0 %434
  %436 = vrot.lane.b32.xlu0 %v178, 32
  %v437 = vpop.permute.xlu0 %436
  %vm438 = vcmask 261120
  %v439 = vsel %vm438, %v435, %v437
  %v443 = vmul.f32 %v428, %v435
  %v444 = vmul.f32 %v429, %v439
  %v445 = vmul.f32 %v430, %v437
  %v446 = vmul.f32 %v431, %v435
  %v447 = vmul.f32 %v432, %v439
  %v448 = vmul.f32 %v433, %v437
  %455 = vrot.lane.b32.xlu0 %v443, 96
  %v456 = vpop.permute.xlu0 %455
  %457 = vrot.lane.b32.xlu0 %v444, 96
  %v458 = vpop.permute.xlu0 %457
  %459 = vrot.lane.b32.xlu0 %v445, 96
  %v460 = vpop.permute.xlu0 %459
  %461 = vrot.lane.b32.xlu0 %v446, 96
  %v462 = vpop.permute.xlu0 %461
  %463 = vrot.lane.b32.xlu0 %v447, 96
  %v464 = vpop.permute.xlu0 %463
  %465 = vrot.lane.b32.xlu0 %v448, 96
  %v466 = vpop.permute.xlu0 %465
  %vm467 = vcmask 785408
  %v468 = vsel %vm467, %v456, %v458
  %v469 = vsel %vm467, %v458, %v460
  %v470 = vsel %vm467, %v462, %v464
  %v471 = vsel %vm467, %v464, %v466
  %476 = vst [vmem:[#allocation3 + $0xc0] sm:$0xff] %v468
  %477 = vst [vmem:[#allocation3 + $0xc8] sm:$0xff] %v469
  %478 = vst [vmem:[#allocation3 + $0xd0] sm:$0xff] %v470
  %479 = vst [vmem:[#allocation3 + $0xd8] sm:$0xff] %v471
  %v480 = vld [vmem:[#allocation2] sm:$0xff]
  %v481 = vld [vmem:[#allocation2 + $0x8] sm:$0xff]
  %v482 = vld [vmem:[#allocation2 + $0x10] sm:$0xff]
  %v483 = vld [vmem:[#allocation2 + $0x18] sm:$0xff]
  %v484 = vld [vmem:[#allocation2 + $0x20] sm:$0xff]
  %v485 = vld [vmem:[#allocation2 + $0x28] sm:$0xff]
  %492 = vrot.lane.b32.xlu0 %v480, 95
  %v493 = vpop.permute.xlu0 %492
  %494 = vrot.lane.b32.xlu0 %v481, 95
  %v495 = vpop.permute.xlu0 %494
  %496 = vrot.lane.b32.xlu0 %v482, 95
  %v497 = vpop.permute.xlu0 %496
  %498 = vrot.lane.b32.xlu0 %v483, 95
  %v499 = vpop.permute.xlu0 %498
  %500 = vrot.lane.b32.xlu0 %v484, 95
  %v501 = vpop.permute.xlu0 %500
  %502 = vrot.lane.b32.xlu0 %v485, 95
  %v503 = vpop.permute.xlu0 %502
  %vm504 = vcmask 777216
  %v505 = vsel %vm504, %v493, %v495
  %v506 = vsel %vm504, %v495, %v497
  %v507 = vsel %vm504, %v499, %v501
  %v508 = vsel %vm504, %v501, %v503
  %513 = vst [vmem:[#allocation3 + $0xe0] sm:$0xff] %v505
  %514 = vst [vmem:[#allocation3 + $0xe8] sm:$0xff] %v506
  %515 = vst [vmem:[#allocation3 + $0xf0] sm:$0xff] %v507
  %516 = vst [vmem:[#allocation3 + $0xf8] sm:$0xff] %v508
  %v517 = vld [vmem:[#allocation2] sm:$0xff]
  %v518 = vld [vmem:[#allocation2 + $0x8] sm:$0xff]
  %v519 = vld [vmem:[#allocation2 + $0x10] sm:$0xff]
  %v520 = vld [vmem:[#allocation2 + $0x18] sm:$0xff]
  %v521 = vld [vmem:[#allocation2 + $0x20] sm:$0xff]
  %v522 = vld [vmem:[#allocation2 + $0x28] sm:$0xff]
  %523 = vrot.lane.b32.xlu0 %v236, 34
  %v524 = vpop.permute.xlu0 %523
  %525 = vrot.lane.b32.xlu0 %v240, 34
  %v526 = vpop.permute.xlu0 %525
  %vm527 = vcmask 277504
  %v528 = vsel %vm527, %v524, %v526
  %v532 = vmul.f32 %v517, %v524
  %v533 = vmul.f32 %v518, %v528
  %v534 = vmul.f32 %v519, %v526
  %v535 = vmul.f32 %v520, %v524
  %v536 = vmul.f32 %v521, %v528
  %v537 = vmul.f32 %v522, %v526
  %544 = vrot.lane.b32.xlu0 %v532, 94
  %v545 = vpop.permute.xlu0 %544
  %546 = vrot.lane.b32.xlu0 %v533, 94
  %v547 = vpop.permute.xlu0 %546
  %548 = vrot.lane.b32.xlu0 %v534, 94
  %v549 = vpop.permute.xlu0 %548
  %550 = vrot.lane.b32.xlu0 %v535, 94
  %v551 = vpop.permute.xlu0 %550
  %552 = vrot.lane.b32.xlu0 %v536, 94
  %v553 = vpop.permute.xlu0 %552
  %554 = vrot.lane.b32.xlu0 %v537, 94
  %v555 = vpop.permute.xlu0 %554
  %vm556 = vcmask 769024
  %v557 = vsel %vm556, %v545, %v547
  %v558 = vsel %vm556, %v547, %v549
  %v559 = vsel %vm556, %v551, %v553
  %v560 = vsel %vm556, %v553, %v555
  %565 = vst [vmem:[#allocation3 + $0x100] sm:$0xff] %v557
  %566 = vst [vmem:[#allocation3 + $0x108] sm:$0xff] %v558
  %567 = vst [vmem:[#allocation3 + $0x110] sm:$0xff] %v559
  %568 = vst [vmem:[#allocation3 + $0x118] sm:$0xff] %v560
  %v569 = vld [vmem:[%s4] sm:$0xff]
  %v570 = vld [vmem:[%s4 + $0x8] sm:$0xff]
  %v571 = vld [vmem:[%s4 + $0x10] sm:$0xff]
  %v572 = vld [vmem:[%s4 + $0x18] sm:$0xff]
  %v573 = vld [vmem:[%s4 + $0x20] sm:$0xff]
  %v574 = vld [vmem:[%s4 + $0x28] sm:$0xff]
  %v575 = vld [vmem:[%s4 + $0x30] sm:$0xff]
  %v576 = vld [vmem:[%s4 + $0x38] sm:$0xff]
  %v577 = vld [vmem:[#allocation3] sm:$0xff]
  %v578 = vld [vmem:[#allocation3 + $0x8] sm:$0xff]
  %v579 = vld [vmem:[#allocation3 + $0x10] sm:$0xff]
  %v580 = vld [vmem:[#allocation3 + $0x18] sm:$0xff]
  %v581 = vld [vmem:[#allocation3 + $0x20] sm:$0xff]
  %v582 = vld [vmem:[#allocation3 + $0x28] sm:$0xff]
  %v583 = vld [vmem:[#allocation3 + $0x30] sm:$0xff]
  %v584 = vld [vmem:[#allocation3 + $0x38] sm:$0xff]
  %v585 = vld [vmem:[#allocation3 + $0x40] sm:$0xff]
  %v586 = vld [vmem:[#allocation3 + $0x48] sm:$0xff]
  %v587 = vld [vmem:[#allocation3 + $0x50] sm:$0xff]
  %v588 = vld [vmem:[#allocation3 + $0x58] sm:$0xff]
  %v589 = vld [vmem:[#allocation3 + $0x60] sm:$0xff]
  %v590 = vld [vmem:[#allocation3 + $0x68] sm:$0xff]
  %v591 = vld [vmem:[#allocation3 + $0x70] sm:$0xff]
  %v592 = vld [vmem:[#allocation3 + $0x78] sm:$0xff]
  %v593 = vld [vmem:[#allocation3 + $0x80] sm:$0xff]
  %v594 = vld [vmem:[#allocation3 + $0x88] sm:$0xff]
  %v595 = vld [vmem:[#allocation3 + $0x90] sm:$0xff]
  %v596 = vld [vmem:[#allocation3 + $0x98] sm:$0xff]
  %v597 = vld [vmem:[#allocation3 + $0xa0] sm:$0xff]
  %v598 = vld [vmem:[#allocation3 + $0xa8] sm:$0xff]
  %v599 = vld [vmem:[#allocation3 + $0xb0] sm:$0xff]
  %v600 = vld [vmem:[#allocation3 + $0xb8] sm:$0xff]
  %v601 = vld [vmem:[#allocation3 + $0xc0] sm:$0xff]
  %v602 = vld [vmem:[#allocation3 + $0xc8] sm:$0xff]
  %v603 = vld [vmem:[#allocation3 + $0xd0] sm:$0xff]
  %v604 = vld [vmem:[#allocation3 + $0xd8] sm:$0xff]
  %v605 = vld [vmem:[#allocation3 + $0xe0] sm:$0xff]
  %v606 = vld [vmem:[#allocation3 + $0xe8] sm:$0xff]
  %v607 = vld [vmem:[#allocation3 + $0xf0] sm:$0xff]
  %v608 = vld [vmem:[#allocation3 + $0xf8] sm:$0xff]
  %v609 = vld [vmem:[#allocation3 + $0x100] sm:$0xff]
  %v610 = vld [vmem:[#allocation3 + $0x108] sm:$0xff]
  %v611 = vld [vmem:[#allocation3 + $0x110] sm:$0xff]
  %v612 = vld [vmem:[#allocation3 + $0x118] sm:$0xff]
  %v613 = vld [vmem:[%s5] sm:$0xff]
  %v614 = vld [vmem:[%s5 + $0x8] sm:$0xff]
  %v615 = vld [vmem:[%s5 + $0x10] sm:$0xff]
  %v616 = vld [vmem:[%s5 + $0x18] sm:$0xff]
  %618 = vset.pattern.permute.xlu0 0
  %619 = vperm.xlu0 %618, %v613
  %v620 = vpop.permute.xlu0 %619
  %623 = vset.pattern.permute.xlu0 0
  %624 = vperm.xlu0 %623, %v614
  %v625 = vpop.permute.xlu0 %624
  %628 = vset.pattern.permute.xlu0 0
  %629 = vperm.xlu0 %628, %v615
  %v630 = vpop.permute.xlu0 %629
  %633 = vset.pattern.permute.xlu0 0
  %634 = vperm.xlu0 %633, %v616
  %v635 = vpop.permute.xlu0 %634
  %v638 = vsel %vm297, %v570, 0
  %v641 = vsel %vm297, %v572, 0
  %v644 = vsel %vm297, %v574, 0
  %v647 = vsel %vm297, %v576, 0
  %649 = vmatprep.subr.mxu0 %v608
  %650 = vmatpush1.msra.mxu0 %v607
  %651 = vmatprep.subr.mxu0 %v606
  %652 = vmatpush1.msra.mxu0 %v605
  %653 = vmatprep.subr.mxu0 %v604
  %654 = vmatpush1.msra.mxu0 %v603
  %655 = vmatprep.subr.mxu0 %v602
  %656 = vmatpush1.msra.mxu0 %v601
  %657 = vmatprep.subr.mxu0 %v600
  %658 = vmatpush1.msra.mxu0 %v599
  %659 = vmatprep.subr.mxu0 %v598
  %660 = vmatpush1.msra.mxu0 %v597
  %661 = vmatprep.subr.mxu0 %v596
  %662 = vmatpush1.msra.mxu0 %v595
  %663 = vmatprep.subr.mxu0 %v594
  %664 = vmatpush1.msra.mxu0 %v593
  %665 = vmatprep.subr.mxu0 %v592
  %666 = vmatpush1.msra.mxu0 %v591
  %667 = vmatprep.subr.mxu0 %v590
  %668 = vmatpush1.msra.mxu0 %v589
  %669 = vmatprep.subr.mxu0 %v588
  %670 = vmatpush1.msra.mxu0 %v587
  %671 = vmatprep.subr.mxu0 %v586
  %672 = vmatpush1.msra.mxu0 %v585
  %673 = vmatprep.subr.mxu0 %v584
  %674 = vmatpush1.msra.mxu0 %v583
  %675 = vmatprep.subr.mxu0 %v582
  %676 = vmatpush1.msra.mxu0 %v581
  %677 = vmatprep.subr.mxu0 %v580
  %678 = vmatpush1.msra.mxu0 %v579
  %679 = vmatprep.subr.mxu0 %v578
  %680 = vmatpush1.msra.mxu0 %v577
  %681 = vmatprep.subr.mxu0 0.0
  %682 = vmatpush2.msra.mxu0 0.0
  %683 = vmatprep.subr.mxu0 0.0
  %684 = vmatpush2.msra.mxu0 0.0
  %685 = vmatprep.subr.mxu0 0.0
  %686 = vmatpush2.msra.mxu0 0.0
  %687 = vmatprep.subr.mxu0 0.0
  %688 = vmatpush2.msra.mxu0 0.0
  %689 = vmatprep.subr.mxu0 0.0
  %690 = vmatpush2.msra.mxu0 0.0
  %691 = vmatprep.subr.mxu0 0.0
  %692 = vmatpush2.msra.mxu0 0.0
  %693 = vmatprep.subr.mxu0 0.0
  %694 = vmatpush2.msra.mxu0 0.0
  %695 = vmatprep.subr.mxu0 0.0
  %696 = vmatpush2.msra.mxu0 0.0
  %697 = vmatprep.subr.mxu0 0.0
  %698 = vmatpush2.msra.mxu0 0.0
  %699 = vmatprep.subr.mxu0 0.0
  %700 = vmatpush2.msra.mxu0 0.0
  %701 = vmatprep.subr.mxu0 0.0
  %702 = vmatpush2.msra.mxu0 0.0
  %703 = vmatprep.subr.mxu0 0.0
  %704 = vmatpush2.msra.mxu0 0.0
  %705 = vmatprep.subr.mxu0 0.0
  %706 = vmatpush2.msra.mxu0 0.0
  %707 = vmatprep.subr.mxu0 0.0
  %708 = vmatpush2.msra.mxu0 0.0
  %709 = vmatprep.subr.mxu0 %v612
  %710 = vmatpush2.msra.mxu0 %v611
  %711 = vmatprep.subr.mxu0 %v610
  %712 = vmatpush2.msra.mxu0 %v609
  %713 = vmatprep.mubr.f32.mxu0 %v638
  %714 = vmatmul.mubr.f32.gmra.mxu0 %v569
  %v715 = vpop.f32.mrf.mxu0
  %v716 = vadd.f32 %v620, %v715
  %v717 = vpop.f32.mrf.mxu0
  %v718 = vadd.f32 %v620, %v717
  %719 = vmatprep.mubr.f32.mxu0 %v641
  %720 = vmatmul.mubr.f32.gmra.mxu0 %v571
  %v721 = vpop.f32.mrf.mxu0
  %v722 = vadd.f32 %v625, %v721
  %v723 = vpop.f32.mrf.mxu0
  %v724 = vadd.f32 %v625, %v723
  %725 = vmatprep.mubr.f32.mxu0 %v644
  %726 = vmatmul.mubr.f32.gmra.mxu0 %v573
  %v727 = vpop.f32.mrf.mxu0
  %v728 = vadd.f32 %v630, %v727
  %v729 = vpop.f32.mrf.mxu0
  %v730 = vadd.f32 %v630, %v729
  %731 = vmatprep.mubr.f32.mxu0 %v647
  %732 = vmatmul.mubr.f32.gmra.mxu0 %v575
  %v733 = vpop.f32.mrf.mxu0
  %v734 = vadd.f32 %v635, %v733
  %v735 = vpop.f32.mrf.mxu0
  %v736 = vadd.f32 %v635, %v735
  %737 = vdwg.mxu0
  %v738 = vadd.f32 %v716, %v718
  %739 = vadd.xlane.f32.xlu0 %v738
  %v740 = vpop.xlane.xlu0 %739
  %v741 = vadd.f32 %v722, %v724
  %742 = vadd.xlane.f32.xlu0 %v741
  %v743 = vpop.xlane.xlu0 %742
  %v744 = vadd.f32 %v728, %v730
  %745 = vadd.xlane.f32.xlu0 %v744
  %v746 = vpop.xlane.xlu0 %745
  %v747 = vadd.f32 %v734, %v736
  %748 = vadd.xlane.f32.xlu0 %v747
  %v749 = vpop.xlane.xlu0 %748
  %v750 = vmul.f32 %v716, %v716
  %v751 = vmul.f32 %v718, %v718
  %v752 = vmul.f32 %v722, %v722
  %v753 = vmul.f32 %v724, %v724
  %v754 = vmul.f32 %v728, %v728
  %v755 = vmul.f32 %v730, %v730
  %v756 = vmul.f32 %v734, %v734
  %v757 = vmul.f32 %v736, %v736
  %v758 = vadd.f32 %v750, %v751
  %759 = vadd.xlane.f32.xlu0 %v758
  %v760 = vpop.xlane.xlu0 %759
  %v761 = vadd.f32 %v752, %v753
  %762 = vadd.xlane.f32.xlu0 %v761
  %v763 = vpop.xlane.xlu0 %762
  %v764 = vadd.f32 %v754, %v755
  %765 = vadd.xlane.f32.xlu0 %v764
  %v766 = vpop.xlane.xlu0 %765
  %v767 = vadd.f32 %v756, %v757
  %768 = vadd.xlane.f32.xlu0 %v767
  %v769 = vpop.xlane.xlu0 %768
  %v770 = vld [vmem:[%s6] sm:$0xff]
  %v771 = vld [vmem:[%s6 + $0x8] sm:$0xff]
  %v772 = vld [vmem:[%s6 + $0x10] sm:$0xff]
  %v773 = vld [vmem:[%s6 + $0x18] sm:$0xff]
  %v775 = vsel %vm438, %v770, 0
  %v778 = vsel %vm438, %v771, 0
  %v781 = vsel %vm438, %v772, 0
  %v784 = vsel %vm438, %v773, 0
  %786 = vmatprep.subr.mxu0 0.0
  %787 = vmatpush1.msra.mxu0 0.0
  %788 = vmatprep.subr.mxu0 0.0
  %789 = vmatpush1.msra.mxu0 0.0
  %790 = vmatprep.subr.mxu0 0.0
  %791 = vmatpush1.msra.mxu0 0.0
  %792 = vmatprep.subr.mxu0 0.0
  %793 = vmatpush1.msra.mxu0 0.0
  %794 = vmatprep.subr.mxu0 0.0
  %795 = vmatpush1.msra.mxu0 0.0
  %796 = vmatprep.subr.mxu0 0.0
  %797 = vmatpush1.msra.mxu0 0.0
  %798 = vmatprep.subr.mxu0 0.0
  %799 = vmatpush1.msra.mxu0 0.0
  %800 = vmatprep.subr.mxu0 0.0
  %801 = vmatpush1.msra.mxu0 0.0
  %802 = vmatprep.subr.mxu0 0.0
  %803 = vmatpush1.msra.mxu0 0.0
  %804 = vmatprep.subr.mxu0 0.0
  %805 = vmatpush1.msra.mxu0 0.0
  %806 = vmatprep.subr.mxu0 0.0
  %807 = vmatpush1.msra.mxu0 0.0
  %808 = vmatprep.subr.mxu0 0.0
  %809 = vmatpush1.msra.mxu0 0.0
  %810 = vmatprep.subr.mxu0 0.0
  %811 = vmatpush1.msra.mxu0 %v749
  %812 = vmatprep.subr.mxu0 0.0
  %813 = vmatpush1.msra.mxu0 %v746
  %814 = vmatprep.subr.mxu0 0.0
  %815 = vmatpush1.msra.mxu0 %v743
  %816 = vmatprep.subr.mxu0 0.0
  %817 = vmatpush1.msra.mxu0 %v740
  %818 = vmatprep.subr.mxu0 0.0
  %819 = vmatpush2.msra.mxu0 0.0
  %820 = vmatprep.subr.mxu0 0.0
  %821 = vmatpush2.msra.mxu0 0.0
  %822 = vmatprep.subr.mxu0 0.0
  %823 = vmatpush2.msra.mxu0 0.0
  %824 = vmatprep.subr.mxu0 0.0
  %825 = vmatpush2.msra.mxu0 0.0
  %826 = vmatprep.subr.mxu0 0.0
  %827 = vmatpush2.msra.mxu0 0.0
  %828 = vmatprep.subr.mxu0 0.0
  %829 = vmatpush2.msra.mxu0 0.0
  %830 = vmatprep.subr.mxu0 0.0
  %831 = vmatpush2.msra.mxu0 0.0
  %832 = vmatprep.subr.mxu0 0.0
  %833 = vmatpush2.msra.mxu0 0.0
  %834 = vmatprep.subr.mxu0 0.0
  %835 = vmatpush2.msra.mxu0 0.0
  %836 = vmatprep.subr.mxu0 0.0
  %837 = vmatpush2.msra.mxu0 0.0
  %838 = vmatprep.subr.mxu0 0.0
  %839 = vmatpush2.msra.mxu0 0.0
  %840 = vmatprep.subr.mxu0 0.0
  %841 = vmatpush2.msra.mxu0 0.0
  %842 = vmatprep.subr.mxu0 0.0
  %843 = vmatpush2.msra.mxu0 0.0
  %844 = vmatprep.subr.mxu0 0.0
  %845 = vmatpush2.msra.mxu0 0.0
  %846 = vmatprep.subr.mxu0 0.0
  %847 = vmatpush2.msra.mxu0 0.0
  %848 = vmatprep.subr.mxu0 0.0
  %849 = vmatpush2.msra.mxu0 0.0
  %850 = vmatprep.mubr.f32.mxu0 0.0
  %851 = vmatmul.mubr.f32.gmra.mxu0 %v775
  %v852 = vpop.f32.mrf.mxu0
  %v853 = vadd.f32 0.0, %v852
  %v854 = vpop.f32.mrf.mxu0
  %855 = vmatprep.mubr.f32.mxu0 0.0
  %856 = vmatmul.mubr.f32.gmra.mxu0 %v778
  %v857 = vpop.f32.mrf.mxu0
  %v858 = vadd.f32 0.0, %v857
  %v859 = vpop.f32.mrf.mxu0
  %860 = vmatprep.mubr.f32.mxu0 0.0
  %861 = vmatmul.mubr.f32.gmra.mxu0 %v781
  %v862 = vpop.f32.mrf.mxu0
  %v863 = vadd.f32 0.0, %v862
  %v864 = vpop.f32.mrf.mxu0
  %865 = vmatprep.mubr.f32.mxu0 0.0
  %866 = vmatmul.mubr.f32.gmra.mxu0 %v784
  %v867 = vpop.f32.mrf.mxu0
  %v868 = vadd.f32 0.0, %v867
  %v869 = vpop.f32.mrf.mxu0
  %870 = vdwg.mxu0
  %871 = vmatprep.subr.mxu0 0.0
  %872 = vmatpush1.msra.mxu0 0.0
  %873 = vmatprep.subr.mxu0 0.0
  %874 = vmatpush1.msra.mxu0 0.0
  %875 = vmatprep.subr.mxu0 0.0
  %876 = vmatpush1.msra.mxu0 0.0
  %877 = vmatprep.subr.mxu0 0.0
  %878 = vmatpush1.msra.mxu0 0.0
  %879 = vmatprep.subr.mxu0 0.0
  %880 = vmatpush1.msra.mxu0 0.0
  %881 = vmatprep.subr.mxu0 0.0
  %882 = vmatpush1.msra.mxu0 0.0
  %883 = vmatprep.subr.mxu0 0.0
  %884 = vmatpush1.msra.mxu0 0.0
  %885 = vmatprep.subr.mxu0 0.0
  %886 = vmatpush1.msra.mxu0 0.0
  %887 = vmatprep.subr.mxu0 0.0
  %888 = vmatpush1.msra.mxu0 0.0
  %889 = vmatprep.subr.mxu0 0.0
  %890 = vmatpush1.msra.mxu0 0.0
  %891 = vmatprep.subr.mxu0 0.0
  %892 = vmatpush1.msra.mxu0 0.0
  %893 = vmatprep.subr.mxu0 0.0
  %894 = vmatpush1.msra.mxu0 0.0
  %895 = vmatprep.subr.mxu0 0.0
  %896 = vmatpush1.msra.mxu0 %v769
  %897 = vmatprep.subr.mxu0 0.0
  %898 = vmatpush1.msra.mxu0 %v766
  %899 = vmatprep.subr.mxu0 0.0
  %900 = vmatpush1.msra.mxu0 %v763
  %901 = vmatprep.subr.mxu0 0.0
  %902 = vmatpush1.msra.mxu0 %v760
  %903 = vmatprep.subr.mxu0 0.0
  %904 = vmatpush2.msra.mxu0 0.0
  %905 = vmatprep.subr.mxu0 0.0
  %906 = vmatpush2.msra.mxu0 0.0
  %907 = vmatprep.subr.mxu0 0.0
  %908 = vmatpush2.msra.mxu0 0.0
  %909 = vmatprep.subr.mxu0 0.0
  %910 = vmatpush2.msra.mxu0 0.0
  %911 = vmatprep.subr.mxu0 0.0
  %912 = vmatpush2.msra.mxu0 0.0
  %913 = vmatprep.subr.mxu0 0.0
  %914 = vmatpush2.msra.mxu0 0.0
  %915 = vmatprep.subr.mxu0 0.0
  %916 = vmatpush2.msra.mxu0 0.0
  %917 = vmatprep.subr.mxu0 0.0
  %918 = vmatpush2.msra.mxu0 0.0
  %919 = vmatprep.subr.mxu0 0.0
  %920 = vmatpush2.msra.mxu0 0.0
  %921 = vmatprep.subr.mxu0 0.0
  %922 = vmatpush2.msra.mxu0 0.0
  %923 = vmatprep.subr.mxu0 0.0
  %924 = vmatpush2.msra.mxu0 0.0
  %925 = vmatprep.subr.mxu0 0.0
  %926 = vmatpush2.msra.mxu0 0.0
  %927 = vmatprep.subr.mxu0 0.0
  %928 = vmatpush2.msra.mxu0 0.0
  %929 = vmatprep.subr.mxu0 0.0
  %930 = vmatpush2.msra.mxu0 0.0
  %931 = vmatprep.subr.mxu0 0.0
  %932 = vmatpush2.msra.mxu0 0.0
  %933 = vmatprep.subr.mxu0 0.0
  %934 = vmatpush2.msra.mxu0 0.0
  %935 = vmatprep.mubr.f32.mxu0 0.0
  %936 = vmatmul.mubr.f32.gmra.mxu0 %v775
  %v937 = vpop.f32.mrf.mxu0
  %v938 = vadd.f32 0.0, %v937
  %v939 = vpop.f32.mrf.mxu0
  %940 = vmatprep.mubr.f32.mxu0 0.0
  %941 = vmatmul.mubr.f32.gmra.mxu0 %v778
  %v942 = vpop.f32.mrf.mxu0
  %v943 = vadd.f32 0.0, %v942
  %v944 = vpop.f32.mrf.mxu0
  %945 = vmatprep.mubr.f32.mxu0 0.0
  %946 = vmatmul.mubr.f32.gmra.mxu0 %v781
  %v947 = vpop.f32.mrf.mxu0
  %v948 = vadd.f32 0.0, %v947
  %v949 = vpop.f32.mrf.mxu0
  %950 = vmatprep.mubr.f32.mxu0 0.0
  %951 = vmatmul.mubr.f32.gmra.mxu0 %v784
  %v952 = vpop.f32.mrf.mxu0
  %v953 = vadd.f32 0.0, %v952
  %v954 = vpop.f32.mrf.mxu0
  %955 = vdwg.mxu0
  %v956 = vmul.f32 %v853, %v853
  %v957 = vmul.f32 %v858, %v858
  %v958 = vmul.f32 %v863, %v863
  %v959 = vmul.f32 %v868, %v868
  %v960 = vsub.f32 %v938, %v956
  %v961 = vsub.f32 %v943, %v957
  %v962 = vsub.f32 %v948, %v958
  %v963 = vsub.f32 %v953, %v959
  %v964 = vadd.f32 %v960, 1e-05
  %v965 = vadd.f32 %v961, 1e-05
  %v966 = vadd.f32 %v962, 1e-05
  %v967 = vadd.f32 %v963, 1e-05
  %v968 = vrsqrt.pop %v964
  %v969 = vrsqrt.pop %v965
  %v970 = vrsqrt.pop %v966
  %v971 = vrsqrt.pop %v967
  %973 = vset.pattern.permute.xlu0 0
  %974 = vperm.xlu0 %973, %v853
  %v975 = vpop.permute.xlu0 %974
  %978 = vset.pattern.permute.xlu0 0
  %979 = vperm.xlu0 %978, %v858
  %v980 = vpop.permute.xlu0 %979
  %983 = vset.pattern.permute.xlu0 0
  %984 = vperm.xlu0 %983, %v863
  %v985 = vpop.permute.xlu0 %984
  %988 = vset.pattern.permute.xlu0 0
  %989 = vperm.xlu0 %988, %v868
  %v990 = vpop.permute.xlu0 %989
  %v992 = vsub.f32 %v716, %v975
  %v993 = vsub.f32 %v718, %v975
  %v994 = vsub.f32 %v722, %v980
  %v995 = vsub.f32 %v724, %v980
  %v996 = vsub.f32 %v728, %v985
  %v997 = vsub.f32 %v730, %v985
  %v998 = vsub.f32 %v734, %v990
  %v999 = vsub.f32 %v736, %v990
  %1001 = vset.pattern.permute.xlu0 0
  %1002 = vperm.xlu0 %1001, %v968
  %v1003 = vpop.permute.xlu0 %1002
  %1006 = vset.pattern.permute.xlu0 0
  %1007 = vperm.xlu0 %1006, %v969
  %v1008 = vpop.permute.xlu0 %1007
  %1011 = vset.pattern.permute.xlu0 0
  %1012 = vperm.xlu0 %1011, %v970
  %v1013 = vpop.permute.xlu0 %1012
  %1016 = vset.pattern.permute.xlu0 0
  %1017 = vperm.xlu0 %1016, %v971
  %v1018 = vpop.permute.xlu0 %1017
  %v1020 = vmul.f32 %v992, %v1003
  %v1021 = vmul.f32 %v993, %v1003
  %v1022 = vmul.f32 %v994, %v1008
  %v1023 = vmul.f32 %v995, %v1008
  %v1024 = vmul.f32 %v996, %v1013
  %v1025 = vmul.f32 %v997, %v1013
  %v1026 = vmul.f32 %v998, %v1018
  %v1027 = vmul.f32 %v999, %v1018
  %v1028 = vld [vmem:[%s7] sm:$0xff]
  %v1029 = vld [vmem:[%s7 + $0x8] sm:$0xff]
  %v1030 = vld [vmem:[%s7 + $0x10] sm:$0xff]
  %v1031 = vld [vmem:[%s7 + $0x18] sm:$0xff]
  %1033 = vset.pattern.permute.xlu0 0
  %1034 = vperm.xlu0 %1033, %v1028
  %v1035 = vpop.permute.xlu0 %1034
  %1038 = vset.pattern.permute.xlu0 0
  %1039 = vperm.xlu0 %1038, %v1029
  %v1040 = vpop.permute.xlu0 %1039
  %1043 = vset.pattern.permute.xlu0 0
  %1044 = vperm.xlu0 %1043, %v1030
  %v1045 = vpop.permute.xlu0 %1044
  %1048 = vset.pattern.permute.xlu0 0
  %1049 = vperm.xlu0 %1048, %v1031
  %v1050 = vpop.permute.xlu0 %1049
  %v1052 = vmul.f32 %v1020, %v1035
  %v1053 = vmul.f32 %v1021, %v1035
  %v1054 = vmul.f32 %v1022, %v1040
  %v1055 = vmul.f32 %v1023, %v1040
  %v1056 = vmul.f32 %v1024, %v1045
  %v1057 = vmul.f32 %v1025, %v1045
  %v1058 = vmul.f32 %v1026, %v1050
  %v1059 = vmul.f32 %v1027, %v1050
  %v1060 = vld [vmem:[%s8] sm:$0xff]
  %v1061 = vld [vmem:[%s8 + $0x8] sm:$0xff]
  %v1062 = vld [vmem:[%s8 + $0x10] sm:$0xff]
  %v1063 = vld [vmem:[%s8 + $0x18] sm:$0xff]
  %1065 = vset.pattern.permute.xlu0 0
  %1066 = vperm.xlu0 %1065, %v1060
  %v1067 = vpop.permute.xlu0 %1066
  %1070 = vset.pattern.permute.xlu0 0
  %1071 = vperm.xlu0 %1070, %v1061
  %v1072 = vpop.permute.xlu0 %1071
  %1075 = vset.pattern.permute.xlu0 0
  %1076 = vperm.xlu0 %1075, %v1062
  %v1077 = vpop.permute.xlu0 %1076
  %1080 = vset.pattern.permute.xlu0 0
  %1081 = vperm.xlu0 %1080, %v1063
  %v1082 = vpop.permute.xlu0 %1081
  %v1084 = vadd.f32 %v1052, %v1067
  %v1085 = vadd.f32 %v1053, %v1067
  %v1086 = vadd.f32 %v1054, %v1072
  %v1087 = vadd.f32 %v1055, %v1072
  %v1088 = vadd.f32 %v1056, %v1077
  %v1089 = vadd.f32 %v1057, %v1077
  %v1090 = vadd.f32 %v1058, %v1082
  %v1091 = vadd.f32 %v1059, %v1082
  %v1092 = vmax.f32 %v1084, 0.0
  %v1093 = vmax.f32 %v1085, 0.0
  %v1094 = vmax.f32 %v1086, 0.0
  %v1095 = vmax.f32 %v1087, 0.0
  %v1096 = vmax.f32 %v1088, 0.0
  %v1097 = vmax.f32 %v1089, 0.0
  %v1098 = vmax.f32 %v1090, 0.0
  %v1099 = vmax.f32 %v1091, 0.0
  %1108 = vrot.lane.b32.xlu0 %v1092, 17
  %v1109 = vpop.permute.xlu0 %1108
  %1110 = vrot.lane.b32.xlu0 %v1093, 17
  %v1111 = vpop.permute.xlu0 %1110
  %1112 = vrot.lane.b32.xlu0 %v1094, 17
  %v1113 = vpop.permute.xlu0 %1112
  %1114 = vrot.lane.b32.xlu0 %v1095, 17
  %v1115 = vpop.permute.xlu0 %1114
  %1116 = vrot.lane.b32.xlu0 %v1096, 17
  %v1117 = vpop.permute.xlu0 %1116
  %1118 = vrot.lane.b32.xlu0 %v1097, 17
  %v1119 = vpop.permute.xlu0 %1118
  %1120 = vrot.lane.b32.xlu0 %v1098, 17
  %v1121 = vpop.permute.xlu0 %1120
  %1122 = vrot.lane.b32.xlu0 %v1099, 17
  %v1123 = vpop.permute.xlu0 %1122
  %v1124 = vsel %vm53, %v1109, %v1111
  %v1125 = vsel %vm53, %v1113, %v1115
  %v1126 = vsel %vm53, %v1117, %v1119
  %v1127 = vsel %vm53, %v1121, %v1123
  %1140 = vst.msk [vmem:[#allocation2] sm:$0xff] %vm159, %v1109
  %1141 = vst [vmem:[#allocation2 + $0x8] sm:$0xff] %v1124
  %1142 = vst.msk [vmem:[#allocation2 + $0x10] sm:$0xff] %vm53, %v1111
  %1143 = vst.msk [vmem:[#allocation2 + $0x18] sm:$0xff] %vm159, %v1113
  %1144 = vst [vmem:[#allocation2 + $0x20] sm:$0xff] %v1125
  %1145 = vst.msk [vmem:[#allocation2 + $0x28] sm:$0xff] %vm53, %v1115
  %1146 = vst.msk [vmem:[#allocation2 + $0x30] sm:$0xff] %vm159, %v1117
  %1147 = vst [vmem:[#allocation2 + $0x38] sm:$0xff] %v1126
  %1148 = vst.msk [vmem:[#allocation2 + $0x40] sm:$0xff] %vm53, %v1119
  %1149 = vst.msk [vmem:[#allocation2 + $0x48] sm:$0xff] %vm159, %v1121
  %1150 = vst [vmem:[#allocation2 + $0x50] sm:$0xff] %v1127
  %1151 = vst.msk [vmem:[#allocation2 + $0x58] sm:$0xff] %vm53, %v1123
  %v1152 = vld [vmem:[#allocation2] sm:$0xff]
  %v1153 = vld [vmem:[#allocation2 + $0x8] sm:$0xff]
  %v1154 = vld [vmem:[#allocation2 + $0x18] sm:$0xff]
  %v1155 = vld [vmem:[#allocation2 + $0x20] sm:$0xff]
  %v1156 = vld [vmem:[#allocation2 + $0x30] sm:$0xff]
  %v1157 = vld [vmem:[#allocation2 + $0x38] sm:$0xff]
  %v1158 = vld [vmem:[#allocation2 + $0x48] sm:$0xff]
  %v1159 = vld [vmem:[#allocation2 + $0x50] sm:$0xff]
  %v1160 = vmul.f32 %v1152, %v174
  %v1161 = vmul.f32 %v1153, %v178
  %v1162 = vmul.f32 %v1154, %v174
  %v1163 = vmul.f32 %v1155, %v178
  %v1164 = vmul.f32 %v1156, %v174
  %v1165 = vmul.f32 %v1157, %v178
  %v1166 = vmul.f32 %v1158, %v174
  %v1167 = vmul.f32 %v1159, %v178
  %1168 = vst [vmem:[#allocation3] sm:$0xff] %v1160
  %1169 = vst [vmem:[#allocation3 + $0x8] sm:$0xff] %v1161
  %1170 = vst [vmem:[#allocation3 + $0x10] sm:$0xff] %v1162
  %1171 = vst [vmem:[#allocation3 + $0x18] sm:$0xff] %v1163
  %1172 = vst [vmem:[#allocation3 + $0x20] sm:$0xff] %v1164
  %1173 = vst [vmem:[#allocation3 + $0x28] sm:$0xff] %v1165
  %1174 = vst [vmem:[#allocation3 + $0x30] sm:$0xff] %v1166
  %1175 = vst [vmem:[#allocation3 + $0x38] sm:$0xff] %v1167
  %v1176 = vld [vmem:[#allocation2] sm:$0xff]
  %v1177 = vld [vmem:[#allocation2 + $0x8] sm:$0xff]
  %v1178 = vld [vmem:[#allocation2 + $0x10] sm:$0xff]
  %v1179 = vld [vmem:[#allocation2 + $0x18] sm:$0xff]
  %v1180 = vld [vmem:[#allocation2 + $0x20] sm:$0xff]
  %v1181 = vld [vmem:[#allocation2 + $0x28] sm:$0xff]
  %v1182 = vld [vmem:[#allocation2 + $0x30] sm:$0xff]
  %v1183 = vld [vmem:[#allocation2 + $0x38] sm:$0xff]
  %v1184 = vld [vmem:[#allocation2 + $0x40] sm:$0xff]
  %v1185 = vld [vmem:[#allocation2 + $0x48] sm:$0xff]
  %v1186 = vld [vmem:[#allocation2 + $0x50] sm:$0xff]
  %v1187 = vld [vmem:[#allocation2 + $0x58] sm:$0xff]
  %1200 = vrot.lane.b32.xlu0 %v1176, 127
  %v1201 = vpop.permute.xlu0 %1200
  %1202 = vrot.lane.b32.xlu0 %v1177, 127
  %v1203 = vpop.permute.xlu0 %1202
  %1204 = vrot.lane.b32.xlu0 %v1178, 127
  %v1205 = vpop.permute.xlu0 %1204
  %1206 = vrot.lane.b32.xlu0 %v1179, 127
  %v1207 = vpop.permute.xlu0 %1206
  %1208 = vrot.lane.b32.xlu0 %v1180, 127
  %v1209 = vpop.permute.xlu0 %1208
  %1210 = vrot.lane.b32.xlu0 %v1181, 127
  %v1211 = vpop.permute.xlu0 %1210
  %1212 = vrot.lane.b32.xlu0 %v1182, 127
  %v1213 = vpop.permute.xlu0 %1212
  %1214 = vrot.lane.b32.xlu0 %v1183, 127
  %v1215 = vpop.permute.xlu0 %1214
  %1216 = vrot.lane.b32.xlu0 %v1184, 127
  %v1217 = vpop.permute.xlu0 %1216
  %1218 = vrot.lane.b32.xlu0 %v1185, 127
  %v1219 = vpop.permute.xlu0 %1218
  %1220 = vrot.lane.b32.xlu0 %v1186, 127
  %v1221 = vpop.permute.xlu0 %1220
  %1222 = vrot.lane.b32.xlu0 %v1187, 127
  %v1223 = vpop.permute.xlu0 %1222
  %v1224 = vsel %vm213, %v1201, %v1203
  %v1225 = vsel %vm213, %v1203, %v1205
  %v1226 = vsel %vm213, %v1207, %v1209
  %v1227 = vsel %vm213, %v1209, %v1211
  %v1228 = vsel %vm213, %v1213, %v1215
  %v1229 = vsel %vm213, %v1215, %v1217
  %v1230 = vsel %vm213, %v1219, %v1221
  %v1231 = vsel %vm213, %v1221, %v1223
  %1240 = vst [vmem:[#allocation3 + $0x40] sm:$0xff] %v1224
  %1241 = vst [vmem:[#allocation3 + $0x48] sm:$0xff] %v1225
  %1242 = vst [vmem:[#allocation3 + $0x50] sm:$0xff] %v1226
  %1243 = vst [vmem:[#allocation3 + $0x58] sm:$0xff] %v1227
  %1244 = vst [vmem:[#allocation3 + $0x60] sm:$0xff] %v1228
  %1245 = vst [vmem:[#allocation3 + $0x68] sm:$0xff] %v1229
  %1246 = vst [vmem:[#allocation3 + $0x70] sm:$0xff] %v1230
  %1247 = vst [vmem:[#allocation3 + $0x78] sm:$0xff] %v1231
  %v1248 = vld [vmem:[#allocation2] sm:$0xff]
  %v1249 = vld [vmem:[#allocation2 + $0x8] sm:$0xff]
  %v1250 = vld [vmem:[#allocation2 + $0x10] sm:$0xff]
  %v1251 = vld [vmem:[#allocation2 + $0x18] sm:$0xff]
  %v1252 = vld [vmem:[#allocation2 + $0x20] sm:$0xff]
  %v1253 = vld [vmem:[#allocation2 + $0x28] sm:$0xff]
  %v1254 = vld [vmem:[#allocation2 + $0x30] sm:$0xff]
  %v1255 = vld [vmem:[#allocation2 + $0x38] sm:$0xff]
  %v1256 = vld [vmem:[#allocation2 + $0x40] sm:$0xff]
  %v1257 = vld [vmem:[#allocation2 + $0x48] sm:$0xff]
  %v1258 = vld [vmem:[#allocation2 + $0x50] sm:$0xff]
  %v1259 = vld [vmem:[#allocation2 + $0x58] sm:$0xff]
  %v1260 = vmul.f32 %v1248, %v242
  %v1261 = vmul.f32 %v1249, %v246
  %v1262 = vmul.f32 %v1250, %v244
  %v1263 = vmul.f32 %v1251, %v242
  %v1264 = vmul.f32 %v1252, %v246
  %v1265 = vmul.f32 %v1253, %v244
  %v1266 = vmul.f32 %v1254, %v242
  %v1267 = vmul.f32 %v1255, %v246
  %v1268 = vmul.f32 %v1256, %v244
  %v1269 = vmul.f32 %v1257, %v242
  %v1270 = vmul.f32 %v1258, %v246
  %v1271 = vmul.f32 %v1259, %v244
  %1284 = vrot.lane.b32.xlu0 %v1260, 126
  %v1285 = vpop.permute.xlu0 %1284
  %1286 = vrot.lane.b32.xlu0 %v1261, 126
  %v1287 = vpop.permute.xlu0 %1286
  %1288 = vrot.lane.b32.xlu0 %v1262, 126
  %v1289 = vpop.permute.xlu0 %1288
  %1290 = vrot.lane.b32.xlu0 %v1263, 126
  %v1291 = vpop.permute.xlu0 %1290
  %1292 = vrot.lane.b32.xlu0 %v1264, 126
  %v1293 = vpop.permute.xlu0 %1292
  %1294 = vrot.lane.b32.xlu0 %v1265, 126
  %v1295 = vpop.permute.xlu0 %1294
  %1296 = vrot.lane.b32.xlu0 %v1266, 126
  %v1297 = vpop.permute.xlu0 %1296
  %1298 = vrot.lane.b32.xlu0 %v1267, 126
  %v1299 = vpop.permute.xlu0 %1298
  %1300 = vrot.lane.b32.xlu0 %v1268, 126
  %v1301 = vpop.permute.xlu0 %1300
  %1302 = vrot.lane.b32.xlu0 %v1269, 126
  %v1303 = vpop.permute.xlu0 %1302
  %1304 = vrot.lane.b32.xlu0 %v1270, 126
  %v1305 = vpop.permute.xlu0 %1304
  %1306 = vrot.lane.b32.xlu0 %v1271, 126
  %v1307 = vpop.permute.xlu0 %1306
  %v1308 = vsel %vm274, %v1285, %v1287
  %v1309 = vsel %vm274, %v1287, %v1289
  %v1310 = vsel %vm274, %v1291, %v1293
  %v1311 = vsel %vm274, %v1293, %v1295
  %v1312 = vsel %vm274, %v1297, %v1299
  %v1313 = vsel %vm274, %v1299, %v1301
  %v1314 = vsel %vm274, %v1303, %v1305
  %v1315 = vsel %vm274, %v1305, %v1307
  %1324 = vst [vmem:[#allocation3 + $0x80] sm:$0xff] %v1308
  %1325 = vst [vmem:[#allocation3 + $0x88] sm:$0xff] %v1309
  %1326 = vst [vmem:[#allocation3 + $0x90] sm:$0xff] %v1310
  %1327 = vst [vmem:[#allocation3 + $0x98] sm:$0xff] %v1311
  %1328 = vst [vmem:[#allocation3 + $0xa0] sm:$0xff] %v1312
  %1329 = vst [vmem:[#allocation3 + $0xa8] sm:$0xff] %v1313
  %1330 = vst [vmem:[#allocation3 + $0xb0] sm:$0xff] %v1314
  %1331 = vst [vmem:[#allocation3 + $0xb8] sm:$0xff] %v1315
  %v1332 = vld [vmem:[#allocation2] sm:$0xff]
  %v1333 = vld [vmem:[#allocation2 + $0x8] sm:$0xff]
  %v1334 = vld [vmem:[#allocation2 + $0x10] sm:$0xff]
  %v1335 = vld [vmem:[#allocation2 + $0x18] sm:$0xff]
  %v1336 = vld [vmem:[#allocation2 + $0x20] sm:$0xff]
  %v1337 = vld [vmem:[#allocation2 + $0x28] sm:$0xff]
  %v1338 = vld [vmem:[#allocation2 + $0x30] sm:$0xff]
  %v1339 = vld [vmem:[#allocation2 + $0x38] sm:$0xff]
  %v1340 = vld [vmem:[#allocation2 + $0x40] sm:$0xff]
  %v1341 = vld [vmem:[#allocation2 + $0x48] sm:$0xff]
  %v1342 = vld [vmem:[#allocation2 + $0x50] sm:$0xff]
  %v1343 = vld [vmem:[#allocation2 + $0x58] sm:$0xff]
  %v1344 = vmul.f32 %v1332, %v294
  %v1345 = vmul.f32 %v1333, %v298
  %v1346 = vmul.f32 %v1334, %v296
  %v1347 = vmul.f32 %v1335, %v294
  %v1348 = vmul.f32 %v1336, %v298
  %v1349 = vmul.f32 %v1337, %v296
  %v1350 = vmul.f32 %v1338, %v294
  %v1351 = vmul.f32 %v1339, %v298
  %v1352 = vmul.f32 %v1340, %v296
  %v1353 = vmul.f32 %v1341, %v294
  %v1354 = vmul.f32 %v1342, %v298
  %v1355 = vmul.f32 %v1343, %v296
  %1368 = vrot.lane.b32.xlu0 %v1344, 112
  %v1369 = vpop.permute.xlu0 %1368
  %1370 = vrot.lane.b32.xlu0 %v1345, 112
  %v1371 = vpop.permute.xlu0 %1370
  %1372 = vrot.lane.b32.xlu0 %v1346, 112
  %v1373 = vpop.permute.xlu0 %1372
  %1374 = vrot.lane.b32.xlu0 %v1347, 112
  %v1375 = vpop.permute.xlu0 %1374
  %1376 = vrot.lane.b32.xlu0 %v1348, 112
  %v1377 = vpop.permute.xlu0 %1376
  %1378 = vrot.lane.b32.xlu0 %v1349, 112
  %v1379 = vpop.permute.xlu0 %1378
  %1380 = vrot.lane.b32.xlu0 %v1350, 112
  %v1381 = vpop.permute.xlu0 %1380
  %1382 = vrot.lane.b32.xlu0 %v1351, 112
  %v1383 = vpop.permute.xlu0 %1382
  %1384 = vrot.lane.b32.xlu0 %v1352, 112
  %v1385 = vpop.permute.xlu0 %1384
  %1386 = vrot.lane.b32.xlu0 %v1353, 112
  %v1387 = vpop.permute.xlu0 %1386
  %1388 = vrot.lane.b32.xlu0 %v1354, 112
  %v1389 = vpop.permute.xlu0 %1388
  %1390 = vrot.lane.b32.xlu0 %v1355, 112
  %v1391 = vpop.permute.xlu0 %1390
  %v1392 = vsel %vm326, %v1369, %v1371
  %v1393 = vsel %vm326, %v1371, %v1373
  %v1394 = vsel %vm326, %v1375, %v1377
  %v1395 = vsel %vm326, %v1377, %v1379
  %v1396 = vsel %vm326, %v1381, %v1383
  %v1397 = vsel %vm326, %v1383, %v1385
  %v1398 = vsel %vm326, %v1387, %v1389
  %v1399 = vsel %vm326, %v1389, %v1391
  %1408 = vst [vmem:[#allocation3 + $0xc0] sm:$0xff] %v1392
  %1409 = vst [vmem:[#allocation3 + $0xc8] sm:$0xff] %v1393
  %1410 = vst [vmem:[#allocation3 + $0xd0] sm:$0xff] %v1394
  %1411 = vst [vmem:[#allocation3 + $0xd8] sm:$0xff] %v1395
  %1412 = vst [vmem:[#allocation3 + $0xe0] sm:$0xff] %v1396
  %1413 = vst [vmem:[#allocation3 + $0xe8] sm:$0xff] %v1397
  %1414 = vst [vmem:[#allocation3 + $0xf0] sm:$0xff] %v1398
  %1415 = vst [vmem:[#allocation3 + $0xf8] sm:$0xff] %v1399
  %v1416 = vld [vmem:[#allocation2] sm:$0xff]
  %v1417 = vld [vmem:[#allocation2 + $0x8] sm:$0xff]
  %v1418 = vld [vmem:[#allocation2 + $0x10] sm:$0xff]
  %v1419 = vld [vmem:[#allocation2 + $0x18] sm:$0xff]
  %v1420 = vld [vmem:[#allocation2 + $0x20] sm:$0xff]
  %v1421 = vld [vmem:[#allocation2 + $0x28] sm:$0xff]
  %v1422 = vld [vmem:[#allocation2 + $0x30] sm:$0xff]
  %v1423 = vld [vmem:[#allocation2 + $0x38] sm:$0xff]
  %v1424 = vld [vmem:[#allocation2 + $0x40] sm:$0xff]
  %v1425 = vld [vmem:[#allocation2 + $0x48] sm:$0xff]
  %v1426 = vld [vmem:[#allocation2 + $0x50] sm:$0xff]
  %v1427 = vld [vmem:[#allocation2 + $0x58] sm:$0xff]
  %1440 = vrot.lane.b32.xlu0 %v1416, 111
  %v1441 = vpop.permute.xlu0 %1440
  %1442 = vrot.lane.b32.xlu0 %v1417, 111
  %v1443 = vpop.permute.xlu0 %1442
  %1444 = vrot.lane.b32.xlu0 %v1418, 111
  %v1445 = vpop.permute.xlu0 %1444
  %1446 = vrot.lane.b32.xlu0 %v1419, 111
  %v1447 = vpop.permute.xlu0 %1446
  %1448 = vrot.lane.b32.xlu0 %v1420, 111
  %v1449 = vpop.permute.xlu0 %1448
  %1450 = vrot.lane.b32.xlu0 %v1421, 111
  %v1451 = vpop.permute.xlu0 %1450
  %1452 = vrot.lane.b32.xlu0 %v1422, 111
  %v1453 = vpop.permute.xlu0 %1452
  %1454 = vrot.lane.b32.xlu0 %v1423, 111
  %v1455 = vpop.permute.xlu0 %1454
  %1456 = vrot.lane.b32.xlu0 %v1424, 111
  %v1457 = vpop.permute.xlu0 %1456
  %1458 = vrot.lane.b32.xlu0 %v1425, 111
  %v1459 = vpop.permute.xlu0 %1458
  %1460 = vrot.lane.b32.xlu0 %v1426, 111
  %v1461 = vpop.permute.xlu0 %1460
  %1462 = vrot.lane.b32.xlu0 %v1427, 111
  %v1463 = vpop.permute.xlu0 %1462
  %v1464 = vsel %vm363, %v1441, %v1443
  %v1465 = vsel %vm363, %v1443, %v1445
  %v1466 = vsel %vm363, %v1447, %v1449
  %v1467 = vsel %vm363, %v1449, %v1451
  %v1468 = vsel %vm363, %v1453, %v1455
  %v1469 = vsel %vm363, %v1455, %v1457
  %v1470 = vsel %vm363, %v1459, %v1461
  %v1471 = vsel %vm363, %v1461, %v1463
  %1480 = vst [vmem:[#allocation3 + $0x100] sm:$0xff] %v1464
  %1481 = vst [vmem:[#allocation3 + $0x108] sm:$0xff] %v1465
  %1482 = vst [vmem:[#allocation3 + $0x110] sm:$0xff] %v1466
  %1483 = vst [vmem:[#allocation3 + $0x118] sm:$0xff] %v1467
  %1484 = vst [vmem:[#allocation3 + $0x120] sm:$0xff] %v1468
  %1485 = vst [vmem:[#allocation3 + $0x128] sm:$0xff] %v1469
  %1486 = vst [vmem:[#allocation3 + $0x130] sm:$0xff] %v1470
  %1487 = vst [vmem:[#allocation3 + $0x138] sm:$0xff] %v1471
  %v1488 = vld [vmem:[#allocation2] sm:$0xff]
  %v1489 = vld [vmem:[#allocation2 + $0x8] sm:$0xff]
  %v1490 = vld [vmem:[#allocation2 + $0x10] sm:$0xff]
  %v1491 = vld [vmem:[#allocation2 + $0x18] sm:$0xff]
  %v1492 = vld [vmem:[#allocation2 + $0x20] sm:$0xff]
  %v1493 = vld [vmem:[#allocation2 + $0x28] sm:$0xff]
  %v1494 = vld [vmem:[#allocation2 + $0x30] sm:$0xff]
  %v1495 = vld [vmem:[#allocation2 + $0x38] sm:$0xff]
  %v1496 = vld [vmem:[#allocation2 + $0x40] sm:$0xff]
  %v1497 = vld [vmem:[#allocation2 + $0x48] sm:$0xff]
  %v1498 = vld [vmem:[#allocation2 + $0x50] sm:$0xff]
  %v1499 = vld [vmem:[#allocation2 + $0x58] sm:$0xff]
  %v1500 = vmul.f32 %v1488, %v383
  %v1501 = vmul.f32 %v1489, %v387
  %v1502 = vmul.f32 %v1490, %v385
  %v1503 = vmul.f32 %v1491, %v383
  %v1504 = vmul.f32 %v1492, %v387
  %v1505 = vmul.f32 %v1493, %v385
  %v1506 = vmul.f32 %v1494, %v383
  %v1507 = vmul.f32 %v1495, %v387
  %v1508 = vmul.f32 %v1496, %v385
  %v1509 = vmul.f32 %v1497, %v383
  %v1510 = vmul.f32 %v1498, %v387
  %v1511 = vmul.f32 %v1499, %v385
  %1524 = vrot.lane.b32.xlu0 %v1500, 110
  %v1525 = vpop.permute.xlu0 %1524
  %1526 = vrot.lane.b32.xlu0 %v1501, 110
  %v1527 = vpop.permute.xlu0 %1526
  %1528 = vrot.lane.b32.xlu0 %v1502, 110
  %v1529 = vpop.permute.xlu0 %1528
  %1530 = vrot.lane.b32.xlu0 %v1503, 110
  %v1531 = vpop.permute.xlu0 %1530
  %1532 = vrot.lane.b32.xlu0 %v1504, 110
  %v1533 = vpop.permute.xlu0 %1532
  %1534 = vrot.lane.b32.xlu0 %v1505, 110
  %v1535 = vpop.permute.xlu0 %1534
  %1536 = vrot.lane.b32.xlu0 %v1506, 110
  %v1537 = vpop.permute.xlu0 %1536
  %1538 = vrot.lane.b32.xlu0 %v1507, 110
  %v1539 = vpop.permute.xlu0 %1538
  %1540 = vrot.lane.b32.xlu0 %v1508, 110
  %v1541 = vpop.permute.xlu0 %1540
  %1542 = vrot.lane.b32.xlu0 %v1509, 110
  %v1543 = vpop.permute.xlu0 %1542
  %1544 = vrot.lane.b32.xlu0 %v1510, 110
  %v1545 = vpop.permute.xlu0 %1544
  %1546 = vrot.lane.b32.xlu0 %v1511, 110
  %v1547 = vpop.permute.xlu0 %1546
  %v1548 = vsel %vm415, %v1525, %v1527
  %v1549 = vsel %vm415, %v1527, %v1529
  %v1550 = vsel %vm415, %v1531, %v1533
  %v1551 = vsel %vm415, %v1533, %v1535
  %v1552 = vsel %vm415, %v1537, %v1539
  %v1553 = vsel %vm415, %v1539, %v1541
  %v1554 = vsel %vm415, %v1543, %v1545
  %v1555 = vsel %vm415, %v1545, %v1547
  %1564 = vst [vmem:[#allocation3 + $0x140] sm:$0xff] %v1548
  %1565 = vst [vmem:[#allocation3 + $0x148] sm:$0xff] %v1549
  %1566 = vst [vmem:[#allocation3 + $0x150] sm:$0xff] %v1550
  %1567 = vst [vmem:[#allocation3 + $0x158] sm:$0xff] %v1551
  %1568 = vst [vmem:[#allocation3 + $0x160] sm:$0xff] %v1552
  %1569 = vst [vmem:[#allocation3 + $0x168] sm:$0xff] %v1553
  %1570 = vst [vmem:[#allocation3 + $0x170] sm:$0xff] %v1554
  %1571 = vst [vmem:[#allocation3 + $0x178] sm:$0xff] %v1555
  %v1572 = vld [vmem:[#allocation2] sm:$0xff]
  %v1573 = vld [vmem:[#allocation2 + $0x8] sm:$0xff]
  %v1574 = vld [vmem:[#allocation2 + $0x10] sm:$0xff]
  %v1575 = vld [vmem:[#allocation2 + $0x18] sm:$0xff]
  %v1576 = vld [vmem:[#allocation2 + $0x20] sm:$0xff]
  %v1577 = vld [vmem:[#allocation2 + $0x28] sm:$0xff]
  %v1578 = vld [vmem:[#allocation2 + $0x30] sm:$0xff]
  %v1579 = vld [vmem:[#allocation2 + $0x38] sm:$0xff]
  %v1580 = vld [vmem:[#allocation2 + $0x40] sm:$0xff]
  %v1581 = vld [vmem:[#allocation2 + $0x48] sm:$0xff]
  %v1582 = vld [vmem:[#allocation2 + $0x50] sm:$0xff]
  %v1583 = vld [vmem:[#allocation2 + $0x58] sm:$0xff]
  %v1584 = vmul.f32 %v1572, %v435
  %v1585 = vmul.f32 %v1573, %v439
  %v1586 = vmul.f32 %v1574, %v437
  %v1587 = vmul.f32 %v1575, %v435
  %v1588 = vmul.f32 %v1576, %v439
  %v1589 = vmul.f32 %v1577, %v437
  %v1590 = vmul.f32 %v1578, %v435
  %v1591 = vmul.f32 %v1579, %v439
  %v1592 = vmul.f32 %v1580, %v437
  %v1593 = vmul.f32 %v1581, %v435
  %v1594 = vmul.f32 %v1582, %v439
  %v1595 = vmul.f32 %v1583, %v437
  %1608 = vrot.lane.b32.xlu0 %v1584, 96
  %v1609 = vpop.permute.xlu0 %1608
  %1610 = vrot.lane.b32.xlu0 %v1585, 96
  %v1611 = vpop.permute.xlu0 %1610
  %1612 = vrot.lane.b32.xlu0 %v1586, 96
  %v1613 = vpop.permute.xlu0 %1612
  %1614 = vrot.lane.b32.xlu0 %v1587, 96
  %v1615 = vpop.permute.xlu0 %1614
  %1616 = vrot.lane.b32.xlu0 %v1588, 96
  %v1617 = vpop.permute.xlu0 %1616
  %1618 = vrot.lane.b32.xlu0 %v1589, 96
  %v1619 = vpop.permute.xlu0 %1618
  %1620 = vrot.lane.b32.xlu0 %v1590, 96
  %v1621 = vpop.permute.xlu0 %1620
  %1622 = vrot.lane.b32.xlu0 %v1591, 96
  %v1623 = vpop.permute.xlu0 %1622
  %1624 = vrot.lane.b32.xlu0 %v1592, 96
  %v1625 = vpop.permute.xlu0 %1624
  %1626 = vrot.lane.b32.xlu0 %v1593, 96
  %v1627 = vpop.permute.xlu0 %1626
  %1628 = vrot.lane.b32.xlu0 %v1594, 96
  %v1629 = vpop.permute.xlu0 %1628
  %1630 = vrot.lane.b32.xlu0 %v1595, 96
  %v1631 = vpop.permute.xlu0 %1630
  %v1632 = vsel %vm467, %v1609, %v1611
  %v1633 = vsel %vm467, %v1611, %v1613
  %v1634 = vsel %vm467, %v1615, %v1617
  %v1635 = vsel %vm467, %v1617, %v1619
  %v1636 = vsel %vm467, %v1621, %v1623
  %v1637 = vsel %vm467, %v1623, %v1625
  %v1638 = vsel %vm467, %v1627, %v1629
  %v1639 = vsel %vm467, %v1629, %v1631
  %1648 = vst [vmem:[#allocation3 + $0x180] sm:$0xff] %v1632
  %1649 = vst [vmem:[#allocation3 + $0x188] sm:$0xff] %v1633
  %1650 = vst [vmem:[#allocation3 + $0x190] sm:$0xff] %v1634
  %1651 = vst [vmem:[#allocation3 + $0x198] sm:$0xff] %v1635
  %1652 = vst [vmem:[#allocation3 + $0x1a0] sm:$0xff] %v1636
  %1653 = vst [vmem:[#allocation3 + $0x1a8] sm:$0xff] %v1637
  %1654 = vst [vmem:[#allocation3 + $0x1b0] sm:$0xff] %v1638
  %1655 = vst [vmem:[#allocation3 + $0x1b8] sm:$0xff] %v1639
  %v1656 = vld [vmem:[#allocation2] sm:$0xff]
  %v1657 = vld [vmem:[#allocation2 + $0x8] sm:$0xff]
  %v1658 = vld [vmem:[#allocation2 + $0x10] sm:$0xff]
  %v1659 = vld [vmem:[#allocation2 + $0x18] sm:$0xff]
  %v1660 = vld [vmem:[#allocation2 + $0x20] sm:$0xff]
  %v1661 = vld [vmem:[#allocation2 + $0x28] sm:$0xff]
  %v1662 = vld [vmem:[#allocation2 + $0x30] sm:$0xff]
  %v1663 = vld [vmem:[#allocation2 + $0x38] sm:$0xff]
  %v1664 = vld [vmem:[#allocation2 + $0x40] sm:$0xff]
  %v1665 = vld [vmem:[#allocation2 + $0x48] sm:$0xff]
  %v1666 = vld [vmem:[#allocation2 + $0x50] sm:$0xff]
  %v1667 = vld [vmem:[#allocation2 + $0x58] sm:$0xff]
  %1680 = vrot.lane.b32.xlu0 %v1656, 95
  %v1681 = vpop.permute.xlu0 %1680
  %1682 = vrot.lane.b32.xlu0 %v1657, 95
  %v1683 = vpop.permute.xlu0 %1682
  %1684 = vrot.lane.b32.xlu0 %v1658, 95
  %v1685 = vpop.permute.xlu0 %1684
  %1686 = vrot.lane.b32.xlu0 %v1659, 95
  %v1687 = vpop.permute.xlu0 %1686
  %1688 = vrot.lane.b32.xlu0 %v1660, 95
  %v1689 = vpop.permute.xlu0 %1688
  %1690 = vrot.lane.b32.xlu0 %v1661, 95
  %v1691 = vpop.permute.xlu0 %1690
  %1692 = vrot.lane.b32.xlu0 %v1662, 95
  %v1693 = vpop.permute.xlu0 %1692
  %1694 = vrot.lane.b32.xlu0 %v1663, 95
  %v1695 = vpop.permute.xlu0 %1694
  %1696 = vrot.lane.b32.xlu0 %v1664, 95
  %v1697 = vpop.permute.xlu0 %1696
  %1698 = vrot.lane.b32.xlu0 %v1665, 95
  %v1699 = vpop.permute.xlu0 %1698
  %1700 = vrot.lane.b32.xlu0 %v1666, 95
  %v1701 = vpop.permute.xlu0 %1700
  %1702 = vrot.lane.b32.xlu0 %v1667, 95
  %v1703 = vpop.permute.xlu0 %1702
  %v1704 = vsel %vm504, %v1681, %v1683
  %v1705 = vsel %vm504, %v1683, %v1685
  %v1706 = vsel %vm504, %v1687, %v1689
  %v1707 = vsel %vm504, %v1689, %v1691
  %v1708 = vsel %vm504, %v1693, %v1695
  %v1709 = vsel %vm504, %v1695, %v1697
  %v1710 = vsel %vm504, %v1699, %v1701
  %v1711 = vsel %vm504, %v1701, %v1703
  %1720 = vst [vmem:[#allocation3 + $0x1c0] sm:$0xff] %v1704
  %1721 = vst [vmem:[#allocation3 + $0x1c8] sm:$0xff] %v1705
  %1722 = vst [vmem:[#allocation3 + $0x1d0] sm:$0xff] %v1706
  %1723 = vst [vmem:[#allocation3 + $0x1d8] sm:$0xff] %v1707
  %1724 = vst [vmem:[#allocation3 + $0x1e0] sm:$0xff] %v1708
  %1725 = vst [vmem:[#allocation3 + $0x1e8] sm:$0xff] %v1709
  %1726 = vst [vmem:[#allocation3 + $0x1f0] sm:$0xff] %v1710
  %1727 = vst [vmem:[#allocation3 + $0x1f8] sm:$0xff] %v1711
  %v1728 = vld [vmem:[#allocation2] sm:$0xff]
  %v1729 = vld [vmem:[#allocation2 + $0x8] sm:$0xff]
  %v1730 = vld [vmem:[#allocation2 + $0x10] sm:$0xff]
  %v1731 = vld [vmem:[#allocation2 + $0x18] sm:$0xff]
  %v1732 = vld [vmem:[#allocation2 + $0x20] sm:$0xff]
  %v1733 = vld [vmem:[#allocation2 + $0x28] sm:$0xff]
  %v1734 = vld [vmem:[#allocation2 + $0x30] sm:$0xff]
  %v1735 = vld [vmem:[#allocation2 + $0x38] sm:$0xff]
  %v1736 = vld [vmem:[#allocation2 + $0x40] sm:$0xff]
  %v1737 = vld [vmem:[#allocation2 + $0x48] sm:$0xff]
  %v1738 = vld [vmem:[#allocation2 + $0x50] sm:$0xff]
  %v1739 = vld [vmem:[#allocation2 + $0x58] sm:$0xff]
  %v1740 = vmul.f32 %v1728, %v524
  %v1741 = vmul.f32 %v1729, %v528
  %v1742 = vmul.f32 %v1730, %v526
  %v1743 = vmul.f32 %v1731, %v524
  %v1744 = vmul.f32 %v1732, %v528
  %v1745 = vmul.f32 %v1733, %v526
  %v1746 = vmul.f32 %v1734, %v524
  %v1747 = vmul.f32 %v1735, %v528
  %v1748 = vmul.f32 %v1736, %v526
  %v1749 = vmul.f32 %v1737, %v524
  %v1750 = vmul.f32 %v1738, %v528
  %v1751 = vmul.f32 %v1739, %v526
  %1764 = vrot.lane.b32.xlu0 %v1740, 94
  %v1765 = vpop.permute.xlu0 %1764
  %1766 = vrot.lane.b32.xlu0 %v1741, 94
  %v1767 = vpop.permute.xlu0 %1766
  %1768 = vrot.lane.b32.xlu0 %v1742, 94
  %v1769 = vpop.permute.xlu0 %1768
  %1770 = vrot.lane.b32.xlu0 %v1743, 94
  %v1771 = vpop.permute.xlu0 %1770
  %1772 = vrot.lane.b32.xlu0 %v1744, 94
  %v1773 = vpop.permute.xlu0 %1772
  %1774 = vrot.lane.b32.xlu0 %v1745, 94
  %v1775 = vpop.permute.xlu0 %1774
  %1776 = vrot.lane.b32.xlu0 %v1746, 94
  %v1777 = vpop.permute.xlu0 %1776
  %1778 = vrot.lane.b32.xlu0 %v1747, 94
  %v1779 = vpop.permute.xlu0 %1778
  %1780 = vrot.lane.b32.xlu0 %v1748, 94
  %v1781 = vpop.permute.xlu0 %1780
  %1782 = vrot.lane.b32.xlu0 %v1749, 94
  %v1783 = vpop.permute.xlu0 %1782
  %1784 = vrot.lane.b32.xlu0 %v1750, 94
  %v1785 = vpop.permute.xlu0 %1784
  %1786 = vrot.lane.b32.xlu0 %v1751, 94
  %v1787 = vpop.permute.xlu0 %1786
  %v1788 = vsel %vm556, %v1765, %v1767
  %v1789 = vsel %vm556, %v1767, %v1769
  %v1790 = vsel %vm556, %v1771, %v1773
  %v1791 = vsel %vm556, %v1773, %v1775
  %v1792 = vsel %vm556, %v1777, %v1779
  %v1793 = vsel %vm556, %v1779, %v1781
  %v1794 = vsel %vm556, %v1783, %v1785
  %v1795 = vsel %vm556, %v1785, %v1787
  %1804 = vst [vmem:[#allocation3 + $0x200] sm:$0xff] %v1788
  %1805 = vst [vmem:[#allocation3 + $0x208] sm:$0xff] %v1789
  %1806 = vst [vmem:[#allocation3 + $0x210] sm:$0xff] %v1790
  %1807 = vst [vmem:[#allocation3 + $0x218] sm:$0xff] %v1791
  %1808 = vst [vmem:[#allocation3 + $0x220] sm:$0xff] %v1792
  %1809 = vst [vmem:[#allocation3 + $0x228] sm:$0xff] %v1793
  %1810 = vst [vmem:[#allocation3 + $0x230] sm:$0xff] %v1794
  %1811 = vst [vmem:[#allocation3 + $0x238] sm:$0xff] %v1795
  %v1812 = vld [vmem:[%s9] sm:$0xff]
  %v1813 = vld [vmem:[%s9 + $0x8] sm:$0xff]
  %v1814 = vld [vmem:[%s9 + $0x10] sm:$0xff]
  %v1815 = vld [vmem:[%s9 + $0x18] sm:$0xff]
  %v1816 = vld [vmem:[%s9 + $0x20] sm:$0xff]
  %v1817 = vld [vmem:[%s9 + $0x28] sm:$0xff]
  %v1818 = vld [vmem:[%s9 + $0x30] sm:$0xff]
  %v1819 = vld [vmem:[%s9 + $0x38] sm:$0xff]
  %v1820 = vld [vmem:[%s9 + $0x40] sm:$0xff]
  %v1821 = vld [vmem:[%s9 + $0x48] sm:$0xff]
  %v1822 = vld [vmem:[%s9 + $0x50] sm:$0xff]
  %v1823 = vld [vmem:[%s9 + $0x58] sm:$0xff]
  %v1824 = vld [vmem:[#allocation3] sm:$0xff]
  %v1825 = vld [vmem:[#allocation3 + $0x8] sm:$0xff]
  %v1826 = vld [vmem:[#allocation3 + $0x10] sm:$0xff]
  %v1827 = vld [vmem:[#allocation3 + $0x18] sm:$0xff]
  %v1828 = vld [vmem:[#allocation3 + $0x20] sm:$0xff]
  %v1829 = vld [vmem:[#allocation3 + $0x28] sm:$0xff]
  %v1830 = vld [vmem:[#allocation3 + $0x30] sm:$0xff]
  %v1831 = vld [vmem:[#allocation3 + $0x38] sm:$0xff]
  %v1832 = vld [vmem:[#allocation3 + $0x40] sm:$0xff]
  %v1833 = vld [vmem:[#allocation3 + $0x48] sm:$0xff]
  %v1834 = vld [vmem:[#allocation3 + $0x50] sm:$0xff]
  %v1835 = vld [vmem:[#allocation3 + $0x58] sm:$0xff]
  %v1836 = vld [vmem:[#allocation3 + $0x60] sm:$0xff]
  %v1837 = vld [vmem:[#allocation3 + $0x68] sm:$0xff]
  %v1838 = vld [vmem:[#allocation3 + $0x70] sm:$0xff]
  %v1839 = vld [vmem:[#allocation3 + $0x78] sm:$0xff]
  %v1840 = vld [vmem:[#allocation3 + $0x80] sm:$0xff]
  %v1841 = vld [vmem:[#allocation3 + $0x88] sm:$0xff]
  %v1842 = vld [vmem:[#allocation3 + $0x90] sm:$0xff]
  %v1843 = vld [vmem:[#allocation3 + $0x98] sm:$0xff]
  %v1844 = vld [vmem:[#allocation3 + $0xa0] sm:$0xff]
  %v1845 = vld [vmem:[#allocation3 + $0xa8] sm:$0xff]
  %v1846 = vld [vmem:[#allocation3 + $0xb0] sm:$0xff]
  %v1847 = vld [vmem:[#allocation3 + $0xb8] sm:$0xff]
  %v1848 = vld [vmem:[#allocation3 + $0xc0] sm:$0xff]
  %v1849 = vld [vmem:[#allocation3 + $0xc8] sm:$0xff]
  %v1850 = vld [vmem:[#allocation3 + $0xd0] sm:$0xff]
  %v1851 = vld [vmem:[#allocation3 + $0xd8] sm:$0xff]
  %v1852 = vld [vmem:[#allocation3 + $0xe0] sm:$0xff]
  %v1853 = vld [vmem:[#allocation3 + $0xe8] sm:$0xff]
  %v1854 = vld [vmem:[#allocation3 + $0xf0] sm:$0xff]
  %v1855 = vld [vmem:[#allocation3 + $0xf8] sm:$0xff]
  %v1856 = vld [vmem:[#allocation3 + $0x100] sm:$0xff]
  %v1857 = vld [vmem:[#allocation3 + $0x108] sm:$0xff]
  %v1858 = vld [vmem:[#allocation3 + $0x110] sm:$0xff]
  %v1859 = vld [vmem:[#allocation3 + $0x118] sm:$0xff]
  %v1860 = vld [vmem:[#allocation3 + $0x120] sm:$0xff]
  %v1861 = vld [vmem:[#allocation3 + $0x128] sm:$0xff]
  %v1862 = vld [vmem:[#allocation3 + $0x130] sm:$0xff]
  %v1863 = vld [vmem:[#allocation3 + $0x138] sm:$0xff]
  %v1864 = vld [vmem:[#allocation3 + $0x140] sm:$0xff]
  %v1865 = vld [vmem:[#allocation3 + $0x148] sm:$0xff]
  %v1866 = vld [vmem:[#allocation3 + $0x150] sm:$0xff]
  %v1867 = vld [vmem:[#allocation3 + $0x158] sm:$0xff]
  %v1868 = vld [vmem:[#allocation3 + $0x160] sm:$0xff]
  %v1869 = vld [vmem:[#allocation3 + $0x168] sm:$0xff]
  %v1870 = vld [vmem:[#allocation3 + $0x170] sm:$0xff]
  %v1871 = vld [vmem:[#allocation3 + $0x178] sm:$0xff]
  %v1872 = vld [vmem:[#allocation3 + $0x180] sm:$0xff]
  %v1873 = vld [vmem:[#allocation3 + $0x188] sm:$0xff]
  %v1874 = vld [vmem:[#allocation3 + $0x190] sm:$0xff]
  %v1875 = vld [vmem:[#allocation3 + $0x198] sm:$0xff]
  %v1876 = vld [vmem:[#allocation3 + $0x1a0] sm:$0xff]
  %v1877 = vld [vmem:[#allocation3 + $0x1a8] sm:$0xff]
  %v1878 = vld [vmem:[#allocation3 + $0x1b0] sm:$0xff]
  %v1879 = vld [vmem:[#allocation3 + $0x1b8] sm:$0xff]
  %v1880 = vld [vmem:[#allocation3 + $0x1c0] sm:$0xff]
  %v1881 = vld [vmem:[#allocation3 + $0x1c8] sm:$0xff]
  %v1882 = vld [vmem:[#allocation3 + $0x1d0] sm:$0xff]
  %v1883 = vld [vmem:[#allocation3 + $0x1d8] sm:$0xff]
  %v1884 = vld [vmem:[#allocation3 + $0x1e0] sm:$0xff]
  %v1885 = vld [vmem:[#allocation3 + $0x1e8] sm:$0xff]
  %v1886 = vld [vmem:[#allocation3 + $0x1f0] sm:$0xff]
  %v1887 = vld [vmem:[#allocation3 + $0x1f8] sm:$0xff]
  %v1888 = vld [vmem:[#allocation3 + $0x200] sm:$0xff]
  %v1889 = vld [vmem:[#allocation3 + $0x208] sm:$0xff]
  %v1890 = vld [vmem:[#allocation3 + $0x210] sm:$0xff]
  %v1891 = vld [vmem:[#allocation3 + $0x218] sm:$0xff]
  %v1892 = vld [vmem:[#allocation3 + $0x220] sm:$0xff]
  %v1893 = vld [vmem:[#allocation3 + $0x228] sm:$0xff]
  %v1894 = vld [vmem:[#allocation3 + $0x230] sm:$0xff]
  %v1895 = vld [vmem:[#allocation3 + $0x238] sm:$0xff]
  %v1896 = vld [vmem:[%s10] sm:$0xff]
  %v1897 = vld [vmem:[%s10 + $0x8] sm:$0xff]
  %v1898 = vld [vmem:[%s10 + $0x10] sm:$0xff]
  %v1899 = vld [vmem:[%s10 + $0x18] sm:$0xff]
  %1901 = vset.pattern.permute.xlu0 0
  %1902 = vperm.xlu0 %1901, %v1896
  %v1903 = vpop.permute.xlu0 %1902
  %1906 = vset.pattern.permute.xlu0 0
  %1907 = vperm.xlu0 %1906, %v1897
  %v1908 = vpop.permute.xlu0 %1907
  %1911 = vset.pattern.permute.xlu0 0
  %1912 = vperm.xlu0 %1911, %v1898
  %v1913 = vpop.permute.xlu0 %1912
  %1916 = vset.pattern.permute.xlu0 0
  %1917 = vperm.xlu0 %1916, %v1899
  %v1918 = vpop.permute.xlu0 %1917
  %v1921 = vsel %vm438, %v1814, 0
  %v1924 = vsel %vm438, %v1817, 0
  %v1927 = vsel %vm438, %v1820, 0
  %v1930 = vsel %vm438, %v1823, 0
  %1932 = vmatprep.subr.mxu0 %v1855
  %1933 = vmatpush1.msra.mxu0 %v1854
  %1934 = vmatprep.subr.mxu0 %v1853
  %1935 = vmatpush1.msra.mxu0 %v1852
  %1936 = vmatprep.subr.mxu0 %v1851
  %1937 = vmatpush1.msra.mxu0 %v1850
  %1938 = vmatprep.subr.mxu0 %v1849
  %1939 = vmatpush1.msra.mxu0 %v1848
  %1940 = vmatprep.subr.mxu0 %v1847
  %1941 = vmatpush1.msra.mxu0 %v1846
  %1942 = vmatprep.subr.mxu0 %v1845
  %1943 = vmatpush1.msra.mxu0 %v1844
  %1944 = vmatprep.subr.mxu0 %v1843
  %1945 = vmatpush1.msra.mxu0 %v1842
  %1946 = vmatprep.subr.mxu0 %v1841
  %1947 = vmatpush1.msra.mxu0 %v1840
  %1948 = vmatprep.subr.mxu0 %v1839
  %1949 = vmatpush1.msra.mxu0 %v1838
  %1950 = vmatprep.subr.mxu0 %v1837
  %1951 = vmatpush1.msra.mxu0 %v1836
  %1952 = vmatprep.subr.mxu0 %v1835
  %1953 = vmatpush1.msra.mxu0 %v1834
  %1954 = vmatprep.subr.mxu0 %v1833
  %1955 = vmatpush1.msra.mxu0 %v1832
  %1956 = vmatprep.subr.mxu0 %v1831
  %1957 = vmatpush1.msra.mxu0 %v1830
  %1958 = vmatprep.subr.mxu0 %v1829
  %1959 = vmatpush1.msra.mxu0 %v1828
  %1960 = vmatprep.subr.mxu0 %v1827
  %1961 = vmatpush1.msra.mxu0 %v1826
  %1962 = vmatprep.subr.mxu0 %v1825
  %1963 = vmatpush1.msra.mxu0 %v1824
  %1964 = vmatprep.subr.mxu0 %v1887
  %1965 = vmatpush2.msra.mxu0 %v1886
  %1966 = vmatprep.subr.mxu0 %v1885
  %1967 = vmatpush2.msra.mxu0 %v1884
  %1968 = vmatprep.subr.mxu0 %v1883
  %1969 = vmatpush2.msra.mxu0 %v1882
  %1970 = vmatprep.subr.mxu0 %v1881
  %1971 = vmatpush2.msra.mxu0 %v1880
  %1972 = vmatprep.subr.mxu0 %v1879
  %1973 = vmatpush2.msra.mxu0 %v1878
  %1974 = vmatprep.subr.mxu0 %v1877
  %1975 = vmatpush2.msra.mxu0 %v1876
  %1976 = vmatprep.subr.mxu0 %v1875
  %1977 = vmatpush2.msra.mxu0 %v1874
  %1978 = vmatprep.subr.mxu0 %v1873
  %1979 = vmatpush2.msra.mxu0 %v1872
  %1980 = vmatprep.subr.mxu0 %v1871
  %1981 = vmatpush2.msra.mxu0 %v1870
  %1982 = vmatprep.subr.mxu0 %v1869
  %1983 = vmatpush2.msra.mxu0 %v1868
  %1984 = vmatprep.subr.mxu0 %v1867
  %1985 = vmatpush2.msra.mxu0 %v1866
  %1986 = vmatprep.subr.mxu0 %v1865
  %1987 = vmatpush2.msra.mxu0 %v1864
  %1988 = vmatprep.subr.mxu0 %v1863
  %1989 = vmatpush2.msra.mxu0 %v1862
  %1990 = vmatprep.subr.mxu0 %v1861
  %1991 = vmatpush2.msra.mxu0 %v1860
  %1992 = vmatprep.subr.mxu0 %v1859
  %1993 = vmatpush2.msra.mxu0 %v1858
  %1994 = vmatprep.subr.mxu0 %v1857
  %1995 = vmatpush2.msra.mxu0 %v1856
  %1996 = vmatprep.mubr.f32.mxu0 %v1813
  %1997 = vmatmul.mubr.f32.gmra.mxu0 %v1812
  %v1998 = vpop.f32.mrf.mxu0
  %v1999 = vadd.f32 %v1903, %v1998
  %v2000 = vpop.f32.mrf.mxu0
  %v2001 = vadd.f32 %v1903, %v2000
  %2002 = vmatprep.mubr.f32.mxu0 %v1816
  %2003 = vmatmul.mubr.f32.gmra.mxu0 %v1815
  %v2004 = vpop.f32.mrf.mxu0
  %v2005 = vadd.f32 %v1908, %v2004
  %v2006 = vpop.f32.mrf.mxu0
  %v2007 = vadd.f32 %v1908, %v2006
  %2008 = vmatprep.mubr.f32.mxu0 %v1819
  %2009 = vmatmul.mubr.f32.gmra.mxu0 %v1818
  %v2010 = vpop.f32.mrf.mxu0
  %v2011 = vadd.f32 %v1913, %v2010
  %v2012 = vpop.f32.mrf.mxu0
  %v2013 = vadd.f32 %v1913, %v2012
  %2014 = vmatprep.mubr.f32.mxu0 %v1822
  %2015 = vmatmul.mubr.f32.gmra.mxu0 %v1821
  %v2016 = vpop.f32.mrf.mxu0
  %v2017 = vadd.f32 %v1918, %v2016
  %v2018 = vpop.f32.mrf.mxu0
  %v2019 = vadd.f32 %v1918, %v2018
  %2020 = vdwg.mxu0
  %2021 = vmatprep.subr.mxu0 0.0
  %2022 = vmatpush1.msra.mxu0 0.0
  %2023 = vmatprep.subr.mxu0 0.0
  %2024 = vmatpush1.msra.mxu0 0.0
  %2025 = vmatprep.subr.mxu0 0.0
  %2026 = vmatpush1.msra.mxu0 0.0
  %2027 = vmatprep.subr.mxu0 0.0
  %2028 = vmatpush1.msra.mxu0 0.0
  %2029 = vmatprep.subr.mxu0 0.0
  %2030 = vmatpush1.msra.mxu0 0.0
  %2031 = vmatprep.subr.mxu0 0.0
  %2032 = vmatpush1.msra.mxu0 0.0
  %2033 = vmatprep.subr.mxu0 0.0
  %2034 = vmatpush1.msra.mxu0 0.0
  %2035 = vmatprep.subr.mxu0 0.0
  %2036 = vmatpush1.msra.mxu0 0.0
  %2037 = vmatprep.subr.mxu0 0.0
  %2038 = vmatpush1.msra.mxu0 0.0
  %2039 = vmatprep.subr.mxu0 0.0
  %2040 = vmatpush1.msra.mxu0 0.0
  %2041 = vmatprep.subr.mxu0 0.0
  %2042 = vmatpush1.msra.mxu0 0.0
  %2043 = vmatprep.subr.mxu0 0.0
  %2044 = vmatpush1.msra.mxu0 0.0
  %2045 = vmatprep.subr.mxu0 %v1895
  %2046 = vmatpush1.msra.mxu0 %v1894
  %2047 = vmatprep.subr.mxu0 %v1893
  %2048 = vmatpush1.msra.mxu0 %v1892
  %2049 = vmatprep.subr.mxu0 %v1891
  %2050 = vmatpush1.msra.mxu0 %v1890
  %2051 = vmatprep.subr.mxu0 %v1889
  %2052 = vmatpush1.msra.mxu0 %v1888
  %2053 = vmatprep.subr.mxu0 0.0
  %2054 = vmatpush2.msra.mxu0 0.0
  %2055 = vmatprep.subr.mxu0 0.0
  %2056 = vmatpush2.msra.mxu0 0.0
  %2057 = vmatprep.subr.mxu0 0.0
  %2058 = vmatpush2.msra.mxu0 0.0
  %2059 = vmatprep.subr.mxu0 0.0
  %2060 = vmatpush2.msra.mxu0 0.0
  %2061 = vmatprep.subr.mxu0 0.0
  %2062 = vmatpush2.msra.mxu0 0.0
  %2063 = vmatprep.subr.mxu0 0.0
  %2064 = vmatpush2.msra.mxu0 0.0
  %2065 = vmatprep.subr.mxu0 0.0
  %2066 = vmatpush2.msra.mxu0 0.0
  %2067 = vmatprep.subr.mxu0 0.0
  %2068 = vmatpush2.msra.mxu0 0.0
  %2069 = vmatprep.subr.mxu0 0.0
  %2070 = vmatpush2.msra.mxu0 0.0
  %2071 = vmatprep.subr.mxu0 0.0
  %2072 = vmatpush2.msra.mxu0 0.0
  %2073 = vmatprep.subr.mxu0 0.0
  %2074 = vmatpush2.msra.mxu0 0.0
  %2075 = vmatprep.subr.mxu0 0.0
  %2076 = vmatpush2.msra.mxu0 0.0
  %2077 = vmatprep.subr.mxu0 0.0
  %2078 = vmatpush2.msra.mxu0 0.0
  %2079 = vmatprep.subr.mxu0 0.0
  %2080 = vmatpush2.msra.mxu0 0.0
  %2081 = vmatprep.subr.mxu0 0.0
  %2082 = vmatpush2.msra.mxu0 0.0
  %2083 = vmatprep.subr.mxu0 0.0
  %2084 = vmatpush2.msra.mxu0 0.0
  %2085 = vmatprep.mubr.f32.mxu0 0.0
  %2086 = vmatmul.mubr.f32.gmra.mxu0 %v1921
  %v2087 = vpop.f32.mrf.mxu0
  %v2088 = vadd.f32 %v1999, %v2087
  %v2089 = vpop.f32.mrf.mxu0
  %v2090 = vadd.f32 %v2001, %v2089
  %2091 = vmatprep.mubr.f32.mxu0 0.0
  %2092 = vmatmul.mubr.f32.gmra.mxu0 %v1924
  %v2093 = vpop.f32.mrf.mxu0
  %v2094 = vadd.f32 %v2005, %v2093
  %v2095 = vpop.f32.mrf.mxu0
  %v2096 = vadd.f32 %v2007, %v2095
  %2097 = vmatprep.mubr.f32.mxu0 0.0
  %2098 = vmatmul.mubr.f32.gmra.mxu0 %v1927
  %v2099 = vpop.f32.mrf.mxu0
  %v2100 = vadd.f32 %v2011, %v2099
  %v2101 = vpop.f32.mrf.mxu0
  %v2102 = vadd.f32 %v2013, %v2101
  %2103 = vmatprep.mubr.f32.mxu0 0.0
  %2104 = vmatmul.mubr.f32.gmra.mxu0 %v1930
  %v2105 = vpop.f32.mrf.mxu0
  %v2106 = vadd.f32 %v2017, %v2105
  %v2107 = vpop.f32.mrf.mxu0
  %v2108 = vadd.f32 %v2019, %v2107
  %2109 = vdwg.mxu0
  %2114 = vrot.lane.b32.xlu0 %v63, 17
  %v2115 = vpop.permute.xlu0 %2114
  %2116 = vrot.lane.b32.xlu0 %v64, 17
  %v2117 = vpop.permute.xlu0 %2116
  %2118 = vrot.lane.b32.xlu0 %v65, 17
  %v2119 = vpop.permute.xlu0 %2118
  %2120 = vrot.lane.b32.xlu0 %v66, 17
  %v2121 = vpop.permute.xlu0 %2120
  %v2122 = vsel %vm53, %v2115, %v2117
  %v2123 = vsel %vm53, %v2119, %v2121
  %2130 = vst.msk [vmem:[#allocation2] sm:$0xff] %vm159, %v2115
  %2131 = vst [vmem:[#allocation2 + $0x8] sm:$0xff] %v2122
  %2132 = vst.msk [vmem:[#allocation2 + $0x10] sm:$0xff] %vm53, %v2117
  %2133 = vst.msk [vmem:[#allocation2 + $0x18] sm:$0xff] %vm159, %v2119
  %2134 = vst [vmem:[#allocation2 + $0x20] sm:$0xff] %v2123
  %2135 = vst.msk [vmem:[#allocation2 + $0x28] sm:$0xff] %vm53, %v2121
  %v2136 = vld [vmem:[#allocation2] sm:$0xff]
  %v2137 = vld [vmem:[#allocation2 + $0x8] sm:$0xff]
  %v2138 = vld [vmem:[#allocation2 + $0x18] sm:$0xff]
  %v2139 = vld [vmem:[#allocation2 + $0x20] sm:$0xff]
  %v2140 = vmul.f32 %v2136, %v174
  %v2141 = vmul.f32 %v2137, %v178
  %v2142 = vmul.f32 %v2138, %v174
  %v2143 = vmul.f32 %v2139, %v178
  %2144 = vst [vmem:[#allocation3] sm:$0xff] %v2140
  %2145 = vst [vmem:[#allocation3 + $0x8] sm:$0xff] %v2141
  %2146 = vst [vmem:[#allocation3 + $0x10] sm:$0xff] %v2142
  %2147 = vst [vmem:[#allocation3 + $0x18] sm:$0xff] %v2143
  %v2148 = vld [vmem:[#allocation2] sm:$0xff]
  %v2149 = vld [vmem:[#allocation2 + $0x8] sm:$0xff]
  %v2150 = vld [vmem:[#allocation2 + $0x10] sm:$0xff]
  %v2151 = vld [vmem:[#allocation2 + $0x18] sm:$0xff]
  %v2152 = vld [vmem:[#allocation2 + $0x20] sm:$0xff]
  %v2153 = vld [vmem:[#allocation2 + $0x28] sm:$0xff]
  %2160 = vrot.lane.b32.xlu0 %v2148, 127
  %v2161 = vpop.permute.xlu0 %2160
  %2162 = vrot.lane.b32.xlu0 %v2149, 127
  %v2163 = vpop.permute.xlu0 %2162
  %2164 = vrot.lane.b32.xlu0 %v2150, 127
  %v2165 = vpop.permute.xlu0 %2164
  %2166 = vrot.lane.b32.xlu0 %v2151, 127
  %v2167 = vpop.permute.xlu0 %2166
  %2168 = vrot.lane.b32.xlu0 %v2152, 127
  %v2169 = vpop.permute.xlu0 %2168
  %2170 = vrot.lane.b32.xlu0 %v2153, 127
  %v2171 = vpop.permute.xlu0 %2170
  %v2172 = vsel %vm213, %v2161, %v2163
  %v2173 = vsel %vm213, %v2163, %v2165
  %v2174 = vsel %vm213, %v2167, %v2169
  %v2175 = vsel %vm213, %v2169, %v2171
  %2180 = vst [vmem:[#allocation3 + $0x20] sm:$0xff] %v2172
  %2181 = vst [vmem:[#allocation3 + $0x28] sm:$0xff] %v2173
  %2182 = vst [vmem:[#allocation3 + $0x30] sm:$0xff] %v2174
  %2183 = vst [vmem:[#allocation3 + $0x38] sm:$0xff] %v2175
  %v2184 = vld [vmem:[#allocation2] sm:$0xff]
  %v2185 = vld [vmem:[#allocation2 + $0x8] sm:$0xff]
  %v2186 = vld [vmem:[#allocation2 + $0x10] sm:$0xff]
  %v2187 = vld [vmem:[#allocation2 + $0x18] sm:$0xff]
  %v2188 = vld [vmem:[#allocation2 + $0x20] sm:$0xff]
  %v2189 = vld [vmem:[#allocation2 + $0x28] sm:$0xff]
  %v2190 = vmul.f32 %v2184, %v242
  %v2191 = vmul.f32 %v2185, %v246
  %v2192 = vmul.f32 %v2186, %v244
  %v2193 = vmul.f32 %v2187, %v242
  %v2194 = vmul.f32 %v2188, %v246
  %v2195 = vmul.f32 %v2189, %v244
  %2202 = vrot.lane.b32.xlu0 %v2190, 126
  %v2203 = vpop.permute.xlu0 %2202
  %2204 = vrot.lane.b32.xlu0 %v2191, 126
  %v2205 = vpop.permute.xlu0 %2204
  %2206 = vrot.lane.b32.xlu0 %v2192, 126
  %v2207 = vpop.permute.xlu0 %2206
  %2208 = vrot.lane.b32.xlu0 %v2193, 126
  %v2209 = vpop.permute.xlu0 %2208
  %2210 = vrot.lane.b32.xlu0 %v2194, 126
  %v2211 = vpop.permute.xlu0 %2210
  %2212 = vrot.lane.b32.xlu0 %v2195, 126
  %v2213 = vpop.permute.xlu0 %2212
  %v2214 = vsel %vm274, %v2203, %v2205
  %v2215 = vsel %vm274, %v2205, %v2207
  %v2216 = vsel %vm274, %v2209, %v2211
  %v2217 = vsel %vm274, %v2211, %v2213
  %2222 = vst [vmem:[#allocation3 + $0x40] sm:$0xff] %v2214
  %2223 = vst [vmem:[#allocation3 + $0x48] sm:$0xff] %v2215
  %2224 = vst [vmem:[#allocation3 + $0x50] sm:$0xff] %v2216
  %2225 = vst [vmem:[#allocation3 + $0x58] sm:$0xff] %v2217
  %v2226 = vld [vmem:[#allocation2] sm:$0xff]
  %v2227 = vld [vmem:[#allocation2 + $0x8] sm:$0xff]
  %v2228 = vld [vmem:[#allocation2 + $0x10] sm:$0xff]
  %v2229 = vld [vmem:[#allocation2 + $0x18] sm:$0xff]
  %v2230 = vld [vmem:[#allocation2 + $0x20] sm:$0xff]
  %v2231 = vld [vmem:[#allocation2 + $0x28] sm:$0xff]
  %v2232 = vmul.f32 %v2226, %v294
  %v2233 = vmul.f32 %v2227, %v298
  %v2234 = vmul.f32 %v2228, %v296
  %v2235 = vmul.f32 %v2229, %v294
  %v2236 = vmul.f32 %v2230, %v298
  %v2237 = vmul.f32 %v2231, %v296
  %2244 = vrot.lane.b32.xlu0 %v2232, 112
  %v2245 = vpop.permute.xlu0 %2244
  %2246 = vrot.lane.b32.xlu0 %v2233, 112
  %v2247 = vpop.permute.xlu0 %2246
  %2248 = vrot.lane.b32.xlu0 %v2234, 112
  %v2249 = vpop.permute.xlu0 %2248
  %2250 = vrot.lane.b32.xlu0 %v2235, 112
  %v2251 = vpop.permute.xlu0 %2250
  %2252 = vrot.lane.b32.xlu0 %v2236, 112
  %v2253 = vpop.permute.xlu0 %2252
  %2254 = vrot.lane.b32.xlu0 %v2237, 112
  %v2255 = vpop.permute.xlu0 %2254
  %v2256 = vsel %vm326, %v2245, %v2247
  %v2257 = vsel %vm326, %v2247, %v2249
  %v2258 = vsel %vm326, %v2251, %v2253
  %v2259 = vsel %vm326, %v2253, %v2255
  %2264 = vst [vmem:[#allocation3 + $0x60] sm:$0xff] %v2256
  %2265 = vst [vmem:[#allocation3 + $0x68] sm:$0xff] %v2257
  %2266 = vst [vmem:[#allocation3 + $0x70] sm:$0xff] %v2258
  %2267 = vst [vmem:[#allocation3 + $0x78] sm:$0xff] %v2259
  %v2268 = vld [vmem:[#allocation2] sm:$0xff]
  %v2269 = vld [vmem:[#allocation2 + $0x8] sm:$0xff]
  %v2270 = vld [vmem:[#allocation2 + $0x10] sm:$0xff]
  %v2271 = vld [vmem:[#allocation2 + $0x18] sm:$0xff]
  %v2272 = vld [vmem:[#allocation2 + $0x20] sm:$0xff]
  %v2273 = vld [vmem:[#allocation2 + $0x28] sm:$0xff]
  %2280 = vrot.lane.b32.xlu0 %v2268, 111
  %v2281 = vpop.permute.xlu0 %2280
  %2282 = vrot.lane.b32.xlu0 %v2269, 111
  %v2283 = vpop.permute.xlu0 %2282
  %2284 = vrot.lane.b32.xlu0 %v2270, 111
  %v2285 = vpop.permute.xlu0 %2284
  %2286 = vrot.lane.b32.xlu0 %v2271, 111
  %v2287 = vpop.permute.xlu0 %2286
  %2288 = vrot.lane.b32.xlu0 %v2272, 111
  %v2289 = vpop.permute.xlu0 %2288
  %2290 = vrot.lane.b32.xlu0 %v2273, 111
  %v2291 = vpop.permute.xlu0 %2290
  %v2292 = vsel %vm363, %v2281, %v2283
  %v2293 = vsel %vm363, %v2283, %v2285
  %v2294 = vsel %vm363, %v2287, %v2289
  %v2295 = vsel %vm363, %v2289, %v2291
  %2300 = vst [vmem:[#allocation3 + $0x80] sm:$0xff] %v2292
  %2301 = vst [vmem:[#allocation3 + $0x88] sm:$0xff] %v2293
  %2302 = vst [vmem:[#allocation3 + $0x90] sm:$0xff] %v2294
  %2303 = vst [vmem:[#allocation3 + $0x98] sm:$0xff] %v2295
  %v2304 = vld [vmem:[#allocation2] sm:$0xff]
  %v2305 = vld [vmem:[#allocation2 + $0x8] sm:$0xff]
  %v2306 = vld [vmem:[#allocation2 + $0x10] sm:$0xff]
  %v2307 = vld [vmem:[#allocation2 + $0x18] sm:$0xff]
  %v2308 = vld [vmem:[#allocation2 + $0x20] sm:$0xff]
  %v2309 = vld [vmem:[#allocation2 + $0x28] sm:$0xff]
  %v2310 = vmul.f32 %v2304, %v383
  %v2311 = vmul.f32 %v2305, %v387
  %v2312 = vmul.f32 %v2306, %v385
  %v2313 = vmul.f32 %v2307, %v383
  %v2314 = vmul.f32 %v2308, %v387
  %v2315 = vmul.f32 %v2309, %v385
  %2322 = vrot.lane.b32.xlu0 %v2310, 110
  %v2323 = vpop.permute.xlu0 %2322
  %2324 = vrot.lane.b32.xlu0 %v2311, 110
  %v2325 = vpop.permute.xlu0 %2324
  %2326 = vrot.lane.b32.xlu0 %v2312, 110
  %v2327 = vpop.permute.xlu0 %2326
  %2328 = vrot.lane.b32.xlu0 %v2313, 110
  %v2329 = vpop.permute.xlu0 %2328
  %2330 = vrot.lane.b32.xlu0 %v2314, 110
  %v2331 = vpop.permute.xlu0 %2330
  %2332 = vrot.lane.b32.xlu0 %v2315, 110
  %v2333 = vpop.permute.xlu0 %2332
  %v2334 = vsel %vm415, %v2323, %v2325
  %v2335 = vsel %vm415, %v2325, %v2327
  %v2336 = vsel %vm415, %v2329, %v2331
  %v2337 = vsel %vm415, %v2331, %v2333
  %2342 = vst [vmem:[#allocation3 + $0xa0] sm:$0xff] %v2334
  %2343 = vst [vmem:[#allocation3 + $0xa8] sm:$0xff] %v2335
  %2344 = vst [vmem:[#allocation3 + $0xb0] sm:$0xff] %v2336
  %2345 = vst [vmem:[#allocation3 + $0xb8] sm:$0xff] %v2337
  %v2346 = vld [vmem:[#allocation2] sm:$0xff]
  %v2347 = vld [vmem:[#allocation2 + $0x8] sm:$0xff]
  %v2348 = vld [vmem:[#allocation2 + $0x10] sm:$0xff]
  %v2349 = vld [vmem:[#allocation2 + $0x18] sm:$0xff]
  %v2350 = vld [vmem:[#allocation2 + $0x20] sm:$0xff]
  %v2351 = vld [vmem:[#allocation2 + $0x28] sm:$0xff]
  %v2352 = vmul.f32 %v2346, %v435
  %v2353 = vmul.f32 %v2347, %v439
  %v2354 = vmul.f32 %v2348, %v437
  %v2355 = vmul.f32 %v2349, %v435
  %v2356 = vmul.f32 %v2350, %v439
  %v2357 = vmul.f32 %v2351, %v437
  %2364 = vrot.lane.b32.xlu0 %v2352, 96
  %v2365 = vpop.permute.xlu0 %2364
  %2366 = vrot.lane.b32.xlu0 %v2353, 96
  %v2367 = vpop.permute.xlu0 %2366
  %2368 = vrot.lane.b32.xlu0 %v2354, 96
  %v2369 = vpop.permute.xlu0 %2368
  %2370 = vrot.lane.b32.xlu0 %v2355, 96
  %v2371 = vpop.permute.xlu0 %2370
  %2372 = vrot.lane.b32.xlu0 %v2356, 96
  %v2373 = vpop.permute.xlu0 %2372
  %2374 = vrot.lane.b32.xlu0 %v2357, 96
  %v2375 = vpop.permute.xlu0 %2374
  %v2376 = vsel %vm467, %v2365, %v2367
  %v2377 = vsel %vm467, %v2367, %v2369
  %v2378 = vsel %vm467, %v2371, %v2373
  %v2379 = vsel %vm467, %v2373, %v2375
  %2384 = vst [vmem:[#allocation3 + $0xc0] sm:$0xff] %v2376
  %2385 = vst [vmem:[#allocation3 + $0xc8] sm:$0xff] %v2377
  %2386 = vst [vmem:[#allocation3 + $0xd0] sm:$0xff] %v2378
  %2387 = vst [vmem:[#allocation3 + $0xd8] sm:$0xff] %v2379
  %v2388 = vld [vmem:[#allocation2] sm:$0xff]
  %v2389 = vld [vmem:[#allocation2 + $0x8] sm:$0xff]
  %v2390 = vld [vmem:[#allocation2 + $0x10] sm:$0xff]
  %v2391 = vld [vmem:[#allocation2 + $0x18] sm:$0xff]
  %v2392 = vld [vmem:[#allocation2 + $0x20] sm:$0xff]
  %v2393 = vld [vmem:[#allocation2 + $0x28] sm:$0xff]
  %2400 = vrot.lane.b32.xlu0 %v2388, 95
  %v2401 = vpop.permute.xlu0 %2400
  %2402 = vrot.lane.b32.xlu0 %v2389, 95
  %v2403 = vpop.permute.xlu0 %2402
  %2404 = vrot.lane.b32.xlu0 %v2390, 95
  %v2405 = vpop.permute.xlu0 %2404
  %2406 = vrot.lane.b32.xlu0 %v2391, 95
  %v2407 = vpop.permute.xlu0 %2406
  %2408 = vrot.lane.b32.xlu0 %v2392, 95
  %v2409 = vpop.permute.xlu0 %2408
  %2410 = vrot.lane.b32.xlu0 %v2393, 95
  %v2411 = vpop.permute.xlu0 %2410
  %v2412 = vsel %vm504, %v2401, %v2403
  %v2413 = vsel %vm504, %v2403, %v2405
  %v2414 = vsel %vm504, %v2407, %v2409
  %v2415 = vsel %vm504, %v2409, %v2411
  %2420 = vst [vmem:[#allocation3 + $0xe0] sm:$0xff] %v2412
  %2421 = vst [vmem:[#allocation3 + $0xe8] sm:$0xff] %v2413
  %2422 = vst [vmem:[#allocation3 + $0xf0] sm:$0xff] %v2414
  %2423 = vst [vmem:[#allocation3 + $0xf8] sm:$0xff] %v2415
  %v2424 = vld [vmem:[#allocation2] sm:$0xff]
  %v2425 = vld [vmem:[#allocation2 + $0x8] sm:$0xff]
  %v2426 = vld [vmem:[#allocation2 + $0x10] sm:$0xff]
  %v2427 = vld [vmem:[#allocation2 + $0x18] sm:$0xff]
  %v2428 = vld [vmem:[#allocation2 + $0x20] sm:$0xff]
  %v2429 = vld [vmem:[#allocation2 + $0x28] sm:$0xff]
  %v2430 = vmul.f32 %v2424, %v524
  %v2431 = vmul.f32 %v2425, %v528
  %v2432 = vmul.f32 %v2426, %v526
  %v2433 = vmul.f32 %v2427, %v524
  %v2434 = vmul.f32 %v2428, %v528
  %v2435 = vmul.f32 %v2429, %v526
  %2442 = vrot.lane.b32.xlu0 %v2430, 94
  %v2443 = vpop.permute.xlu0 %2442
  %2444 = vrot.lane.b32.xlu0 %v2431, 94
  %v2445 = vpop.permute.xlu0 %2444
  %2446 = vrot.lane.b32.xlu0 %v2432, 94
  %v2447 = vpop.permute.xlu0 %2446
  %2448 = vrot.lane.b32.xlu0 %v2433, 94
  %v2449 = vpop.permute.xlu0 %2448
  %2450 = vrot.lane.b32.xlu0 %v2434, 94
  %v2451 = vpop.permute.xlu0 %2450
  %2452 = vrot.lane.b32.xlu0 %v2435, 94
  %v2453 = vpop.permute.xlu0 %2452
  %v2454 = vsel %vm556, %v2443, %v2445
  %v2455 = vsel %vm556, %v2445, %v2447
  %v2456 = vsel %vm556, %v2449, %v2451
  %v2457 = vsel %vm556, %v2451, %v2453
  %2462 = vst [vmem:[#allocation3 + $0x100] sm:$0xff] %v2454
  %2463 = vst [vmem:[#allocation3 + $0x108] sm:$0xff] %v2455
  %2464 = vst [vmem:[#allocation3 + $0x110] sm:$0xff] %v2456
  %2465 = vst [vmem:[#allocation3 + $0x118] sm:$0xff] %v2457
  %v2466 = vld [vmem:[%s11] sm:$0xff]
  %v2467 = vld [vmem:[%s11 + $0x8] sm:$0xff]
  %v2468 = vld [vmem:[%s11 + $0x10] sm:$0xff]
  %v2469 = vld [vmem:[%s11 + $0x18] sm:$0xff]
  %v2470 = vld [vmem:[%s11 + $0x20] sm:$0xff]
  %v2471 = vld [vmem:[%s11 + $0x28] sm:$0xff]
  %v2472 = vld [vmem:[%s11 + $0x30] sm:$0xff]
  %v2473 = vld [vmem:[%s11 + $0x38] sm:$0xff]
  %v2474 = vld [vmem:[#allocation3] sm:$0xff]
  %v2475 = vld [vmem:[#allocation3 + $0x8] sm:$0xff]
  %v2476 = vld [vmem:[#allocation3 + $0x10] sm:$0xff]
  %v2477 = vld [vmem:[#allocation3 + $0x18] sm:$0xff]
  %v2478 = vld [vmem:[#allocation3 + $0x20] sm:$0xff]
  %v2479 = vld [vmem:[#allocation3 + $0x28] sm:$0xff]
  %v2480 = vld [vmem:[#allocation3 + $0x30] sm:$0xff]
  %v2481 = vld [vmem:[#allocation3 + $0x38] sm:$0xff]
  %v2482 = vld [vmem:[#allocation3 + $0x40] sm:$0xff]
  %v2483 = vld [vmem:[#allocation3 + $0x48] sm:$0xff]
  %v2484 = vld [vmem:[#allocation3 + $0x50] sm:$0xff]
  %v2485 = vld [vmem:[#allocation3 + $0x58] sm:$0xff]
  %v2486 = vld [vmem:[#allocation3 + $0x60] sm:$0xff]
  %v2487 = vld [vmem:[#allocation3 + $0x68] sm:$0xff]
  %v2488 = vld [vmem:[#allocation3 + $0x70] sm:$0xff]
  %v2489 = vld [vmem:[#allocation3 + $0x78] sm:$0xff]
  %v2490 = vld [vmem:[#allocation3 + $0x80] sm:$0xff]
  %v2491 = vld [vmem:[#allocation3 + $0x88] sm:$0xff]
  %v2492 = vld [vmem:[#allocation3 + $0x90] sm:$0xff]
  %v2493 = vld [vmem:[#allocation3 + $0x98] sm:$0xff]
  %v2494 = vld [vmem:[#allocation3 + $0xa0] sm:$0xff]
  %v2495 = vld [vmem:[#allocation3 + $0xa8] sm:$0xff]
  %v2496 = vld [vmem:[#allocation3 + $0xb0] sm:$0xff]
  %v2497 = vld [vmem:[#allocation3 + $0xb8] sm:$0xff]
  %v2498 = vld [vmem:[#allocation3 + $0xc0] sm:$0xff]
  %v2499 = vld [vmem:[#allocation3 + $0xc8] sm:$0xff]
  %v2500 = vld [vmem:[#allocation3 + $0xd0] sm:$0xff]
  %v2501 = vld [vmem:[#allocation3 + $0xd8] sm:$0xff]
  %v2502 = vld [vmem:[#allocation3 + $0xe0] sm:$0xff]
  %v2503 = vld [vmem:[#allocation3 + $0xe8] sm:$0xff]
  %v2504 = vld [vmem:[#allocation3 + $0xf0] sm:$0xff]
  %v2505 = vld [vmem:[#allocation3 + $0xf8] sm:$0xff]
  %v2506 = vld [vmem:[#allocation3 + $0x100] sm:$0xff]
  %v2507 = vld [vmem:[#allocation3 + $0x108] sm:$0xff]
  %v2508 = vld [vmem:[#allocation3 + $0x110] sm:$0xff]
  %v2509 = vld [vmem:[#allocation3 + $0x118] sm:$0xff]
  %v2510 = vld [vmem:[%s12] sm:$0xff]
  %v2511 = vld [vmem:[%s12 + $0x8] sm:$0xff]
  %v2512 = vld [vmem:[%s12 + $0x10] sm:$0xff]
  %v2513 = vld [vmem:[%s12 + $0x18] sm:$0xff]
  %2515 = vset.pattern.permute.xlu0 0
  %2516 = vperm.xlu0 %2515, %v2510
  %v2517 = vpop.permute.xlu0 %2516
  %2520 = vset.pattern.permute.xlu0 0
  %2521 = vperm.xlu0 %2520, %v2511
  %v2522 = vpop.permute.xlu0 %2521
  %2525 = vset.pattern.permute.xlu0 0
  %2526 = vperm.xlu0 %2525, %v2512
  %v2527 = vpop.permute.xlu0 %2526
  %2530 = vset.pattern.permute.xlu0 0
  %2531 = vperm.xlu0 %2530, %v2513
  %v2532 = vpop.permute.xlu0 %2531
  %v2535 = vsel %vm297, %v2467, 0
  %v2538 = vsel %vm297, %v2469, 0
  %v2541 = vsel %vm297, %v2471, 0
  %v2544 = vsel %vm297, %v2473, 0
  %2546 = vmatprep.subr.mxu0 %v2505
  %2547 = vmatpush1.msra.mxu0 %v2504
  %2548 = vmatprep.subr.mxu0 %v2503
  %2549 = vmatpush1.msra.mxu0 %v2502
  %2550 = vmatprep.subr.mxu0 %v2501
  %2551 = vmatpush1.msra.mxu0 %v2500
  %2552 = vmatprep.subr.mxu0 %v2499
  %2553 = vmatpush1.msra.mxu0 %v2498
  %2554 = vmatprep.subr.mxu0 %v2497
  %2555 = vmatpush1.msra.mxu0 %v2496
  %2556 = vmatprep.subr.mxu0 %v2495
  %2557 = vmatpush1.msra.mxu0 %v2494
  %2558 = vmatprep.subr.mxu0 %v2493
  %2559 = vmatpush1.msra.mxu0 %v2492
  %2560 = vmatprep.subr.mxu0 %v2491
  %2561 = vmatpush1.msra.mxu0 %v2490
  %2562 = vmatprep.subr.mxu0 %v2489
  %2563 = vmatpush1.msra.mxu0 %v2488
  %2564 = vmatprep.subr.mxu0 %v2487
  %2565 = vmatpush1.msra.mxu0 %v2486
  %2566 = vmatprep.subr.mxu0 %v2485
  %2567 = vmatpush1.msra.mxu0 %v2484
  %2568 = vmatprep.subr.mxu0 %v2483
  %2569 = vmatpush1.msra.mxu0 %v2482
  %2570 = vmatprep.subr.mxu0 %v2481
  %2571 = vmatpush1.msra.mxu0 %v2480
  %2572 = vmatprep.subr.mxu0 %v2479
  %2573 = vmatpush1.msra.mxu0 %v2478
  %2574 = vmatprep.subr.mxu0 %v2477
  %2575 = vmatpush1.msra.mxu0 %v2476
  %2576 = vmatprep.subr.mxu0 %v2475
  %2577 = vmatpush1.msra.mxu0 %v2474
  %2578 = vmatprep.subr.mxu0 0.0
  %2579 = vmatpush2.msra.mxu0 0.0
  %2580 = vmatprep.subr.mxu0 0.0
  %2581 = vmatpush2.msra.mxu0 0.0
  %2582 = vmatprep.subr.mxu0 0.0
  %2583 = vmatpush2.msra.mxu0 0.0
  %2584 = vmatprep.subr.mxu0 0.0
  %2585 = vmatpush2.msra.mxu0 0.0
  %2586 = vmatprep.subr.mxu0 0.0
  %2587 = vmatpush2.msra.mxu0 0.0
  %2588 = vmatprep.subr.mxu0 0.0
  %2589 = vmatpush2.msra.mxu0 0.0
  %2590 = vmatprep.subr.mxu0 0.0
  %2591 = vmatpush2.msra.mxu0 0.0
  %2592 = vmatprep.subr.mxu0 0.0
  %2593 = vmatpush2.msra.mxu0 0.0
  %2594 = vmatprep.subr.mxu0 0.0
  %2595 = vmatpush2.msra.mxu0 0.0
  %2596 = vmatprep.subr.mxu0 0.0
  %2597 = vmatpush2.msra.mxu0 0.0
  %2598 = vmatprep.subr.mxu0 0.0
  %2599 = vmatpush2.msra.mxu0 0.0
  %2600 = vmatprep.subr.mxu0 0.0
  %2601 = vmatpush2.msra.mxu0 0.0
  %2602 = vmatprep.subr.mxu0 0.0
  %2603 = vmatpush2.msra.mxu0 0.0
  %2604 = vmatprep.subr.mxu0 0.0
  %2605 = vmatpush2.msra.mxu0 0.0
  %2606 = vmatprep.subr.mxu0 %v2509
  %2607 = vmatpush2.msra.mxu0 %v2508
  %2608 = vmatprep.subr.mxu0 %v2507
  %2609 = vmatpush2.msra.mxu0 %v2506
  %2610 = vmatprep.mubr.f32.mxu0 %v2535
  %2611 = vmatmul.mubr.f32.gmra.mxu0 %v2466
  %v2612 = vpop.f32.mrf.mxu0
  %v2613 = vadd.f32 %v2517, %v2612
  %v2614 = vpop.f32.mrf.mxu0
  %v2615 = vadd.f32 %v2517, %v2614
  %2616 = vmatprep.mubr.f32.mxu0 %v2538
  %2617 = vmatmul.mubr.f32.gmra.mxu0 %v2468
  %v2618 = vpop.f32.mrf.mxu0
  %v2619 = vadd.f32 %v2522, %v2618
  %v2620 = vpop.f32.mrf.mxu0
  %v2621 = vadd.f32 %v2522, %v2620
  %2622 = vmatprep.mubr.f32.mxu0 %v2541
  %2623 = vmatmul.mubr.f32.gmra.mxu0 %v2470
  %v2624 = vpop.f32.mrf.mxu0
  %v2625 = vadd.f32 %v2527, %v2624
  %v2626 = vpop.f32.mrf.mxu0
  %v2627 = vadd.f32 %v2527, %v2626
  %2628 = vmatprep.mubr.f32.mxu0 %v2544
  %2629 = vmatmul.mubr.f32.gmra.mxu0 %v2472
  %v2630 = vpop.f32.mrf.mxu0
  %v2631 = vadd.f32 %v2532, %v2630
  %v2632 = vpop.f32.mrf.mxu0
  %v2633 = vadd.f32 %v2532, %v2632
  %2634 = vdwg.mxu0
  %v2635 = vadd.f32 %v2613, %v2615
  %2636 = vadd.xlane.f32.xlu0 %v2635
  %v2637 = vpop.xlane.xlu0 %2636
  %v2638 = vadd.f32 %v2619, %v2621
  %2639 = vadd.xlane.f32.xlu0 %v2638
  %v2640 = vpop.xlane.xlu0 %2639
  %v2641 = vadd.f32 %v2625, %v2627
  %2642 = vadd.xlane.f32.xlu0 %v2641
  %v2643 = vpop.xlane.xlu0 %2642
  %v2644 = vadd.f32 %v2631, %v2633
  %2645 = vadd.xlane.f32.xlu0 %v2644
  %v2646 = vpop.xlane.xlu0 %2645
  %v2647 = vmul.f32 %v2613, %v2613
  %v2648 = vmul.f32 %v2615, %v2615
  %v2649 = vmul.f32 %v2619, %v2619
  %v2650 = vmul.f32 %v2621, %v2621
  %v2651 = vmul.f32 %v2625, %v2625
  %v2652 = vmul.f32 %v2627, %v2627
  %v2653 = vmul.f32 %v2631, %v2631
  %v2654 = vmul.f32 %v2633, %v2633
  %v2655 = vadd.f32 %v2647, %v2648
  %2656 = vadd.xlane.f32.xlu0 %v2655
  %v2657 = vpop.xlane.xlu0 %2656
  %v2658 = vadd.f32 %v2649, %v2650
  %2659 = vadd.xlane.f32.xlu0 %v2658
  %v2660 = vpop.xlane.xlu0 %2659
  %v2661 = vadd.f32 %v2651, %v2652
  %2662 = vadd.xlane.f32.xlu0 %v2661
  %v2663 = vpop.xlane.xlu0 %2662
  %v2664 = vadd.f32 %v2653, %v2654
  %2665 = vadd.xlane.f32.xlu0 %v2664
  %v2666 = vpop.xlane.xlu0 %2665
  %v2667 = vld [vmem:[%s6] sm:$0xff]
  %v2668 = vld [vmem:[%s6 + $0x8] sm:$0xff]
  %v2669 = vld [vmem:[%s6 + $0x10] sm:$0xff]
  %v2670 = vld [vmem:[%s6 + $0x18] sm:$0xff]
  %v2672 = vsel %vm438, %v2667, 0
  %v2675 = vsel %vm438, %v2668, 0
  %v2678 = vsel %vm438, %v2669, 0
  %v2681 = vsel %vm438, %v2670, 0
  %2683 = vmatprep.subr.mxu0 0.0
  %2684 = vmatpush1.msra.mxu0 0.0
  %2685 = vmatprep.subr.mxu0 0.0
  %2686 = vmatpush1.msra.mxu0 0.0
  %2687 = vmatprep.subr.mxu0 0.0
  %2688 = vmatpush1.msra.mxu0 0.0
  %2689 = vmatprep.subr.mxu0 0.0
  %2690 = vmatpush1.msra.mxu0 0.0
  %2691 = vmatprep.subr.mxu0 0.0
  %2692 = vmatpush1.msra.mxu0 0.0
  %2693 = vmatprep.subr.mxu0 0.0
  %2694 = vmatpush1.msra.mxu0 0.0
  %2695 = vmatprep.subr.mxu0 0.0
  %2696 = vmatpush1.msra.mxu0 0.0
  %2697 = vmatprep.subr.mxu0 0.0
  %2698 = vmatpush1.msra.mxu0 0.0
  %2699 = vmatprep.subr.mxu0 0.0
  %2700 = vmatpush1.msra.mxu0 0.0
  %2701 = vmatprep.subr.mxu0 0.0
  %2702 = vmatpush1.msra.mxu0 0.0
  %2703 = vmatprep.subr.mxu0 0.0
  %2704 = vmatpush1.msra.mxu0 0.0
  %2705 = vmatprep.subr.mxu0 0.0
  %2706 = vmatpush1.msra.mxu0 0.0
  %2707 = vmatprep.subr.mxu0 0.0
  %2708 = vmatpush1.msra.mxu0 %v2646
  %2709 = vmatprep.subr.mxu0 0.0
  %2710 = vmatpush1.msra.mxu0 %v2643
  %2711 = vmatprep.subr.mxu0 0.0
  %2712 = vmatpush1.msra.mxu0 %v2640
  %2713 = vmatprep.subr.mxu0 0.0
  %2714 = vmatpush1.msra.mxu0 %v2637
  %2715 = vmatprep.subr.mxu0 0.0
  %2716 = vmatpush2.msra.mxu0 0.0
  %2717 = vmatprep.subr.mxu0 0.0
  %2718 = vmatpush2.msra.mxu0 0.0
  %2719 = vmatprep.subr.mxu0 0.0
  %2720 = vmatpush2.msra.mxu0 0.0
  %2721 = vmatprep.subr.mxu0 0.0
  %2722 = vmatpush2.msra.mxu0 0.0
  %2723 = vmatprep.subr.mxu0 0.0
  %2724 = vmatpush2.msra.mxu0 0.0
  %2725 = vmatprep.subr.mxu0 0.0
  %2726 = vmatpush2.msra.mxu0 0.0
  %2727 = vmatprep.subr.mxu0 0.0
  %2728 = vmatpush2.msra.mxu0 0.0
  %2729 = vmatprep.subr.mxu0 0.0
  %2730 = vmatpush2.msra.mxu0 0.0
  %2731 = vmatprep.subr.mxu0 0.0
  %2732 = vmatpush2.msra.mxu0 0.0
  %2733 = vmatprep.subr.mxu0 0.0
  %2734 = vmatpush2.msra.mxu0 0.0
  %2735 = vmatprep.subr.mxu0 0.0
  %2736 = vmatpush2.msra.mxu0 0.0
  %2737 = vmatprep.subr.mxu0 0.0
  %2738 = vmatpush2.msra.mxu0 0.0
  %2739 = vmatprep.subr.mxu0 0.0
  %2740 = vmatpush2.msra.mxu0 0.0
  %2741 = vmatprep.subr.mxu0 0.0
  %2742 = vmatpush2.msra.mxu0 0.0
  %2743 = vmatprep.subr.mxu0 0.0
  %2744 = vmatpush2.msra.mxu0 0.0
  %2745 = vmatprep.subr.mxu0 0.0
  %2746 = vmatpush2.msra.mxu0 0.0
  %2747 = vmatprep.mubr.f32.mxu0 0.0
  %2748 = vmatmul.mubr.f32.gmra.mxu0 %v2672
  %v2749 = vpop.f32.mrf.mxu0
  %v2750 = vadd.f32 0.0, %v2749
  %v2751 = vpop.f32.mrf.mxu0
  %2752 = vmatprep.mubr.f32.mxu0 0.0
  %2753 = vmatmul.mubr.f32.gmra.mxu0 %v2675
  %v2754 = vpop.f32.mrf.mxu0
  %v2755 = vadd.f32 0.0, %v2754
  %v2756 = vpop.f32.mrf.mxu0
  %2757 = vmatprep.mubr.f32.mxu0 0.0
  %2758 = vmatmul.mubr.f32.gmra.mxu0 %v2678
  %v2759 = vpop.f32.mrf.mxu0
  %v2760 = vadd.f32 0.0, %v2759
  %v2761 = vpop.f32.mrf.mxu0
  %2762 = vmatprep.mubr.f32.mxu0 0.0
  %2763 = vmatmul.mubr.f32.gmra.mxu0 %v2681
  %v2764 = vpop.f32.mrf.mxu0
  %v2765 = vadd.f32 0.0, %v2764
  %v2766 = vpop.f32.mrf.mxu0
  %2767 = vdwg.mxu0
  %2768 = vmatprep.subr.mxu0 0.0
  %2769 = vmatpush1.msra.mxu0 0.0
  %2770 = vmatprep.subr.mxu0 0.0
  %2771 = vmatpush1.msra.mxu0 0.0
  %2772 = vmatprep.subr.mxu0 0.0
  %2773 = vmatpush1.msra.mxu0 0.0
  %2774 = vmatprep.subr.mxu0 0.0
  %2775 = vmatpush1.msra.mxu0 0.0
  %2776 = vmatprep.subr.mxu0 0.0
  %2777 = vmatpush1.msra.mxu0 0.0
  %2778 = vmatprep.subr.mxu0 0.0
  %2779 = vmatpush1.msra.mxu0 0.0
  %2780 = vmatprep.subr.mxu0 0.0
  %2781 = vmatpush1.msra.mxu0 0.0
  %2782 = vmatprep.subr.mxu0 0.0
  %2783 = vmatpush1.msra.mxu0 0.0
  %2784 = vmatprep.subr.mxu0 0.0
  %2785 = vmatpush1.msra.mxu0 0.0
  %2786 = vmatprep.subr.mxu0 0.0
  %2787 = vmatpush1.msra.mxu0 0.0
  %2788 = vmatprep.subr.mxu0 0.0
  %2789 = vmatpush1.msra.mxu0 0.0
  %2790 = vmatprep.subr.mxu0 0.0
  %2791 = vmatpush1.msra.mxu0 0.0
  %2792 = vmatprep.subr.mxu0 0.0
  %2793 = vmatpush1.msra.mxu0 %v2666
  %2794 = vmatprep.subr.mxu0 0.0
  %2795 = vmatpush1.msra.mxu0 %v2663
  %2796 = vmatprep.subr.mxu0 0.0
  %2797 = vmatpush1.msra.mxu0 %v2660
  %2798 = vmatprep.subr.mxu0 0.0
  %2799 = vmatpush1.msra.mxu0 %v2657
  %2800 = vmatprep.subr.mxu0 0.0
  %2801 = vmatpush2.msra.mxu0 0.0
  %2802 = vmatprep.subr.mxu0 0.0
  %2803 = vmatpush2.msra.mxu0 0.0
  %2804 = vmatprep.subr.mxu0 0.0
  %2805 = vmatpush2.msra.mxu0 0.0
  %2806 = vmatprep.subr.mxu0 0.0
  %2807 = vmatpush2.msra.mxu0 0.0
  %2808 = vmatprep.subr.mxu0 0.0
  %2809 = vmatpush2.msra.mxu0 0.0
  %2810 = vmatprep.subr.mxu0 0.0
  %2811 = vmatpush2.msra.mxu0 0.0
  %2812 = vmatprep.subr.mxu0 0.0
  %2813 = vmatpush2.msra.mxu0 0.0
  %2814 = vmatprep.subr.mxu0 0.0
  %2815 = vmatpush2.msra.mxu0 0.0
  %2816 = vmatprep.subr.mxu0 0.0
  %2817 = vmatpush2.msra.mxu0 0.0
  %2818 = vmatprep.subr.mxu0 0.0
  %2819 = vmatpush2.msra.mxu0 0.0
  %2820 = vmatprep.subr.mxu0 0.0
  %2821 = vmatpush2.msra.mxu0 0.0
  %2822 = vmatprep.subr.mxu0 0.0
  %2823 = vmatpush2.msra.mxu0 0.0
  %2824 = vmatprep.subr.mxu0 0.0
  %2825 = vmatpush2.msra.mxu0 0.0
  %2826 = vmatprep.subr.mxu0 0.0
  %2827 = vmatpush2.msra.mxu0 0.0
  %2828 = vmatprep.subr.mxu0 0.0
  %2829 = vmatpush2.msra.mxu0 0.0
  %2830 = vmatprep.subr.mxu0 0.0
  %2831 = vmatpush2.msra.mxu0 0.0
  %2832 = vmatprep.mubr.f32.mxu0 0.0
  %2833 = vmatmul.mubr.f32.gmra.mxu0 %v2672
  %v2834 = vpop.f32.mrf.mxu0
  %v2835 = vadd.f32 0.0, %v2834
  %v2836 = vpop.f32.mrf.mxu0
  %2837 = vmatprep.mubr.f32.mxu0 0.0
  %2838 = vmatmul.mubr.f32.gmra.mxu0 %v2675
  %v2839 = vpop.f32.mrf.mxu0
  %v2840 = vadd.f32 0.0, %v2839
  %v2841 = vpop.f32.mrf.mxu0
  %2842 = vmatprep.mubr.f32.mxu0 0.0
  %2843 = vmatmul.mubr.f32.gmra.mxu0 %v2678
  %v2844 = vpop.f32.mrf.mxu0
  %v2845 = vadd.f32 0.0, %v2844
  %v2846 = vpop.f32.mrf.mxu0
  %2847 = vmatprep.mubr.f32.mxu0 0.0
  %2848 = vmatmul.mubr.f32.gmra.mxu0 %v2681
  %v2849 = vpop.f32.mrf.mxu0
  %v2850 = vadd.f32 0.0, %v2849
  %v2851 = vpop.f32.mrf.mxu0
  %2852 = vdwg.mxu0
  %v2853 = vmul.f32 %v2750, %v2750
  %v2854 = vmul.f32 %v2755, %v2755
  %v2855 = vmul.f32 %v2760, %v2760
  %v2856 = vmul.f32 %v2765, %v2765
  %v2857 = vsub.f32 %v2835, %v2853
  %v2858 = vsub.f32 %v2840, %v2854
  %v2859 = vsub.f32 %v2845, %v2855
  %v2860 = vsub.f32 %v2850, %v2856
  %v2861 = vadd.f32 %v2857, 1e-05
  %v2862 = vadd.f32 %v2858, 1e-05
  %v2863 = vadd.f32 %v2859, 1e-05
  %v2864 = vadd.f32 %v2860, 1e-05
  %v2865 = vrsqrt.pop %v2861
  %v2866 = vrsqrt.pop %v2862
  %v2867 = vrsqrt.pop %v2863
  %v2868 = vrsqrt.pop %v2864
  %2870 = vset.pattern.permute.xlu0 0
  %2871 = vperm.xlu0 %2870, %v2750
  %v2872 = vpop.permute.xlu0 %2871
  %2875 = vset.pattern.permute.xlu0 0
  %2876 = vperm.xlu0 %2875, %v2755
  %v2877 = vpop.permute.xlu0 %2876
  %2880 = vset.pattern.permute.xlu0 0
  %2881 = vperm.xlu0 %2880, %v2760
  %v2882 = vpop.permute.xlu0 %2881
  %2885 = vset.pattern.permute.xlu0 0
  %2886 = vperm.xlu0 %2885, %v2765
  %v2887 = vpop.permute.xlu0 %2886
  %v2889 = vsub.f32 %v2613, %v2872
  %v2890 = vsub.f32 %v2615, %v2872
  %v2891 = vsub.f32 %v2619, %v2877
  %v2892 = vsub.f32 %v2621, %v2877
  %v2893 = vsub.f32 %v2625, %v2882
  %v2894 = vsub.f32 %v2627, %v2882
  %v2895 = vsub.f32 %v2631, %v2887
  %v2896 = vsub.f32 %v2633, %v2887
  %2898 = vset.pattern.permute.xlu0 0
  %2899 = vperm.xlu0 %2898, %v2865
  %v2900 = vpop.permute.xlu0 %2899
  %2903 = vset.pattern.permute.xlu0 0
  %2904 = vperm.xlu0 %2903, %v2866
  %v2905 = vpop.permute.xlu0 %2904
  %2908 = vset.pattern.permute.xlu0 0
  %2909 = vperm.xlu0 %2908, %v2867
  %v2910 = vpop.permute.xlu0 %2909
  %2913 = vset.pattern.permute.xlu0 0
  %2914 = vperm.xlu0 %2913, %v2868
  %v2915 = vpop.permute.xlu0 %2914
  %v2917 = vmul.f32 %v2889, %v2900
  %v2918 = vmul.f32 %v2890, %v2900
  %v2919 = vmul.f32 %v2891, %v2905
  %v2920 = vmul.f32 %v2892, %v2905
  %v2921 = vmul.f32 %v2893, %v2910
  %v2922 = vmul.f32 %v2894, %v2910
  %v2923 = vmul.f32 %v2895, %v2915
  %v2924 = vmul.f32 %v2896, %v2915
  %v2925 = vld [vmem:[%s13] sm:$0xff]
  %v2926 = vld [vmem:[%s13 + $0x8] sm:$0xff]
  %v2927 = vld [vmem:[%s13 + $0x10] sm:$0xff]
  %v2928 = vld [vmem:[%s13 + $0x18] sm:$0xff]
  %2930 = vset.pattern.permute.xlu0 0
  %2931 = vperm.xlu0 %2930, %v2925
  %v2932 = vpop.permute.xlu0 %2931
  %2935 = vset.pattern.permute.xlu0 0
  %2936 = vperm.xlu0 %2935, %v2926
  %v2937 = vpop.permute.xlu0 %2936
  %2940 = vset.pattern.permute.xlu0 0
  %2941 = vperm.xlu0 %2940, %v2927
  %v2942 = vpop.permute.xlu0 %2941
  %2945 = vset.pattern.permute.xlu0 0
  %2946 = vperm.xlu0 %2945, %v2928
  %v2947 = vpop.permute.xlu0 %2946
  %v2949 = vmul.f32 %v2917, %v2932
  %v2950 = vmul.f32 %v2918, %v2932
  %v2951 = vmul.f32 %v2919, %v2937
  %v2952 = vmul.f32 %v2920, %v2937
  %v2953 = vmul.f32 %v2921, %v2942
  %v2954 = vmul.f32 %v2922, %v2942
  %v2955 = vmul.f32 %v2923, %v2947
  %v2956 = vmul.f32 %v2924, %v2947
  %v2957 = vld [vmem:[%s14] sm:$0xff]
  %v2958 = vld [vmem:[%s14 + $0x8] sm:$0xff]
  %v2959 = vld [vmem:[%s14 + $0x10] sm:$0xff]
  %v2960 = vld [vmem:[%s14 + $0x18] sm:$0xff]
  %2962 = vset.pattern.permute.xlu0 0
  %2963 = vperm.xlu0 %2962, %v2957
  %v2964 = vpop.permute.xlu0 %2963
  %2967 = vset.pattern.permute.xlu0 0
  %2968 = vperm.xlu0 %2967, %v2958
  %v2969 = vpop.permute.xlu0 %2968
  %2972 = vset.pattern.permute.xlu0 0
  %2973 = vperm.xlu0 %2972, %v2959
  %v2974 = vpop.permute.xlu0 %2973
  %2977 = vset.pattern.permute.xlu0 0
  %2978 = vperm.xlu0 %2977, %v2960
  %v2979 = vpop.permute.xlu0 %2978
  %v2981 = vadd.f32 %v2949, %v2964
  %v2982 = vadd.f32 %v2950, %v2964
  %v2983 = vadd.f32 %v2951, %v2969
  %v2984 = vadd.f32 %v2952, %v2969
  %v2985 = vadd.f32 %v2953, %v2974
  %v2986 = vadd.f32 %v2954, %v2974
  %v2987 = vadd.f32 %v2955, %v2979
  %v2988 = vadd.f32 %v2956, %v2979
  %v2989 = vadd.f32 %v2088, %v2981
  %v2990 = vadd.f32 %v2090, %v2982
  %v2991 = vadd.f32 %v2094, %v2983
  %v2992 = vadd.f32 %v2096, %v2984
  %v2993 = vadd.f32 %v2100, %v2985
  %v2994 = vadd.f32 %v2102, %v2986
  %v2995 = vadd.f32 %v2106, %v2987
  %v2996 = vadd.f32 %v2108, %v2988
  %2997 = vst [vmem:[%s15] sm:$0xff] %v2989
  %2998 = vst [vmem:[%s15 + $0x8] sm:$0xff] %v2990
  %2999 = vst [vmem:[%s15 + $0x10] sm:$0xff] %v2991
  %3000 = vst [vmem:[%s15 + $0x18] sm:$0xff] %v2992
  %3001 = vst [vmem:[%s15 + $0x20] sm:$0xff] %v2993
  %3002 = vst [vmem:[%s15 + $0x28] sm:$0xff] %v2994
  %3003 = vst [vmem:[%s15 + $0x30] sm:$0xff] %v2995
  %3004 = vst [vmem:[%s15 + $0x38] sm:$0xff] %v2996
  %s3005 = scalar_lea.vmem %s0, 32
  %v3006 = vld [vmem:[%s3005] sm:$0xff]
  %v3007 = vld [vmem:[%s3005 + $0x8] sm:$0xff]
  %v3008 = vld [vmem:[%s3005 + $0x10] sm:$0xff]
  %v3009 = vld [vmem:[%s3005 + $0x18] sm:$0xff]
  %v3010 = vadd.f32 %v3006, %v3007
  %3011 = vadd.xlane.f32.xlu0 %v3010
  %v3012 = vpop.xlane.xlu0 %3011
  %v3013 = vadd.f32 %v3008, %v3009
  %3014 = vadd.xlane.f32.xlu0 %v3013
  %v3015 = vpop.xlane.xlu0 %3014
  %v3016 = vmul.f32 %v3006, %v3006
  %v3017 = vmul.f32 %v3007, %v3007
  %v3018 = vmul.f32 %v3008, %v3008
  %v3019 = vmul.f32 %v3009, %v3009
  %v3020 = vadd.f32 %v3016, %v3017
  %3021 = vadd.xlane.f32.xlu0 %v3020
  %v3022 = vpop.xlane.xlu0 %3021
  %v3023 = vadd.f32 %v3018, %v3019
  %3024 = vadd.xlane.f32.xlu0 %v3023
  %v3025 = vpop.xlane.xlu0 %3024
  %v3026 = vmul.f32 %v3012, 0.00390625
  %v3027 = vmul.f32 %v3015, 0.00390625
  %v3028 = vmul.f32 %v3022, 0.00390625
  %v3029 = vmul.f32 %v3025, 0.00390625
  %v3030 = vmul.f32 %v3026, %v3026
  %v3031 = vmul.f32 %v3027, %v3027
  %v3032 = vsub.f32 %v3028, %v3030
  %v3033 = vsub.f32 %v3029, %v3031
  %v3034 = vadd.f32 %v3032, 1e-05
  %v3035 = vadd.f32 %v3033, 1e-05
  %v3036 = vrsqrt.pop %v3034
  %v3037 = vrsqrt.pop %v3035
  %v3038 = vsub.f32 %v3006, %v3026
  %v3039 = vsub.f32 %v3007, %v3026
  %v3040 = vsub.f32 %v3008, %v3027
  %v3041 = vsub.f32 %v3009, %v3027
  %v3042 = vmul.f32 %v3038, %v3036
  %v3043 = vmul.f32 %v3039, %v3036
  %v3044 = vmul.f32 %v3040, %v3037
  %v3045 = vmul.f32 %v3041, %v3037
  %v3046 = vld [vmem:[%s2] sm:$0xff]
  %v3047 = vld [vmem:[%s2 + $0x8] sm:$0xff]
  %3049 = vset.pattern.permute.xlu0 0
  %3050 = vperm.xlu0 %3049, %v3046
  %v3051 = vpop.permute.xlu0 %3050
  %3054 = vset.pattern.permute.xlu0 0
  %3055 = vperm.xlu0 %3054, %v3047
  %v3056 = vpop.permute.xlu0 %3055
  %v3058 = vmul.f32 %v3042, %v3051
  %v3059 = vmul.f32 %v3043, %v3051
  %v3060 = vmul.f32 %v3044, %v3056
  %v3061 = vmul.f32 %v3045, %v3056
  %v3062 = vld [vmem:[%s3] sm:$0xff]
  %v3063 = vld [vmem:[%s3 + $0x8] sm:$0xff]
  %3065 = vset.pattern.permute.xlu0 0
  %3066 = vperm.xlu0 %3065, %v3062
  %v3067 = vpop.permute.xlu0 %3066
  %3070 = vset.pattern.permute.xlu0 0
  %3071 = vperm.xlu0 %3070, %v3063
  %v3072 = vpop.permute.xlu0 %3071
  %v3074 = vadd.f32 %v3058, %v3067
  %v3075 = vadd.f32 %v3059, %v3067
  %v3076 = vadd.f32 %v3060, %v3072
  %v3077 = vadd.f32 %v3061, %v3072
  %v3078 = vmax.f32 %v3074, 0.0
  %v3079 = vmax.f32 %v3075, 0.0
  %v3080 = vmax.f32 %v3076, 0.0
  %v3081 = vmax.f32 %v3077, 0.0
  %3086 = vrot.lane.b32.xlu0 %v3078, 17
  %v3087 = vpop.permute.xlu0 %3086
  %3088 = vrot.lane.b32.xlu0 %v3079, 17
  %v3089 = vpop.permute.xlu0 %3088
  %3090 = vrot.lane.b32.xlu0 %v3080, 17
  %v3091 = vpop.permute.xlu0 %3090
  %3092 = vrot.lane.b32.xlu0 %v3081, 17
  %v3093 = vpop.permute.xlu0 %3092
  %v3094 = vsel %vm53, %v3087, %v3089
  %v3095 = vsel %vm53, %v3091, %v3093
  %3102 = vst.msk [vmem:[#allocation2] sm:$0xff] %vm159, %v3087
  %3103 = vst [vmem:[#allocation2 + $0x8] sm:$0xff] %v3094
  %3104 = vst.msk [vmem:[#allocation2 + $0x10] sm:$0xff] %vm53, %v3089
  %3105 = vst.msk [vmem:[#allocation2 + $0x18] sm:$0xff] %vm159, %v3091
  %3106 = vst [vmem:[#allocation2 + $0x20] sm:$0xff] %v3095
  %3107 = vst.msk [vmem:[#allocation2 + $0x28] sm:$0xff] %vm53, %v3093
  %v3108 = vld [vmem:[#allocation2] sm:$0xff]
  %v3109 = vld [vmem:[#allocation2 + $0x8] sm:$0xff]
  %v3110 = vld [vmem:[#allocation2 + $0x18] sm:$0xff]
  %v3111 = vld [vmem:[#allocation2 + $0x20] sm:$0xff]
  %v3112 = vmul.f32 %v3108, %v174
  %v3113 = vmul.f32 %v3109, %v178
  %v3114 = vmul.f32 %v3110, %v174
  %v3115 = vmul.f32 %v3111, %v178
  %3116 = vst [vmem:[#allocation3] sm:$0xff] %v3112
  %3117 = vst [vmem:[#allocation3 + $0x8] sm:$0xff] %v3113
  %3118 = vst [vmem:[#allocation3 + $0x10] sm:$0xff] %v3114
  %3119 = vst [vmem:[#allocation3 + $0x18] sm:$0xff] %v3115
  %v3120 = vld [vmem:[#allocation2] sm:$0xff]
  %v3121 = vld [vmem:[#allocation2 + $0x8] sm:$0xff]
  %v3122 = vld [vmem:[#allocation2 + $0x10] sm:$0xff]
  %v3123 = vld [vmem:[#allocation2 + $0x18] sm:$0xff]
  %v3124 = vld [vmem:[#allocation2 + $0x20] sm:$0xff]
  %v3125 = vld [vmem:[#allocation2 + $0x28] sm:$0xff]
  %3132 = vrot.lane.b32.xlu0 %v3120, 127
  %v3133 = vpop.permute.xlu0 %3132
  %3134 = vrot.lane.b32.xlu0 %v3121, 127
  %v3135 = vpop.permute.xlu0 %3134
  %3136 = vrot.lane.b32.xlu0 %v3122, 127
  %v3137 = vpop.permute.xlu0 %3136
  %3138 = vrot.lane.b32.xlu0 %v3123, 127
  %v3139 = vpop.permute.xlu0 %3138
  %3140 = vrot.lane.b32.xlu0 %v3124, 127
  %v3141 = vpop.permute.xlu0 %3140
  %3142 = vrot.lane.b32.xlu0 %v3125, 127
  %v3143 = vpop.permute.xlu0 %3142
  %v3144 = vsel %vm213, %v3133, %v3135
  %v3145 = vsel %vm213, %v3135, %v3137
  %v3146 = vsel %vm213, %v3139, %v3141
  %v3147 = vsel %vm213, %v3141, %v3143
  %3152 = vst [vmem:[#allocation3 + $0x20] sm:$0xff] %v3144
  %3153 = vst [vmem:[#allocation3 + $0x28] sm:$0xff] %v3145
  %3154 = vst [vmem:[#allocation3 + $0x30] sm:$0xff] %v3146
  %3155 = vst [vmem:[#allocation3 + $0x38] sm:$0xff] %v3147
  %v3156 = vld [vmem:[#allocation2] sm:$0xff]
  %v3157 = vld [vmem:[#allocation2 + $0x8] sm:$0xff]
  %v3158 = vld [vmem:[#allocation2 + $0x10] sm:$0xff]
  %v3159 = vld [vmem:[#allocation2 + $0x18] sm:$0xff]
  %v3160 = vld [vmem:[#allocation2 + $0x20] sm:$0xff]
  %v3161 = vld [vmem:[#allocation2 + $0x28] sm:$0xff]
  %v3162 = vmul.f32 %v3156, %v242
  %v3163 = vmul.f32 %v3157, %v246
  %v3164 = vmul.f32 %v3158, %v244
  %v3165 = vmul.f32 %v3159, %v242
  %v3166 = vmul.f32 %v3160, %v246
  %v3167 = vmul.f32 %v3161, %v244
  %3174 = vrot.lane.b32.xlu0 %v3162, 126
  %v3175 = vpop.permute.xlu0 %3174
  %3176 = vrot.lane.b32.xlu0 %v3163, 126
  %v3177 = vpop.permute.xlu0 %3176
  %3178 = vrot.lane.b32.xlu0 %v3164, 126
  %v3179 = vpop.permute.xlu0 %3178
  %3180 = vrot.lane.b32.xlu0 %v3165, 126
  %v3181 = vpop.permute.xlu0 %3180
  %3182 = vrot.lane.b32.xlu0 %v3166, 126
  %v3183 = vpop.permute.xlu0 %3182
  %3184 = vrot.lane.b32.xlu0 %v3167, 126
  %v3185 = vpop.permute.xlu0 %3184
  %v3186 = vsel %vm274, %v3175, %v3177
  %v3187 = vsel %vm274, %v3177, %v3179
  %v3188 = vsel %vm274, %v3181, %v3183
  %v3189 = vsel %vm274, %v3183, %v3185
  %3194 = vst [vmem:[#allocation3 + $0x40] sm:$0xff] %v3186
  %3195 = vst [vmem:[#allocation3 + $0x48] sm:$0xff] %v3187
  %3196 = vst [vmem:[#allocation3 + $0x50] sm:$0xff] %v3188
  %3197 = vst [vmem:[#allocation3 + $0x58] sm:$0xff] %v3189
  %v3198 = vld [vmem:[#allocation2] sm:$0xff]
  %v3199 = vld [vmem:[#allocation2 + $0x8] sm:$0xff]
  %v3200 = vld [vmem:[#allocation2 + $0x10] sm:$0xff]
  %v3201 = vld [vmem:[#allocation2 + $0x18] sm:$0xff]
  %v3202 = vld [vmem:[#allocation2 + $0x20] sm:$0xff]
  %v3203 = vld [vmem:[#allocation2 + $0x28] sm:$0xff]
  %v3204 = vmul.f32 %v3198, %v294
  %v3205 = vmul.f32 %v3199, %v298
  %v3206 = vmul.f32 %v3200, %v296
  %v3207 = vmul.f32 %v3201, %v294
  %v3208 = vmul.f32 %v3202, %v298
  %v3209 = vmul.f32 %v3203, %v296
  %3216 = vrot.lane.b32.xlu0 %v3204, 112
  %v3217 = vpop.permute.xlu0 %3216
  %3218 = vrot.lane.b32.xlu0 %v3205, 112
  %v3219 = vpop.permute.xlu0 %3218
  %3220 = vrot.lane.b32.xlu0 %v3206, 112
  %v3221 = vpop.permute.xlu0 %3220
  %3222 = vrot.lane.b32.xlu0 %v3207, 112
  %v3223 = vpop.permute.xlu0 %3222
  %3224 = vrot.lane.b32.xlu0 %v3208, 112
  %v3225 = vpop.permute.xlu0 %3224
  %3226 = vrot.lane.b32.xlu0 %v3209, 112
  %v3227 = vpop.permute.xlu0 %3226
  %v3228 = vsel %vm326, %v3217, %v3219
  %v3229 = vsel %vm326, %v3219, %v3221
  %v3230 = vsel %vm326, %v3223, %v3225
  %v3231 = vsel %vm326, %v3225, %v3227
  %3236 = vst [vmem:[#allocation3 + $0x60] sm:$0xff] %v3228
  %3237 = vst [vmem:[#allocation3 + $0x68] sm:$0xff] %v3229
  %3238 = vst [vmem:[#allocation3 + $0x70] sm:$0xff] %v3230
  %3239 = vst [vmem:[#allocation3 + $0x78] sm:$0xff] %v3231
  %v3240 = vld [vmem:[#allocation2] sm:$0xff]
  %v3241 = vld [vmem:[#allocation2 + $0x8] sm:$0xff]
  %v3242 = vld [vmem:[#allocation2 + $0x10] sm:$0xff]
  %v3243 = vld [vmem:[#allocation2 + $0x18] sm:$0xff]
  %v3244 = vld [vmem:[#allocation2 + $0x20] sm:$0xff]
  %v3245 = vld [vmem:[#allocation2 + $0x28] sm:$0xff]
  %3252 = vrot.lane.b32.xlu0 %v3240, 111
  %v3253 = vpop.permute.xlu0 %3252
  %3254 = vrot.lane.b32.xlu0 %v3241, 111
  %v3255 = vpop.permute.xlu0 %3254
  %3256 = vrot.lane.b32.xlu0 %v3242, 111
  %v3257 = vpop.permute.xlu0 %3256
  %3258 = vrot.lane.b32.xlu0 %v3243, 111
  %v3259 = vpop.permute.xlu0 %3258
  %3260 = vrot.lane.b32.xlu0 %v3244, 111
  %v3261 = vpop.permute.xlu0 %3260
  %3262 = vrot.lane.b32.xlu0 %v3245, 111
  %v3263 = vpop.permute.xlu0 %3262
  %v3264 = vsel %vm363, %v3253, %v3255
  %v3265 = vsel %vm363, %v3255, %v3257
  %v3266 = vsel %vm363, %v3259, %v3261
  %v3267 = vsel %vm363, %v3261, %v3263
  %3272 = vst [vmem:[#allocation3 + $0x80] sm:$0xff] %v3264
  %3273 = vst [vmem:[#allocation3 + $0x88] sm:$0xff] %v3265
  %3274 = vst [vmem:[#allocation3 + $0x90] sm:$0xff] %v3266
  %3275 = vst [vmem:[#allocation3 + $0x98] sm:$0xff] %v3267
  %v3276 = vld [vmem:[#allocation2] sm:$0xff]
  %v3277 = vld [vmem:[#allocation2 + $0x8] sm:$0xff]
  %v3278 = vld [vmem:[#allocation2 + $0x10] sm:$0xff]
  %v3279 = vld [vmem:[#allocation2 + $0x18] sm:$0xff]
  %v3280 = vld [vmem:[#allocation2 + $0x20] sm:$0xff]
  %v3281 = vld [vmem:[#allocation2 + $0x28] sm:$0xff]
  %v3282 = vmul.f32 %v3276, %v383
  %v3283 = vmul.f32 %v3277, %v387
  %v3284 = vmul.f32 %v3278, %v385
  %v3285 = vmul.f32 %v3279, %v383
  %v3286 = vmul.f32 %v3280, %v387
  %v3287 = vmul.f32 %v3281, %v385
  %3294 = vrot.lane.b32.xlu0 %v3282, 110
  %v3295 = vpop.permute.xlu0 %3294
  %3296 = vrot.lane.b32.xlu0 %v3283, 110
  %v3297 = vpop.permute.xlu0 %3296
  %3298 = vrot.lane.b32.xlu0 %v3284, 110
  %v3299 = vpop.permute.xlu0 %3298
  %3300 = vrot.lane.b32.xlu0 %v3285, 110
  %v3301 = vpop.permute.xlu0 %3300
  %3302 = vrot.lane.b32.xlu0 %v3286, 110
  %v3303 = vpop.permute.xlu0 %3302
  %3304 = vrot.lane.b32.xlu0 %v3287, 110
  %v3305 = vpop.permute.xlu0 %3304
  %v3306 = vsel %vm415, %v3295, %v3297
  %v3307 = vsel %vm415, %v3297, %v3299
  %v3308 = vsel %vm415, %v3301, %v3303
  %v3309 = vsel %vm415, %v3303, %v3305
  %3314 = vst [vmem:[#allocation3 + $0xa0] sm:$0xff] %v3306
  %3315 = vst [vmem:[#allocation3 + $0xa8] sm:$0xff] %v3307
  %3316 = vst [vmem:[#allocation3 + $0xb0] sm:$0xff] %v3308
  %3317 = vst [vmem:[#allocation3 + $0xb8] sm:$0xff] %v3309
  %v3318 = vld [vmem:[#allocation2] sm:$0xff]
  %v3319 = vld [vmem:[#allocation2 + $0x8] sm:$0xff]
  %v3320 = vld [vmem:[#allocation2 + $0x10] sm:$0xff]
  %v3321 = vld [vmem:[#allocation2 + $0x18] sm:$0xff]
  %v3322 = vld [vmem:[#allocation2 + $0x20] sm:$0xff]
  %v3323 = vld [vmem:[#allocation2 + $0x28] sm:$0xff]
  %v3324 = vmul.f32 %v3318, %v435
  %v3325 = vmul.f32 %v3319, %v439
  %v3326 = vmul.f32 %v3320, %v437
  %v3327 = vmul.f32 %v3321, %v435
  %v3328 = vmul.f32 %v3322, %v439
  %v3329 = vmul.f32 %v3323, %v437
  %3336 = vrot.lane.b32.xlu0 %v3324, 96
  %v3337 = vpop.permute.xlu0 %3336
  %3338 = vrot.lane.b32.xlu0 %v3325, 96
  %v3339 = vpop.permute.xlu0 %3338
  %3340 = vrot.lane.b32.xlu0 %v3326, 96
  %v3341 = vpop.permute.xlu0 %3340
  %3342 = vrot.lane.b32.xlu0 %v3327, 96
  %v3343 = vpop.permute.xlu0 %3342
  %3344 = vrot.lane.b32.xlu0 %v3328, 96
  %v3345 = vpop.permute.xlu0 %3344
  %3346 = vrot.lane.b32.xlu0 %v3329, 96
  %v3347 = vpop.permute.xlu0 %3346
  %v3348 = vsel %vm467, %v3337, %v3339
  %v3349 = vsel %vm467, %v3339, %v3341
  %v3350 = vsel %vm467, %v3343, %v3345
  %v3351 = vsel %vm467, %v3345, %v3347
  %3356 = vst [vmem:[#allocation3 + $0xc0] sm:$0xff] %v3348
  %3357 = vst [vmem:[#allocation3 + $0xc8] sm:$0xff] %v3349
  %3358 = vst [vmem:[#allocation3 + $0xd0] sm:$0xff] %v3350
  %3359 = vst [vmem:[#allocation3 + $0xd8] sm:$0xff] %v3351
  %v3360 = vld [vmem:[#allocation2] sm:$0xff]
  %v3361 = vld [vmem:[#allocation2 + $0x8] sm:$0xff]
  %v3362 = vld [vmem:[#allocation2 + $0x10] sm:$0xff]
  %v3363 = vld [vmem:[#allocation2 + $0x18] sm:$0xff]
  %v3364 = vld [vmem:[#allocation2 + $0x20] sm:$0xff]
  %v3365 = vld [vmem:[#allocation2 + $0x28] sm:$0xff]
  %3372 = vrot.lane.b32.xlu0 %v3360, 95
  %v3373 = vpop.permute.xlu0 %3372
  %3374 = vrot.lane.b32.xlu0 %v3361, 95
  %v3375 = vpop.permute.xlu0 %3374
  %3376 = vrot.lane.b32.xlu0 %v3362, 95
  %v3377 = vpop.permute.xlu0 %3376
  %3378 = vrot.lane.b32.xlu0 %v3363, 95
  %v3379 = vpop.permute.xlu0 %3378
  %3380 = vrot.lane.b32.xlu0 %v3364, 95
  %v3381 = vpop.permute.xlu0 %3380
  %3382 = vrot.lane.b32.xlu0 %v3365, 95
  %v3383 = vpop.permute.xlu0 %3382
  %v3384 = vsel %vm504, %v3373, %v3375
  %v3385 = vsel %vm504, %v3375, %v3377
  %v3386 = vsel %vm504, %v3379, %v3381
  %v3387 = vsel %vm504, %v3381, %v3383
  %3392 = vst [vmem:[#allocation3 + $0xe0] sm:$0xff] %v3384
  %3393 = vst [vmem:[#allocation3 + $0xe8] sm:$0xff] %v3385
  %3394 = vst [vmem:[#allocation3 + $0xf0] sm:$0xff] %v3386
  %3395 = vst [vmem:[#allocation3 + $0xf8] sm:$0xff] %v3387
  %v3396 = vld [vmem:[#allocation2] sm:$0xff]
  %v3397 = vld [vmem:[#allocation2 + $0x8] sm:$0xff]
  %v3398 = vld [vmem:[#allocation2 + $0x10] sm:$0xff]
  %v3399 = vld [vmem:[#allocation2 + $0x18] sm:$0xff]
  %v3400 = vld [vmem:[#allocation2 + $0x20] sm:$0xff]
  %v3401 = vld [vmem:[#allocation2 + $0x28] sm:$0xff]
  %v3402 = vmul.f32 %v3396, %v524
  %v3403 = vmul.f32 %v3397, %v528
  %v3404 = vmul.f32 %v3398, %v526
  %v3405 = vmul.f32 %v3399, %v524
  %v3406 = vmul.f32 %v3400, %v528
  %v3407 = vmul.f32 %v3401, %v526
  %3414 = vrot.lane.b32.xlu0 %v3402, 94
  %v3415 = vpop.permute.xlu0 %3414
  %3416 = vrot.lane.b32.xlu0 %v3403, 94
  %v3417 = vpop.permute.xlu0 %3416
  %3418 = vrot.lane.b32.xlu0 %v3404, 94
  %v3419 = vpop.permute.xlu0 %3418
  %3420 = vrot.lane.b32.xlu0 %v3405, 94
  %v3421 = vpop.permute.xlu0 %3420
  %3422 = vrot.lane.b32.xlu0 %v3406, 94
  %v3423 = vpop.permute.xlu0 %3422
  %3424 = vrot.lane.b32.xlu0 %v3407, 94
  %v3425 = vpop.permute.xlu0 %3424
  %v3426 = vsel %vm556, %v3415, %v3417
  %v3427 = vsel %vm556, %v3417, %v3419
  %v3428 = vsel %vm556, %v3421, %v3423
  %v3429 = vsel %vm556, %v3423, %v3425
  %3434 = vst [vmem:[#allocation3 + $0x100] sm:$0xff] %v3426
  %3435 = vst [vmem:[#allocation3 + $0x108] sm:$0xff] %v3427
  %3436 = vst [vmem:[#allocation3 + $0x110] sm:$0xff] %v3428
  %3437 = vst [vmem:[#allocation3 + $0x118] sm:$0xff] %v3429
  %v3438 = vld [vmem:[%s4] sm:$0xff]
  %v3439 = vld [vmem:[%s4 + $0x8] sm:$0xff]
  %v3440 = vld [vmem:[%s4 + $0x10] sm:$0xff]
  %v3441 = vld [vmem:[%s4 + $0x18] sm:$0xff]
  %v3442 = vld [vmem:[%s4 + $0x20] sm:$0xff]
  %v3443 = vld [vmem:[%s4 + $0x28] sm:$0xff]
  %v3444 = vld [vmem:[%s4 + $0x30] sm:$0xff]
  %v3445 = vld [vmem:[%s4 + $0x38] sm:$0xff]
  %v3446 = vld [vmem:[#allocation3] sm:$0xff]
  %v3447 = vld [vmem:[#allocation3 + $0x8] sm:$0xff]
  %v3448 = vld [vmem:[#allocation3 + $0x10] sm:$0xff]
  %v3449 = vld [vmem:[#allocation3 + $0x18] sm:$0xff]
  %v3450 = vld [vmem:[#allocation3 + $0x20] sm:$0xff]
  %v3451 = vld [vmem:[#allocation3 + $0x28] sm:$0xff]
  %v3452 = vld [vmem:[#allocation3 + $0x30] sm:$0xff]
  %v3453 = vld [vmem:[#allocation3 + $0x38] sm:$0xff]
  %v3454 = vld [vmem:[#allocation3 + $0x40] sm:$0xff]
  %v3455 = vld [vmem:[#allocation3 + $0x48] sm:$0xff]
  %v3456 = vld [vmem:[#allocation3 + $0x50] sm:$0xff]
  %v3457 = vld [vmem:[#allocation3 + $0x58] sm:$0xff]
  %v3458 = vld [vmem:[#allocation3 + $0x60] sm:$0xff]
  %v3459 = vld [vmem:[#allocation3 + $0x68] sm:$0xff]
  %v3460 = vld [vmem:[#allocation3 + $0x70] sm:$0xff]
  %v3461 = vld [vmem:[#allocation3 + $0x78] sm:$0xff]
  %v3462 = vld [vmem:[#allocation3 + $0x80] sm:$0xff]
  %v3463 = vld [vmem:[#allocation3 + $0x88] sm:$0xff]
  %v3464 = vld [vmem:[#allocation3 + $0x90] sm:$0xff]
  %v3465 = vld [vmem:[#allocation3 + $0x98] sm:$0xff]
  %v3466 = vld [vmem:[#allocation3 + $0xa0] sm:$0xff]
  %v3467 = vld [vmem:[#allocation3 + $0xa8] sm:$0xff]
  %v3468 = vld [vmem:[#allocation3 + $0xb0] sm:$0xff]
  %v3469 = vld [vmem:[#allocation3 + $0xb8] sm:$0xff]
  %v3470 = vld [vmem:[#allocation3 + $0xc0] sm:$0xff]
  %v3471 = vld [vmem:[#allocation3 + $0xc8] sm:$0xff]
  %v3472 = vld [vmem:[#allocation3 + $0xd0] sm:$0xff]
  %v3473 = vld [vmem:[#allocation3 + $0xd8] sm:$0xff]
  %v3474 = vld [vmem:[#allocation3 + $0xe0] sm:$0xff]
  %v3475 = vld [vmem:[#allocation3 + $0xe8] sm:$0xff]
  %v3476 = vld [vmem:[#allocation3 + $0xf0] sm:$0xff]
  %v3477 = vld [vmem:[#allocation3 + $0xf8] sm:$0xff]
  %v3478 = vld [vmem:[#allocation3 + $0x100] sm:$0xff]
  %v3479 = vld [vmem:[#allocation3 + $0x108] sm:$0xff]
  %v3480 = vld [vmem:[#allocation3 + $0x110] sm:$0xff]
  %v3481 = vld [vmem:[#allocation3 + $0x118] sm:$0xff]
  %v3482 = vld [vmem:[%s5] sm:$0xff]
  %v3483 = vld [vmem:[%s5 + $0x8] sm:$0xff]
  %v3484 = vld [vmem:[%s5 + $0x10] sm:$0xff]
  %v3485 = vld [vmem:[%s5 + $0x18] sm:$0xff]
  %3487 = vset.pattern.permute.xlu0 0
  %3488 = vperm.xlu0 %3487, %v3482
  %v3489 = vpop.permute.xlu0 %3488
  %3492 = vset.pattern.permute.xlu0 0
  %3493 = vperm.xlu0 %3492, %v3483
  %v3494 = vpop.permute.xlu0 %3493
  %3497 = vset.pattern.permute.xlu0 0
  %3498 = vperm.xlu0 %3497, %v3484
  %v3499 = vpop.permute.xlu0 %3498
  %3502 = vset.pattern.permute.xlu0 0
  %3503 = vperm.xlu0 %3502, %v3485
  %v3504 = vpop.permute.xlu0 %3503
  %v3507 = vsel %vm297, %v3439, 0
  %v3510 = vsel %vm297, %v3441, 0
  %v3513 = vsel %vm297, %v3443, 0
  %v3516 = vsel %vm297, %v3445, 0
  %3518 = vmatprep.subr.mxu0 %v3477
  %3519 = vmatpush1.msra.mxu0 %v3476
  %3520 = vmatprep.subr.mxu0 %v3475
  %3521 = vmatpush1.msra.mxu0 %v3474
  %3522 = vmatprep.subr.mxu0 %v3473
  %3523 = vmatpush1.msra.mxu0 %v3472
  %3524 = vmatprep.subr.mxu0 %v3471
  %3525 = vmatpush1.msra.mxu0 %v3470
  %3526 = vmatprep.subr.mxu0 %v3469
  %3527 = vmatpush1.msra.mxu0 %v3468
  %3528 = vmatprep.subr.mxu0 %v3467
  %3529 = vmatpush1.msra.mxu0 %v3466
  %3530 = vmatprep.subr.mxu0 %v3465
  %3531 = vmatpush1.msra.mxu0 %v3464
  %3532 = vmatprep.subr.mxu0 %v3463
  %3533 = vmatpush1.msra.mxu0 %v3462
  %3534 = vmatprep.subr.mxu0 %v3461
  %3535 = vmatpush1.msra.mxu0 %v3460
  %3536 = vmatprep.subr.mxu0 %v3459
  %3537 = vmatpush1.msra.mxu0 %v3458
  %3538 = vmatprep.subr.mxu0 %v3457
  %3539 = vmatpush1.msra.mxu0 %v3456
  %3540 = vmatprep.subr.mxu0 %v3455
  %3541 = vmatpush1.msra.mxu0 %v3454
  %3542 = vmatprep.subr.mxu0 %v3453
  %3543 = vmatpush1.msra.mxu0 %v3452
  %3544 = vmatprep.subr.mxu0 %v3451
  %3545 = vmatpush1.msra.mxu0 %v3450
  %3546 = vmatprep.subr.mxu0 %v3449
  %3547 = vmatpush1.msra.mxu0 %v3448
  %3548 = vmatprep.subr.mxu0 %v3447
  %3549 = vmatpush1.msra.mxu0 %v3446
  %3550 = vmatprep.subr.mxu0 0.0
  %3551 = vmatpush2.msra.mxu0 0.0
  %3552 = vmatprep.subr.mxu0 0.0
  %3553 = vmatpush2.msra.mxu0 0.0
  %3554 = vmatprep.subr.mxu0 0.0
  %3555 = vmatpush2.msra.mxu0 0.0
  %3556 = vmatprep.subr.mxu0 0.0
  %3557 = vmatpush2.msra.mxu0 0.0
  %3558 = vmatprep.subr.mxu0 0.0
  %3559 = vmatpush2.msra.mxu0 0.0
  %3560 = vmatprep.subr.mxu0 0.0
  %3561 = vmatpush2.msra.mxu0 0.0
  %3562 = vmatprep.subr.mxu0 0.0
  %3563 = vmatpush2.msra.mxu0 0.0
  %3564 = vmatprep.subr.mxu0 0.0
  %3565 = vmatpush2.msra.mxu0 0.0
  %3566 = vmatprep.subr.mxu0 0.0
  %3567 = vmatpush2.msra.mxu0 0.0
  %3568 = vmatprep.subr.mxu0 0.0
  %3569 = vmatpush2.msra.mxu0 0.0
  %3570 = vmatprep.subr.mxu0 0.0
  %3571 = vmatpush2.msra.mxu0 0.0
  %3572 = vmatprep.subr.mxu0 0.0
  %3573 = vmatpush2.msra.mxu0 0.0
  %3574 = vmatprep.subr.mxu0 0.0
  %3575 = vmatpush2.msra.mxu0 0.0
  %3576 = vmatprep.subr.mxu0 0.0
  %3577 = vmatpush2.msra.mxu0 0.0
  %3578 = vmatprep.subr.mxu0 %v3481
  %3579 = vmatpush2.msra.mxu0 %v3480
  %3580 = vmatprep.subr.mxu0 %v3479
  %3581 = vmatpush2.msra.mxu0 %v3478
  %3582 = vmatprep.mubr.f32.mxu0 %v3507
  %3583 = vmatmul.mubr.f32.gmra.mxu0 %v3438
  %v3584 = vpop.f32.mrf.mxu0
  %v3585 = vadd.f32 %v3489, %v3584
  %v3586 = vpop.f32.mrf.mxu0
  %v3587 = vadd.f32 %v3489, %v3586
  %3588 = vmatprep.mubr.f32.mxu0 %v3510
  %3589 = vmatmul.mubr.f32.gmra.mxu0 %v3440
  %v3590 = vpop.f32.mrf.mxu0
  %v3591 = vadd.f32 %v3494, %v3590
  %v3592 = vpop.f32.mrf.mxu0
  %v3593 = vadd.f32 %v3494, %v3592
  %3594 = vmatprep.mubr.f32.mxu0 %v3513
  %3595 = vmatmul.mubr.f32.gmra.mxu0 %v3442
  %v3596 = vpop.f32.mrf.mxu0
  %v3597 = vadd.f32 %v3499, %v3596
  %v3598 = vpop.f32.mrf.mxu0
  %v3599 = vadd.f32 %v3499, %v3598
  %3600 = vmatprep.mubr.f32.mxu0 %v3516
  %3601 = vmatmul.mubr.f32.gmra.mxu0 %v3444
  %v3602 = vpop.f32.mrf.mxu0
  %v3603 = vadd.f32 %v3504, %v3602
  %v3604 = vpop.f32.mrf.mxu0
  %v3605 = vadd.f32 %v3504, %v3604
  %3606 = vdwg.mxu0
  %v3607 = vadd.f32 %v3585, %v3587
  %3608 = vadd.xlane.f32.xlu0 %v3607
  %v3609 = vpop.xlane.xlu0 %3608
  %v3610 = vadd.f32 %v3591, %v3593
  %3611 = vadd.xlane.f32.xlu0 %v3610
  %v3612 = vpop.xlane.xlu0 %3611
  %v3613 = vadd.f32 %v3597, %v3599
  %3614 = vadd.xlane.f32.xlu0 %v3613
  %v3615 = vpop.xlane.xlu0 %3614
  %v3616 = vadd.f32 %v3603, %v3605
  %3617 = vadd.xlane.f32.xlu0 %v3616
  %v3618 = vpop.xlane.xlu0 %3617
  %v3619 = vmul.f32 %v3585, %v3585
  %v3620 = vmul.f32 %v3587, %v3587
  %v3621 = vmul.f32 %v3591, %v3591
  %v3622 = vmul.f32 %v3593, %v3593
  %v3623 = vmul.f32 %v3597, %v3597
  %v3624 = vmul.f32 %v3599, %v3599
  %v3625 = vmul.f32 %v3603, %v3603
  %v3626 = vmul.f32 %v3605, %v3605
  %v3627 = vadd.f32 %v3619, %v3620
  %3628 = vadd.xlane.f32.xlu0 %v3627
  %v3629 = vpop.xlane.xlu0 %3628
  %v3630 = vadd.f32 %v3621, %v3622
  %3631 = vadd.xlane.f32.xlu0 %v3630
  %v3632 = vpop.xlane.xlu0 %3631
  %v3633 = vadd.f32 %v3623, %v3624
  %3634 = vadd.xlane.f32.xlu0 %v3633
  %v3635 = vpop.xlane.xlu0 %3634
  %v3636 = vadd.f32 %v3625, %v3626
  %3637 = vadd.xlane.f32.xlu0 %v3636
  %v3638 = vpop.xlane.xlu0 %3637
  %v3639 = vld [vmem:[%s6] sm:$0xff]
  %v3640 = vld [vmem:[%s6 + $0x8] sm:$0xff]
  %v3641 = vld [vmem:[%s6 + $0x10] sm:$0xff]
  %v3642 = vld [vmem:[%s6 + $0x18] sm:$0xff]
  %v3644 = vsel %vm438, %v3639, 0
  %v3647 = vsel %vm438, %v3640, 0
  %v3650 = vsel %vm438, %v3641, 0
  %v3653 = vsel %vm438, %v3642, 0
  %3655 = vmatprep.subr.mxu0 0.0
  %3656 = vmatpush1.msra.mxu0 0.0
  %3657 = vmatprep.subr.mxu0 0.0
  %3658 = vmatpush1.msra.mxu0 0.0
  %3659 = vmatprep.subr.mxu0 0.0
  %3660 = vmatpush1.msra.mxu0 0.0
  %3661 = vmatprep.subr.mxu0 0.0
  %3662 = vmatpush1.msra.mxu0 0.0
  %3663 = vmatprep.subr.mxu0 0.0
  %3664 = vmatpush1.msra.mxu0 0.0
  %3665 = vmatprep.subr.mxu0 0.0
  %3666 = vmatpush1.msra.mxu0 0.0
  %3667 = vmatprep.subr.mxu0 0.0
  %3668 = vmatpush1.msra.mxu0 0.0
  %3669 = vmatprep.subr.mxu0 0.0
  %3670 = vmatpush1.msra.mxu0 0.0
  %3671 = vmatprep.subr.mxu0 0.0
  %3672 = vmatpush1.msra.mxu0 0.0
  %3673 = vmatprep.subr.mxu0 0.0
  %3674 = vmatpush1.msra.mxu0 0.0
  %3675 = vmatprep.subr.mxu0 0.0
  %3676 = vmatpush1.msra.mxu0 0.0
  %3677 = vmatprep.subr.mxu0 0.0
  %3678 = vmatpush1.msra.mxu0 0.0
  %3679 = vmatprep.subr.mxu0 0.0
  %3680 = vmatpush1.msra.mxu0 %v3618
  %3681 = vmatprep.subr.mxu0 0.0
  %3682 = vmatpush1.msra.mxu0 %v3615
  %3683 = vmatprep.subr.mxu0 0.0
  %3684 = vmatpush1.msra.mxu0 %v3612
  %3685 = vmatprep.subr.mxu0 0.0
  %3686 = vmatpush1.msra.mxu0 %v3609
  %3687 = vmatprep.subr.mxu0 0.0
  %3688 = vmatpush2.msra.mxu0 0.0
  %3689 = vmatprep.subr.mxu0 0.0
  %3690 = vmatpush2.msra.mxu0 0.0
  %3691 = vmatprep.subr.mxu0 0.0
  %3692 = vmatpush2.msra.mxu0 0.0
  %3693 = vmatprep.subr.mxu0 0.0
  %3694 = vmatpush2.msra.mxu0 0.0
  %3695 = vmatprep.subr.mxu0 0.0
  %3696 = vmatpush2.msra.mxu0 0.0
  %3697 = vmatprep.subr.mxu0 0.0
  %3698 = vmatpush2.msra.mxu0 0.0
  %3699 = vmatprep.subr.mxu0 0.0
  %3700 = vmatpush2.msra.mxu0 0.0
  %3701 = vmatprep.subr.mxu0 0.0
  %3702 = vmatpush2.msra.mxu0 0.0
  %3703 = vmatprep.subr.mxu0 0.0
  %3704 = vmatpush2.msra.mxu0 0.0
  %3705 = vmatprep.subr.mxu0 0.0
  %3706 = vmatpush2.msra.mxu0 0.0
  %3707 = vmatprep.subr.mxu0 0.0
  %3708 = vmatpush2.msra.mxu0 0.0
  %3709 = vmatprep.subr.mxu0 0.0
  %3710 = vmatpush2.msra.mxu0 0.0
  %3711 = vmatprep.subr.mxu0 0.0
  %3712 = vmatpush2.msra.mxu0 0.0
  %3713 = vmatprep.subr.mxu0 0.0
  %3714 = vmatpush2.msra.mxu0 0.0
  %3715 = vmatprep.subr.mxu0 0.0
  %3716 = vmatpush2.msra.mxu0 0.0
  %3717 = vmatprep.subr.mxu0 0.0
  %3718 = vmatpush2.msra.mxu0 0.0
  %3719 = vmatprep.mubr.f32.mxu0 0.0
  %3720 = vmatmul.mubr.f32.gmra.mxu0 %v3644
  %v3721 = vpop.f32.mrf.mxu0
  %v3722 = vadd.f32 0.0, %v3721
  %v3723 = vpop.f32.mrf.mxu0
  %3724 = vmatprep.mubr.f32.mxu0 0.0
  %3725 = vmatmul.mubr.f32.gmra.mxu0 %v3647
  %v3726 = vpop.f32.mrf.mxu0
  %v3727 = vadd.f32 0.0, %v3726
  %v3728 = vpop.f32.mrf.mxu0
  %3729 = vmatprep.mubr.f32.mxu0 0.0
  %3730 = vmatmul.mubr.f32.gmra.mxu0 %v3650
  %v3731 = vpop.f32.mrf.mxu0
  %v3732 = vadd.f32 0.0, %v3731
  %v3733 = vpop.f32.mrf.mxu0
  %3734 = vmatprep.mubr.f32.mxu0 0.0
  %3735 = vmatmul.mubr.f32.gmra.mxu0 %v3653
  %v3736 = vpop.f32.mrf.mxu0
  %v3737 = vadd.f32 0.0, %v3736
  %v3738 = vpop.f32.mrf.mxu0
  %3739 = vdwg.mxu0
  %3740 = vmatprep.subr.mxu0 0.0
  %3741 = vmatpush1.msra.mxu0 0.0
  %3742 = vmatprep.subr.mxu0 0.0
  %3743 = vmatpush1.msra.mxu0 0.0
  %3744 = vmatprep.subr.mxu0 0.0
  %3745 = vmatpush1.msra.mxu0 0.0
  %3746 = vmatprep.subr.mxu0 0.0
  %3747 = vmatpush1.msra.mxu0 0.0
  %3748 = vmatprep.subr.mxu0 0.0
  %3749 = vmatpush1.msra.mxu0 0.0
  %3750 = vmatprep.subr.mxu0 0.0
  %3751 = vmatpush1.msra.mxu0 0.0
  %3752 = vmatprep.subr.mxu0 0.0
  %3753 = vmatpush1.msra.mxu0 0.0
  %3754 = vmatprep.subr.mxu0 0.0
  %3755 = vmatpush1.msra.mxu0 0.0
  %3756 = vmatprep.subr.mxu0 0.0
  %3757 = vmatpush1.msra.mxu0 0.0
  %3758 = vmatprep.subr.mxu0 0.0
  %3759 = vmatpush1.msra.mxu0 0.0
  %3760 = vmatprep.subr.mxu0 0.0
  %3761 = vmatpush1.msra.mxu0 0.0
  %3762 = vmatprep.subr.mxu0 0.0
  %3763 = vmatpush1.msra.mxu0 0.0
  %3764 = vmatprep.subr.mxu0 0.0
  %3765 = vmatpush1.msra.mxu0 %v3638
  %3766 = vmatprep.subr.mxu0 0.0
  %3767 = vmatpush1.msra.mxu0 %v3635
  %3768 = vmatprep.subr.mxu0 0.0
  %3769 = vmatpush1.msra.mxu0 %v3632
  %3770 = vmatprep.subr.mxu0 0.0
  %3771 = vmatpush1.msra.mxu0 %v3629
  %3772 = vmatprep.subr.mxu0 0.0
  %3773 = vmatpush2.msra.mxu0 0.0
  %3774 = vmatprep.subr.mxu0 0.0
  %3775 = vmatpush2.msra.mxu0 0.0
  %3776 = vmatprep.subr.mxu0 0.0
  %3777 = vmatpush2.msra.mxu0 0.0
  %3778 = vmatprep.subr.mxu0 0.0
  %3779 = vmatpush2.msra.mxu0 0.0
  %3780 = vmatprep.subr.mxu0 0.0
  %3781 = vmatpush2.msra.mxu0 0.0
  %3782 = vmatprep.subr.mxu0 0.0
  %3783 = vmatpush2.msra.mxu0 0.0
  %3784 = vmatprep.subr.mxu0 0.0
  %3785 = vmatpush2.msra.mxu0 0.0
  %3786 = vmatprep.subr.mxu0 0.0
  %3787 = vmatpush2.msra.mxu0 0.0
  %3788 = vmatprep.subr.mxu0 0.0
  %3789 = vmatpush2.msra.mxu0 0.0
  %3790 = vmatprep.subr.mxu0 0.0
  %3791 = vmatpush2.msra.mxu0 0.0
  %3792 = vmatprep.subr.mxu0 0.0
  %3793 = vmatpush2.msra.mxu0 0.0
  %3794 = vmatprep.subr.mxu0 0.0
  %3795 = vmatpush2.msra.mxu0 0.0
  %3796 = vmatprep.subr.mxu0 0.0
  %3797 = vmatpush2.msra.mxu0 0.0
  %3798 = vmatprep.subr.mxu0 0.0
  %3799 = vmatpush2.msra.mxu0 0.0
  %3800 = vmatprep.subr.mxu0 0.0
  %3801 = vmatpush2.msra.mxu0 0.0
  %3802 = vmatprep.subr.mxu0 0.0
  %3803 = vmatpush2.msra.mxu0 0.0
  %3804 = vmatprep.mubr.f32.mxu0 0.0
  %3805 = vmatmul.mubr.f32.gmra.mxu0 %v3644
  %v3806 = vpop.f32.mrf.mxu0
  %v3807 = vadd.f32 0.0, %v3806
  %v3808 = vpop.f32.mrf.mxu0
  %3809 = vmatprep.mubr.f32.mxu0 0.0
  %3810 = vmatmul.mubr.f32.gmra.mxu0 %v3647
  %v3811 = vpop.f32.mrf.mxu0
  %v3812 = vadd.f32 0.0, %v3811
  %v3813 = vpop.f32.mrf.mxu0
  %3814 = vmatprep.mubr.f32.mxu0 0.0
  %3815 = vmatmul.mubr.f32.gmra.mxu0 %v3650
  %v3816 = vpop.f32.mrf.mxu0
  %v3817 = vadd.f32 0.0, %v3816
  %v3818 = vpop.f32.mrf.mxu0
  %3819 = vmatprep.mubr.f32.mxu0 0.0
  %3820 = vmatmul.mubr.f32.gmra.mxu0 %v3653
  %v3821 = vpop.f32.mrf.mxu0
  %v3822 = vadd.f32 0.0, %v3821
  %v3823 = vpop.f32.mrf.mxu0
  %3824 = vdwg.mxu0
  %v3825 = vmul.f32 %v3722, %v3722
  %v3826 = vmul.f32 %v3727, %v3727
  %v3827 = vmul.f32 %v3732, %v3732
  %v3828 = vmul.f32 %v3737, %v3737
  %v3829 = vsub.f32 %v3807, %v3825
  %v3830 = vsub.f32 %v3812, %v3826
  %v3831 = vsub.f32 %v3817, %v3827
  %v3832 = vsub.f32 %v3822, %v3828
  %v3833 = vadd.f32 %v3829, 1e-05
  %v3834 = vadd.f32 %v3830, 1e-05
  %v3835 = vadd.f32 %v3831, 1e-05
  %v3836 = vadd.f32 %v3832, 1e-05
  %v3837 = vrsqrt.pop %v3833
  %v3838 = vrsqrt.pop %v3834
  %v3839 = vrsqrt.pop %v3835
  %v3840 = vrsqrt.pop %v3836
  %3842 = vset.pattern.permute.xlu0 0
  %3843 = vperm.xlu0 %3842, %v3722
  %v3844 = vpop.permute.xlu0 %3843
  %3847 = vset.pattern.permute.xlu0 0
  %3848 = vperm.xlu0 %3847, %v3727
  %v3849 = vpop.permute.xlu0 %3848
  %3852 = vset.pattern.permute.xlu0 0
  %3853 = vperm.xlu0 %3852, %v3732
  %v3854 = vpop.permute.xlu0 %3853
  %3857 = vset.pattern.permute.xlu0 0
  %3858 = vperm.xlu0 %3857, %v3737
  %v3859 = vpop.permute.xlu0 %3858
  %v3861 = vsub.f32 %v3585, %v3844
  %v3862 = vsub.f32 %v3587, %v3844
  %v3863 = vsub.f32 %v3591, %v3849
  %v3864 = vsub.f32 %v3593, %v3849
  %v3865 = vsub.f32 %v3597, %v3854
  %v3866 = vsub.f32 %v3599, %v3854
  %v3867 = vsub.f32 %v3603, %v3859
  %v3868 = vsub.f32 %v3605, %v3859
  %3870 = vset.pattern.permute.xlu0 0
  %3871 = vperm.xlu0 %3870, %v3837
  %v3872 = vpop.permute.xlu0 %3871
  %3875 = vset.pattern.permute.xlu0 0
  %3876 = vperm.xlu0 %3875, %v3838
  %v3877 = vpop.permute.xlu0 %3876
  %3880 = vset.pattern.permute.xlu0 0
  %3881 = vperm.xlu0 %3880, %v3839
  %v3882 = vpop.permute.xlu0 %3881
  %3885 = vset.pattern.permute.xlu0 0
  %3886 = vperm.xlu0 %3885, %v3840
  %v3887 = vpop.permute.xlu0 %3886
  %v3889 = vmul.f32 %v3861, %v3872
  %v3890 = vmul.f32 %v3862, %v3872
  %v3891 = vmul.f32 %v3863, %v3877
  %v3892 = vmul.f32 %v3864, %v3877
  %v3893 = vmul.f32 %v3865, %v3882
  %v3894 = vmul.f32 %v3866, %v3882
  %v3895 = vmul.f32 %v3867, %v3887
  %v3896 = vmul.f32 %v3868, %v3887
  %v3897 = vld [vmem:[%s7] sm:$0xff]
  %v3898 = vld [vmem:[%s7 + $0x8] sm:$0xff]
  %v3899 = vld [vmem:[%s7 + $0x10] sm:$0xff]
  %v3900 = vld [vmem:[%s7 + $0x18] sm:$0xff]
  %3902 = vset.pattern.permute.xlu0 0
  %3903 = vperm.xlu0 %3902, %v3897
  %v3904 = vpop.permute.xlu0 %3903
  %3907 = vset.pattern.permute.xlu0 0
  %3908 = vperm.xlu0 %3907, %v3898
  %v3909 = vpop.permute.xlu0 %3908
  %3912 = vset.pattern.permute.xlu0 0
  %3913 = vperm.xlu0 %3912, %v3899
  %v3914 = vpop.permute.xlu0 %3913
  %3917 = vset.pattern.permute.xlu0 0
  %3918 = vperm.xlu0 %3917, %v3900
  %v3919 = vpop.permute.xlu0 %3918
  %v3921 = vmul.f32 %v3889, %v3904
  %v3922 = vmul.f32 %v3890, %v3904
  %v3923 = vmul.f32 %v3891, %v3909
  %v3924 = vmul.f32 %v3892, %v3909
  %v3925 = vmul.f32 %v3893, %v3914
  %v3926 = vmul.f32 %v3894, %v3914
  %v3927 = vmul.f32 %v3895, %v3919
  %v3928 = vmul.f32 %v3896, %v3919
  %v3929 = vld [vmem:[%s8] sm:$0xff]
  %v3930 = vld [vmem:[%s8 + $0x8] sm:$0xff]
  %v3931 = vld [vmem:[%s8 + $0x10] sm:$0xff]
  %v3932 = vld [vmem:[%s8 + $0x18] sm:$0xff]
  %3934 = vset.pattern.permute.xlu0 0
  %3935 = vperm.xlu0 %3934, %v3929
  %v3936 = vpop.permute.xlu0 %3935
  %3939 = vset.pattern.permute.xlu0 0
  %3940 = vperm.xlu0 %3939, %v3930
  %v3941 = vpop.permute.xlu0 %3940
  %3944 = vset.pattern.permute.xlu0 0
  %3945 = vperm.xlu0 %3944, %v3931
  %v3946 = vpop.permute.xlu0 %3945
  %3949 = vset.pattern.permute.xlu0 0
  %3950 = vperm.xlu0 %3949, %v3932
  %v3951 = vpop.permute.xlu0 %3950
  %v3953 = vadd.f32 %v3921, %v3936
  %v3954 = vadd.f32 %v3922, %v3936
  %v3955 = vadd.f32 %v3923, %v3941
  %v3956 = vadd.f32 %v3924, %v3941
  %v3957 = vadd.f32 %v3925, %v3946
  %v3958 = vadd.f32 %v3926, %v3946
  %v3959 = vadd.f32 %v3927, %v3951
  %v3960 = vadd.f32 %v3928, %v3951
  %v3961 = vmax.f32 %v3953, 0.0
  %v3962 = vmax.f32 %v3954, 0.0
  %v3963 = vmax.f32 %v3955, 0.0
  %v3964 = vmax.f32 %v3956, 0.0
  %v3965 = vmax.f32 %v3957, 0.0
  %v3966 = vmax.f32 %v3958, 0.0
  %v3967 = vmax.f32 %v3959, 0.0
  %v3968 = vmax.f32 %v3960, 0.0
  %3977 = vrot.lane.b32.xlu0 %v3961, 17
  %v3978 = vpop.permute.xlu0 %3977
  %3979 = vrot.lane.b32.xlu0 %v3962, 17
  %v3980 = vpop.permute.xlu0 %3979
  %3981 = vrot.lane.b32.xlu0 %v3963, 17
  %v3982 = vpop.permute.xlu0 %3981
  %3983 = vrot.lane.b32.xlu0 %v3964, 17
  %v3984 = vpop.permute.xlu0 %3983
  %3985 = vrot.lane.b32.xlu0 %v3965, 17
  %v3986 = vpop.permute.xlu0 %3985
  %3987 = vrot.lane.b32.xlu0 %v3966, 17
  %v3988 = vpop.permute.xlu0 %3987
  %3989 = vrot.lane.b32.xlu0 %v3967, 17
  %v3990 = vpop.permute.xlu0 %3989
  %3991 = vrot.lane.b32.xlu0 %v3968, 17
  %v3992 = vpop.permute.xlu0 %3991
  %v3993 = vsel %vm53, %v3978, %v3980
  %v3994 = vsel %vm53, %v3982, %v3984
  %v3995 = vsel %vm53, %v3986, %v3988
  %v3996 = vsel %vm53, %v3990, %v3992
  %4009 = vst.msk [vmem:[#allocation2] sm:$0xff] %vm159, %v3978
  %4010 = vst [vmem:[#allocation2 + $0x8] sm:$0xff] %v3993
  %4011 = vst.msk [vmem:[#allocation2 + $0x10] sm:$0xff] %vm53, %v3980
  %4012 = vst.msk [vmem:[#allocation2 + $0x18] sm:$0xff] %vm159, %v3982
  %4013 = vst [vmem:[#allocation2 + $0x20] sm:$0xff] %v3994
  %4014 = vst.msk [vmem:[#allocation2 + $0x28] sm:$0xff] %vm53, %v3984
  %4015 = vst.msk [vmem:[#allocation2 + $0x30] sm:$0xff] %vm159, %v3986
  %4016 = vst [vmem:[#allocation2 + $0x38] sm:$0xff] %v3995
  %4017 = vst.msk [vmem:[#allocation2 + $0x40] sm:$0xff] %vm53, %v3988
  %4018 = vst.msk [vmem:[#allocation2 + $0x48] sm:$0xff] %vm159, %v3990
  %4019 = vst [vmem:[#allocation2 + $0x50] sm:$0xff] %v3996
  %4020 = vst.msk [vmem:[#allocation2 + $0x58] sm:$0xff] %vm53, %v3992
  %v4021 = vld [vmem:[#allocation2] sm:$0xff]
  %v4022 = vld [vmem:[#allocation2 + $0x8] sm:$0xff]
  %v4023 = vld [vmem:[#allocation2 + $0x18] sm:$0xff]
  %v4024 = vld [vmem:[#allocation2 + $0x20] sm:$0xff]
  %v4025 = vld [vmem:[#allocation2 + $0x30] sm:$0xff]
  %v4026 = vld [vmem:[#allocation2 + $0x38] sm:$0xff]
  %v4027 = vld [vmem:[#allocation2 + $0x48] sm:$0xff]
  %v4028 = vld [vmem:[#allocation2 + $0x50] sm:$0xff]
  %v4029 = vmul.f32 %v4021, %v174
  %v4030 = vmul.f32 %v4022, %v178
  %v4031 = vmul.f32 %v4023, %v174
  %v4032 = vmul.f32 %v4024, %v178
  %v4033 = vmul.f32 %v4025, %v174
  %v4034 = vmul.f32 %v4026, %v178
  %v4035 = vmul.f32 %v4027, %v174
  %v4036 = vmul.f32 %v4028, %v178
  %4037 = vst [vmem:[#allocation3] sm:$0xff] %v4029
  %4038 = vst [vmem:[#allocation3 + $0x8] sm:$0xff] %v4030
  %4039 = vst [vmem:[#allocation3 + $0x10] sm:$0xff] %v4031
  %4040 = vst [vmem:[#allocation3 + $0x18] sm:$0xff] %v4032
  %4041 = vst [vmem:[#allocation3 + $0x20] sm:$0xff] %v4033
  %4042 = vst [vmem:[#allocation3 + $0x28] sm:$0xff] %v4034
  %4043 = vst [vmem:[#allocation3 + $0x30] sm:$0xff] %v4035
  %4044 = vst [vmem:[#allocation3 + $0x38] sm:$0xff] %v4036
  %v4045 = vld [vmem:[#allocation2] sm:$0xff]
  %v4046 = vld [vmem:[#allocation2 + $0x8] sm:$0xff]
  %v4047 = vld [vmem:[#allocation2 + $0x10] sm:$0xff]
  %v4048 = vld [vmem:[#allocation2 + $0x18] sm:$0xff]
  %v4049 = vld [vmem:[#allocation2 + $0x20] sm:$0xff]
  %v4050 = vld [vmem:[#allocation2 + $0x28] sm:$0xff]
  %v4051 = vld [vmem:[#allocation2 + $0x30] sm:$0xff]
  %v4052 = vld [vmem:[#allocation2 + $0x38] sm:$0xff]
  %v4053 = vld [vmem:[#allocation2 + $0x40] sm:$0xff]
  %v4054 = vld [vmem:[#allocation2 + $0x48] sm:$0xff]
  %v4055 = vld [vmem:[#allocation2 + $0x50] sm:$0xff]
  %v4056 = vld [vmem:[#allocation2 + $0x58] sm:$0xff]
  %4069 = vrot.lane.b32.xlu0 %v4045, 127
  %v4070 = vpop.permute.xlu0 %4069
  %4071 = vrot.lane.b32.xlu0 %v4046, 127
  %v4072 = vpop.permute.xlu0 %4071
  %4073 = vrot.lane.b32.xlu0 %v4047, 127
  %v4074 = vpop.permute.xlu0 %4073
  %4075 = vrot.lane.b32.xlu0 %v4048, 127
  %v4076 = vpop.permute.xlu0 %4075
  %4077 = vrot.lane.b32.xlu0 %v4049, 127
  %v4078 = vpop.permute.xlu0 %4077
  %4079 = vrot.lane.b32.xlu0 %v4050, 127
  %v4080 = vpop.permute.xlu0 %4079
  %4081 = vrot.lane.b32.xlu0 %v4051, 127
  %v4082 = vpop.permute.xlu0 %4081
  %4083 = vrot.lane.b32.xlu0 %v4052, 127
  %v4084 = vpop.permute.xlu0 %4083
  %4085 = vrot.lane.b32.xlu0 %v4053, 127
  %v4086 = vpop.permute.xlu0 %4085
  %4087 = vrot.lane.b32.xlu0 %v4054, 127
  %v4088 = vpop.permute.xlu0 %4087
  %4089 = vrot.lane.b32.xlu0 %v4055, 127
  %v4090 = vpop.permute.xlu0 %4089
  %4091 = vrot.lane.b32.xlu0 %v4056, 127
  %v4092 = vpop.permute.xlu0 %4091
  %v4093 = vsel %vm213, %v4070, %v4072
  %v4094 = vsel %vm213, %v4072, %v4074
  %v4095 = vsel %vm213, %v4076, %v4078
  %v4096 = vsel %vm213, %v4078, %v4080
  %v4097 = vsel %vm213, %v4082, %v4084
  %v4098 = vsel %vm213, %v4084, %v4086
  %v4099 = vsel %vm213, %v4088, %v4090
  %v4100 = vsel %vm213, %v4090, %v4092
  %4109 = vst [vmem:[#allocation3 + $0x40] sm:$0xff] %v4093
  %4110 = vst [vmem:[#allocation3 + $0x48] sm:$0xff] %v4094
  %4111 = vst [vmem:[#allocation3 + $0x50] sm:$0xff] %v4095
  %4112 = vst [vmem:[#allocation3 + $0x58] sm:$0xff] %v4096
  %4113 = vst [vmem:[#allocation3 + $0x60] sm:$0xff] %v4097
  %4114 = vst [vmem:[#allocation3 + $0x68] sm:$0xff] %v4098
  %4115 = vst [vmem:[#allocation3 + $0x70] sm:$0xff] %v4099
  %4116 = vst [vmem:[#allocation3 + $0x78] sm:$0xff] %v4100
  %v4117 = vld [vmem:[#allocation2] sm:$0xff]
  %v4118 = vld [vmem:[#allocation2 + $0x8] sm:$0xff]
  %v4119 = vld [vmem:[#allocation2 + $0x10] sm:$0xff]
  %v4120 = vld [vmem:[#allocation2 + $0x18] sm:$0xff]
  %v4121 = vld [vmem:[#allocation2 + $0x20] sm:$0xff]
  %v4122 = vld [vmem:[#allocation2 + $0x28] sm:$0xff]
  %v4123 = vld [vmem:[#allocation2 + $0x30] sm:$0xff]
  %v4124 = vld [vmem:[#allocation2 + $0x38] sm:$0xff]
  %v4125 = vld [vmem:[#allocation2 + $0x40] sm:$0xff]
  %v4126 = vld [vmem:[#allocation2 + $0x48] sm:$0xff]
  %v4127 = vld [vmem:[#allocation2 + $0x50] sm:$0xff]
  %v4128 = vld [vmem:[#allocation2 + $0x58] sm:$0xff]
  %v4129 = vmul.f32 %v4117, %v242
  %v4130 = vmul.f32 %v4118, %v246
  %v4131 = vmul.f32 %v4119, %v244
  %v4132 = vmul.f32 %v4120, %v242
  %v4133 = vmul.f32 %v4121, %v246
  %v4134 = vmul.f32 %v4122, %v244
  %v4135 = vmul.f32 %v4123, %v242
  %v4136 = vmul.f32 %v4124, %v246
  %v4137 = vmul.f32 %v4125, %v244
  %v4138 = vmul.f32 %v4126, %v242
  %v4139 = vmul.f32 %v4127, %v246
  %v4140 = vmul.f32 %v4128, %v244
  %4153 = vrot.lane.b32.xlu0 %v4129, 126
  %v4154 = vpop.permute.xlu0 %4153
  %4155 = vrot.lane.b32.xlu0 %v4130, 126
  %v4156 = vpop.permute.xlu0 %4155
  %4157 = vrot.lane.b32.xlu0 %v4131, 126
  %v4158 = vpop.permute.xlu0 %4157
  %4159 = vrot.lane.b32.xlu0 %v4132, 126
  %v4160 = vpop.permute.xlu0 %4159
  %4161 = vrot.lane.b32.xlu0 %v4133, 126
  %v4162 = vpop.permute.xlu0 %4161
  %4163 = vrot.lane.b32.xlu0 %v4134, 126
  %v4164 = vpop.permute.xlu0 %4163
  %4165 = vrot.lane.b32.xlu0 %v4135, 126
  %v4166 = vpop.permute.xlu0 %4165
  %4167 = vrot.lane.b32.xlu0 %v4136, 126
  %v4168 = vpop.permute.xlu0 %4167
  %4169 = vrot.lane.b32.xlu0 %v4137, 126
  %v4170 = vpop.permute.xlu0 %4169
  %4171 = vrot.lane.b32.xlu0 %v4138, 126
  %v4172 = vpop.permute.xlu0 %4171
  %4173 = vrot.lane.b32.xlu0 %v4139, 126
  %v4174 = vpop.permute.xlu0 %4173
  %4175 = vrot.lane.b32.xlu0 %v4140, 126
  %v4176 = vpop.permute.xlu0 %4175
  %v4177 = vsel %vm274, %v4154, %v4156
  %v4178 = vsel %vm274, %v4156, %v4158
  %v4179 = vsel %vm274, %v4160, %v4162
  %v4180 = vsel %vm274, %v4162, %v4164
  %v4181 = vsel %vm274, %v4166, %v4168
  %v4182 = vsel %vm274, %v4168, %v4170
  %v4183 = vsel %vm274, %v4172, %v4174
  %v4184 = vsel %vm274, %v4174, %v4176
  %4193 = vst [vmem:[#allocation3 + $0x80] sm:$0xff] %v4177
  %4194 = vst [vmem:[#allocation3 + $0x88] sm:$0xff] %v4178
  %4195 = vst [vmem:[#allocation3 + $0x90] sm:$0xff] %v4179
  %4196 = vst [vmem:[#allocation3 + $0x98] sm:$0xff] %v4180
  %4197 = vst [vmem:[#allocation3 + $0xa0] sm:$0xff] %v4181
  %4198 = vst [vmem:[#allocation3 + $0xa8] sm:$0xff] %v4182
  %4199 = vst [vmem:[#allocation3 + $0xb0] sm:$0xff] %v4183
  %4200 = vst [vmem:[#allocation3 + $0xb8] sm:$0xff] %v4184
  %v4201 = vld [vmem:[#allocation2] sm:$0xff]
  %v4202 = vld [vmem:[#allocation2 + $0x8] sm:$0xff]
  %v4203 = vld [vmem:[#allocation2 + $0x10] sm:$0xff]
  %v4204 = vld [vmem:[#allocation2 + $0x18] sm:$0xff]
  %v4205 = vld [vmem:[#allocation2 + $0x20] sm:$0xff]
  %v4206 = vld [vmem:[#allocation2 + $0x28] sm:$0xff]
  %v4207 = vld [vmem:[#allocation2 + $0x30] sm:$0xff]
  %v4208 = vld [vmem:[#allocation2 + $0x38] sm:$0xff]
  %v4209 = vld [vmem:[#allocation2 + $0x40] sm:$0xff]
  %v4210 = vld [vmem:[#allocation2 + $0x48] sm:$0xff]
  %v4211 = vld [vmem:[#allocation2 + $0x50] sm:$0xff]
  %v4212 = vld [vmem:[#allocation2 + $0x58] sm:$0xff]
  %v4213 = vmul.f32 %v4201, %v294
  %v4214 = vmul.f32 %v4202, %v298
  %v4215 = vmul.f32 %v4203, %v296
  %v4216 = vmul.f32 %v4204, %v294
  %v4217 = vmul.f32 %v4205, %v298
  %v4218 = vmul.f32 %v4206, %v296
  %v4219 = vmul.f32 %v4207, %v294
  %v4220 = vmul.f32 %v4208, %v298
  %v4221 = vmul.f32 %v4209, %v296
  %v4222 = vmul.f32 %v4210, %v294
  %v4223 = vmul.f32 %v4211, %v298
  %v4224 = vmul.f32 %v4212, %v296
  %4237 = vrot.lane.b32.xlu0 %v4213, 112
  %v4238 = vpop.permute.xlu0 %4237
  %4239 = vrot.lane.b32.xlu0 %v4214, 112
  %v4240 = vpop.permute.xlu0 %4239
  %4241 = vrot.lane.b32.xlu0 %v4215, 112
  %v4242 = vpop.permute.xlu0 %4241
  %4243 = vrot.lane.b32.xlu0 %v4216, 112
  %v4244 = vpop.permute.xlu0 %4243
  %4245 = vrot.lane.b32.xlu0 %v4217, 112
  %v4246 = vpop.permute.xlu0 %4245
  %4247 = vrot.lane.b32.xlu0 %v4218, 112
  %v4248 = vpop.permute.xlu0 %4247
  %4249 = vrot.lane.b32.xlu0 %v4219, 112
  %v4250 = vpop.permute.xlu0 %4249
  %4251 = vrot.lane.b32.xlu0 %v4220, 112
  %v4252 = vpop.permute.xlu0 %4251
  %4253 = vrot.lane.b32.xlu0 %v4221, 112
  %v4254 = vpop.permute.xlu0 %4253
  %4255 = vrot.lane.b32.xlu0 %v4222, 112
  %v4256 = vpop.permute.xlu0 %4255
  %4257 = vrot.lane.b32.xlu0 %v4223, 112
  %v4258 = vpop.permute.xlu0 %4257
  %4259 = vrot.lane.b32.xlu0 %v4224, 112
  %v4260 = vpop.permute.xlu0 %4259
  %v4261 = vsel %vm326, %v4238, %v4240
  %v4262 = vsel %vm326, %v4240, %v4242
  %v4263 = vsel %vm326, %v4244, %v4246
  %v4264 = vsel %vm326, %v4246, %v4248
  %v4265 = vsel %vm326, %v4250, %v4252
  %v4266 = vsel %vm326, %v4252, %v4254
  %v4267 = vsel %vm326, %v4256, %v4258
  %v4268 = vsel %vm326, %v4258, %v4260
  %4277 = vst [vmem:[#allocation3 + $0xc0] sm:$0xff] %v4261
  %4278 = vst [vmem:[#allocation3 + $0xc8] sm:$0xff] %v4262
  %4279 = vst [vmem:[#allocation3 + $0xd0] sm:$0xff] %v4263
  %4280 = vst [vmem:[#allocation3 + $0xd8] sm:$0xff] %v4264
  %4281 = vst [vmem:[#allocation3 + $0xe0] sm:$0xff] %v4265
  %4282 = vst [vmem:[#allocation3 + $0xe8] sm:$0xff] %v4266
  %4283 = vst [vmem:[#allocation3 + $0xf0] sm:$0xff] %v4267
  %4284 = vst [vmem:[#allocation3 + $0xf8] sm:$0xff] %v4268
  %v4285 = vld [vmem:[#allocation2] sm:$0xff]
  %v4286 = vld [vmem:[#allocation2 + $0x8] sm:$0xff]
  %v4287 = vld [vmem:[#allocation2 + $0x10] sm:$0xff]
  %v4288 = vld [vmem:[#allocation2 + $0x18] sm:$0xff]
  %v4289 = vld [vmem:[#allocation2 + $0x20] sm:$0xff]
  %v4290 = vld [vmem:[#allocation2 + $0x28] sm:$0xff]
  %v4291 = vld [vmem:[#allocation2 + $0x30] sm:$0xff]
  %v4292 = vld [vmem:[#allocation2 + $0x38] sm:$0xff]
  %v4293 = vld [vmem:[#allocation2 + $0x40] sm:$0xff]
  %v4294 = vld [vmem:[#allocation2 + $0x48] sm:$0xff]
  %v4295 = vld [vmem:[#allocation2 + $0x50] sm:$0xff]
  %v4296 = vld [vmem:[#allocation2 + $0x58] sm:$0xff]
  %4309 = vrot.lane.b32.xlu0 %v4285, 111
  %v4310 = vpop.permute.xlu0 %4309
  %4311 = vrot.lane.b32.xlu0 %v4286, 111
  %v4312 = vpop.permute.xlu0 %4311
  %4313 = vrot.lane.b32.xlu0 %v4287, 111
  %v4314 = vpop.permute.xlu0 %4313
  %4315 = vrot.lane.b32.xlu0 %v4288, 111
  %v4316 = vpop.permute.xlu0 %4315
  %4317 = vrot.lane.b32.xlu0 %v4289, 111
  %v4318 = vpop.permute.xlu0 %4317
  %4319 = vrot.lane.b32.xlu0 %v4290, 111
  %v4320 = vpop.permute.xlu0 %4319
  %4321 = vrot.lane.b32.xlu0 %v4291, 111
  %v4322 = vpop.permute.xlu0 %4321
  %4323 = vrot.lane.b32.xlu0 %v4292, 111
  %v4324 = vpop.permute.xlu0 %4323
  %4325 = vrot.lane.b32.xlu0 %v4293, 111
  %v4326 = vpop.permute.xlu0 %4325
  %4327 = vrot.lane.b32.xlu0 %v4294, 111
  %v4328 = vpop.permute.xlu0 %4327
  %4329 = vrot.lane.b32.xlu0 %v4295, 111
  %v4330 = vpop.permute.xlu0 %4329
  %4331 = vrot.lane.b32.xlu0 %v4296, 111
  %v4332 = vpop.permute.xlu0 %4331
  %v4333 = vsel %vm363, %v4310, %v4312
  %v4334 = vsel %vm363, %v4312, %v4314
  %v4335 = vsel %vm363, %v4316, %v4318
  %v4336 = vsel %vm363, %v4318, %v4320
  %v4337 = vsel %vm363, %v4322, %v4324
  %v4338 = vsel %vm363, %v4324, %v4326
  %v4339 = vsel %vm363, %v4328, %v4330
  %v4340 = vsel %vm363, %v4330, %v4332
  %4349 = vst [vmem:[#allocation3 + $0x100] sm:$0xff] %v4333
  %4350 = vst [vmem:[#allocation3 + $0x108] sm:$0xff] %v4334
  %4351 = vst [vmem:[#allocation3 + $0x110] sm:$0xff] %v4335
  %4352 = vst [vmem:[#allocation3 + $0x118] sm:$0xff] %v4336
  %4353 = vst [vmem:[#allocation3 + $0x120] sm:$0xff] %v4337
  %4354 = vst [vmem:[#allocation3 + $0x128] sm:$0xff] %v4338
  %4355 = vst [vmem:[#allocation3 + $0x130] sm:$0xff] %v4339
  %4356 = vst [vmem:[#allocation3 + $0x138] sm:$0xff] %v4340
  %v4357 = vld [vmem:[#allocation2] sm:$0xff]
  %v4358 = vld [vmem:[#allocation2 + $0x8] sm:$0xff]
  %v4359 = vld [vmem:[#allocation2 + $0x10] sm:$0xff]
  %v4360 = vld [vmem:[#allocation2 + $0x18] sm:$0xff]
  %v4361 = vld [vmem:[#allocation2 + $0x20] sm:$0xff]
  %v4362 = vld [vmem:[#allocation2 + $0x28] sm:$0xff]
  %v4363 = vld [vmem:[#allocation2 + $0x30] sm:$0xff]
  %v4364 = vld [vmem:[#allocation2 + $0x38] sm:$0xff]
  %v4365 = vld [vmem:[#allocation2 + $0x40] sm:$0xff]
  %v4366 = vld [vmem:[#allocation2 + $0x48] sm:$0xff]
  %v4367 = vld [vmem:[#allocation2 + $0x50] sm:$0xff]
  %v4368 = vld [vmem:[#allocation2 + $0x58] sm:$0xff]
  %v4369 = vmul.f32 %v4357, %v383
  %v4370 = vmul.f32 %v4358, %v387
  %v4371 = vmul.f32 %v4359, %v385
  %v4372 = vmul.f32 %v4360, %v383
  %v4373 = vmul.f32 %v4361, %v387
  %v4374 = vmul.f32 %v4362, %v385
  %v4375 = vmul.f32 %v4363, %v383
  %v4376 = vmul.f32 %v4364, %v387
  %v4377 = vmul.f32 %v4365, %v385
  %v4378 = vmul.f32 %v4366, %v383
  %v4379 = vmul.f32 %v4367, %v387
  %v4380 = vmul.f32 %v4368, %v385
  %4393 = vrot.lane.b32.xlu0 %v4369, 110
  %v4394 = vpop.permute.xlu0 %4393
  %4395 = vrot.lane.b32.xlu0 %v4370, 110
  %v4396 = vpop.permute.xlu0 %4395
  %4397 = vrot.lane.b32.xlu0 %v4371, 110
  %v4398 = vpop.permute.xlu0 %4397
  %4399 = vrot.lane.b32.xlu0 %v4372, 110
  %v4400 = vpop.permute.xlu0 %4399
  %4401 = vrot.lane.b32.xlu0 %v4373, 110
  %v4402 = vpop.permute.xlu0 %4401
  %4403 = vrot.lane.b32.xlu0 %v4374, 110
  %v4404 = vpop.permute.xlu0 %4403
  %4405 = vrot.lane.b32.xlu0 %v4375, 110
  %v4406 = vpop.permute.xlu0 %4405
  %4407 = vrot.lane.b32.xlu0 %v4376, 110
  %v4408 = vpop.permute.xlu0 %4407
  %4409 = vrot.lane.b32.xlu0 %v4377, 110
  %v4410 = vpop.permute.xlu0 %4409
  %4411 = vrot.lane.b32.xlu0 %v4378, 110
  %v4412 = vpop.permute.xlu0 %4411
  %4413 = vrot.lane.b32.xlu0 %v4379, 110
  %v4414 = vpop.permute.xlu0 %4413
  %4415 = vrot.lane.b32.xlu0 %v4380, 110
  %v4416 = vpop.permute.xlu0 %4415
  %v4417 = vsel %vm415, %v4394, %v4396
  %v4418 = vsel %vm415, %v4396, %v4398
  %v4419 = vsel %vm415, %v4400, %v4402
  %v4420 = vsel %vm415, %v4402, %v4404
  %v4421 = vsel %vm415, %v4406, %v4408
  %v4422 = vsel %vm415, %v4408, %v4410
  %v4423 = vsel %vm415, %v4412, %v4414
  %v4424 = vsel %vm415, %v4414, %v4416
  %4433 = vst [vmem:[#allocation3 + $0x140] sm:$0xff] %v4417
  %4434 = vst [vmem:[#allocation3 + $0x148] sm:$0xff] %v4418
  %4435 = vst [vmem:[#allocation3 + $0x150] sm:$0xff] %v4419
  %4436 = vst [vmem:[#allocation3 + $0x158] sm:$0xff] %v4420
  %4437 = vst [vmem:[#allocation3 + $0x160] sm:$0xff] %v4421
  %4438 = vst [vmem:[#allocation3 + $0x168] sm:$0xff] %v4422
  %4439 = vst [vmem:[#allocation3 + $0x170] sm:$0xff] %v4423
  %4440 = vst [vmem:[#allocation3 + $0x178] sm:$0xff] %v4424
  %v4441 = vld [vmem:[#allocation2] sm:$0xff]
  %v4442 = vld [vmem:[#allocation2 + $0x8] sm:$0xff]
  %v4443 = vld [vmem:[#allocation2 + $0x10] sm:$0xff]
  %v4444 = vld [vmem:[#allocation2 + $0x18] sm:$0xff]
  %v4445 = vld [vmem:[#allocation2 + $0x20] sm:$0xff]
  %v4446 = vld [vmem:[#allocation2 + $0x28] sm:$0xff]
  %v4447 = vld [vmem:[#allocation2 + $0x30] sm:$0xff]
  %v4448 = vld [vmem:[#allocation2 + $0x38] sm:$0xff]
  %v4449 = vld [vmem:[#allocation2 + $0x40] sm:$0xff]
  %v4450 = vld [vmem:[#allocation2 + $0x48] sm:$0xff]
  %v4451 = vld [vmem:[#allocation2 + $0x50] sm:$0xff]
  %v4452 = vld [vmem:[#allocation2 + $0x58] sm:$0xff]
  %v4453 = vmul.f32 %v4441, %v435
  %v4454 = vmul.f32 %v4442, %v439
  %v4455 = vmul.f32 %v4443, %v437
  %v4456 = vmul.f32 %v4444, %v435
  %v4457 = vmul.f32 %v4445, %v439
  %v4458 = vmul.f32 %v4446, %v437
  %v4459 = vmul.f32 %v4447, %v435
  %v4460 = vmul.f32 %v4448, %v439
  %v4461 = vmul.f32 %v4449, %v437
  %v4462 = vmul.f32 %v4450, %v435
  %v4463 = vmul.f32 %v4451, %v439
  %v4464 = vmul.f32 %v4452, %v437
  %4477 = vrot.lane.b32.xlu0 %v4453, 96
  %v4478 = vpop.permute.xlu0 %4477
  %4479 = vrot.lane.b32.xlu0 %v4454, 96
  %v4480 = vpop.permute.xlu0 %4479
  %4481 = vrot.lane.b32.xlu0 %v4455, 96
  %v4482 = vpop.permute.xlu0 %4481
  %4483 = vrot.lane.b32.xlu0 %v4456, 96
  %v4484 = vpop.permute.xlu0 %4483
  %4485 = vrot.lane.b32.xlu0 %v4457, 96
  %v4486 = vpop.permute.xlu0 %4485
  %4487 = vrot.lane.b32.xlu0 %v4458, 96
  %v4488 = vpop.permute.xlu0 %4487
  %4489 = vrot.lane.b32.xlu0 %v4459, 96
  %v4490 = vpop.permute.xlu0 %4489
  %4491 = vrot.lane.b32.xlu0 %v4460, 96
  %v4492 = vpop.permute.xlu0 %4491
  %4493 = vrot.lane.b32.xlu0 %v4461, 96
  %v4494 = vpop.permute.xlu0 %4493
  %4495 = vrot.lane.b32.xlu0 %v4462, 96
  %v4496 = vpop.permute.xlu0 %4495
  %4497 = vrot.lane.b32.xlu0 %v4463, 96
  %v4498 = vpop.permute.xlu0 %4497
  %4499 = vrot.lane.b32.xlu0 %v4464, 96
  %v4500 = vpop.permute.xlu0 %4499
  %v4501 = vsel %vm467, %v4478, %v4480
  %v4502 = vsel %vm467, %v4480, %v4482
  %v4503 = vsel %vm467, %v4484, %v4486
  %v4504 = vsel %vm467, %v4486, %v4488
  %v4505 = vsel %vm467, %v4490, %v4492
  %v4506 = vsel %vm467, %v4492, %v4494
  %v4507 = vsel %vm467, %v4496, %v4498
  %v4508 = vsel %vm467, %v4498, %v4500
  %4517 = vst [vmem:[#allocation3 + $0x180] sm:$0xff] %v4501
  %4518 = vst [vmem:[#allocation3 + $0x188] sm:$0xff] %v4502
  %4519 = vst [vmem:[#allocation3 + $0x190] sm:$0xff] %v4503
  %4520 = vst [vmem:[#allocation3 + $0x198] sm:$0xff] %v4504
  %4521 = vst [vmem:[#allocation3 + $0x1a0] sm:$0xff] %v4505
  %4522 = vst [vmem:[#allocation3 + $0x1a8] sm:$0xff] %v4506
  %4523 = vst [vmem:[#allocation3 + $0x1b0] sm:$0xff] %v4507
  %4524 = vst [vmem:[#allocation3 + $0x1b8] sm:$0xff] %v4508
  %v4525 = vld [vmem:[#allocation2] sm:$0xff]
  %v4526 = vld [vmem:[#allocation2 + $0x8] sm:$0xff]
  %v4527 = vld [vmem:[#allocation2 + $0x10] sm:$0xff]
  %v4528 = vld [vmem:[#allocation2 + $0x18] sm:$0xff]
  %v4529 = vld [vmem:[#allocation2 + $0x20] sm:$0xff]
  %v4530 = vld [vmem:[#allocation2 + $0x28] sm:$0xff]
  %v4531 = vld [vmem:[#allocation2 + $0x30] sm:$0xff]
  %v4532 = vld [vmem:[#allocation2 + $0x38] sm:$0xff]
  %v4533 = vld [vmem:[#allocation2 + $0x40] sm:$0xff]
  %v4534 = vld [vmem:[#allocation2 + $0x48] sm:$0xff]
  %v4535 = vld [vmem:[#allocation2 + $0x50] sm:$0xff]
  %v4536 = vld [vmem:[#allocation2 + $0x58] sm:$0xff]
  %4549 = vrot.lane.b32.xlu0 %v4525, 95
  %v4550 = vpop.permute.xlu0 %4549
  %4551 = vrot.lane.b32.xlu0 %v4526, 95
  %v4552 = vpop.permute.xlu0 %4551
  %4553 = vrot.lane.b32.xlu0 %v4527, 95
  %v4554 = vpop.permute.xlu0 %4553
  %4555 = vrot.lane.b32.xlu0 %v4528, 95
  %v4556 = vpop.permute.xlu0 %4555
  %4557 = vrot.lane.b32.xlu0 %v4529, 95
  %v4558 = vpop.permute.xlu0 %4557
  %4559 = vrot.lane.b32.xlu0 %v4530, 95
  %v4560 = vpop.permute.xlu0 %4559
  %4561 = vrot.lane.b32.xlu0 %v4531, 95
  %v4562 = vpop.permute.xlu0 %4561
  %4563 = vrot.lane.b32.xlu0 %v4532, 95
  %v4564 = vpop.permute.xlu0 %4563
  %4565 = vrot.lane.b32.xlu0 %v4533, 95
  %v4566 = vpop.permute.xlu0 %4565
  %4567 = vrot.lane.b32.xlu0 %v4534, 95
  %v4568 = vpop.permute.xlu0 %4567
  %4569 = vrot.lane.b32.xlu0 %v4535, 95
  %v4570 = vpop.permute.xlu0 %4569
  %4571 = vrot.lane.b32.xlu0 %v4536, 95
  %v4572 = vpop.permute.xlu0 %4571
  %v4573 = vsel %vm504, %v4550, %v4552
  %v4574 = vsel %vm504, %v4552, %v4554
  %v4575 = vsel %vm504, %v4556, %v4558
  %v4576 = vsel %vm504, %v4558, %v4560
  %v4577 = vsel %vm504, %v4562, %v4564
  %v4578 = vsel %vm504, %v4564, %v4566
  %v4579 = vsel %vm504, %v4568, %v4570
  %v4580 = vsel %vm504, %v4570, %v4572
  %4589 = vst [vmem:[#allocation3 + $0x1c0] sm:$0xff] %v4573
  %4590 = vst [vmem:[#allocation3 + $0x1c8] sm:$0xff] %v4574
  %4591 = vst [vmem:[#allocation3 + $0x1d0] sm:$0xff] %v4575
  %4592 = vst [vmem:[#allocation3 + $0x1d8] sm:$0xff] %v4576
  %4593 = vst [vmem:[#allocation3 + $0x1e0] sm:$0xff] %v4577
  %4594 = vst [vmem:[#allocation3 + $0x1e8] sm:$0xff] %v4578
  %4595 = vst [vmem:[#allocation3 + $0x1f0] sm:$0xff] %v4579
  %4596 = vst [vmem:[#allocation3 + $0x1f8] sm:$0xff] %v4580
  %v4597 = vld [vmem:[#allocation2] sm:$0xff]
  %v4598 = vld [vmem:[#allocation2 + $0x8] sm:$0xff]
  %v4599 = vld [vmem:[#allocation2 + $0x10] sm:$0xff]
  %v4600 = vld [vmem:[#allocation2 + $0x18] sm:$0xff]
  %v4601 = vld [vmem:[#allocation2 + $0x20] sm:$0xff]
  %v4602 = vld [vmem:[#allocation2 + $0x28] sm:$0xff]
  %v4603 = vld [vmem:[#allocation2 + $0x30] sm:$0xff]
  %v4604 = vld [vmem:[#allocation2 + $0x38] sm:$0xff]
  %v4605 = vld [vmem:[#allocation2 + $0x40] sm:$0xff]
  %v4606 = vld [vmem:[#allocation2 + $0x48] sm:$0xff]
  %v4607 = vld [vmem:[#allocation2 + $0x50] sm:$0xff]
  %v4608 = vld [vmem:[#allocation2 + $0x58] sm:$0xff]
  %v4609 = vmul.f32 %v4597, %v524
  %v4610 = vmul.f32 %v4598, %v528
  %v4611 = vmul.f32 %v4599, %v526
  %v4612 = vmul.f32 %v4600, %v524
  %v4613 = vmul.f32 %v4601, %v528
  %v4614 = vmul.f32 %v4602, %v526
  %v4615 = vmul.f32 %v4603, %v524
  %v4616 = vmul.f32 %v4604, %v528
  %v4617 = vmul.f32 %v4605, %v526
  %v4618 = vmul.f32 %v4606, %v524
  %v4619 = vmul.f32 %v4607, %v528
  %v4620 = vmul.f32 %v4608, %v526
  %4633 = vrot.lane.b32.xlu0 %v4609, 94
  %v4634 = vpop.permute.xlu0 %4633
  %4635 = vrot.lane.b32.xlu0 %v4610, 94
  %v4636 = vpop.permute.xlu0 %4635
  %4637 = vrot.lane.b32.xlu0 %v4611, 94
  %v4638 = vpop.permute.xlu0 %4637
  %4639 = vrot.lane.b32.xlu0 %v4612, 94
  %v4640 = vpop.permute.xlu0 %4639
  %4641 = vrot.lane.b32.xlu0 %v4613, 94
  %v4642 = vpop.permute.xlu0 %4641
  %4643 = vrot.lane.b32.xlu0 %v4614, 94
  %v4644 = vpop.permute.xlu0 %4643
  %4645 = vrot.lane.b32.xlu0 %v4615, 94
  %v4646 = vpop.permute.xlu0 %4645
  %4647 = vrot.lane.b32.xlu0 %v4616, 94
  %v4648 = vpop.permute.xlu0 %4647
  %4649 = vrot.lane.b32.xlu0 %v4617, 94
  %v4650 = vpop.permute.xlu0 %4649
  %4651 = vrot.lane.b32.xlu0 %v4618, 94
  %v4652 = vpop.permute.xlu0 %4651
  %4653 = vrot.lane.b32.xlu0 %v4619, 94
  %v4654 = vpop.permute.xlu0 %4653
  %4655 = vrot.lane.b32.xlu0 %v4620, 94
  %v4656 = vpop.permute.xlu0 %4655
  %v4657 = vsel %vm556, %v4634, %v4636
  %v4658 = vsel %vm556, %v4636, %v4638
  %v4659 = vsel %vm556, %v4640, %v4642
  %v4660 = vsel %vm556, %v4642, %v4644
  %v4661 = vsel %vm556, %v4646, %v4648
  %v4662 = vsel %vm556, %v4648, %v4650
  %v4663 = vsel %vm556, %v4652, %v4654
  %v4664 = vsel %vm556, %v4654, %v4656
  %4673 = vst [vmem:[#allocation3 + $0x200] sm:$0xff] %v4657
  %4674 = vst [vmem:[#allocation3 + $0x208] sm:$0xff] %v4658
  %4675 = vst [vmem:[#allocation3 + $0x210] sm:$0xff] %v4659
  %4676 = vst [vmem:[#allocation3 + $0x218] sm:$0xff] %v4660
  %4677 = vst [vmem:[#allocation3 + $0x220] sm:$0xff] %v4661
  %4678 = vst [vmem:[#allocation3 + $0x228] sm:$0xff] %v4662
  %4679 = vst [vmem:[#allocation3 + $0x230] sm:$0xff] %v4663
  %4680 = vst [vmem:[#allocation3 + $0x238] sm:$0xff] %v4664
  %v4681 = vld [vmem:[%s9] sm:$0xff]
  %v4682 = vld [vmem:[%s9 + $0x8] sm:$0xff]
  %v4683 = vld [vmem:[%s9 + $0x10] sm:$0xff]
  %v4684 = vld [vmem:[%s9 + $0x18] sm:$0xff]
  %v4685 = vld [vmem:[%s9 + $0x20] sm:$0xff]
  %v4686 = vld [vmem:[%s9 + $0x28] sm:$0xff]
  %v4687 = vld [vmem:[%s9 + $0x30] sm:$0xff]
  %v4688 = vld [vmem:[%s9 + $0x38] sm:$0xff]
  %v4689 = vld [vmem:[%s9 + $0x40] sm:$0xff]
  %v4690 = vld [vmem:[%s9 + $0x48] sm:$0xff]
  %v4691 = vld [vmem:[%s9 + $0x50] sm:$0xff]
  %v4692 = vld [vmem:[%s9 + $0x58] sm:$0xff]
  %v4693 = vld [vmem:[#allocation3] sm:$0xff]
  %v4694 = vld [vmem:[#allocation3 + $0x8] sm:$0xff]
  %v4695 = vld [vmem:[#allocation3 + $0x10] sm:$0xff]
  %v4696 = vld [vmem:[#allocation3 + $0x18] sm:$0xff]
  %v4697 = vld [vmem:[#allocation3 + $0x20] sm:$0xff]
  %v4698 = vld [vmem:[#allocation3 + $0x28] sm:$0xff]
  %v4699 = vld [vmem:[#allocation3 + $0x30] sm:$0xff]
  %v4700 = vld [vmem:[#allocation3 + $0x38] sm:$0xff]
  %v4701 = vld [vmem:[#allocation3 + $0x40] sm:$0xff]
  %v4702 = vld [vmem:[#allocation3 + $0x48] sm:$0xff]
  %v4703 = vld [vmem:[#allocation3 + $0x50] sm:$0xff]
  %v4704 = vld [vmem:[#allocation3 + $0x58] sm:$0xff]
  %v4705 = vld [vmem:[#allocation3 + $0x60] sm:$0xff]
  %v4706 = vld [vmem:[#allocation3 + $0x68] sm:$0xff]
  %v4707 = vld [vmem:[#allocation3 + $0x70] sm:$0xff]
  %v4708 = vld [vmem:[#allocation3 + $0x78] sm:$0xff]
  %v4709 = vld [vmem:[#allocation3 + $0x80] sm:$0xff]
  %v4710 = vld [vmem:[#allocation3 + $0x88] sm:$0xff]
  %v4711 = vld [vmem:[#allocation3 + $0x90] sm:$0xff]
  %v4712 = vld [vmem:[#allocation3 + $0x98] sm:$0xff]
  %v4713 = vld [vmem:[#allocation3 + $0xa0] sm:$0xff]
  %v4714 = vld [vmem:[#allocation3 + $0xa8] sm:$0xff]
  %v4715 = vld [vmem:[#allocation3 + $0xb0] sm:$0xff]
  %v4716 = vld [vmem:[#allocation3 + $0xb8] sm:$0xff]
  %v4717 = vld [vmem:[#allocation3 + $0xc0] sm:$0xff]
  %v4718 = vld [vmem:[#allocation3 + $0xc8] sm:$0xff]
  %v4719 = vld [vmem:[#allocation3 + $0xd0] sm:$0xff]
  %v4720 = vld [vmem:[#allocation3 + $0xd8] sm:$0xff]
  %v4721 = vld [vmem:[#allocation3 + $0xe0] sm:$0xff]
  %v4722 = vld [vmem:[#allocation3 + $0xe8] sm:$0xff]
  %v4723 = vld [vmem:[#allocation3 + $0xf0] sm:$0xff]
  %v4724 = vld [vmem:[#allocation3 + $0xf8] sm:$0xff]
  %v4725 = vld [vmem:[#allocation3 + $0x100] sm:$0xff]
  %v4726 = vld [vmem:[#allocation3 + $0x108] sm:$0xff]
  %v4727 = vld [vmem:[#allocation3 + $0x110] sm:$0xff]
  %v4728 = vld [vmem:[#allocation3 + $0x118] sm:$0xff]
  %v4729 = vld [vmem:[#allocation3 + $0x120] sm:$0xff]
  %v4730 = vld [vmem:[#allocation3 + $0x128] sm:$0xff]
  %v4731 = vld [vmem:[#allocation3 + $0x130] sm:$0xff]
  %v4732 = vld [vmem:[#allocation3 + $0x138] sm:$0xff]
  %v4733 = vld [vmem:[#allocation3 + $0x140] sm:$0xff]
  %v4734 = vld [vmem:[#allocation3 + $0x148] sm:$0xff]
  %v4735 = vld [vmem:[#allocation3 + $0x150] sm:$0xff]
  %v4736 = vld [vmem:[#allocation3 + $0x158] sm:$0xff]
  %v4737 = vld [vmem:[#allocation3 + $0x160] sm:$0xff]
  %v4738 = vld [vmem:[#allocation3 + $0x168] sm:$0xff]
  %v4739 = vld [vmem:[#allocation3 + $0x170] sm:$0xff]
  %v4740 = vld [vmem:[#allocation3 + $0x178] sm:$0xff]
  %v4741 = vld [vmem:[#allocation3 + $0x180] sm:$0xff]
  %v4742 = vld [vmem:[#allocation3 + $0x188] sm:$0xff]
  %v4743 = vld [vmem:[#allocation3 + $0x190] sm:$0xff]
  %v4744 = vld [vmem:[#allocation3 + $0x198] sm:$0xff]
  %v4745 = vld [vmem:[#allocation3 + $0x1a0] sm:$0xff]
  %v4746 = vld [vmem:[#allocation3 + $0x1a8] sm:$0xff]
  %v4747 = vld [vmem:[#allocation3 + $0x1b0] sm:$0xff]
  %v4748 = vld [vmem:[#allocation3 + $0x1b8] sm:$0xff]
  %v4749 = vld [vmem:[#allocation3 + $0x1c0] sm:$0xff]
  %v4750 = vld [vmem:[#allocation3 + $0x1c8] sm:$0xff]
  %v4751 = vld [vmem:[#allocation3 + $0x1d0] sm:$0xff]
  %v4752 = vld [vmem:[#allocation3 + $0x1d8] sm:$0xff]
  %v4753 = vld [vmem:[#allocation3 + $0x1e0] sm:$0xff]
  %v4754 = vld [vmem:[#allocation3 + $0x1e8] sm:$0xff]
  %v4755 = vld [vmem:[#allocation3 + $0x1f0] sm:$0xff]
  %v4756 = vld [vmem:[#allocation3 + $0x1f8] sm:$0xff]
  %v4757 = vld [vmem:[#allocation3 + $0x200] sm:$0xff]
  %v4758 = vld [vmem:[#allocation3 + $0x208] sm:$0xff]
  %v4759 = vld [vmem:[#allocation3 + $0x210] sm:$0xff]
  %v4760 = vld [vmem:[#allocation3 + $0x218] sm:$0xff]
  %v4761 = vld [vmem:[#allocation3 + $0x220] sm:$0xff]
  %v4762 = vld [vmem:[#allocation3 + $0x228] sm:$0xff]
  %v4763 = vld [vmem:[#allocation3 + $0x230] sm:$0xff]
  %v4764 = vld [vmem:[#allocation3 + $0x238] sm:$0xff]
  %v4765 = vld [vmem:[%s10] sm:$0xff]
  %v4766 = vld [vmem:[%s10 + $0x8] sm:$0xff]
  %v4767 = vld [vmem:[%s10 + $0x10] sm:$0xff]
  %v4768 = vld [vmem:[%s10 + $0x18] sm:$0xff]
  %4770 = vset.pattern.permute.xlu0 0
  %4771 = vperm.xlu0 %4770, %v4765
  %v4772 = vpop.permute.xlu0 %4771
  %4775 = vset.pattern.permute.xlu0 0
  %4776 = vperm.xlu0 %4775, %v4766
  %v4777 = vpop.permute.xlu0 %4776
  %4780 = vset.pattern.permute.xlu0 0
  %4781 = vperm.xlu0 %4780, %v4767
  %v4782 = vpop.permute.xlu0 %4781
  %4785 = vset.pattern.permute.xlu0 0
  %4786 = vperm.xlu0 %4785, %v4768
  %v4787 = vpop.permute.xlu0 %4786
  %v4790 = vsel %vm438, %v4683, 0
  %v4793 = vsel %vm438, %v4686, 0
  %v4796 = vsel %vm438, %v4689, 0
  %v4799 = vsel %vm438, %v4692, 0
  %4801 = vmatprep.subr.mxu0 %v4724
  %4802 = vmatpush1.msra.mxu0 %v4723
  %4803 = vmatprep.subr.mxu0 %v4722
  %4804 = vmatpush1.msra.mxu0 %v4721
  %4805 = vmatprep.subr.mxu0 %v4720
  %4806 = vmatpush1.msra.mxu0 %v4719
  %4807 = vmatprep.subr.mxu0 %v4718
  %4808 = vmatpush1.msra.mxu0 %v4717
  %4809 = vmatprep.subr.mxu0 %v4716
  %4810 = vmatpush1.msra.mxu0 %v4715
  %4811 = vmatprep.subr.mxu0 %v4714
  %4812 = vmatpush1.msra.mxu0 %v4713
  %4813 = vmatprep.subr.mxu0 %v4712
  %4814 = vmatpush1.msra.mxu0 %v4711
  %4815 = vmatprep.subr.mxu0 %v4710
  %4816 = vmatpush1.msra.mxu0 %v4709
  %4817 = vmatprep.subr.mxu0 %v4708
  %4818 = vmatpush1.msra.mxu0 %v4707
  %4819 = vmatprep.subr.mxu0 %v4706
  %4820 = vmatpush1.msra.mxu0 %v4705
  %4821 = vmatprep.subr.mxu0 %v4704
  %4822 = vmatpush1.msra.mxu0 %v4703
  %4823 = vmatprep.subr.mxu0 %v4702
  %4824 = vmatpush1.msra.mxu0 %v4701
  %4825 = vmatprep.subr.mxu0 %v4700
  %4826 = vmatpush1.msra.mxu0 %v4699
  %4827 = vmatprep.subr.mxu0 %v4698
  %4828 = vmatpush1.msra.mxu0 %v4697
  %4829 = vmatprep.subr.mxu0 %v4696
  %4830 = vmatpush1.msra.mxu0 %v4695
  %4831 = vmatprep.subr.mxu0 %v4694
  %4832 = vmatpush1.msra.mxu0 %v4693
  %4833 = vmatprep.subr.mxu0 %v4756
  %4834 = vmatpush2.msra.mxu0 %v4755
  %4835 = vmatprep.subr.mxu0 %v4754
  %4836 = vmatpush2.msra.mxu0 %v4753
  %4837 = vmatprep.subr.mxu0 %v4752
  %4838 = vmatpush2.msra.mxu0 %v4751
  %4839 = vmatprep.subr.mxu0 %v4750
  %4840 = vmatpush2.msra.mxu0 %v4749
  %4841 = vmatprep.subr.mxu0 %v4748
  %4842 = vmatpush2.msra.mxu0 %v4747
  %4843 = vmatprep.subr.mxu0 %v4746
  %4844 = vmatpush2.msra.mxu0 %v4745
  %4845 = vmatprep.subr.mxu0 %v4744
  %4846 = vmatpush2.msra.mxu0 %v4743
  %4847 = vmatprep.subr.mxu0 %v4742
  %4848 = vmatpush2.msra.mxu0 %v4741
  %4849 = vmatprep.subr.mxu0 %v4740
  %4850 = vmatpush2.msra.mxu0 %v4739
  %4851 = vmatprep.subr.mxu0 %v4738
  %4852 = vmatpush2.msra.mxu0 %v4737
  %4853 = vmatprep.subr.mxu0 %v4736
  %4854 = vmatpush2.msra.mxu0 %v4735
  %4855 = vmatprep.subr.mxu0 %v4734
  %4856 = vmatpush2.msra.mxu0 %v4733
  %4857 = vmatprep.subr.mxu0 %v4732
  %4858 = vmatpush2.msra.mxu0 %v4731
  %4859 = vmatprep.subr.mxu0 %v4730
  %4860 = vmatpush2.msra.mxu0 %v4729
  %4861 = vmatprep.subr.mxu0 %v4728
  %4862 = vmatpush2.msra.mxu0 %v4727
  %4863 = vmatprep.subr.mxu0 %v4726
  %4864 = vmatpush2.msra.mxu0 %v4725
  %4865 = vmatprep.mubr.f32.mxu0 %v4682
  %4866 = vmatmul.mubr.f32.gmra.mxu0 %v4681
  %v4867 = vpop.f32.mrf.mxu0
  %v4868 = vadd.f32 %v4772, %v4867
  %v4869 = vpop.f32.mrf.mxu0
  %v4870 = vadd.f32 %v4772, %v4869
  %4871 = vmatprep.mubr.f32.mxu0 %v4685
  %4872 = vmatmul.mubr.f32.gmra.mxu0 %v4684
  %v4873 = vpop.f32.mrf.mxu0
  %v4874 = vadd.f32 %v4777, %v4873
  %v4875 = vpop.f32.mrf.mxu0
  %v4876 = vadd.f32 %v4777, %v4875
  %4877 = vmatprep.mubr.f32.mxu0 %v4688
  %4878 = vmatmul.mubr.f32.gmra.mxu0 %v4687
  %v4879 = vpop.f32.mrf.mxu0
  %v4880 = vadd.f32 %v4782, %v4879
  %v4881 = vpop.f32.mrf.mxu0
  %v4882 = vadd.f32 %v4782, %v4881
  %4883 = vmatprep.mubr.f32.mxu0 %v4691
  %4884 = vmatmul.mubr.f32.gmra.mxu0 %v4690
  %v4885 = vpop.f32.mrf.mxu0
  %v4886 = vadd.f32 %v4787, %v4885
  %v4887 = vpop.f32.mrf.mxu0
  %v4888 = vadd.f32 %v4787, %v4887
  %4889 = vdwg.mxu0
  %4890 = vmatprep.subr.mxu0 0.0
  %4891 = vmatpush1.msra.mxu0 0.0
  %4892 = vmatprep.subr.mxu0 0.0
  %4893 = vmatpush1.msra.mxu0 0.0
  %4894 = vmatprep.subr.mxu0 0.0
  %4895 = vmatpush1.msra.mxu0 0.0
  %4896 = vmatprep.subr.mxu0 0.0
  %4897 = vmatpush1.msra.mxu0 0.0
  %4898 = vmatprep.subr.mxu0 0.0
  %4899 = vmatpush1.msra.mxu0 0.0
  %4900 = vmatprep.subr.mxu0 0.0
  %4901 = vmatpush1.msra.mxu0 0.0
  %4902 = vmatprep.subr.mxu0 0.0
  %4903 = vmatpush1.msra.mxu0 0.0
  %4904 = vmatprep.subr.mxu0 0.0
  %4905 = vmatpush1.msra.mxu0 0.0
  %4906 = vmatprep.subr.mxu0 0.0
  %4907 = vmatpush1.msra.mxu0 0.0
  %4908 = vmatprep.subr.mxu0 0.0
  %4909 = vmatpush1.msra.mxu0 0.0
  %4910 = vmatprep.subr.mxu0 0.0
  %4911 = vmatpush1.msra.mxu0 0.0
  %4912 = vmatprep.subr.mxu0 0.0
  %4913 = vmatpush1.msra.mxu0 0.0
  %4914 = vmatprep.subr.mxu0 %v4764
  %4915 = vmatpush1.msra.mxu0 %v4763
  %4916 = vmatprep.subr.mxu0 %v4762
  %4917 = vmatpush1.msra.mxu0 %v4761
  %4918 = vmatprep.subr.mxu0 %v4760
  %4919 = vmatpush1.msra.mxu0 %v4759
  %4920 = vmatprep.subr.mxu0 %v4758
  %4921 = vmatpush1.msra.mxu0 %v4757
  %4922 = vmatprep.subr.mxu0 0.0
  %4923 = vmatpush2.msra.mxu0 0.0
  %4924 = vmatprep.subr.mxu0 0.0
  %4925 = vmatpush2.msra.mxu0 0.0
  %4926 = vmatprep.subr.mxu0 0.0
  %4927 = vmatpush2.msra.mxu0 0.0
  %4928 = vmatprep.subr.mxu0 0.0
  %4929 = vmatpush2.msra.mxu0 0.0
  %4930 = vmatprep.subr.mxu0 0.0
  %4931 = vmatpush2.msra.mxu0 0.0
  %4932 = vmatprep.subr.mxu0 0.0
  %4933 = vmatpush2.msra.mxu0 0.0
  %4934 = vmatprep.subr.mxu0 0.0
  %4935 = vmatpush2.msra.mxu0 0.0
  %4936 = vmatprep.subr.mxu0 0.0
  %4937 = vmatpush2.msra.mxu0 0.0
  %4938 = vmatprep.subr.mxu0 0.0
  %4939 = vmatpush2.msra.mxu0 0.0
  %4940 = vmatprep.subr.mxu0 0.0
  %4941 = vmatpush2.msra.mxu0 0.0
  %4942 = vmatprep.subr.mxu0 0.0
  %4943 = vmatpush2.msra.mxu0 0.0
  %4944 = vmatprep.subr.mxu0 0.0
  %4945 = vmatpush2.msra.mxu0 0.0
  %4946 = vmatprep.subr.mxu0 0.0
  %4947 = vmatpush2.msra.mxu0 0.0
  %4948 = vmatprep.subr.mxu0 0.0
  %4949 = vmatpush2.msra.mxu0 0.0
  %4950 = vmatprep.subr.mxu0 0.0
  %4951 = vmatpush2.msra.mxu0 0.0
  %4952 = vmatprep.subr.mxu0 0.0
  %4953 = vmatpush2.msra.mxu0 0.0
  %4954 = vmatprep.mubr.f32.mxu0 0.0
  %4955 = vmatmul.mubr.f32.gmra.mxu0 %v4790
  %v4956 = vpop.f32.mrf.mxu0
  %v4957 = vadd.f32 %v4868, %v4956
  %v4958 = vpop.f32.mrf.mxu0
  %v4959 = vadd.f32 %v4870, %v4958
  %4960 = vmatprep.mubr.f32.mxu0 0.0
  %4961 = vmatmul.mubr.f32.gmra.mxu0 %v4793
  %v4962 = vpop.f32.mrf.mxu0
  %v4963 = vadd.f32 %v4874, %v4962
  %v4964 = vpop.f32.mrf.mxu0
  %v4965 = vadd.f32 %v4876, %v4964
  %4966 = vmatprep.mubr.f32.mxu0 0.0
  %4967 = vmatmul.mubr.f32.gmra.mxu0 %v4796
  %v4968 = vpop.f32.mrf.mxu0
  %v4969 = vadd.f32 %v4880, %v4968
  %v4970 = vpop.f32.mrf.mxu0
  %v4971 = vadd.f32 %v4882, %v4970
  %4972 = vmatprep.mubr.f32.mxu0 0.0
  %4973 = vmatmul.mubr.f32.gmra.mxu0 %v4799
  %v4974 = vpop.f32.mrf.mxu0
  %v4975 = vadd.f32 %v4886, %v4974
  %v4976 = vpop.f32.mrf.mxu0
  %v4977 = vadd.f32 %v4888, %v4976
  %4978 = vdwg.mxu0
  %4983 = vrot.lane.b32.xlu0 %v3006, 17
  %v4984 = vpop.permute.xlu0 %4983
  %4985 = vrot.lane.b32.xlu0 %v3007, 17
  %v4986 = vpop.permute.xlu0 %4985
  %4987 = vrot.lane.b32.xlu0 %v3008, 17
  %v4988 = vpop.permute.xlu0 %4987
  %4989 = vrot.lane.b32.xlu0 %v3009, 17
  %v4990 = vpop.permute.xlu0 %4989
  %v4991 = vsel %vm53, %v4984, %v4986
  %v4992 = vsel %vm53, %v4988, %v4990
  %4999 = vst.msk [vmem:[#allocation2] sm:$0xff] %vm159, %v4984
  %5000 = vst [vmem:[#allocation2 + $0x8] sm:$0xff] %v4991
  %5001 = vst.msk [vmem:[#allocation2 + $0x10] sm:$0xff] %vm53, %v4986
  %5002 = vst.msk [vmem:[#allocation2 + $0x18] sm:$0xff] %vm159, %v4988
  %5003 = vst [vmem:[#allocation2 + $0x20] sm:$0xff] %v4992
  %5004 = vst.msk [vmem:[#allocation2 + $0x28] sm:$0xff] %vm53, %v4990
  %v5005 = vld [vmem:[#allocation2] sm:$0xff]
  %v5006 = vld [vmem:[#allocation2 + $0x8] sm:$0xff]
  %v5007 = vld [vmem:[#allocation2 + $0x18] sm:$0xff]
  %v5008 = vld [vmem:[#allocation2 + $0x20] sm:$0xff]
  %v5009 = vmul.f32 %v5005, %v174
  %v5010 = vmul.f32 %v5006, %v178
  %v5011 = vmul.f32 %v5007, %v174
  %v5012 = vmul.f32 %v5008, %v178
  %5013 = vst [vmem:[#allocation3] sm:$0xff] %v5009
  %5014 = vst [vmem:[#allocation3 + $0x8] sm:$0xff] %v5010
  %5015 = vst [vmem:[#allocation3 + $0x10] sm:$0xff] %v5011
  %5016 = vst [vmem:[#allocation3 + $0x18] sm:$0xff] %v5012
  %v5017 = vld [vmem:[#allocation2] sm:$0xff]
  %v5018 = vld [vmem:[#allocation2 + $0x8] sm:$0xff]
  %v5019 = vld [vmem:[#allocation2 + $0x10] sm:$0xff]
  %v5020 = vld [vmem:[#allocation2 + $0x18] sm:$0xff]
  %v5021 = vld [vmem:[#allocation2 + $0x20] sm:$0xff]
  %v5022 = vld [vmem:[#allocation2 + $0x28] sm:$0xff]
  %5029 = vrot.lane.b32.xlu0 %v5017, 127
  %v5030 = vpop.permute.xlu0 %5029
  %5031 = vrot.lane.b32.xlu0 %v5018, 127
  %v5032 = vpop.permute.xlu0 %5031
  %5033 = vrot.lane.b32.xlu0 %v5019, 127
  %v5034 = vpop.permute.xlu0 %5033
  %5035 = vrot.lane.b32.xlu0 %v5020, 127
  %v5036 = vpop.permute.xlu0 %5035
  %5037 = vrot.lane.b32.xlu0 %v5021, 127
  %v5038 = vpop.permute.xlu0 %5037
  %5039 = vrot.lane.b32.xlu0 %v5022, 127
  %v5040 = vpop.permute.xlu0 %5039
  %v5041 = vsel %vm213, %v5030, %v5032
  %v5042 = vsel %vm213, %v5032, %v5034
  %v5043 = vsel %vm213, %v5036, %v5038
  %v5044 = vsel %vm213, %v5038, %v5040
  %5049 = vst [vmem:[#allocation3 + $0x20] sm:$0xff] %v5041
  %5050 = vst [vmem:[#allocation3 + $0x28] sm:$0xff] %v5042
  %5051 = vst [vmem:[#allocation3 + $0x30] sm:$0xff] %v5043
  %5052 = vst [vmem:[#allocation3 + $0x38] sm:$0xff] %v5044
  %v5053 = vld [vmem:[#allocation2] sm:$0xff]
  %v5054 = vld [vmem:[#allocation2 + $0x8] sm:$0xff]
  %v5055 = vld [vmem:[#allocation2 + $0x10] sm:$0xff]
  %v5056 = vld [vmem:[#allocation2 + $0x18] sm:$0xff]
  %v5057 = vld [vmem:[#allocation2 + $0x20] sm:$0xff]
  %v5058 = vld [vmem:[#allocation2 + $0x28] sm:$0xff]
  %v5059 = vmul.f32 %v5053, %v242
  %v5060 = vmul.f32 %v5054, %v246
  %v5061 = vmul.f32 %v5055, %v244
  %v5062 = vmul.f32 %v5056, %v242
  %v5063 = vmul.f32 %v5057, %v246
  %v5064 = vmul.f32 %v5058, %v244
  %5071 = vrot.lane.b32.xlu0 %v5059, 126
  %v5072 = vpop.permute.xlu0 %5071
  %5073 = vrot.lane.b32.xlu0 %v5060, 126
  %v5074 = vpop.permute.xlu0 %5073
  %5075 = vrot.lane.b32.xlu0 %v5061, 126
  %v5076 = vpop.permute.xlu0 %5075
  %5077 = vrot.lane.b32.xlu0 %v5062, 126
  %v5078 = vpop.permute.xlu0 %5077
  %5079 = vrot.lane.b32.xlu0 %v5063, 126
  %v5080 = vpop.permute.xlu0 %5079
  %5081 = vrot.lane.b32.xlu0 %v5064, 126
  %v5082 = vpop.permute.xlu0 %5081
  %v5083 = vsel %vm274, %v5072, %v5074
  %v5084 = vsel %vm274, %v5074, %v5076
  %v5085 = vsel %vm274, %v5078, %v5080
  %v5086 = vsel %vm274, %v5080, %v5082
  %5091 = vst [vmem:[#allocation3 + $0x40] sm:$0xff] %v5083
  %5092 = vst [vmem:[#allocation3 + $0x48] sm:$0xff] %v5084
  %5093 = vst [vmem:[#allocation3 + $0x50] sm:$0xff] %v5085
  %5094 = vst [vmem:[#allocation3 + $0x58] sm:$0xff] %v5086
  %v5095 = vld [vmem:[#allocation2] sm:$0xff]
  %v5096 = vld [vmem:[#allocation2 + $0x8] sm:$0xff]
  %v5097 = vld [vmem:[#allocation2 + $0x10] sm:$0xff]
  %v5098 = vld [vmem:[#allocation2 + $0x18] sm:$0xff]
  %v5099 = vld [vmem:[#allocation2 + $0x20] sm:$0xff]
  %v5100 = vld [vmem:[#allocation2 + $0x28] sm:$0xff]
  %v5101 = vmul.f32 %v5095, %v294
  %v5102 = vmul.f32 %v5096, %v298
  %v5103 = vmul.f32 %v5097, %v296
  %v5104 = vmul.f32 %v5098, %v294
  %v5105 = vmul.f32 %v5099, %v298
  %v5106 = vmul.f32 %v5100, %v296
  %5113 = vrot.lane.b32.xlu0 %v5101, 112
  %v5114 = vpop.permute.xlu0 %5113
  %5115 = vrot.lane.b32.xlu0 %v5102, 112
  %v5116 = vpop.permute.xlu0 %5115
  %5117 = vrot.lane.b32.xlu0 %v5103, 112
  %v5118 = vpop.permute.xlu0 %5117
  %5119 = vrot.lane.b32.xlu0 %v5104, 112
  %v5120 = vpop.permute.xlu0 %5119
  %5121 = vrot.lane.b32.xlu0 %v5105, 112
  %v5122 = vpop.permute.xlu0 %5121
  %5123 = vrot.lane.b32.xlu0 %v5106, 112
  %v5124 = vpop.permute.xlu0 %5123
  %v5125 = vsel %vm326, %v5114, %v5116
  %v5126 = vsel %vm326, %v5116, %v5118
  %v5127 = vsel %vm326, %v5120, %v5122
  %v5128 = vsel %vm326, %v5122, %v5124
  %5133 = vst [vmem:[#allocation3 + $0x60] sm:$0xff] %v5125
  %5134 = vst [vmem:[#allocation3 + $0x68] sm:$0xff] %v5126
  %5135 = vst [vmem:[#allocation3 + $0x70] sm:$0xff] %v5127
  %5136 = vst [vmem:[#allocation3 + $0x78] sm:$0xff] %v5128
  %v5137 = vld [vmem:[#allocation2] sm:$0xff]
  %v5138 = vld [vmem:[#allocation2 + $0x8] sm:$0xff]
  %v5139 = vld [vmem:[#allocation2 + $0x10] sm:$0xff]
  %v5140 = vld [vmem:[#allocation2 + $0x18] sm:$0xff]
  %v5141 = vld [vmem:[#allocation2 + $0x20] sm:$0xff]
  %v5142 = vld [vmem:[#allocation2 + $0x28] sm:$0xff]
  %5149 = vrot.lane.b32.xlu0 %v5137, 111
  %v5150 = vpop.permute.xlu0 %5149
  %5151 = vrot.lane.b32.xlu0 %v5138, 111
  %v5152 = vpop.permute.xlu0 %5151
  %5153 = vrot.lane.b32.xlu0 %v5139, 111
  %v5154 = vpop.permute.xlu0 %5153
  %5155 = vrot.lane.b32.xlu0 %v5140, 111
  %v5156 = vpop.permute.xlu0 %5155
  %5157 = vrot.lane.b32.xlu0 %v5141, 111
  %v5158 = vpop.permute.xlu0 %5157
  %5159 = vrot.lane.b32.xlu0 %v5142, 111
  %v5160 = vpop.permute.xlu0 %5159
  %v5161 = vsel %vm363, %v5150, %v5152
  %v5162 = vsel %vm363, %v5152, %v5154
  %v5163 = vsel %vm363, %v5156, %v5158
  %v5164 = vsel %vm363, %v5158, %v5160
  %5169 = vst [vmem:[#allocation3 + $0x80] sm:$0xff] %v5161
  %5170 = vst [vmem:[#allocation3 + $0x88] sm:$0xff] %v5162
  %5171 = vst [vmem:[#allocation3 + $0x90] sm:$0xff] %v5163
  %5172 = vst [vmem:[#allocation3 + $0x98] sm:$0xff] %v5164
  %v5173 = vld [vmem:[#allocation2] sm:$0xff]
  %v5174 = vld [vmem:[#allocation2 + $0x8] sm:$0xff]
  %v5175 = vld [vmem:[#allocation2 + $0x10] sm:$0xff]
  %v5176 = vld [vmem:[#allocation2 + $0x18] sm:$0xff]
  %v5177 = vld [vmem:[#allocation2 + $0x20] sm:$0xff]
  %v5178 = vld [vmem:[#allocation2 + $0x28] sm:$0xff]
  %v5179 = vmul.f32 %v5173, %v383
  %v5180 = vmul.f32 %v5174, %v387
  %v5181 = vmul.f32 %v5175, %v385
  %v5182 = vmul.f32 %v5176, %v383
  %v5183 = vmul.f32 %v5177, %v387
  %v5184 = vmul.f32 %v5178, %v385
  %5191 = vrot.lane.b32.xlu0 %v5179, 110
  %v5192 = vpop.permute.xlu0 %5191
  %5193 = vrot.lane.b32.xlu0 %v5180, 110
  %v5194 = vpop.permute.xlu0 %5193
  %5195 = vrot.lane.b32.xlu0 %v5181, 110
  %v5196 = vpop.permute.xlu0 %5195
  %5197 = vrot.lane.b32.xlu0 %v5182, 110
  %v5198 = vpop.permute.xlu0 %5197
  %5199 = vrot.lane.b32.xlu0 %v5183, 110
  %v5200 = vpop.permute.xlu0 %5199
  %5201 = vrot.lane.b32.xlu0 %v5184, 110
  %v5202 = vpop.permute.xlu0 %5201
  %v5203 = vsel %vm415, %v5192, %v5194
  %v5204 = vsel %vm415, %v5194, %v5196
  %v5205 = vsel %vm415, %v5198, %v5200
  %v5206 = vsel %vm415, %v5200, %v5202
  %5211 = vst [vmem:[#allocation3 + $0xa0] sm:$0xff] %v5203
  %5212 = vst [vmem:[#allocation3 + $0xa8] sm:$0xff] %v5204
  %5213 = vst [vmem:[#allocation3 + $0xb0] sm:$0xff] %v5205
  %5214 = vst [vmem:[#allocation3 + $0xb8] sm:$0xff] %v5206
  %v5215 = vld [vmem:[#allocation2] sm:$0xff]
  %v5216 = vld [vmem:[#allocation2 + $0x8] sm:$0xff]
  %v5217 = vld [vmem:[#allocation2 + $0x10] sm:$0xff]
  %v5218 = vld [vmem:[#allocation2 + $0x18] sm:$0xff]
  %v5219 = vld [vmem:[#allocation2 + $0x20] sm:$0xff]
  %v5220 = vld [vmem:[#allocation2 + $0x28] sm:$0xff]
  %v5221 = vmul.f32 %v5215, %v435
  %v5222 = vmul.f32 %v5216, %v439
  %v5223 = vmul.f32 %v5217, %v437
  %v5224 = vmul.f32 %v5218, %v435
  %v5225 = vmul.f32 %v5219, %v439
  %v5226 = vmul.f32 %v5220, %v437
  %5233 = vrot.lane.b32.xlu0 %v5221, 96
  %v5234 = vpop.permute.xlu0 %5233
  %5235 = vrot.lane.b32.xlu0 %v5222, 96
  %v5236 = vpop.permute.xlu0 %5235
  %5237 = vrot.lane.b32.xlu0 %v5223, 96
  %v5238 = vpop.permute.xlu0 %5237
  %5239 = vrot.lane.b32.xlu0 %v5224, 96
  %v5240 = vpop.permute.xlu0 %5239
  %5241 = vrot.lane.b32.xlu0 %v5225, 96
  %v5242 = vpop.permute.xlu0 %5241
  %5243 = vrot.lane.b32.xlu0 %v5226, 96
  %v5244 = vpop.permute.xlu0 %5243
  %v5245 = vsel %vm467, %v5234, %v5236
  %v5246 = vsel %vm467, %v5236, %v5238
  %v5247 = vsel %vm467, %v5240, %v5242
  %v5248 = vsel %vm467, %v5242, %v5244
  %5253 = vst [vmem:[#allocation3 + $0xc0] sm:$0xff] %v5245
  %5254 = vst [vmem:[#allocation3 + $0xc8] sm:$0xff] %v5246
  %5255 = vst [vmem:[#allocation3 + $0xd0] sm:$0xff] %v5247
  %5256 = vst [vmem:[#allocation3 + $0xd8] sm:$0xff] %v5248
  %v5257 = vld [vmem:[#allocation2] sm:$0xff]
  %v5258 = vld [vmem:[#allocation2 + $0x8] sm:$0xff]
  %v5259 = vld [vmem:[#allocation2 + $0x10] sm:$0xff]
  %v5260 = vld [vmem:[#allocation2 + $0x18] sm:$0xff]
  %v5261 = vld [vmem:[#allocation2 + $0x20] sm:$0xff]
  %v5262 = vld [vmem:[#allocation2 + $0x28] sm:$0xff]
  %5269 = vrot.lane.b32.xlu0 %v5257, 95
  %v5270 = vpop.permute.xlu0 %5269
  %5271 = vrot.lane.b32.xlu0 %v5258, 95
  %v5272 = vpop.permute.xlu0 %5271
  %5273 = vrot.lane.b32.xlu0 %v5259, 95
  %v5274 = vpop.permute.xlu0 %5273
  %5275 = vrot.lane.b32.xlu0 %v5260, 95
  %v5276 = vpop.permute.xlu0 %5275
  %5277 = vrot.lane.b32.xlu0 %v5261, 95
  %v5278 = vpop.permute.xlu0 %5277
  %5279 = vrot.lane.b32.xlu0 %v5262, 95
  %v5280 = vpop.permute.xlu0 %5279
  %v5281 = vsel %vm504, %v5270, %v5272
  %v5282 = vsel %vm504, %v5272, %v5274
  %v5283 = vsel %vm504, %v5276, %v5278
  %v5284 = vsel %vm504, %v5278, %v5280
  %5289 = vst [vmem:[#allocation3 + $0xe0] sm:$0xff] %v5281
  %5290 = vst [vmem:[#allocation3 + $0xe8] sm:$0xff] %v5282
  %5291 = vst [vmem:[#allocation3 + $0xf0] sm:$0xff] %v5283
  %5292 = vst [vmem:[#allocation3 + $0xf8] sm:$0xff] %v5284
  %v5293 = vld [vmem:[#allocation2] sm:$0xff]
  %v5294 = vld [vmem:[#allocation2 + $0x8] sm:$0xff]
  %v5295 = vld [vmem:[#allocation2 + $0x10] sm:$0xff]
  %v5296 = vld [vmem:[#allocation2 + $0x18] sm:$0xff]
  %v5297 = vld [vmem:[#allocation2 + $0x20] sm:$0xff]
  %v5298 = vld [vmem:[#allocation2 + $0x28] sm:$0xff]
  %v5299 = vmul.f32 %v5293, %v524
  %v5300 = vmul.f32 %v5294, %v528
  %v5301 = vmul.f32 %v5295, %v526
  %v5302 = vmul.f32 %v5296, %v524
  %v5303 = vmul.f32 %v5297, %v528
  %v5304 = vmul.f32 %v5298, %v526
  %5311 = vrot.lane.b32.xlu0 %v5299, 94
  %v5312 = vpop.permute.xlu0 %5311
  %5313 = vrot.lane.b32.xlu0 %v5300, 94
  %v5314 = vpop.permute.xlu0 %5313
  %5315 = vrot.lane.b32.xlu0 %v5301, 94
  %v5316 = vpop.permute.xlu0 %5315
  %5317 = vrot.lane.b32.xlu0 %v5302, 94
  %v5318 = vpop.permute.xlu0 %5317
  %5319 = vrot.lane.b32.xlu0 %v5303, 94
  %v5320 = vpop.permute.xlu0 %5319
  %5321 = vrot.lane.b32.xlu0 %v5304, 94
  %v5322 = vpop.permute.xlu0 %5321
  %v5323 = vsel %vm556, %v5312, %v5314
  %v5324 = vsel %vm556, %v5314, %v5316
  %v5325 = vsel %vm556, %v5318, %v5320
  %v5326 = vsel %vm556, %v5320, %v5322
  %5331 = vst [vmem:[#allocation3 + $0x100] sm:$0xff] %v5323
  %5332 = vst [vmem:[#allocation3 + $0x108] sm:$0xff] %v5324
  %5333 = vst [vmem:[#allocation3 + $0x110] sm:$0xff] %v5325
  %5334 = vst [vmem:[#allocation3 + $0x118] sm:$0xff] %v5326
  %v5335 = vld [vmem:[%s11] sm:$0xff]
  %v5336 = vld [vmem:[%s11 + $0x8] sm:$0xff]
  %v5337 = vld [vmem:[%s11 + $0x10] sm:$0xff]
  %v5338 = vld [vmem:[%s11 + $0x18] sm:$0xff]
  %v5339 = vld [vmem:[%s11 + $0x20] sm:$0xff]
  %v5340 = vld [vmem:[%s11 + $0x28] sm:$0xff]
  %v5341 = vld [vmem:[%s11 + $0x30] sm:$0xff]
  %v5342 = vld [vmem:[%s11 + $0x38] sm:$0xff]
  %v5343 = vld [vmem:[#allocation3] sm:$0xff]
  %v5344 = vld [vmem:[#allocation3 + $0x8] sm:$0xff]
  %v5345 = vld [vmem:[#allocation3 + $0x10] sm:$0xff]
  %v5346 = vld [vmem:[#allocation3 + $0x18] sm:$0xff]
  %v5347 = vld [vmem:[#allocation3 + $0x20] sm:$0xff]
  %v5348 = vld [vmem:[#allocation3 + $0x28] sm:$0xff]
  %v5349 = vld [vmem:[#allocation3 + $0x30] sm:$0xff]
  %v5350 = vld [vmem:[#allocation3 + $0x38] sm:$0xff]
  %v5351 = vld [vmem:[#allocation3 + $0x40] sm:$0xff]
  %v5352 = vld [vmem:[#allocation3 + $0x48] sm:$0xff]
  %v5353 = vld [vmem:[#allocation3 + $0x50] sm:$0xff]
  %v5354 = vld [vmem:[#allocation3 + $0x58] sm:$0xff]
  %v5355 = vld [vmem:[#allocation3 + $0x60] sm:$0xff]
  %v5356 = vld [vmem:[#allocation3 + $0x68] sm:$0xff]
  %v5357 = vld [vmem:[#allocation3 + $0x70] sm:$0xff]
  %v5358 = vld [vmem:[#allocation3 + $0x78] sm:$0xff]
  %v5359 = vld [vmem:[#allocation3 + $0x80] sm:$0xff]
  %v5360 = vld [vmem:[#allocation3 + $0x88] sm:$0xff]
  %v5361 = vld [vmem:[#allocation3 + $0x90] sm:$0xff]
  %v5362 = vld [vmem:[#allocation3 + $0x98] sm:$0xff]
  %v5363 = vld [vmem:[#allocation3 + $0xa0] sm:$0xff]
  %v5364 = vld [vmem:[#allocation3 + $0xa8] sm:$0xff]
  %v5365 = vld [vmem:[#allocation3 + $0xb0] sm:$0xff]
  %v5366 = vld [vmem:[#allocation3 + $0xb8] sm:$0xff]
  %v5367 = vld [vmem:[#allocation3 + $0xc0] sm:$0xff]
  %v5368 = vld [vmem:[#allocation3 + $0xc8] sm:$0xff]
  %v5369 = vld [vmem:[#allocation3 + $0xd0] sm:$0xff]
  %v5370 = vld [vmem:[#allocation3 + $0xd8] sm:$0xff]
  %v5371 = vld [vmem:[#allocation3 + $0xe0] sm:$0xff]
  %v5372 = vld [vmem:[#allocation3 + $0xe8] sm:$0xff]
  %v5373 = vld [vmem:[#allocation3 + $0xf0] sm:$0xff]
  %v5374 = vld [vmem:[#allocation3 + $0xf8] sm:$0xff]
  %v5375 = vld [vmem:[#allocation3 + $0x100] sm:$0xff]
  %v5376 = vld [vmem:[#allocation3 + $0x108] sm:$0xff]
  %v5377 = vld [vmem:[#allocation3 + $0x110] sm:$0xff]
  %v5378 = vld [vmem:[#allocation3 + $0x118] sm:$0xff]
  %v5379 = vld [vmem:[%s12] sm:$0xff]
  %v5380 = vld [vmem:[%s12 + $0x8] sm:$0xff]
  %v5381 = vld [vmem:[%s12 + $0x10] sm:$0xff]
  %v5382 = vld [vmem:[%s12 + $0x18] sm:$0xff]
  %5384 = vset.pattern.permute.xlu0 0
  %5385 = vperm.xlu0 %5384, %v5379
  %v5386 = vpop.permute.xlu0 %5385
  %5389 = vset.pattern.permute.xlu0 0
  %5390 = vperm.xlu0 %5389, %v5380
  %v5391 = vpop.permute.xlu0 %5390
  %5394 = vset.pattern.permute.xlu0 0
  %5395 = vperm.xlu0 %5394, %v5381
  %v5396 = vpop.permute.xlu0 %5395
  %5399 = vset.pattern.permute.xlu0 0
  %5400 = vperm.xlu0 %5399, %v5382
  %v5401 = vpop.permute.xlu0 %5400
  %v5404 = vsel %vm297, %v5336, 0
  %v5407 = vsel %vm297, %v5338, 0
  %v5410 = vsel %vm297, %v5340, 0
  %v5413 = vsel %vm297, %v5342, 0
  %5415 = vmatprep.subr.mxu0 %v5374
  %5416 = vmatpush1.msra.mxu0 %v5373
  %5417 = vmatprep.subr.mxu0 %v5372
  %5418 = vmatpush1.msra.mxu0 %v5371
  %5419 = vmatprep.subr.mxu0 %v5370
  %5420 = vmatpush1.msra.mxu0 %v5369
  %5421 = vmatprep.subr.mxu0 %v5368
  %5422 = vmatpush1.msra.mxu0 %v5367
  %5423 = vmatprep.subr.mxu0 %v5366
  %5424 = vmatpush1.msra.mxu0 %v5365
  %5425 = vmatprep.subr.mxu0 %v5364
  %5426 = vmatpush1.msra.mxu0 %v5363
  %5427 = vmatprep.subr.mxu0 %v5362
  %5428 = vmatpush1.msra.mxu0 %v5361
  %5429 = vmatprep.subr.mxu0 %v5360
  %5430 = vmatpush1.msra.mxu0 %v5359
  %5431 = vmatprep.subr.mxu0 %v5358
  %5432 = vmatpush1.msra.mxu0 %v5357
  %5433 = vmatprep.subr.mxu0 %v5356
  %5434 = vmatpush1.msra.mxu0 %v5355
  %5435 = vmatprep.subr.mxu0 %v5354
  %5436 = vmatpush1.msra.mxu0 %v5353
  %5437 = vmatprep.subr.mxu0 %v5352
  %5438 = vmatpush1.msra.mxu0 %v5351
  %5439 = vmatprep.subr.mxu0 %v5350
  %5440 = vmatpush1.msra.mxu0 %v5349
  %5441 = vmatprep.subr.mxu0 %v5348
  %5442 = vmatpush1.msra.mxu0 %v5347
  %5443 = vmatprep.subr.mxu0 %v5346
  %5444 = vmatpush1.msra.mxu0 %v5345
  %5445 = vmatprep.subr.mxu0 %v5344
  %5446 = vmatpush1.msra.mxu0 %v5343
  %5447 = vmatprep.subr.mxu0 0.0
  %5448 = vmatpush2.msra.mxu0 0.0
  %5449 = vmatprep.subr.mxu0 0.0
  %5450 = vmatpush2.msra.mxu0 0.0
  %5451 = vmatprep.subr.mxu0 0.0
  %5452 = vmatpush2.msra.mxu0 0.0
  %5453 = vmatprep.subr.mxu0 0.0
  %5454 = vmatpush2.msra.mxu0 0.0
  %5455 = vmatprep.subr.mxu0 0.0
  %5456 = vmatpush2.msra.mxu0 0.0
  %5457 = vmatprep.subr.mxu0 0.0
  %5458 = vmatpush2.msra.mxu0 0.0
  %5459 = vmatprep.subr.mxu0 0.0
  %5460 = vmatpush2.msra.mxu0 0.0
  %5461 = vmatprep.subr.mxu0 0.0
  %5462 = vmatpush2.msra.mxu0 0.0
  %5463 = vmatprep.subr.mxu0 0.0
  %5464 = vmatpush2.msra.mxu0 0.0
  %5465 = vmatprep.subr.mxu0 0.0
  %5466 = vmatpush2.msra.mxu0 0.0
  %5467 = vmatprep.subr.mxu0 0.0
  %5468 = vmatpush2.msra.mxu0 0.0
  %5469 = vmatprep.subr.mxu0 0.0
  %5470 = vmatpush2.msra.mxu0 0.0
  %5471 = vmatprep.subr.mxu0 0.0
  %5472 = vmatpush2.msra.mxu0 0.0
  %5473 = vmatprep.subr.mxu0 0.0
  %5474 = vmatpush2.msra.mxu0 0.0
  %5475 = vmatprep.subr.mxu0 %v5378
  %5476 = vmatpush2.msra.mxu0 %v5377
  %5477 = vmatprep.subr.mxu0 %v5376
  %5478 = vmatpush2.msra.mxu0 %v5375
  %5479 = vmatprep.mubr.f32.mxu0 %v5404
  %5480 = vmatmul.mubr.f32.gmra.mxu0 %v5335
  %v5481 = vpop.f32.mrf.mxu0
  %v5482 = vadd.f32 %v5386, %v5481
  %v5483 = vpop.f32.mrf.mxu0
  %v5484 = vadd.f32 %v5386, %v5483
  %5485 = vmatprep.mubr.f32.mxu0 %v5407
  %5486 = vmatmul.mubr.f32.gmra.mxu0 %v5337
  %v5487 = vpop.f32.mrf.mxu0
  %v5488 = vadd.f32 %v5391, %v5487
  %v5489 = vpop.f32.mrf.mxu0
  %v5490 = vadd.f32 %v5391, %v5489
  %5491 = vmatprep.mubr.f32.mxu0 %v5410
  %5492 = vmatmul.mubr.f32.gmra.mxu0 %v5339
  %v5493 = vpop.f32.mrf.mxu0
  %v5494 = vadd.f32 %v5396, %v5493
  %v5495 = vpop.f32.mrf.mxu0
  %v5496 = vadd.f32 %v5396, %v5495
  %5497 = vmatprep.mubr.f32.mxu0 %v5413
  %5498 = vmatmul.mubr.f32.gmra.mxu0 %v5341
  %v5499 = vpop.f32.mrf.mxu0
  %v5500 = vadd.f32 %v5401, %v5499
  %v5501 = vpop.f32.mrf.mxu0
  %v5502 = vadd.f32 %v5401, %v5501
  %5503 = vdwg.mxu0
  %v5504 = vadd.f32 %v5482, %v5484
  %5505 = vadd.xlane.f32.xlu0 %v5504
  %v5506 = vpop.xlane.xlu0 %5505
  %v5507 = vadd.f32 %v5488, %v5490
  %5508 = vadd.xlane.f32.xlu0 %v5507
  %v5509 = vpop.xlane.xlu0 %5508
  %v5510 = vadd.f32 %v5494, %v5496
  %5511 = vadd.xlane.f32.xlu0 %v5510
  %v5512 = vpop.xlane.xlu0 %5511
  %v5513 = vadd.f32 %v5500, %v5502
  %5514 = vadd.xlane.f32.xlu0 %v5513
  %v5515 = vpop.xlane.xlu0 %5514
  %v5516 = vmul.f32 %v5482, %v5482
  %v5517 = vmul.f32 %v5484, %v5484
  %v5518 = vmul.f32 %v5488, %v5488
  %v5519 = vmul.f32 %v5490, %v5490
  %v5520 = vmul.f32 %v5494, %v5494
  %v5521 = vmul.f32 %v5496, %v5496
  %v5522 = vmul.f32 %v5500, %v5500
  %v5523 = vmul.f32 %v5502, %v5502
  %v5524 = vadd.f32 %v5516, %v5517
  %5525 = vadd.xlane.f32.xlu0 %v5524
  %v5526 = vpop.xlane.xlu0 %5525
  %v5527 = vadd.f32 %v5518, %v5519
  %5528 = vadd.xlane.f32.xlu0 %v5527
  %v5529 = vpop.xlane.xlu0 %5528
  %v5530 = vadd.f32 %v5520, %v5521
  %5531 = vadd.xlane.f32.xlu0 %v5530
  %v5532 = vpop.xlane.xlu0 %5531
  %v5533 = vadd.f32 %v5522, %v5523
  %5534 = vadd.xlane.f32.xlu0 %v5533
  %v5535 = vpop.xlane.xlu0 %5534
  %v5536 = vld [vmem:[%s6] sm:$0xff]
  %v5537 = vld [vmem:[%s6 + $0x8] sm:$0xff]
  %v5538 = vld [vmem:[%s6 + $0x10] sm:$0xff]
  %v5539 = vld [vmem:[%s6 + $0x18] sm:$0xff]
  %v5541 = vsel %vm438, %v5536, 0
  %v5544 = vsel %vm438, %v5537, 0
  %v5547 = vsel %vm438, %v5538, 0
  %v5550 = vsel %vm438, %v5539, 0
  %5552 = vmatprep.subr.mxu0 0.0
  %5553 = vmatpush1.msra.mxu0 0.0
  %5554 = vmatprep.subr.mxu0 0.0
  %5555 = vmatpush1.msra.mxu0 0.0
  %5556 = vmatprep.subr.mxu0 0.0
  %5557 = vmatpush1.msra.mxu0 0.0
  %5558 = vmatprep.subr.mxu0 0.0
  %5559 = vmatpush1.msra.mxu0 0.0
  %5560 = vmatprep.subr.mxu0 0.0
  %5561 = vmatpush1.msra.mxu0 0.0
  %5562 = vmatprep.subr.mxu0 0.0
  %5563 = vmatpush1.msra.mxu0 0.0
  %5564 = vmatprep.subr.mxu0 0.0
  %5565 = vmatpush1.msra.mxu0 0.0
  %5566 = vmatprep.subr.mxu0 0.0
  %5567 = vmatpush1.msra.mxu0 0.0
  %5568 = vmatprep.subr.mxu0 0.0
  %5569 = vmatpush1.msra.mxu0 0.0
  %5570 = vmatprep.subr.mxu0 0.0
  %5571 = vmatpush1.msra.mxu0 0.0
  %5572 = vmatprep.subr.mxu0 0.0
  %5573 = vmatpush1.msra.mxu0 0.0
  %5574 = vmatprep.subr.mxu0 0.0
  %5575 = vmatpush1.msra.mxu0 0.0
  %5576 = vmatprep.subr.mxu0 0.0
  %5577 = vmatpush1.msra.mxu0 %v5515
  %5578 = vmatprep.subr.mxu0 0.0
  %5579 = vmatpush1.msra.mxu0 %v5512
  %5580 = vmatprep.subr.mxu0 0.0
  %5581 = vmatpush1.msra.mxu0 %v5509
  %5582 = vmatprep.subr.mxu0 0.0
  %5583 = vmatpush1.msra.mxu0 %v5506
  %5584 = vmatprep.subr.mxu0 0.0
  %5585 = vmatpush2.msra.mxu0 0.0
  %5586 = vmatprep.subr.mxu0 0.0
  %5587 = vmatpush2.msra.mxu0 0.0
  %5588 = vmatprep.subr.mxu0 0.0
  %5589 = vmatpush2.msra.mxu0 0.0
  %5590 = vmatprep.subr.mxu0 0.0
  %5591 = vmatpush2.msra.mxu0 0.0
  %5592 = vmatprep.subr.mxu0 0.0
  %5593 = vmatpush2.msra.mxu0 0.0
  %5594 = vmatprep.subr.mxu0 0.0
  %5595 = vmatpush2.msra.mxu0 0.0
  %5596 = vmatprep.subr.mxu0 0.0
  %5597 = vmatpush2.msra.mxu0 0.0
  %5598 = vmatprep.subr.mxu0 0.0
  %5599 = vmatpush2.msra.mxu0 0.0
  %5600 = vmatprep.subr.mxu0 0.0
  %5601 = vmatpush2.msra.mxu0 0.0
  %5602 = vmatprep.subr.mxu0 0.0
  %5603 = vmatpush2.msra.mxu0 0.0
  %5604 = vmatprep.subr.mxu0 0.0
  %5605 = vmatpush2.msra.mxu0 0.0
  %5606 = vmatprep.subr.mxu0 0.0
  %5607 = vmatpush2.msra.mxu0 0.0
  %5608 = vmatprep.subr.mxu0 0.0
  %5609 = vmatpush2.msra.mxu0 0.0
  %5610 = vmatprep.subr.mxu0 0.0
  %5611 = vmatpush2.msra.mxu0 0.0
  %5612 = vmatprep.subr.mxu0 0.0
  %5613 = vmatpush2.msra.mxu0 0.0
  %5614 = vmatprep.subr.mxu0 0.0
  %5615 = vmatpush2.msra.mxu0 0.0
  %5616 = vmatprep.mubr.f32.mxu0 0.0
  %5617 = vmatmul.mubr.f32.gmra.mxu0 %v5541
  %v5618 = vpop.f32.mrf.mxu0
  %v5619 = vadd.f32 0.0, %v5618
  %v5620 = vpop.f32.mrf.mxu0
  %5621 = vmatprep.mubr.f32.mxu0 0.0
  %5622 = vmatmul.mubr.f32.gmra.mxu0 %v5544
  %v5623 = vpop.f32.mrf.mxu0
  %v5624 = vadd.f32 0.0, %v5623
  %v5625 = vpop.f32.mrf.mxu0
  %5626 = vmatprep.mubr.f32.mxu0 0.0
  %5627 = vmatmul.mubr.f32.gmra.mxu0 %v5547
  %v5628 = vpop.f32.mrf.mxu0
  %v5629 = vadd.f32 0.0, %v5628
  %v5630 = vpop.f32.mrf.mxu0
  %5631 = vmatprep.mubr.f32.mxu0 0.0
  %5632 = vmatmul.mubr.f32.gmra.mxu0 %v5550
  %v5633 = vpop.f32.mrf.mxu0
  %v5634 = vadd.f32 0.0, %v5633
  %v5635 = vpop.f32.mrf.mxu0
  %5636 = vdwg.mxu0
  %5637 = vmatprep.subr.mxu0 0.0
  %5638 = vmatpush1.msra.mxu0 0.0
  %5639 = vmatprep.subr.mxu0 0.0
  %5640 = vmatpush1.msra.mxu0 0.0
  %5641 = vmatprep.subr.mxu0 0.0
  %5642 = vmatpush1.msra.mxu0 0.0
  %5643 = vmatprep.subr.mxu0 0.0
  %5644 = vmatpush1.msra.mxu0 0.0
  %5645 = vmatprep.subr.mxu0 0.0
  %5646 = vmatpush1.msra.mxu0 0.0
  %5647 = vmatprep.subr.mxu0 0.0
  %5648 = vmatpush1.msra.mxu0 0.0
  %5649 = vmatprep.subr.mxu0 0.0
  %5650 = vmatpush1.msra.mxu0 0.0
  %5651 = vmatprep.subr.mxu0 0.0
  %5652 = vmatpush1.msra.mxu0 0.0
  %5653 = vmatprep.subr.mxu0 0.0
  %5654 = vmatpush1.msra.mxu0 0.0
  %5655 = vmatprep.subr.mxu0 0.0
  %5656 = vmatpush1.msra.mxu0 0.0
  %5657 = vmatprep.subr.mxu0 0.0
  %5658 = vmatpush1.msra.mxu0 0.0
  %5659 = vmatprep.subr.mxu0 0.0
  %5660 = vmatpush1.msra.mxu0 0.0
  %5661 = vmatprep.subr.mxu0 0.0
  %5662 = vmatpush1.msra.mxu0 %v5535
  %5663 = vmatprep.subr.mxu0 0.0
  %5664 = vmatpush1.msra.mxu0 %v5532
  %5665 = vmatprep.subr.mxu0 0.0
  %5666 = vmatpush1.msra.mxu0 %v5529
  %5667 = vmatprep.subr.mxu0 0.0
  %5668 = vmatpush1.msra.mxu0 %v5526
  %5669 = vmatprep.subr.mxu0 0.0
  %5670 = vmatpush2.msra.mxu0 0.0
  %5671 = vmatprep.subr.mxu0 0.0
  %5672 = vmatpush2.msra.mxu0 0.0
  %5673 = vmatprep.subr.mxu0 0.0
  %5674 = vmatpush2.msra.mxu0 0.0
  %5675 = vmatprep.subr.mxu0 0.0
  %5676 = vmatpush2.msra.mxu0 0.0
  %5677 = vmatprep.subr.mxu0 0.0
  %5678 = vmatpush2.msra.mxu0 0.0
  %5679 = vmatprep.subr.mxu0 0.0
  %5680 = vmatpush2.msra.mxu0 0.0
  %5681 = vmatprep.subr.mxu0 0.0
  %5682 = vmatpush2.msra.mxu0 0.0
  %5683 = vmatprep.subr.mxu0 0.0
  %5684 = vmatpush2.msra.mxu0 0.0
  %5685 = vmatprep.subr.mxu0 0.0
  %5686 = vmatpush2.msra.mxu0 0.0
  %5687 = vmatprep.subr.mxu0 0.0
  %5688 = vmatpush2.msra.mxu0 0.0
  %5689 = vmatprep.subr.mxu0 0.0
  %5690 = vmatpush2.msra.mxu0 0.0
  %5691 = vmatprep.subr.mxu0 0.0
  %5692 = vmatpush2.msra.mxu0 0.0
  %5693 = vmatprep.subr.mxu0 0.0
  %5694 = vmatpush2.msra.mxu0 0.0
  %5695 = vmatprep.subr.mxu0 0.0
  %5696 = vmatpush2.msra.mxu0 0.0
  %5697 = vmatprep.subr.mxu0 0.0
  %5698 = vmatpush2.msra.mxu0 0.0
  %5699 = vmatprep.subr.mxu0 0.0
  %5700 = vmatpush2.msra.mxu0 0.0
  %5701 = vmatprep.mubr.f32.mxu0 0.0
  %5702 = vmatmul.mubr.f32.gmra.mxu0 %v5541
  %v5703 = vpop.f32.mrf.mxu0
  %v5704 = vadd.f32 0.0, %v5703
  %v5705 = vpop.f32.mrf.mxu0
  %5706 = vmatprep.mubr.f32.mxu0 0.0
  %5707 = vmatmul.mubr.f32.gmra.mxu0 %v5544
  %v5708 = vpop.f32.mrf.mxu0
  %v5709 = vadd.f32 0.0, %v5708
  %v5710 = vpop.f32.mrf.mxu0
  %5711 = vmatprep.mubr.f32.mxu0 0.0
  %5712 = vmatmul.mubr.f32.gmra.mxu0 %v5547
  %v5713 = vpop.f32.mrf.mxu0
  %v5714 = vadd.f32 0.0, %v5713
  %v5715 = vpop.f32.mrf.mxu0
  %5716 = vmatprep.mubr.f32.mxu0 0.0
  %5717 = vmatmul.mubr.f32.gmra.mxu0 %v5550
  %v5718 = vpop.f32.mrf.mxu0
  %v5719 = vadd.f32 0.0, %v5718
  %v5720 = vpop.f32.mrf.mxu0
  %5721 = vdwg.mxu0
  %v5722 = vmul.f32 %v5619, %v5619
  %v5723 = vmul.f32 %v5624, %v5624
  %v5724 = vmul.f32 %v5629, %v5629
  %v5725 = vmul.f32 %v5634, %v5634
  %v5726 = vsub.f32 %v5704, %v5722
  %v5727 = vsub.f32 %v5709, %v5723
  %v5728 = vsub.f32 %v5714, %v5724
  %v5729 = vsub.f32 %v5719, %v5725
  %v5730 = vadd.f32 %v5726, 1e-05
  %v5731 = vadd.f32 %v5727, 1e-05
  %v5732 = vadd.f32 %v5728, 1e-05
  %v5733 = vadd.f32 %v5729, 1e-05
  %v5734 = vrsqrt.pop %v5730
  %v5735 = vrsqrt.pop %v5731
  %v5736 = vrsqrt.pop %v5732
  %v5737 = vrsqrt.pop %v5733
  %5739 = vset.pattern.permute.xlu0 0
  %5740 = vperm.xlu0 %5739, %v5619
  %v5741 = vpop.permute.xlu0 %5740
  %5744 = vset.pattern.permute.xlu0 0
  %5745 = vperm.xlu0 %5744, %v5624
  %v5746 = vpop.permute.xlu0 %5745
  %5749 = vset.pattern.permute.xlu0 0
  %5750 = vperm.xlu0 %5749, %v5629
  %v5751 = vpop.permute.xlu0 %5750
  %5754 = vset.pattern.permute.xlu0 0
  %5755 = vperm.xlu0 %5754, %v5634
  %v5756 = vpop.permute.xlu0 %5755
  %v5758 = vsub.f32 %v5482, %v5741
  %v5759 = vsub.f32 %v5484, %v5741
  %v5760 = vsub.f32 %v5488, %v5746
  %v5761 = vsub.f32 %v5490, %v5746
  %v5762 = vsub.f32 %v5494, %v5751
  %v5763 = vsub.f32 %v5496, %v5751
  %v5764 = vsub.f32 %v5500, %v5756
  %v5765 = vsub.f32 %v5502, %v5756
  %5767 = vset.pattern.permute.xlu0 0
  %5768 = vperm.xlu0 %5767, %v5734
  %v5769 = vpop.permute.xlu0 %5768
  %5772 = vset.pattern.permute.xlu0 0
  %5773 = vperm.xlu0 %5772, %v5735
  %v5774 = vpop.permute.xlu0 %5773
  %5777 = vset.pattern.permute.xlu0 0
  %5778 = vperm.xlu0 %5777, %v5736
  %v5779 = vpop.permute.xlu0 %5778
  %5782 = vset.pattern.permute.xlu0 0
  %5783 = vperm.xlu0 %5782, %v5737
  %v5784 = vpop.permute.xlu0 %5783
  %v5786 = vmul.f32 %v5758, %v5769
  %v5787 = vmul.f32 %v5759, %v5769
  %v5788 = vmul.f32 %v5760, %v5774
  %v5789 = vmul.f32 %v5761, %v5774
  %v5790 = vmul.f32 %v5762, %v5779
  %v5791 = vmul.f32 %v5763, %v5779
  %v5792 = vmul.f32 %v5764, %v5784
  %v5793 = vmul.f32 %v5765, %v5784
  %v5794 = vld [vmem:[%s13] sm:$0xff]
  %v5795 = vld [vmem:[%s13 + $0x8] sm:$0xff]
  %v5796 = vld [vmem:[%s13 + $0x10] sm:$0xff]
  %v5797 = vld [vmem:[%s13 + $0x18] sm:$0xff]
  %5799 = vset.pattern.permute.xlu0 0
  %5800 = vperm.xlu0 %5799, %v5794
  %v5801 = vpop.permute.xlu0 %5800
  %5804 = vset.pattern.permute.xlu0 0
  %5805 = vperm.xlu0 %5804, %v5795
  %v5806 = vpop.permute.xlu0 %5805
  %5809 = vset.pattern.permute.xlu0 0
  %5810 = vperm.xlu0 %5809, %v5796
  %v5811 = vpop.permute.xlu0 %5810
  %5814 = vset.pattern.permute.xlu0 0
  %5815 = vperm.xlu0 %5814, %v5797
  %v5816 = vpop.permute.xlu0 %5815
  %v5818 = vmul.f32 %v5786, %v5801
  %v5819 = vmul.f32 %v5787, %v5801
  %v5820 = vmul.f32 %v5788, %v5806
  %v5821 = vmul.f32 %v5789, %v5806
  %v5822 = vmul.f32 %v5790, %v5811
  %v5823 = vmul.f32 %v5791, %v5811
  %v5824 = vmul.f32 %v5792, %v5816
  %v5825 = vmul.f32 %v5793, %v5816
  %v5826 = vld [vmem:[%s14] sm:$0xff]
  %v5827 = vld [vmem:[%s14 + $0x8] sm:$0xff]
  %v5828 = vld [vmem:[%s14 + $0x10] sm:$0xff]
  %v5829 = vld [vmem:[%s14 + $0x18] sm:$0xff]
  %5831 = vset.pattern.permute.xlu0 0
  %5832 = vperm.xlu0 %5831, %v5826
  %v5833 = vpop.permute.xlu0 %5832
  %5836 = vset.pattern.permute.xlu0 0
  %5837 = vperm.xlu0 %5836, %v5827
  %v5838 = vpop.permute.xlu0 %5837
  %5841 = vset.pattern.permute.xlu0 0
  %5842 = vperm.xlu0 %5841, %v5828
  %v5843 = vpop.permute.xlu0 %5842
  %5846 = vset.pattern.permute.xlu0 0
  %5847 = vperm.xlu0 %5846, %v5829
  %v5848 = vpop.permute.xlu0 %5847
  %v5850 = vadd.f32 %v5818, %v5833
  %v5851 = vadd.f32 %v5819, %v5833
  %v5852 = vadd.f32 %v5820, %v5838
  %v5853 = vadd.f32 %v5821, %v5838
  %v5854 = vadd.f32 %v5822, %v5843
  %v5855 = vadd.f32 %v5823, %v5843
  %v5856 = vadd.f32 %v5824, %v5848
  %v5857 = vadd.f32 %v5825, %v5848
  %v5858 = vadd.f32 %v4957, %v5850
  %v5859 = vadd.f32 %v4959, %v5851
  %v5860 = vadd.f32 %v4963, %v5852
  %v5861 = vadd.f32 %v4965, %v5853
  %v5862 = vadd.f32 %v4969, %v5854
  %v5863 = vadd.f32 %v4971, %v5855
  %v5864 = vadd.f32 %v4975, %v5856
  %v5865 = vadd.f32 %v4977, %v5857
  %s5866 = scalar_lea.vmem %s15, 64
  %5867 = vst [vmem:[%s5866] sm:$0xff] %v5858
  %5868 = vst [vmem:[%s5866 + $0x8] sm:$0xff] %v5859
  %5869 = vst [vmem:[%s5866 + $0x10] sm:$0xff] %v5860
  %5870 = vst [vmem:[%s5866 + $0x18] sm:$0xff] %v5861
  %5871 = vst [vmem:[%s5866 + $0x20] sm:$0xff] %v5862
  %5872 = vst [vmem:[%s5866 + $0x28] sm:$0xff] %v5863
  %5873 = vst [vmem:[%s5866 + $0x30] sm:$0xff] %v5864
  %5874 = vst [vmem:[%s5866 + $0x38] sm:$0xff] %v5865
  // Predicated region
  $region62: #{residual_conv_forward.1} parent=0 // pred_check
    _
  $region63: #{residual_conv_forward.1} parent=0 // pred_check_branch
    %5876 = sbr.rel (0) target = $region65
  $region64: #{residual_conv_forward.1} parent=0 // pred_region
    _
  $region65: #{residual_conv_forward.1} parent=0 // pred_fallthru
    _
  // Predicated region
  $region66: #{residual_conv_forward.1} parent=0 // pred_check
    _
  $region67: #{residual_conv_forward.1} parent=0 // pred_check_branch
    %5878 = sbr.rel (0) target = $region69
  $region68: #{residual_conv_forward.1} parent=0 // pred_region
    _
  $region69: #{residual_conv_forward.1} parent=0 // pred_fallthru
    _

</llo_original>
